<compile_context>
chip_gen: v5e
topology: v5e:2x2
jax: 0.10.0
libtpu: 0.0.40
codegen_flags: <defaults>
</compile_context>

<pallas_src>
import functools

import jax
import jax.numpy as jnp
from jax import lax
from jax.experimental import pallas as pl
from jax.experimental.pallas import tpu as pltpu


# ------------------------------ fused kernel ---------------------------------

def _gen_fused_kernel(x_ref, wf_ref, bf_ref, wm_ref, bm_ref, gm_ref, bt_ref,
                      wl_ref, bl_ref, o_ref, act_ref,
                      *, N, H, W, Cin, depth, eps, cout_pad):
    C = 64
    M = N * H * W
    inv_cnt = 1.0 / float(M)

    # Zero the padded activation scratch once; the 1-pixel border stays zero
    # for every layer (this IS the 'same' conv zero padding).
    act_ref[...] = jnp.zeros(act_ref.shape, act_ref.dtype)

    # ---- first layer: Conv3x3(Cin -> 64) + ReLU ------------------------------
    acc = jnp.zeros((M, C), jnp.float32)
    for t in range(9):
        dy, dx = t // 3, t % 3
        tap = x_ref[:, dy:dy + H, dx:dx + W, :].reshape(M, Cin)
        w_t = wf_ref[t]                                   # (Cin, 64) f32
        if Cin == 1:
            # Degenerate K=1: cheap VPU outer product instead of a K=1 matmul.
            acc = acc + tap * w_t
        else:
            acc = acc + jnp.dot(tap.astype(jnp.bfloat16),
                                w_t.astype(jnp.bfloat16),
                                preferred_element_type=jnp.float32)
    y0 = jnp.maximum(acc + bf_ref[...], 0.0)
    act_ref[:, 1:H + 1, 1:W + 1, :] = y0.reshape(N, H, W, C)

    # ---- mid layers: Conv3x3 + BatchNorm(batch stats) + ReLU -----------------
    def layer_body(l, carry):
        acc = jnp.zeros((M, C), jnp.float32)
        for t in range(9):
            dy, dx = t // 3, t % 3
            tap = act_ref[:, dy:dy + H, dx:dx + W, :].reshape(M, C)
            w_t = wm_ref[l * 9 + t]                       # (64, 64) bf16
            acc = acc + jnp.dot(tap.astype(jnp.bfloat16), w_t,
                                preferred_element_type=jnp.float32)
        z = acc + bm_ref[l]                               # pre-BN, f32
        mean = jnp.sum(z, axis=0, keepdims=True) * inv_cnt
        zc = z - mean
        var = jnp.sum(zc * zc, axis=0, keepdims=True) * inv_cnt  # biased var
        scale = gm_ref[l] * lax.rsqrt(var + eps)
        y = jnp.maximum(zc * scale + bt_ref[l], 0.0)
        act_ref[:, 1:H + 1, 1:W + 1, :] = y.reshape(N, H, W, C)
        return carry

    lax.fori_loop(0, depth, layer_body, 0)

    # ---- last layer: Conv3x3(64 -> 1), Cout zero-padded to cout_pad lanes ----
    acc = jnp.zeros((M, cout_pad), jnp.float32)
    for t in range(9):
        dy, dx = t // 3, t % 3
        tap = act_ref[:, dy:dy + H, dx:dx + W, :].reshape(M, C)
        acc = acc + jnp.dot(tap.astype(jnp.bfloat16), wl_ref[t],
                            preferred_element_type=jnp.float32)
    o_ref[...] = (acc + bl_ref[...]).reshape(N, H, W, cout_pad)


# --------------------------- Parameter init ----------------------------------

def init_gen_params(key, inch=1, depth=15):
    """Deterministic He-style init for conv stacks; BN affine near identity."""
    params = {"mid": []}

    def conv_init(k, cin, cout):
        kw, kb = jax.random.split(k)
        fan_in = 9 * cin
        w = jax.random.normal(kw, (3, 3, cin, cout), jnp.float32) * jnp.sqrt(
            2.0 / fan_in)
        b = 0.01 * jax.random.normal(kb, (cout,), jnp.float32)
        return w, b

    keys = jax.random.split(key, depth + 2)
    params["first"] = conv_init(keys[0], inch, 64)
    for i in range(depth):
        kw, kg, kbt = jax.random.split(keys[1 + i], 3)
        w, b = conv_init(kw, 64, 64)
        gamma = 1.0 + 0.1 * jax.random.normal(kg, (64,), jnp.float32)
        beta = 0.1 * jax.random.normal(kbt, (64,), jnp.float32)
        params["mid"].append((w, b, gamma, beta))
    params["last"] = conv_init(keys[-1], 64, 1)
    return params


# ------------------------------ Forward ---------------------------------------

def gen_forward(params, x_nchw, eps=1e-5):
    """Matches Gen.forward: x (N, inch, H, W) -> out (N, 1, H, W)."""
    N, Cin, H, W = x_nchw.shape
    depth = len(params["mid"])
    C = 64
    COUT_PAD = 8   # last-layer lanes; only channel 0 is real

    # NCHW -> NHWC, pre-pad spatially (removes all in-kernel padding for L0).
    x = jnp.transpose(x_nchw, (0, 2, 3, 1)).astype(jnp.float32)
    x_pad = jnp.pad(x, ((0, 0), (1, 1), (1, 1), (0, 0)))

    # Pack weights: tap index t = dy*3 + dx (row-major), channels in lanes.
    wf, bf = params["first"]
    wf2 = wf.reshape(9, Cin, C).astype(jnp.float32)
    bf2 = bf.reshape(1, C).astype(jnp.float32)

    wm = jnp.stack([w.reshape(9, C, C) for (w, _, _, _) in params["mid"]])
    wm = wm.reshape(depth * 9, C, C).astype(jnp.bfloat16)
    bm = jnp.stack([b.reshape(1, C) for (_, b, _, _) in params["mid"]])
    gm = jnp.stack([g.reshape(1, C) for (_, _, g, _) in params["mid"]])
    bt = jnp.stack([t.reshape(1, C) for (_, _, _, t) in params["mid"]])

    wl, bl = params["last"]
    wl2 = jnp.zeros((9, C, COUT_PAD), jnp.float32).at[:, :, :1].set(
        wl.reshape(9, C, 1)).astype(jnp.bfloat16)
    bl2 = jnp.zeros((1, COUT_PAD), jnp.float32).at[:, :1].set(bl.reshape(1, 1))

    kernel = functools.partial(
        _gen_fused_kernel, N=N, H=H, W=W, Cin=Cin, depth=depth,
        eps=float(eps), cout_pad=COUT_PAD)

    out = pl.pallas_call(
        kernel,
        out_shape=jax.ShapeDtypeStruct((N, H, W, COUT_PAD), jnp.float32),
        grid=(1,),
        in_specs=[
            pl.BlockSpec((N, H + 2, W + 2, Cin), lambda i: (0, 0, 0, 0)),
            pl.BlockSpec((9, Cin, C), lambda i: (0, 0, 0)),
            pl.BlockSpec((1, C), lambda i: (0, 0)),
            pl.BlockSpec((depth * 9, C, C), lambda i: (0, 0, 0)),
            pl.BlockSpec((depth, 1, C), lambda i: (0, 0, 0)),
            pl.BlockSpec((depth, 1, C), lambda i: (0, 0, 0)),
            pl.BlockSpec((depth, 1, C), lambda i: (0, 0, 0)),
            pl.BlockSpec((9, C, COUT_PAD), lambda i: (0, 0, 0)),
            pl.BlockSpec((1, COUT_PAD), lambda i: (0, 0)),
        ],
        out_specs=pl.BlockSpec((N, H, W, COUT_PAD), lambda i: (0, 0, 0, 0)),
        scratch_shapes=[pltpu.VMEM((N, H + 2, W + 2, C), jnp.float32)],
        compiler_params=pltpu.CompilerParams(
            dimension_semantics=("arbitrary",),
            vmem_limit_bytes=32 * 1024 * 1024),
    )(x_pad, wf2, bf2, wm, bm, gm, bt, wl2, bl2)

    out = out[..., :1]                                  # drop Cout padding
    # NOTE: ReLUX exists in Gen.__init__ but is never applied in Gen.forward,
    # so it is intentionally omitted here.  BN uses current-batch (training
    # mode) statistics, matching a freshly-constructed PyTorch module.
    return jnp.transpose(out, (0, 3, 1, 2))             # NHWC -> NCHW


# -------------------------------- Main -----------------------------------------

if __name__ == "__main__":
    key = jax.random.PRNGKey(0)
    k_params, k_x = jax.random.split(key)

    INCH, DEPTH = 1, 15
    N, H, W = 2, 16, 16

    params = init_gen_params(k_params, inch=INCH, depth=DEPTH)
    x = jax.random.normal(k_x, (N, INCH, H, W), jnp.float32)

    out = gen_forward(params, x)
    out = jax.block_until_ready(out)

    assert out.shape == (N, 1, H, W), out.shape
    assert jnp.all(jnp.isfinite(out))
    print("KERNEL_OK")
</pallas_src>

<mosaic_0001>
module attributes {stable_mosaic.version = 11 : i64} {
  func.func @_gen_fused_kernel(%arg0: i32, %arg1: memref<2x18x18x1xf32, #tpu.memory_space<vmem>>, %arg2: memref<9x1x64xf32, #tpu.memory_space<vmem>>, %arg3: memref<1x64xf32, #tpu.memory_space<vmem>>, %arg4: memref<135x64x64xbf16, #tpu.memory_space<vmem>>, %arg5: memref<15x1x64xf32, #tpu.memory_space<vmem>>, %arg6: memref<15x1x64xf32, #tpu.memory_space<vmem>>, %arg7: memref<15x1x64xf32, #tpu.memory_space<vmem>>, %arg8: memref<9x64x8xbf16, #tpu.memory_space<vmem>>, %arg9: memref<1x8xf32, #tpu.memory_space<vmem>>, %arg10: memref<2x16x16x8xf32, #tpu.memory_space<vmem>>, %arg11: memref<2x18x18x64xf32, #tpu.memory_space<vmem>>) attributes {dimension_semantics = [#tpu.dimension_semantics<arbitrary>], iteration_bounds = array<i64: 1>, scalar_prefetch = 0 : i64, scratch_operands = 1 : i64, tpu.core_type = #tpu.core_type<tc>, window_params = [{pipeline_mode = #tpu.pipeline_mode<synchronous>, transform_indices = @transform_0, window_bounds = array<i64: 2, 18, 18, 1>}, {pipeline_mode = #tpu.pipeline_mode<synchronous>, transform_indices = @transform_1, window_bounds = array<i64: 9, 1, 64>}, {pipeline_mode = #tpu.pipeline_mode<synchronous>, transform_indices = @transform_2, window_bounds = array<i64: 1, 64>}, {pipeline_mode = #tpu.pipeline_mode<synchronous>, transform_indices = @transform_3, window_bounds = array<i64: 135, 64, 64>}, {pipeline_mode = #tpu.pipeline_mode<synchronous>, transform_indices = @transform_4, window_bounds = array<i64: 15, 1, 64>}, {pipeline_mode = #tpu.pipeline_mode<synchronous>, transform_indices = @transform_5, window_bounds = array<i64: 15, 1, 64>}, {pipeline_mode = #tpu.pipeline_mode<synchronous>, transform_indices = @transform_6, window_bounds = array<i64: 15, 1, 64>}, {pipeline_mode = #tpu.pipeline_mode<synchronous>, transform_indices = @transform_7, window_bounds = array<i64: 9, 64, 8>}, {pipeline_mode = #tpu.pipeline_mode<synchronous>, transform_indices = @transform_8, window_bounds = array<i64: 1, 8>}, {pipeline_mode = #tpu.pipeline_mode<synchronous>, transform_indices = @transform_9, window_bounds = array<i64: 2, 16, 16, 8>}]} {
    %cst = arith.constant 0.000000e+00 : f32
    %0 = vector.broadcast %cst : f32 to vector<2x18x18x64xf32>
    %c0 = arith.constant 0 : index
    %c0_0 = arith.constant 0 : index
    %c0_1 = arith.constant 0 : index
    %c0_2 = arith.constant 0 : index
    %1 = vector.load %arg11[%c0, %c0_0, %c0_1, %c0_2] : memref<2x18x18x64xf32, #tpu.memory_space<vmem>>, vector<2x18x18x64xf32>
    tpu.vector_store %arg11[%c0, %c0_0, %c0_1, %c0_2], %0 {strides = array<i32>} : memref<2x18x18x64xf32, #tpu.memory_space<vmem>>, vector<2x18x18x64xf32>,
    %cst_3 = arith.constant 0.000000e+00 : f32
    %2 = vector.broadcast %cst_3 : f32 to vector<512x64xf32>
    %c0_4 = arith.constant 0 : index
    %c0_5 = arith.constant 0 : index
    %c0_6 = arith.constant 0 : index
    %c0_7 = arith.constant 0 : index
    %3 = vector.load %arg1[%c0_4, %c0_5, %c0_6, %c0_7] : memref<2x18x18x1xf32, #tpu.memory_space<vmem>>, vector<2x16x16x1xf32>
    %4 = vector.shape_cast %3 : vector<2x16x16x1xf32> to vector<512x1xf32>
    %c0_8 = arith.constant 0 : index
    %c0_9 = arith.constant 0 : index
    %c0_10 = arith.constant 0 : index
    %5 = vector.load %arg2[%c0_8, %c0_9, %c0_10] : memref<9x1x64xf32, #tpu.memory_space<vmem>>, vector<1x1x64xf32>
    %6 = vector.shape_cast %5 : vector<1x1x64xf32> to vector<1x64xf32>
    %7 = vector.broadcast %4 : vector<512x1xf32> to vector<512x64xf32>
    %8 = vector.broadcast %6 : vector<1x64xf32> to vector<512x64xf32>
    %9 = arith.mulf %7, %8 : vector<512x64xf32>
    %10 = arith.addf %2, %9 : vector<512x64xf32>
    %c0_11 = arith.constant 0 : index
    %c0_12 = arith.constant 0 : index
    %c1 = arith.constant 1 : index
    %c0_13 = arith.constant 0 : index
    %11 = vector.load %arg1[%c0_11, %c0_12, %c1, %c0_13] : memref<2x18x18x1xf32, #tpu.memory_space<vmem>>, vector<2x16x16x1xf32>
    %12 = vector.shape_cast %11 : vector<2x16x16x1xf32> to vector<512x1xf32>
    %c1_14 = arith.constant 1 : index
    %c0_15 = arith.constant 0 : index
    %c0_16 = arith.constant 0 : index
    %13 = vector.load %arg2[%c1_14, %c0_15, %c0_16] : memref<9x1x64xf32, #tpu.memory_space<vmem>>, vector<1x1x64xf32>
    %14 = vector.shape_cast %13 : vector<1x1x64xf32> to vector<1x64xf32>
    %15 = vector.broadcast %12 : vector<512x1xf32> to vector<512x64xf32>
    %16 = vector.broadcast %14 : vector<1x64xf32> to vector<512x64xf32>
    %17 = arith.mulf %15, %16 : vector<512x64xf32>
    %18 = arith.addf %10, %17 : vector<512x64xf32>
    %c0_17 = arith.constant 0 : index
    %c0_18 = arith.constant 0 : index
    %c2 = arith.constant 2 : index
    %c0_19 = arith.constant 0 : index
    %19 = vector.load %arg1[%c0_17, %c0_18, %c2, %c0_19] : memref<2x18x18x1xf32, #tpu.memory_space<vmem>>, vector<2x16x16x1xf32>
    %20 = vector.shape_cast %19 : vector<2x16x16x1xf32> to vector<512x1xf32>
    %c2_20 = arith.constant 2 : index
    %c0_21 = arith.constant 0 : index
    %c0_22 = arith.constant 0 : index
    %21 = vector.load %arg2[%c2_20, %c0_21, %c0_22] : memref<9x1x64xf32, #tpu.memory_space<vmem>>, vector<1x1x64xf32>
    %22 = vector.shape_cast %21 : vector<1x1x64xf32> to vector<1x64xf32>
    %23 = vector.broadcast %20 : vector<512x1xf32> to vector<512x64xf32>
    %24 = vector.broadcast %22 : vector<1x64xf32> to vector<512x64xf32>
    %25 = arith.mulf %23, %24 : vector<512x64xf32>
    %26 = arith.addf %18, %25 : vector<512x64xf32>
    %c0_23 = arith.constant 0 : index
    %c1_24 = arith.constant 1 : index
    %c0_25 = arith.constant 0 : index
    %c0_26 = arith.constant 0 : index
    %27 = vector.load %arg1[%c0_23, %c1_24, %c0_25, %c0_26] : memref<2x18x18x1xf32, #tpu.memory_space<vmem>>, vector<2x16x16x1xf32>
    %28 = vector.shape_cast %27 : vector<2x16x16x1xf32> to vector<512x1xf32>
    %c3 = arith.constant 3 : index
    %c0_27 = arith.constant 0 : index
    %c0_28 = arith.constant 0 : index
    %29 = vector.load %arg2[%c3, %c0_27, %c0_28] : memref<9x1x64xf32, #tpu.memory_space<vmem>>, vector<1x1x64xf32>
    %30 = vector.shape_cast %29 : vector<1x1x64xf32> to vector<1x64xf32>
    %31 = vector.broadcast %28 : vector<512x1xf32> to vector<512x64xf32>
    %32 = vector.broadcast %30 : vector<1x64xf32> to vector<512x64xf32>
    %33 = arith.mulf %31, %32 : vector<512x64xf32>
    %34 = arith.addf %26, %33 : vector<512x64xf32>
    %c0_29 = arith.constant 0 : index
    %c1_30 = arith.constant 1 : index
    %c1_31 = arith.constant 1 : index
    %c0_32 = arith.constant 0 : index
    %35 = vector.load %arg1[%c0_29, %c1_30, %c1_31, %c0_32] : memref<2x18x18x1xf32, #tpu.memory_space<vmem>>, vector<2x16x16x1xf32>
    %36 = vector.shape_cast %35 : vector<2x16x16x1xf32> to vector<512x1xf32>
    %c4 = arith.constant 4 : index
    %c0_33 = arith.constant 0 : index
    %c0_34 = arith.constant 0 : index
    %37 = vector.load %arg2[%c4, %c0_33, %c0_34] : memref<9x1x64xf32, #tpu.memory_space<vmem>>, vector<1x1x64xf32>
    %38 = vector.shape_cast %37 : vector<1x1x64xf32> to vector<1x64xf32>
    %39 = vector.broadcast %36 : vector<512x1xf32> to vector<512x64xf32>
    %40 = vector.broadcast %38 : vector<1x64xf32> to vector<512x64xf32>
    %41 = arith.mulf %39, %40 : vector<512x64xf32>
    %42 = arith.addf %34, %41 : vector<512x64xf32>
    %c0_35 = arith.constant 0 : index
    %c1_36 = arith.constant 1 : index
    %c2_37 = arith.constant 2 : index
    %c0_38 = arith.constant 0 : index
    %43 = vector.load %arg1[%c0_35, %c1_36, %c2_37, %c0_38] : memref<2x18x18x1xf32, #tpu.memory_space<vmem>>, vector<2x16x16x1xf32>
    %44 = vector.shape_cast %43 : vector<2x16x16x1xf32> to vector<512x1xf32>
    %c5 = arith.constant 5 : index
    %c0_39 = arith.constant 0 : index
    %c0_40 = arith.constant 0 : index
    %45 = vector.load %arg2[%c5, %c0_39, %c0_40] : memref<9x1x64xf32, #tpu.memory_space<vmem>>, vector<1x1x64xf32>
    %46 = vector.shape_cast %45 : vector<1x1x64xf32> to vector<1x64xf32>
    %47 = vector.broadcast %44 : vector<512x1xf32> to vector<512x64xf32>
    %48 = vector.broadcast %46 : vector<1x64xf32> to vector<512x64xf32>
    %49 = arith.mulf %47, %48 : vector<512x64xf32>
    %50 = arith.addf %42, %49 : vector<512x64xf32>
    %c0_41 = arith.constant 0 : index
    %c2_42 = arith.constant 2 : index
    %c0_43 = arith.constant 0 : index
    %c0_44 = arith.constant 0 : index
    %51 = vector.load %arg1[%c0_41, %c2_42, %c0_43, %c0_44] : memref<2x18x18x1xf32, #tpu.memory_space<vmem>>, vector<2x16x16x1xf32>
    %52 = vector.shape_cast %51 : vector<2x16x16x1xf32> to vector<512x1xf32>
    %c6 = arith.constant 6 : index
    %c0_45 = arith.constant 0 : index
    %c0_46 = arith.constant 0 : index
    %53 = vector.load %arg2[%c6, %c0_45, %c0_46] : memref<9x1x64xf32, #tpu.memory_space<vmem>>, vector<1x1x64xf32>
    %54 = vector.shape_cast %53 : vector<1x1x64xf32> to vector<1x64xf32>
    %55 = vector.broadcast %52 : vector<512x1xf32> to vector<512x64xf32>
    %56 = vector.broadcast %54 : vector<1x64xf32> to vector<512x64xf32>
    %57 = arith.mulf %55, %56 : vector<512x64xf32>
    %58 = arith.addf %50, %57 : vector<512x64xf32>
    %c0_47 = arith.constant 0 : index
    %c2_48 = arith.constant 2 : index
    %c1_49 = arith.constant 1 : index
    %c0_50 = arith.constant 0 : index
    %59 = vector.load %arg1[%c0_47, %c2_48, %c1_49, %c0_50] : memref<2x18x18x1xf32, #tpu.memory_space<vmem>>, vector<2x16x16x1xf32>
    %60 = vector.shape_cast %59 : vector<2x16x16x1xf32> to vector<512x1xf32>
    %c7 = arith.constant 7 : index
    %c0_51 = arith.constant 0 : index
    %c0_52 = arith.constant 0 : index
    %61 = vector.load %arg2[%c7, %c0_51, %c0_52] : memref<9x1x64xf32, #tpu.memory_space<vmem>>, vector<1x1x64xf32>
    %62 = vector.shape_cast %61 : vector<1x1x64xf32> to vector<1x64xf32>
    %63 = vector.broadcast %60 : vector<512x1xf32> to vector<512x64xf32>
    %64 = vector.broadcast %62 : vector<1x64xf32> to vector<512x64xf32>
    %65 = arith.mulf %63, %64 : vector<512x64xf32>
    %66 = arith.addf %58, %65 : vector<512x64xf32>
    %c0_53 = arith.constant 0 : index
    %c2_54 = arith.constant 2 : index
    %c2_55 = arith.constant 2 : index
    %c0_56 = arith.constant 0 : index
    %67 = vector.load %arg1[%c0_53, %c2_54, %c2_55, %c0_56] : memref<2x18x18x1xf32, #tpu.memory_space<vmem>>, vector<2x16x16x1xf32>
    %68 = vector.shape_cast %67 : vector<2x16x16x1xf32> to vector<512x1xf32>
    %c8 = arith.constant 8 : index
    %c0_57 = arith.constant 0 : index
    %c0_58 = arith.constant 0 : index
    %69 = vector.load %arg2[%c8, %c0_57, %c0_58] : memref<9x1x64xf32, #tpu.memory_space<vmem>>, vector<1x1x64xf32>
    %70 = vector.shape_cast %69 : vector<1x1x64xf32> to vector<1x64xf32>
    %71 = vector.broadcast %68 : vector<512x1xf32> to vector<512x64xf32>
    %72 = vector.broadcast %70 : vector<1x64xf32> to vector<512x64xf32>
    %73 = arith.mulf %71, %72 : vector<512x64xf32>
    %74 = arith.addf %66, %73 : vector<512x64xf32>
    %c0_59 = arith.constant 0 : index
    %c0_60 = arith.constant 0 : index
    %75 = vector.load %arg3[%c0_59, %c0_60] : memref<1x64xf32, #tpu.memory_space<vmem>>, vector<1x64xf32>
    %76 = vector.broadcast %75 : vector<1x64xf32> to vector<512x64xf32>
    %77 = arith.addf %74, %76 : vector<512x64xf32>
    %cst_61 = arith.constant 0.000000e+00 : f32
    %78 = vector.broadcast %cst_61 : f32 to vector<512x64xf32>
    %79 = arith.maximumf %77, %78 : vector<512x64xf32>
    %80 = vector.shape_cast %79 : vector<512x64xf32> to vector<2x16x16x64xf32>
    %c0_62 = arith.constant 0 : index
    %c1_63 = arith.constant 1 : index
    %c1_64 = arith.constant 1 : index
    %c0_65 = arith.constant 0 : index
    %81 = vector.load %arg11[%c0_62, %c1_63, %c1_64, %c0_65] : memref<2x18x18x64xf32, #tpu.memory_space<vmem>>, vector<2x16x16x64xf32>
    tpu.vector_store %arg11[%c0_62, %c1_63, %c1_64, %c0_65], %80 {strides = array<i32>} : memref<2x18x18x64xf32, #tpu.memory_space<vmem>>, vector<2x16x16x64xf32>,
    %c0_i32 = arith.constant 0 : i32
    %c15_i32 = arith.constant 15 : i32
    %82 = arith.addi %c0_i32, %c15_i32 : i32
    %c1_i32 = arith.constant 1 : i32
    scf.for %arg12 = %c0_i32 to %82 step %c1_i32  : i32 {
      %cst_146 = arith.constant 0.000000e+00 : f32
      %152 = vector.broadcast %cst_146 : f32 to vector<512x64xf32>
      %c0_147 = arith.constant 0 : index
      %c0_148 = arith.constant 0 : index
      %c0_149 = arith.constant 0 : index
      %c0_150 = arith.constant 0 : index
      %153 = vector.load %arg11[%c0_147, %c0_148, %c0_149, %c0_150] : memref<2x18x18x64xf32, #tpu.memory_space<vmem>>, vector<2x16x16x64xf32>
      %154 = vector.shape_cast %153 : vector<2x16x16x64xf32> to vector<512x64xf32>
      %c9_i32 = arith.constant 9 : i32
      %155 = arith.muli %arg12, %c9_i32 : i32
      %c0_i32_151 = arith.constant 0 : i32
      %156 = arith.addi %155, %c0_i32_151 : i32
      %157 = arith.index_cast %156 : i32 to index
      %c0_152 = arith.constant 0 : index
      %c0_153 = arith.constant 0 : index
      %158 = vector.load %arg4[%157, %c0_152, %c0_153] : memref<135x64x64xbf16, #tpu.memory_space<vmem>>, vector<1x64x64xbf16>
      %159 = vector.shape_cast %158 : vector<1x64x64xbf16> to vector<64x64xbf16>
      %160 = arith.truncf %154 : vector<512x64xf32> to vector<512x64xbf16>
      %cst_154 = arith.constant dense<0.000000e+00> : vector<512x64xf32>
      %161 = tpu.matmul %160, %159, %cst_154 {dimension_numbers = #tpu.dot_dimension_numbers<[1], [0], [0], [1], [0, 0, 1, 1], [], []>} : vector<512x64xbf16>, vector<64x64xbf16>, vector<512x64xf32> -> vector<512x64xf32>
      %162 = arith.addf %152, %161 : vector<512x64xf32>
      %c0_155 = arith.constant 0 : index
      %c0_156 = arith.constant 0 : index
      %c1_157 = arith.constant 1 : index
      %c0_158 = arith.constant 0 : index
      %163 = vector.load %arg11[%c0_155, %c0_156, %c1_157, %c0_158] : memref<2x18x18x64xf32, #tpu.memory_space<vmem>>, vector<2x16x16x64xf32>
      %164 = vector.shape_cast %163 : vector<2x16x16x64xf32> to vector<512x64xf32>
      %c9_i32_159 = arith.constant 9 : i32
      %165 = arith.muli %arg12, %c9_i32_159 : i32
      %c1_i32_160 = arith.constant 1 : i32
      %166 = arith.addi %165, %c1_i32_160 : i32
      %167 = arith.index_cast %166 : i32 to index
      %c0_161 = arith.constant 0 : index
      %c0_162 = arith.constant 0 : index
      %168 = vector.load %arg4[%167, %c0_161, %c0_162] : memref<135x64x64xbf16, #tpu.memory_space<vmem>>, vector<1x64x64xbf16>
      %169 = vector.shape_cast %168 : vector<1x64x64xbf16> to vector<64x64xbf16>
      %170 = arith.truncf %164 : vector<512x64xf32> to vector<512x64xbf16>
      %cst_163 = arith.constant dense<0.000000e+00> : vector<512x64xf32>
      %171 = tpu.matmul %170, %169, %cst_163 {dimension_numbers = #tpu.dot_dimension_numbers<[1], [0], [0], [1], [0, 0, 1, 1], [], []>} : vector<512x64xbf16>, vector<64x64xbf16>, vector<512x64xf32> -> vector<512x64xf32>
      %172 = arith.addf %162, %171 : vector<512x64xf32>
      %c0_164 = arith.constant 0 : index
      %c0_165 = arith.constant 0 : index
      %c2_166 = arith.constant 2 : index
      %c0_167 = arith.constant 0 : index
      %173 = vector.load %arg11[%c0_164, %c0_165, %c2_166, %c0_167] : memref<2x18x18x64xf32, #tpu.memory_space<vmem>>, vector<2x16x16x64xf32>
      %174 = vector.shape_cast %173 : vector<2x16x16x64xf32> to vector<512x64xf32>
      %c9_i32_168 = arith.constant 9 : i32
      %175 = arith.muli %arg12, %c9_i32_168 : i32
      %c2_i32 = arith.constant 2 : i32
      %176 = arith.addi %175, %c2_i32 : i32
      %177 = arith.index_cast %176 : i32 to index
      %c0_169 = arith.constant 0 : index
      %c0_170 = arith.constant 0 : index
      %178 = vector.load %arg4[%177, %c0_169, %c0_170] : memref<135x64x64xbf16, #tpu.memory_space<vmem>>, vector<1x64x64xbf16>
      %179 = vector.shape_cast %178 : vector<1x64x64xbf16> to vector<64x64xbf16>
      %180 = arith.truncf %174 : vector<512x64xf32> to vector<512x64xbf16>
      %cst_171 = arith.constant dense<0.000000e+00> : vector<512x64xf32>
      %181 = tpu.matmul %180, %179, %cst_171 {dimension_numbers = #tpu.dot_dimension_numbers<[1], [0], [0], [1], [0, 0, 1, 1], [], []>} : vector<512x64xbf16>, vector<64x64xbf16>, vector<512x64xf32> -> vector<512x64xf32>
      %182 = arith.addf %172, %181 : vector<512x64xf32>
      %c0_172 = arith.constant 0 : index
      %c1_173 = arith.constant 1 : index
      %c0_174 = arith.constant 0 : index
      %c0_175 = arith.constant 0 : index
      %183 = vector.load %arg11[%c0_172, %c1_173, %c0_174, %c0_175] : memref<2x18x18x64xf32, #tpu.memory_space<vmem>>, vector<2x16x16x64xf32>
      %184 = vector.shape_cast %183 : vector<2x16x16x64xf32> to vector<512x64xf32>
      %c9_i32_176 = arith.constant 9 : i32
      %185 = arith.muli %arg12, %c9_i32_176 : i32
      %c3_i32 = arith.constant 3 : i32
      %186 = arith.addi %185, %c3_i32 : i32
      %187 = arith.index_cast %186 : i32 to index
      %c0_177 = arith.constant 0 : index
      %c0_178 = arith.constant 0 : index
      %188 = vector.load %arg4[%187, %c0_177, %c0_178] : memref<135x64x64xbf16, #tpu.memory_space<vmem>>, vector<1x64x64xbf16>
      %189 = vector.shape_cast %188 : vector<1x64x64xbf16> to vector<64x64xbf16>
      %190 = arith.truncf %184 : vector<512x64xf32> to vector<512x64xbf16>
      %cst_179 = arith.constant dense<0.000000e+00> : vector<512x64xf32>
      %191 = tpu.matmul %190, %189, %cst_179 {dimension_numbers = #tpu.dot_dimension_numbers<[1], [0], [0], [1], [0, 0, 1, 1], [], []>} : vector<512x64xbf16>, vector<64x64xbf16>, vector<512x64xf32> -> vector<512x64xf32>
      %192 = arith.addf %182, %191 : vector<512x64xf32>
      %c0_180 = arith.constant 0 : index
      %c1_181 = arith.constant 1 : index
      %c1_182 = arith.constant 1 : index
      %c0_183 = arith.constant 0 : index
      %193 = vector.load %arg11[%c0_180, %c1_181, %c1_182, %c0_183] : memref<2x18x18x64xf32, #tpu.memory_space<vmem>>, vector<2x16x16x64xf32>
      %194 = vector.shape_cast %193 : vector<2x16x16x64xf32> to vector<512x64xf32>
      %c9_i32_184 = arith.constant 9 : i32
      %195 = arith.muli %arg12, %c9_i32_184 : i32
      %c4_i32 = arith.constant 4 : i32
      %196 = arith.addi %195, %c4_i32 : i32
      %197 = arith.index_cast %196 : i32 to index
      %c0_185 = arith.constant 0 : index
      %c0_186 = arith.constant 0 : index
      %198 = vector.load %arg4[%197, %c0_185, %c0_186] : memref<135x64x64xbf16, #tpu.memory_space<vmem>>, vector<1x64x64xbf16>
      %199 = vector.shape_cast %198 : vector<1x64x64xbf16> to vector<64x64xbf16>
      %200 = arith.truncf %194 : vector<512x64xf32> to vector<512x64xbf16>
      %cst_187 = arith.constant dense<0.000000e+00> : vector<512x64xf32>
      %201 = tpu.matmul %200, %199, %cst_187 {dimension_numbers = #tpu.dot_dimension_numbers<[1], [0], [0], [1], [0, 0, 1, 1], [], []>} : vector<512x64xbf16>, vector<64x64xbf16>, vector<512x64xf32> -> vector<512x64xf32>
      %202 = arith.addf %192, %201 : vector<512x64xf32>
      %c0_188 = arith.constant 0 : index
      %c1_189 = arith.constant 1 : index
      %c2_190 = arith.constant 2 : index
      %c0_191 = arith.constant 0 : index
      %203 = vector.load %arg11[%c0_188, %c1_189, %c2_190, %c0_191] : memref<2x18x18x64xf32, #tpu.memory_space<vmem>>, vector<2x16x16x64xf32>
      %204 = vector.shape_cast %203 : vector<2x16x16x64xf32> to vector<512x64xf32>
      %c9_i32_192 = arith.constant 9 : i32
      %205 = arith.muli %arg12, %c9_i32_192 : i32
      %c5_i32 = arith.constant 5 : i32
      %206 = arith.addi %205, %c5_i32 : i32
      %207 = arith.index_cast %206 : i32 to index
      %c0_193 = arith.constant 0 : index
      %c0_194 = arith.constant 0 : index
      %208 = vector.load %arg4[%207, %c0_193, %c0_194] : memref<135x64x64xbf16, #tpu.memory_space<vmem>>, vector<1x64x64xbf16>
      %209 = vector.shape_cast %208 : vector<1x64x64xbf16> to vector<64x64xbf16>
      %210 = arith.truncf %204 : vector<512x64xf32> to vector<512x64xbf16>
      %cst_195 = arith.constant dense<0.000000e+00> : vector<512x64xf32>
      %211 = tpu.matmul %210, %209, %cst_195 {dimension_numbers = #tpu.dot_dimension_numbers<[1], [0], [0], [1], [0, 0, 1, 1], [], []>} : vector<512x64xbf16>, vector<64x64xbf16>, vector<512x64xf32> -> vector<512x64xf32>
      %212 = arith.addf %202, %211 : vector<512x64xf32>
      %c0_196 = arith.constant 0 : index
      %c2_197 = arith.constant 2 : index
      %c0_198 = arith.constant 0 : index
      %c0_199 = arith.constant 0 : index
      %213 = vector.load %arg11[%c0_196, %c2_197, %c0_198, %c0_199] : memref<2x18x18x64xf32, #tpu.memory_space<vmem>>, vector<2x16x16x64xf32>
      %214 = vector.shape_cast %213 : vector<2x16x16x64xf32> to vector<512x64xf32>
      %c9_i32_200 = arith.constant 9 : i32
      %215 = arith.muli %arg12, %c9_i32_200 : i32
      %c6_i32 = arith.constant 6 : i32
      %216 = arith.addi %215, %c6_i32 : i32
      %217 = arith.index_cast %216 : i32 to index
      %c0_201 = arith.constant 0 : index
      %c0_202 = arith.constant 0 : index
      %218 = vector.load %arg4[%217, %c0_201, %c0_202] : memref<135x64x64xbf16, #tpu.memory_space<vmem>>, vector<1x64x64xbf16>
      %219 = vector.shape_cast %218 : vector<1x64x64xbf16> to vector<64x64xbf16>
      %220 = arith.truncf %214 : vector<512x64xf32> to vector<512x64xbf16>
      %cst_203 = arith.constant dense<0.000000e+00> : vector<512x64xf32>
      %221 = tpu.matmul %220, %219, %cst_203 {dimension_numbers = #tpu.dot_dimension_numbers<[1], [0], [0], [1], [0, 0, 1, 1], [], []>} : vector<512x64xbf16>, vector<64x64xbf16>, vector<512x64xf32> -> vector<512x64xf32>
      %222 = arith.addf %212, %221 : vector<512x64xf32>
      %c0_204 = arith.constant 0 : index
      %c2_205 = arith.constant 2 : index
      %c1_206 = arith.constant 1 : index
      %c0_207 = arith.constant 0 : index
      %223 = vector.load %arg11[%c0_204, %c2_205, %c1_206, %c0_207] : memref<2x18x18x64xf32, #tpu.memory_space<vmem>>, vector<2x16x16x64xf32>
      %224 = vector.shape_cast %223 : vector<2x16x16x64xf32> to vector<512x64xf32>
      %c9_i32_208 = arith.constant 9 : i32
      %225 = arith.muli %arg12, %c9_i32_208 : i32
      %c7_i32 = arith.constant 7 : i32
      %226 = arith.addi %225, %c7_i32 : i32
      %227 = arith.index_cast %226 : i32 to index
      %c0_209 = arith.constant 0 : index
      %c0_210 = arith.constant 0 : index
      %228 = vector.load %arg4[%227, %c0_209, %c0_210] : memref<135x64x64xbf16, #tpu.memory_space<vmem>>, vector<1x64x64xbf16>
      %229 = vector.shape_cast %228 : vector<1x64x64xbf16> to vector<64x64xbf16>
      %230 = arith.truncf %224 : vector<512x64xf32> to vector<512x64xbf16>
      %cst_211 = arith.constant dense<0.000000e+00> : vector<512x64xf32>
      %231 = tpu.matmul %230, %229, %cst_211 {dimension_numbers = #tpu.dot_dimension_numbers<[1], [0], [0], [1], [0, 0, 1, 1], [], []>} : vector<512x64xbf16>, vector<64x64xbf16>, vector<512x64xf32> -> vector<512x64xf32>
      %232 = arith.addf %222, %231 : vector<512x64xf32>
      %c0_212 = arith.constant 0 : index
      %c2_213 = arith.constant 2 : index
      %c2_214 = arith.constant 2 : index
      %c0_215 = arith.constant 0 : index
      %233 = vector.load %arg11[%c0_212, %c2_213, %c2_214, %c0_215] : memref<2x18x18x64xf32, #tpu.memory_space<vmem>>, vector<2x16x16x64xf32>
      %234 = vector.shape_cast %233 : vector<2x16x16x64xf32> to vector<512x64xf32>
      %c9_i32_216 = arith.constant 9 : i32
      %235 = arith.muli %arg12, %c9_i32_216 : i32
      %c8_i32 = arith.constant 8 : i32
      %236 = arith.addi %235, %c8_i32 : i32
      %237 = arith.index_cast %236 : i32 to index
      %c0_217 = arith.constant 0 : index
      %c0_218 = arith.constant 0 : index
      %238 = vector.load %arg4[%237, %c0_217, %c0_218] : memref<135x64x64xbf16, #tpu.memory_space<vmem>>, vector<1x64x64xbf16>
      %239 = vector.shape_cast %238 : vector<1x64x64xbf16> to vector<64x64xbf16>
      %240 = arith.truncf %234 : vector<512x64xf32> to vector<512x64xbf16>
      %cst_219 = arith.constant dense<0.000000e+00> : vector<512x64xf32>
      %241 = tpu.matmul %240, %239, %cst_219 {dimension_numbers = #tpu.dot_dimension_numbers<[1], [0], [0], [1], [0, 0, 1, 1], [], []>} : vector<512x64xbf16>, vector<64x64xbf16>, vector<512x64xf32> -> vector<512x64xf32>
      %242 = arith.addf %232, %241 : vector<512x64xf32>
      %243 = arith.index_cast %arg12 : i32 to index
      %c0_220 = arith.constant 0 : index
      %c0_221 = arith.constant 0 : index
      %244 = vector.load %arg5[%243, %c0_220, %c0_221] : memref<15x1x64xf32, #tpu.memory_space<vmem>>, vector<1x1x64xf32>
      %245 = vector.shape_cast %244 : vector<1x1x64xf32> to vector<1x64xf32>
      %246 = vector.broadcast %245 : vector<1x64xf32> to vector<512x64xf32>
      %247 = arith.addf %242, %246 : vector<512x64xf32>
      %cst_222 = arith.constant dense<0.000000e+00> : vector<64xf32>
      %248 = vector.multi_reduction <add>, %247, %cst_222 [0] : vector<512x64xf32> to vector<64xf32>
      %249 = vector.shape_cast %248 : vector<64xf32> to vector<1x64xf32>
      %cst_223 = arith.constant 0.001953125 : f32
      %250 = vector.broadcast %cst_223 : f32 to vector<1x64xf32>
      %251 = arith.mulf %249, %250 : vector<1x64xf32>
      %252 = vector.broadcast %251 : vector<1x64xf32> to vector<512x64xf32>
      %253 = arith.subf %247, %252 : vector<512x64xf32>
      %254 = arith.mulf %253, %253 : vector<512x64xf32>
      %cst_224 = arith.constant dense<0.000000e+00> : vector<64xf32>
      %255 = vector.multi_reduction <add>, %254, %cst_224 [0] : vector<512x64xf32> to vector<64xf32>
      %256 = vector.shape_cast %255 : vector<64xf32> to vector<1x64xf32>
      %cst_225 = arith.constant 0.001953125 : f32
      %257 = vector.broadcast %cst_225 : f32 to vector<1x64xf32>
      %258 = arith.mulf %256, %257 : vector<1x64xf32>
      %259 = arith.index_cast %arg12 : i32 to index
      %c0_226 = arith.constant 0 : index
      %c0_227 = arith.constant 0 : index
      %260 = vector.load %arg6[%259, %c0_226, %c0_227] : memref<15x1x64xf32, #tpu.memory_space<vmem>>, vector<1x1x64xf32>
      %261 = vector.shape_cast %260 : vector<1x1x64xf32> to vector<1x64xf32>
      %cst_228 = arith.constant 9.99999974E-6 : f32
      %262 = vector.broadcast %cst_228 : f32 to vector<1x64xf32>
      %263 = arith.addf %258, %262 : vector<1x64xf32>
      %264 = math.rsqrt %263 : vector<1x64xf32>
      %265 = arith.mulf %261, %264 : vector<1x64xf32>
      %266 = vector.broadcast %265 : vector<1x64xf32> to vector<512x64xf32>
      %267 = arith.mulf %253, %266 : vector<512x64xf32>
      %268 = arith.index_cast %arg12 : i32 to index
      %c0_229 = arith.constant 0 : index
      %c0_230 = arith.constant 0 : index
      %269 = vector.load %arg7[%268, %c0_229, %c0_230] : memref<15x1x64xf32, #tpu.memory_space<vmem>>, vector<1x1x64xf32>
      %270 = vector.shape_cast %269 : vector<1x1x64xf32> to vector<1x64xf32>
      %271 = vector.broadcast %270 : vector<1x64xf32> to vector<512x64xf32>
      %272 = arith.addf %267, %271 : vector<512x64xf32>
      %cst_231 = arith.constant 0.000000e+00 : f32
      %273 = vector.broadcast %cst_231 : f32 to vector<512x64xf32>
      %274 = arith.maximumf %272, %273 : vector<512x64xf32>
      %275 = vector.shape_cast %274 : vector<512x64xf32> to vector<2x16x16x64xf32>
      %c0_232 = arith.constant 0 : index
      %c1_233 = arith.constant 1 : index
      %c1_234 = arith.constant 1 : index
      %c0_235 = arith.constant 0 : index
      %276 = vector.load %arg11[%c0_232, %c1_233, %c1_234, %c0_235] : memref<2x18x18x64xf32, #tpu.memory_space<vmem>>, vector<2x16x16x64xf32>
      tpu.vector_store %arg11[%c0_232, %c1_233, %c1_234, %c0_235], %275 {strides = array<i32>} : memref<2x18x18x64xf32, #tpu.memory_space<vmem>>, vector<2x16x16x64xf32>,
    }
    %c15_i32_66 = arith.constant 15 : i32
    %cst_67 = arith.constant 0.000000e+00 : f32
    %83 = vector.broadcast %cst_67 : f32 to vector<512x8xf32>
    %c0_68 = arith.constant 0 : index
    %c0_69 = arith.constant 0 : index
    %c0_70 = arith.constant 0 : index
    %c0_71 = arith.constant 0 : index
    %84 = vector.load %arg11[%c0_68, %c0_69, %c0_70, %c0_71] : memref<2x18x18x64xf32, #tpu.memory_space<vmem>>, vector<2x16x16x64xf32>
    %85 = vector.shape_cast %84 : vector<2x16x16x64xf32> to vector<512x64xf32>
    %86 = arith.truncf %85 : vector<512x64xf32> to vector<512x64xbf16>
    %c0_72 = arith.constant 0 : index
    %c0_73 = arith.constant 0 : index
    %c0_74 = arith.constant 0 : index
    %87 = vector.load %arg8[%c0_72, %c0_73, %c0_74] : memref<9x64x8xbf16, #tpu.memory_space<vmem>>, vector<1x64x8xbf16>
    %88 = vector.shape_cast %87 : vector<1x64x8xbf16> to vector<64x8xbf16>
    %cst_75 = arith.constant dense<0.000000e+00> : vector<512x8xf32>
    %89 = tpu.matmul %86, %88, %cst_75 {dimension_numbers = #tpu.dot_dimension_numbers<[1], [0], [0], [1], [0, 0, 1, 1], [], []>} : vector<512x64xbf16>, vector<64x8xbf16>, vector<512x8xf32> -> vector<512x8xf32>
    %90 = arith.addf %83, %89 : vector<512x8xf32>
    %c0_76 = arith.constant 0 : index
    %c0_77 = arith.constant 0 : index
    %c1_78 = arith.constant 1 : index
    %c0_79 = arith.constant 0 : index
    %91 = vector.load %arg11[%c0_76, %c0_77, %c1_78, %c0_79] : memref<2x18x18x64xf32, #tpu.memory_space<vmem>>, vector<2x16x16x64xf32>
    %92 = vector.shape_cast %91 : vector<2x16x16x64xf32> to vector<512x64xf32>
    %93 = arith.truncf %92 : vector<512x64xf32> to vector<512x64xbf16>
    %c1_80 = arith.constant 1 : index
    %c0_81 = arith.constant 0 : index
    %c0_82 = arith.constant 0 : index
    %94 = vector.load %arg8[%c1_80, %c0_81, %c0_82] : memref<9x64x8xbf16, #tpu.memory_space<vmem>>, vector<1x64x8xbf16>
    %95 = vector.shape_cast %94 : vector<1x64x8xbf16> to vector<64x8xbf16>
    %cst_83 = arith.constant dense<0.000000e+00> : vector<512x8xf32>
    %96 = tpu.matmul %93, %95, %cst_83 {dimension_numbers = #tpu.dot_dimension_numbers<[1], [0], [0], [1], [0, 0, 1, 1], [], []>} : vector<512x64xbf16>, vector<64x8xbf16>, vector<512x8xf32> -> vector<512x8xf32>
    %97 = arith.addf %90, %96 : vector<512x8xf32>
    %c0_84 = arith.constant 0 : index
    %c0_85 = arith.constant 0 : index
    %c2_86 = arith.constant 2 : index
    %c0_87 = arith.constant 0 : index
    %98 = vector.load %arg11[%c0_84, %c0_85, %c2_86, %c0_87] : memref<2x18x18x64xf32, #tpu.memory_space<vmem>>, vector<2x16x16x64xf32>
    %99 = vector.shape_cast %98 : vector<2x16x16x64xf32> to vector<512x64xf32>
    %100 = arith.truncf %99 : vector<512x64xf32> to vector<512x64xbf16>
    %c2_88 = arith.constant 2 : index
    %c0_89 = arith.constant 0 : index
    %c0_90 = arith.constant 0 : index
    %101 = vector.load %arg8[%c2_88, %c0_89, %c0_90] : memref<9x64x8xbf16, #tpu.memory_space<vmem>>, vector<1x64x8xbf16>
    %102 = vector.shape_cast %101 : vector<1x64x8xbf16> to vector<64x8xbf16>
    %cst_91 = arith.constant dense<0.000000e+00> : vector<512x8xf32>
    %103 = tpu.matmul %100, %102, %cst_91 {dimension_numbers = #tpu.dot_dimension_numbers<[1], [0], [0], [1], [0, 0, 1, 1], [], []>} : vector<512x64xbf16>, vector<64x8xbf16>, vector<512x8xf32> -> vector<512x8xf32>
    %104 = arith.addf %97, %103 : vector<512x8xf32>
    %c0_92 = arith.constant 0 : index
    %c1_93 = arith.constant 1 : index
    %c0_94 = arith.constant 0 : index
    %c0_95 = arith.constant 0 : index
    %105 = vector.load %arg11[%c0_92, %c1_93, %c0_94, %c0_95] : memref<2x18x18x64xf32, #tpu.memory_space<vmem>>, vector<2x16x16x64xf32>
    %106 = vector.shape_cast %105 : vector<2x16x16x64xf32> to vector<512x64xf32>
    %107 = arith.truncf %106 : vector<512x64xf32> to vector<512x64xbf16>
    %c3_96 = arith.constant 3 : index
    %c0_97 = arith.constant 0 : index
    %c0_98 = arith.constant 0 : index
    %108 = vector.load %arg8[%c3_96, %c0_97, %c0_98] : memref<9x64x8xbf16, #tpu.memory_space<vmem>>, vector<1x64x8xbf16>
    %109 = vector.shape_cast %108 : vector<1x64x8xbf16> to vector<64x8xbf16>
    %cst_99 = arith.constant dense<0.000000e+00> : vector<512x8xf32>
    %110 = tpu.matmul %107, %109, %cst_99 {dimension_numbers = #tpu.dot_dimension_numbers<[1], [0], [0], [1], [0, 0, 1, 1], [], []>} : vector<512x64xbf16>, vector<64x8xbf16>, vector<512x8xf32> -> vector<512x8xf32>
    %111 = arith.addf %104, %110 : vector<512x8xf32>
    %c0_100 = arith.constant 0 : index
    %c1_101 = arith.constant 1 : index
    %c1_102 = arith.constant 1 : index
    %c0_103 = arith.constant 0 : index
    %112 = vector.load %arg11[%c0_100, %c1_101, %c1_102, %c0_103] : memref<2x18x18x64xf32, #tpu.memory_space<vmem>>, vector<2x16x16x64xf32>
    %113 = vector.shape_cast %112 : vector<2x16x16x64xf32> to vector<512x64xf32>
    %114 = arith.truncf %113 : vector<512x64xf32> to vector<512x64xbf16>
    %c4_104 = arith.constant 4 : index
    %c0_105 = arith.constant 0 : index
    %c0_106 = arith.constant 0 : index
    %115 = vector.load %arg8[%c4_104, %c0_105, %c0_106] : memref<9x64x8xbf16, #tpu.memory_space<vmem>>, vector<1x64x8xbf16>
    %116 = vector.shape_cast %115 : vector<1x64x8xbf16> to vector<64x8xbf16>
    %cst_107 = arith.constant dense<0.000000e+00> : vector<512x8xf32>
    %117 = tpu.matmul %114, %116, %cst_107 {dimension_numbers = #tpu.dot_dimension_numbers<[1], [0], [0], [1], [0, 0, 1, 1], [], []>} : vector<512x64xbf16>, vector<64x8xbf16>, vector<512x8xf32> -> vector<512x8xf32>
    %118 = arith.addf %111, %117 : vector<512x8xf32>
    %c0_108 = arith.constant 0 : index
    %c1_109 = arith.constant 1 : index
    %c2_110 = arith.constant 2 : index
    %c0_111 = arith.constant 0 : index
    %119 = vector.load %arg11[%c0_108, %c1_109, %c2_110, %c0_111] : memref<2x18x18x64xf32, #tpu.memory_space<vmem>>, vector<2x16x16x64xf32>
    %120 = vector.shape_cast %119 : vector<2x16x16x64xf32> to vector<512x64xf32>
    %121 = arith.truncf %120 : vector<512x64xf32> to vector<512x64xbf16>
    %c5_112 = arith.constant 5 : index
    %c0_113 = arith.constant 0 : index
    %c0_114 = arith.constant 0 : index
    %122 = vector.load %arg8[%c5_112, %c0_113, %c0_114] : memref<9x64x8xbf16, #tpu.memory_space<vmem>>, vector<1x64x8xbf16>
    %123 = vector.shape_cast %122 : vector<1x64x8xbf16> to vector<64x8xbf16>
    %cst_115 = arith.constant dense<0.000000e+00> : vector<512x8xf32>
    %124 = tpu.matmul %121, %123, %cst_115 {dimension_numbers = #tpu.dot_dimension_numbers<[1], [0], [0], [1], [0, 0, 1, 1], [], []>} : vector<512x64xbf16>, vector<64x8xbf16>, vector<512x8xf32> -> vector<512x8xf32>
    %125 = arith.addf %118, %124 : vector<512x8xf32>
    %c0_116 = arith.constant 0 : index
    %c2_117 = arith.constant 2 : index
    %c0_118 = arith.constant 0 : index
    %c0_119 = arith.constant 0 : index
    %126 = vector.load %arg11[%c0_116, %c2_117, %c0_118, %c0_119] : memref<2x18x18x64xf32, #tpu.memory_space<vmem>>, vector<2x16x16x64xf32>
    %127 = vector.shape_cast %126 : vector<2x16x16x64xf32> to vector<512x64xf32>
    %128 = arith.truncf %127 : vector<512x64xf32> to vector<512x64xbf16>
    %c6_120 = arith.constant 6 : index
    %c0_121 = arith.constant 0 : index
    %c0_122 = arith.constant 0 : index
    %129 = vector.load %arg8[%c6_120, %c0_121, %c0_122] : memref<9x64x8xbf16, #tpu.memory_space<vmem>>, vector<1x64x8xbf16>
    %130 = vector.shape_cast %129 : vector<1x64x8xbf16> to vector<64x8xbf16>
    %cst_123 = arith.constant dense<0.000000e+00> : vector<512x8xf32>
    %131 = tpu.matmul %128, %130, %cst_123 {dimension_numbers = #tpu.dot_dimension_numbers<[1], [0], [0], [1], [0, 0, 1, 1], [], []>} : vector<512x64xbf16>, vector<64x8xbf16>, vector<512x8xf32> -> vector<512x8xf32>
    %132 = arith.addf %125, %131 : vector<512x8xf32>
    %c0_124 = arith.constant 0 : index
    %c2_125 = arith.constant 2 : index
    %c1_126 = arith.constant 1 : index
    %c0_127 = arith.constant 0 : index
    %133 = vector.load %arg11[%c0_124, %c2_125, %c1_126, %c0_127] : memref<2x18x18x64xf32, #tpu.memory_space<vmem>>, vector<2x16x16x64xf32>
    %134 = vector.shape_cast %133 : vector<2x16x16x64xf32> to vector<512x64xf32>
    %135 = arith.truncf %134 : vector<512x64xf32> to vector<512x64xbf16>
    %c7_128 = arith.constant 7 : index
    %c0_129 = arith.constant 0 : index
    %c0_130 = arith.constant 0 : index
    %136 = vector.load %arg8[%c7_128, %c0_129, %c0_130] : memref<9x64x8xbf16, #tpu.memory_space<vmem>>, vector<1x64x8xbf16>
    %137 = vector.shape_cast %136 : vector<1x64x8xbf16> to vector<64x8xbf16>
    %cst_131 = arith.constant dense<0.000000e+00> : vector<512x8xf32>
    %138 = tpu.matmul %135, %137, %cst_131 {dimension_numbers = #tpu.dot_dimension_numbers<[1], [0], [0], [1], [0, 0, 1, 1], [], []>} : vector<512x64xbf16>, vector<64x8xbf16>, vector<512x8xf32> -> vector<512x8xf32>
    %139 = arith.addf %132, %138 : vector<512x8xf32>
    %c0_132 = arith.constant 0 : index
    %c2_133 = arith.constant 2 : index
    %c2_134 = arith.constant 2 : index
    %c0_135 = arith.constant 0 : index
    %140 = vector.load %arg11[%c0_132, %c2_133, %c2_134, %c0_135] : memref<2x18x18x64xf32, #tpu.memory_space<vmem>>, vector<2x16x16x64xf32>
    %141 = vector.shape_cast %140 : vector<2x16x16x64xf32> to vector<512x64xf32>
    %142 = arith.truncf %141 : vector<512x64xf32> to vector<512x64xbf16>
    %c8_136 = arith.constant 8 : index
    %c0_137 = arith.constant 0 : index
    %c0_138 = arith.constant 0 : index
    %143 = vector.load %arg8[%c8_136, %c0_137, %c0_138] : memref<9x64x8xbf16, #tpu.memory_space<vmem>>, vector<1x64x8xbf16>
    %144 = vector.shape_cast %143 : vector<1x64x8xbf16> to vector<64x8xbf16>
    %cst_139 = arith.constant dense<0.000000e+00> : vector<512x8xf32>
    %145 = tpu.matmul %142, %144, %cst_139 {dimension_numbers = #tpu.dot_dimension_numbers<[1], [0], [0], [1], [0, 0, 1, 1], [], []>} : vector<512x64xbf16>, vector<64x8xbf16>, vector<512x8xf32> -> vector<512x8xf32>
    %146 = arith.addf %139, %145 : vector<512x8xf32>
    %c0_140 = arith.constant 0 : index
    %c0_141 = arith.constant 0 : index
    %147 = vector.load %arg9[%c0_140, %c0_141] : memref<1x8xf32, #tpu.memory_space<vmem>>, vector<1x8xf32>
    %148 = vector.broadcast %147 : vector<1x8xf32> to vector<512x8xf32>
    %149 = arith.addf %146, %148 : vector<512x8xf32>
    %150 = vector.shape_cast %149 : vector<512x8xf32> to vector<2x16x16x8xf32>
    %c0_142 = arith.constant 0 : index
    %c0_143 = arith.constant 0 : index
    %c0_144 = arith.constant 0 : index
    %c0_145 = arith.constant 0 : index
    %151 = vector.load %arg10[%c0_142, %c0_143, %c0_144, %c0_145] : memref<2x16x16x8xf32, #tpu.memory_space<vmem>>, vector<2x16x16x8xf32>
    tpu.vector_store %arg10[%c0_142, %c0_143, %c0_144, %c0_145], %150 {strides = array<i32>} : memref<2x16x16x8xf32, #tpu.memory_space<vmem>>, vector<2x16x16x8xf32>,
    return
  }
  func.func @transform_0(%arg0: i32) -> (i32, i32, i32, i32) {
    %c0_i32 = arith.constant 0 : i32
    %c0_i32_0 = arith.constant 0 : i32
    %c0_i32_1 = arith.constant 0 : i32
    %c0_i32_2 = arith.constant 0 : i32
    %c0_i32_3 = arith.constant 0 : i32
    return %c0_i32, %c0_i32_0, %c0_i32_1, %c0_i32_2 : i32, i32, i32, i32
  }
  func.func @transform_1(%arg0: i32) -> (i32, i32, i32) {
    %c0_i32 = arith.constant 0 : i32
    %c0_i32_0 = arith.constant 0 : i32
    %c0_i32_1 = arith.constant 0 : i32
    %c0_i32_2 = arith.constant 0 : i32
    return %c0_i32, %c0_i32_0, %c0_i32_1 : i32, i32, i32
  }
  func.func @transform_2(%arg0: i32) -> (i32, i32) {
    %c0_i32 = arith.constant 0 : i32
    %c0_i32_0 = arith.constant 0 : i32
    %c0_i32_1 = arith.constant 0 : i32
    return %c0_i32, %c0_i32_0 : i32, i32
  }
  func.func @transform_3(%arg0: i32) -> (i32, i32, i32) {
    %c0_i32 = arith.constant 0 : i32
    %c0_i32_0 = arith.constant 0 : i32
    %c0_i32_1 = arith.constant 0 : i32
    %c0_i32_2 = arith.constant 0 : i32
    return %c0_i32, %c0_i32_0, %c0_i32_1 : i32, i32, i32
  }
  func.func @transform_4(%arg0: i32) -> (i32, i32, i32) {
    %c0_i32 = arith.constant 0 : i32
    %c0_i32_0 = arith.constant 0 : i32
    %c0_i32_1 = arith.constant 0 : i32
    %c0_i32_2 = arith.constant 0 : i32
    return %c0_i32, %c0_i32_0, %c0_i32_1 : i32, i32, i32
  }
  func.func @transform_5(%arg0: i32) -> (i32, i32, i32) {
    %c0_i32 = arith.constant 0 : i32
    %c0_i32_0 = arith.constant 0 : i32
    %c0_i32_1 = arith.constant 0 : i32
    %c0_i32_2 = arith.constant 0 : i32
    return %c0_i32, %c0_i32_0, %c0_i32_1 : i32, i32, i32
  }
  func.func @transform_6(%arg0: i32) -> (i32, i32, i32) {
    %c0_i32 = arith.constant 0 : i32
    %c0_i32_0 = arith.constant 0 : i32
    %c0_i32_1 = arith.constant 0 : i32
    %c0_i32_2 = arith.constant 0 : i32
    return %c0_i32, %c0_i32_0, %c0_i32_1 : i32, i32, i32
  }
  func.func @transform_7(%arg0: i32) -> (i32, i32, i32) {
    %c0_i32 = arith.constant 0 : i32
    %c0_i32_0 = arith.constant 0 : i32
    %c0_i32_1 = arith.constant 0 : i32
    %c0_i32_2 = arith.constant 0 : i32
    return %c0_i32, %c0_i32_0, %c0_i32_1 : i32, i32, i32
  }
  func.func @transform_8(%arg0: i32) -> (i32, i32) {
    %c0_i32 = arith.constant 0 : i32
    %c0_i32_0 = arith.constant 0 : i32
    %c0_i32_1 = arith.constant 0 : i32
    return %c0_i32, %c0_i32_0 : i32, i32
  }
  func.func @transform_9(%arg0: i32) -> (i32, i32, i32, i32) {
    %c0_i32 = arith.constant 0 : i32
    %c0_i32_0 = arith.constant 0 : i32
    %c0_i32_1 = arith.constant 0 : i32
    %c0_i32_2 = arith.constant 0 : i32
    %c0_i32_3 = arith.constant 0 : i32
    return %c0_i32, %c0_i32_0, %c0_i32_1, %c0_i32_2 : i32, i32, i32, i32
  }
}

</mosaic_0001>

<llo_original>
// kernel: tpu_custom_call.1
$region0: #{tpu_custom_call.1}
  #allocation0 [shape = 'u32[]', space=smem, size = 0x4, offset = 0x4, fixed_abs, tag = 'smem constant byte address 0x4 - core index']
  #allocation1 [shape = 'u32[72,128]{1,0:T(1,128)}', space=vmem, size = 0x9000, scoped, tag = 'internal scratch']
  #allocation2 [shape = 'f32[2,18,18,64]{3,2,1,0:T(8,128)}', space=vmem, size = 0x6c000, scoped, tag = 'scratch operand']
  %s0 = inlined_call_operand.vmem [shape: f32[2,18,18,1], index: 0, kind: input, shape index: {}]
  %s1 = inlined_call_operand.vmem [shape: f32[9,1,64], index: 1, kind: input, shape index: {}]
  %s2 = inlined_call_operand.vmem [shape: f32[1,64], index: 2, kind: input, shape index: {}]
  %s3 = inlined_call_operand.vmem [shape: bf16[135,64,64], index: 3, kind: input, shape index: {}]
  %s4 = inlined_call_operand.vmem [shape: f32[15,1,64], index: 4, kind: input, shape index: {}]
  %s5 = inlined_call_operand.vmem [shape: f32[15,1,64], index: 5, kind: input, shape index: {}]
  %s6 = inlined_call_operand.vmem [shape: f32[15,1,64], index: 6, kind: input, shape index: {}]
  %s7 = inlined_call_operand.vmem [shape: bf16[9,64,8], index: 7, kind: input, shape index: {}]
  %s8 = inlined_call_operand.vmem [shape: f32[1,8], index: 8, kind: input, shape index: {}]
  %s9 = inlined_call_operand.vmem [shape: f32[2,16,16,8], index: 9, kind: output, shape index: {}]
  %s10 = sld [smem:[#allocation0]]
  $region53: #{tpu_custom_call.1} parent=0
    _
  %s12 = ssub.s32 1, %s10
  %s13 = scalar_select 0, %s12, %s10
  // Predicated region
  $region2: #{tpu_custom_call.1} parent=0 // pred_check
    _
  $region3: #{tpu_custom_call.1} parent=0 // pred_check_branch
    %15 = sbr.rel (0) target = $region5
  $region4: #{tpu_custom_call.1} parent=0 // pred_region
    _
  $region5: #{tpu_custom_call.1} parent=0 // pred_fallthru
    _
  // Predicated region
  $region6: #{tpu_custom_call.1} parent=0 // pred_check
    _
  $region7: #{tpu_custom_call.1} parent=0 // pred_check_branch
    %17 = sbr.rel (0) target = $region9
  $region8: #{tpu_custom_call.1} parent=0 // pred_region
    _
  $region9: #{tpu_custom_call.1} parent=0 // pred_fallthru
    _
  // Predicated region
  $region10: #{tpu_custom_call.1} parent=0 // pred_check
    _
  $region11: #{tpu_custom_call.1} parent=0 // pred_check_branch
    %19 = sbr.rel (0) target = $region13
  $region12: #{tpu_custom_call.1} parent=0 // pred_region
    _
  $region13: #{tpu_custom_call.1} parent=0 // pred_fallthru
    _
  // Predicated region
  $region14: #{tpu_custom_call.1} parent=0 // pred_check
    _
  $region15: #{tpu_custom_call.1} parent=0 // pred_check_branch
    %21 = sbr.rel (0) target = $region17
  $region16: #{tpu_custom_call.1} parent=0 // pred_region
    _
  $region17: #{tpu_custom_call.1} parent=0 // pred_fallthru
    _
  // Predicated region
  $region18: #{tpu_custom_call.1} parent=0 // pred_check
    _
  $region19: #{tpu_custom_call.1} parent=0 // pred_check_branch
    %23 = sbr.rel (0) target = $region21
  $region20: #{tpu_custom_call.1} parent=0 // pred_region
    _
  $region21: #{tpu_custom_call.1} parent=0 // pred_fallthru
    _
  // Predicated region
  $region22: #{tpu_custom_call.1} parent=0 // pred_check
    _
  $region23: #{tpu_custom_call.1} parent=0 // pred_check_branch
    %25 = sbr.rel (0) target = $region25
  $region24: #{tpu_custom_call.1} parent=0 // pred_region
    _
  $region25: #{tpu_custom_call.1} parent=0 // pred_fallthru
    _
  // Predicated region
  $region26: #{tpu_custom_call.1} parent=0 // pred_check
    _
  $region27: #{tpu_custom_call.1} parent=0 // pred_check_branch
    %27 = sbr.rel (0) target = $region29
  $region28: #{tpu_custom_call.1} parent=0 // pred_region
    _
  $region29: #{tpu_custom_call.1} parent=0 // pred_fallthru
    _
  // Predicated region
  $region30: #{tpu_custom_call.1} parent=0 // pred_check
    _
  $region31: #{tpu_custom_call.1} parent=0 // pred_check_branch
    %29 = sbr.rel (0) target = $region33
  $region32: #{tpu_custom_call.1} parent=0 // pred_region
    _
  $region33: #{tpu_custom_call.1} parent=0 // pred_fallthru
    _
  // Predicated region
  $region34: #{tpu_custom_call.1} parent=0 // pred_check
    _
  $region35: #{tpu_custom_call.1} parent=0 // pred_check_branch
    %31 = sbr.rel (0) target = $region37
  $region36: #{tpu_custom_call.1} parent=0 // pred_region
    _
  $region37: #{tpu_custom_call.1} parent=0 // pred_fallthru
    _
  %vm33 = vcmask 523264
  %34 = vst.msk [vmem:[#allocation2] sm:$0xff] %vm33, 0.0
  %35 = vst.msk [vmem:[#allocation2 + $0x8] sm:$0xff] %vm33, 0.0
  %vm36 = vcmask 517120
  %37 = vst.msk [vmem:[#allocation2 + $0x10] sm:$0x3] %vm36, 0.0
  %38 = vst.msk [vmem:[#allocation2 + $0x18] sm:$0xff] %vm33, 0.0
  %39 = vst.msk [vmem:[#allocation2 + $0x20] sm:$0xff] %vm33, 0.0
  %40 = vst.msk [vmem:[#allocation2 + $0x28] sm:$0x3] %vm36, 0.0
  %41 = vst.msk [vmem:[#allocation2 + $0x30] sm:$0xff] %vm33, 0.0
  %42 = vst.msk [vmem:[#allocation2 + $0x38] sm:$0xff] %vm33, 0.0
  %43 = vst.msk [vmem:[#allocation2 + $0x40] sm:$0x3] %vm36, 0.0
  %44 = vst.msk [vmem:[#allocation2 + $0x48] sm:$0xff] %vm33, 0.0
  %45 = vst.msk [vmem:[#allocation2 + $0x50] sm:$0xff] %vm33, 0.0
  %46 = vst.msk [vmem:[#allocation2 + $0x58] sm:$0x3] %vm36, 0.0
  %47 = vst.msk [vmem:[#allocation2 + $0x60] sm:$0xff] %vm33, 0.0
  %48 = vst.msk [vmem:[#allocation2 + $0x68] sm:$0xff] %vm33, 0.0
  %49 = vst.msk [vmem:[#allocation2 + $0x70] sm:$0x3] %vm36, 0.0
  %50 = vst.msk [vmem:[#allocation2 + $0x78] sm:$0xff] %vm33, 0.0
  %51 = vst.msk [vmem:[#allocation2 + $0x80] sm:$0xff] %vm33, 0.0
  %52 = vst.msk [vmem:[#allocation2 + $0x88] sm:$0x3] %vm36, 0.0
  %53 = vst.msk [vmem:[#allocation2 + $0x90] sm:$0xff] %vm33, 0.0
  %54 = vst.msk [vmem:[#allocation2 + $0x98] sm:$0xff] %vm33, 0.0
  %55 = vst.msk [vmem:[#allocation2 + $0xa0] sm:$0x3] %vm36, 0.0
  %56 = vst.msk [vmem:[#allocation2 + $0xa8] sm:$0xff] %vm33, 0.0
  %57 = vst.msk [vmem:[#allocation2 + $0xb0] sm:$0xff] %vm33, 0.0
  %58 = vst.msk [vmem:[#allocation2 + $0xb8] sm:$0x3] %vm36, 0.0
  %59 = vst.msk [vmem:[#allocation2 + $0xc0] sm:$0xff] %vm33, 0.0
  %60 = vst.msk [vmem:[#allocation2 + $0xc8] sm:$0xff] %vm33, 0.0
  %61 = vst.msk [vmem:[#allocation2 + $0xd0] sm:$0x3] %vm36, 0.0
  %62 = vst.msk [vmem:[#allocation2 + $0xd8] sm:$0xff] %vm33, 0.0
  %63 = vst.msk [vmem:[#allocation2 + $0xe0] sm:$0xff] %vm33, 0.0
  %64 = vst.msk [vmem:[#allocation2 + $0xe8] sm:$0x3] %vm36, 0.0
  %65 = vst.msk [vmem:[#allocation2 + $0xf0] sm:$0xff] %vm33, 0.0
  %66 = vst.msk [vmem:[#allocation2 + $0xf8] sm:$0xff] %vm33, 0.0
  %67 = vst.msk [vmem:[#allocation2 + $0x100] sm:$0x3] %vm36, 0.0
  %68 = vst.msk [vmem:[#allocation2 + $0x108] sm:$0xff] %vm33, 0.0
  %69 = vst.msk [vmem:[#allocation2 + $0x110] sm:$0xff] %vm33, 0.0
  %70 = vst.msk [vmem:[#allocation2 + $0x118] sm:$0x3] %vm36, 0.0
  %71 = vst.msk [vmem:[#allocation2 + $0x120] sm:$0xff] %vm33, 0.0
  %72 = vst.msk [vmem:[#allocation2 + $0x128] sm:$0xff] %vm33, 0.0
  %73 = vst.msk [vmem:[#allocation2 + $0x130] sm:$0x3] %vm36, 0.0
  %74 = vst.msk [vmem:[#allocation2 + $0x138] sm:$0xff] %vm33, 0.0
  %75 = vst.msk [vmem:[#allocation2 + $0x140] sm:$0xff] %vm33, 0.0
  %76 = vst.msk [vmem:[#allocation2 + $0x148] sm:$0x3] %vm36, 0.0
  %77 = vst.msk [vmem:[#allocation2 + $0x150] sm:$0xff] %vm33, 0.0
  %78 = vst.msk [vmem:[#allocation2 + $0x158] sm:$0xff] %vm33, 0.0
  %79 = vst.msk [vmem:[#allocation2 + $0x160] sm:$0x3] %vm36, 0.0
  %80 = vst.msk [vmem:[#allocation2 + $0x168] sm:$0xff] %vm33, 0.0
  %81 = vst.msk [vmem:[#allocation2 + $0x170] sm:$0xff] %vm33, 0.0
  %82 = vst.msk [vmem:[#allocation2 + $0x178] sm:$0x3] %vm36, 0.0
  %83 = vst.msk [vmem:[#allocation2 + $0x180] sm:$0xff] %vm33, 0.0
  %84 = vst.msk [vmem:[#allocation2 + $0x188] sm:$0xff] %vm33, 0.0
  %85 = vst.msk [vmem:[#allocation2 + $0x190] sm:$0x3] %vm36, 0.0
  %86 = vst.msk [vmem:[#allocation2 + $0x198] sm:$0xff] %vm33, 0.0
  %87 = vst.msk [vmem:[#allocation2 + $0x1a0] sm:$0xff] %vm33, 0.0
  %88 = vst.msk [vmem:[#allocation2 + $0x1a8] sm:$0x3] %vm36, 0.0
  %89 = vst.msk [vmem:[#allocation2 + $0x1b0] sm:$0xff] %vm33, 0.0
  %90 = vst.msk [vmem:[#allocation2 + $0x1b8] sm:$0xff] %vm33, 0.0
  %91 = vst.msk [vmem:[#allocation2 + $0x1c0] sm:$0x3] %vm36, 0.0
  %92 = vst.msk [vmem:[#allocation2 + $0x1c8] sm:$0xff] %vm33, 0.0
  %93 = vst.msk [vmem:[#allocation2 + $0x1d0] sm:$0xff] %vm33, 0.0
  %94 = vst.msk [vmem:[#allocation2 + $0x1d8] sm:$0x3] %vm36, 0.0
  %95 = vst.msk [vmem:[#allocation2 + $0x1e0] sm:$0xff] %vm33, 0.0
  %96 = vst.msk [vmem:[#allocation2 + $0x1e8] sm:$0xff] %vm33, 0.0
  %97 = vst.msk [vmem:[#allocation2 + $0x1f0] sm:$0x3] %vm36, 0.0
  %98 = vst.msk [vmem:[#allocation2 + $0x1f8] sm:$0xff] %vm33, 0.0
  %99 = vst.msk [vmem:[#allocation2 + $0x200] sm:$0xff] %vm33, 0.0
  %100 = vst.msk [vmem:[#allocation2 + $0x208] sm:$0x3] %vm36, 0.0
  %101 = vst.msk [vmem:[#allocation2 + $0x210] sm:$0xff] %vm33, 0.0
  %102 = vst.msk [vmem:[#allocation2 + $0x218] sm:$0xff] %vm33, 0.0
  %103 = vst.msk [vmem:[#allocation2 + $0x220] sm:$0x3] %vm36, 0.0
  %104 = vst.msk [vmem:[#allocation2 + $0x228] sm:$0xff] %vm33, 0.0
  %105 = vst.msk [vmem:[#allocation2 + $0x230] sm:$0xff] %vm33, 0.0
  %106 = vst.msk [vmem:[#allocation2 + $0x238] sm:$0x3] %vm36, 0.0
  %107 = vst.msk [vmem:[#allocation2 + $0x240] sm:$0xff] %vm33, 0.0
  %108 = vst.msk [vmem:[#allocation2 + $0x248] sm:$0xff] %vm33, 0.0
  %109 = vst.msk [vmem:[#allocation2 + $0x250] sm:$0x3] %vm36, 0.0
  %110 = vst.msk [vmem:[#allocation2 + $0x258] sm:$0xff] %vm33, 0.0
  %111 = vst.msk [vmem:[#allocation2 + $0x260] sm:$0xff] %vm33, 0.0
  %112 = vst.msk [vmem:[#allocation2 + $0x268] sm:$0x3] %vm36, 0.0
  %113 = vst.msk [vmem:[#allocation2 + $0x270] sm:$0xff] %vm33, 0.0
  %114 = vst.msk [vmem:[#allocation2 + $0x278] sm:$0xff] %vm33, 0.0
  %115 = vst.msk [vmem:[#allocation2 + $0x280] sm:$0x3] %vm36, 0.0
  %116 = vst.msk [vmem:[#allocation2 + $0x288] sm:$0xff] %vm33, 0.0
  %117 = vst.msk [vmem:[#allocation2 + $0x290] sm:$0xff] %vm33, 0.0
  %118 = vst.msk [vmem:[#allocation2 + $0x298] sm:$0x3] %vm36, 0.0
  %119 = vst.msk [vmem:[#allocation2 + $0x2a0] sm:$0xff] %vm33, 0.0
  %120 = vst.msk [vmem:[#allocation2 + $0x2a8] sm:$0xff] %vm33, 0.0
  %121 = vst.msk [vmem:[#allocation2 + $0x2b0] sm:$0x3] %vm36, 0.0
  %122 = vst.msk [vmem:[#allocation2 + $0x2b8] sm:$0xff] %vm33, 0.0
  %123 = vst.msk [vmem:[#allocation2 + $0x2c0] sm:$0xff] %vm33, 0.0
  %124 = vst.msk [vmem:[#allocation2 + $0x2c8] sm:$0x3] %vm36, 0.0
  %125 = vst.msk [vmem:[#allocation2 + $0x2d0] sm:$0xff] %vm33, 0.0
  %126 = vst.msk [vmem:[#allocation2 + $0x2d8] sm:$0xff] %vm33, 0.0
  %127 = vst.msk [vmem:[#allocation2 + $0x2e0] sm:$0x3] %vm36, 0.0
  %128 = vst.msk [vmem:[#allocation2 + $0x2e8] sm:$0xff] %vm33, 0.0
  %129 = vst.msk [vmem:[#allocation2 + $0x2f0] sm:$0xff] %vm33, 0.0
  %130 = vst.msk [vmem:[#allocation2 + $0x2f8] sm:$0x3] %vm36, 0.0
  %131 = vst.msk [vmem:[#allocation2 + $0x300] sm:$0xff] %vm33, 0.0
  %132 = vst.msk [vmem:[#allocation2 + $0x308] sm:$0xff] %vm33, 0.0
  %133 = vst.msk [vmem:[#allocation2 + $0x310] sm:$0x3] %vm36, 0.0
  %134 = vst.msk [vmem:[#allocation2 + $0x318] sm:$0xff] %vm33, 0.0
  %135 = vst.msk [vmem:[#allocation2 + $0x320] sm:$0xff] %vm33, 0.0
  %136 = vst.msk [vmem:[#allocation2 + $0x328] sm:$0x3] %vm36, 0.0
  %137 = vst.msk [vmem:[#allocation2 + $0x330] sm:$0xff] %vm33, 0.0
  %138 = vst.msk [vmem:[#allocation2 + $0x338] sm:$0xff] %vm33, 0.0
  %139 = vst.msk [vmem:[#allocation2 + $0x340] sm:$0x3] %vm36, 0.0
  %140 = vst.msk [vmem:[#allocation2 + $0x348] sm:$0xff] %vm33, 0.0
  %141 = vst.msk [vmem:[#allocation2 + $0x350] sm:$0xff] %vm33, 0.0
  %142 = vst.msk [vmem:[#allocation2 + $0x358] sm:$0x3] %vm36, 0.0
  %v143 = vld [vmem:[%s0] sm:$0xff]
  %v144 = vld [vmem:[%s0 + $0x8] sm:$0xff]
  %v145 = vld [vmem:[%s0 + $0x18] sm:$0xff]
  %v146 = vld [vmem:[%s0 + $0x20] sm:$0xff]
  %v147 = vld [vmem:[%s0 + $0x30] sm:$0xff]
  %v148 = vld [vmem:[%s0 + $0x38] sm:$0xff]
  %v149 = vld [vmem:[%s0 + $0x48] sm:$0xff]
  %v150 = vld [vmem:[%s0 + $0x50] sm:$0xff]
  %v151 = vld [vmem:[%s0 + $0x60] sm:$0xff]
  %v152 = vld [vmem:[%s0 + $0x68] sm:$0xff]
  %v153 = vld [vmem:[%s0 + $0x78] sm:$0xff]
  %v154 = vld [vmem:[%s0 + $0x80] sm:$0xff]
  %v155 = vld [vmem:[%s0 + $0x90] sm:$0xff]
  %v156 = vld [vmem:[%s0 + $0x98] sm:$0xff]
  %v157 = vld [vmem:[%s0 + $0xa8] sm:$0xff]
  %v158 = vld [vmem:[%s0 + $0xb0] sm:$0xff]
  %v159 = vld [vmem:[%s0 + $0xc0] sm:$0xff]
  %v160 = vld [vmem:[%s0 + $0xc8] sm:$0xff]
  %v161 = vld [vmem:[%s0 + $0xd8] sm:$0xff]
  %v162 = vld [vmem:[%s0 + $0xe0] sm:$0xff]
  %v163 = vld [vmem:[%s0 + $0xf0] sm:$0xff]
  %v164 = vld [vmem:[%s0 + $0xf8] sm:$0xff]
  %v165 = vld [vmem:[%s0 + $0x108] sm:$0xff]
  %v166 = vld [vmem:[%s0 + $0x110] sm:$0xff]
  %v167 = vld [vmem:[%s0 + $0x120] sm:$0xff]
  %v168 = vld [vmem:[%s0 + $0x128] sm:$0xff]
  %v169 = vld [vmem:[%s0 + $0x138] sm:$0xff]
  %v170 = vld [vmem:[%s0 + $0x140] sm:$0xff]
  %v171 = vld [vmem:[%s0 + $0x150] sm:$0xff]
  %v172 = vld [vmem:[%s0 + $0x158] sm:$0xff]
  %v173 = vld [vmem:[%s0 + $0x168] sm:$0xff]
  %v174 = vld [vmem:[%s0 + $0x170] sm:$0xff]
  %v175 = vld [vmem:[%s0 + $0x1b0] sm:$0xff]
  %v176 = vld [vmem:[%s0 + $0x1b8] sm:$0xff]
  %v177 = vld [vmem:[%s0 + $0x1c8] sm:$0xff]
  %v178 = vld [vmem:[%s0 + $0x1d0] sm:$0xff]
  %v179 = vld [vmem:[%s0 + $0x1e0] sm:$0xff]
  %v180 = vld [vmem:[%s0 + $0x1e8] sm:$0xff]
  %v181 = vld [vmem:[%s0 + $0x1f8] sm:$0xff]
  %v182 = vld [vmem:[%s0 + $0x200] sm:$0xff]
  %v183 = vld [vmem:[%s0 + $0x210] sm:$0xff]
  %v184 = vld [vmem:[%s0 + $0x218] sm:$0xff]
  %v185 = vld [vmem:[%s0 + $0x228] sm:$0xff]
  %v186 = vld [vmem:[%s0 + $0x230] sm:$0xff]
  %v187 = vld [vmem:[%s0 + $0x240] sm:$0xff]
  %v188 = vld [vmem:[%s0 + $0x248] sm:$0xff]
  %v189 = vld [vmem:[%s0 + $0x258] sm:$0xff]
  %v190 = vld [vmem:[%s0 + $0x260] sm:$0xff]
  %v191 = vld [vmem:[%s0 + $0x270] sm:$0xff]
  %v192 = vld [vmem:[%s0 + $0x278] sm:$0xff]
  %v193 = vld [vmem:[%s0 + $0x288] sm:$0xff]
  %v194 = vld [vmem:[%s0 + $0x290] sm:$0xff]
  %v195 = vld [vmem:[%s0 + $0x2a0] sm:$0xff]
  %v196 = vld [vmem:[%s0 + $0x2a8] sm:$0xff]
  %v197 = vld [vmem:[%s0 + $0x2b8] sm:$0xff]
  %v198 = vld [vmem:[%s0 + $0x2c0] sm:$0xff]
  %v199 = vld [vmem:[%s0 + $0x2d0] sm:$0xff]
  %v200 = vld [vmem:[%s0 + $0x2d8] sm:$0xff]
  %v201 = vld [vmem:[%s0 + $0x2e8] sm:$0xff]
  %v202 = vld [vmem:[%s0 + $0x2f0] sm:$0xff]
  %v203 = vld [vmem:[%s0 + $0x300] sm:$0xff]
  %v204 = vld [vmem:[%s0 + $0x308] sm:$0xff]
  %v205 = vld [vmem:[%s0 + $0x318] sm:$0xff]
  %v206 = vld [vmem:[%s0 + $0x320] sm:$0xff]
  %v207 = vld [vmem:[%s1] sm:$0x1]
  %209 = vset.pattern.permute.xlu0 0
  %210 = vperm.xlu0 %209, %v143
  %v211 = vpop.permute.xlu0 %210
  %214 = vset.pattern.permute.xlu0 0
  %215 = vperm.xlu0 %214, %v144
  %v216 = vpop.permute.xlu0 %215
  %219 = vset.pattern.permute.xlu0 0
  %220 = vperm.xlu0 %219, %v145
  %v221 = vpop.permute.xlu0 %220
  %224 = vset.pattern.permute.xlu0 0
  %225 = vperm.xlu0 %224, %v146
  %v226 = vpop.permute.xlu0 %225
  %229 = vset.pattern.permute.xlu0 0
  %230 = vperm.xlu0 %229, %v147
  %v231 = vpop.permute.xlu0 %230
  %234 = vset.pattern.permute.xlu0 0
  %235 = vperm.xlu0 %234, %v148
  %v236 = vpop.permute.xlu0 %235
  %239 = vset.pattern.permute.xlu0 0
  %240 = vperm.xlu0 %239, %v149
  %v241 = vpop.permute.xlu0 %240
  %244 = vset.pattern.permute.xlu0 0
  %245 = vperm.xlu0 %244, %v150
  %v246 = vpop.permute.xlu0 %245
  %249 = vset.pattern.permute.xlu0 0
  %250 = vperm.xlu0 %249, %v151
  %v251 = vpop.permute.xlu0 %250
  %254 = vset.pattern.permute.xlu0 0
  %255 = vperm.xlu0 %254, %v152
  %v256 = vpop.permute.xlu0 %255
  %259 = vset.pattern.permute.xlu0 0
  %260 = vperm.xlu0 %259, %v153
  %v261 = vpop.permute.xlu0 %260
  %264 = vset.pattern.permute.xlu0 0
  %265 = vperm.xlu0 %264, %v154
  %v266 = vpop.permute.xlu0 %265
  %269 = vset.pattern.permute.xlu0 0
  %270 = vperm.xlu0 %269, %v155
  %v271 = vpop.permute.xlu0 %270
  %274 = vset.pattern.permute.xlu0 0
  %275 = vperm.xlu0 %274, %v156
  %v276 = vpop.permute.xlu0 %275
  %279 = vset.pattern.permute.xlu0 0
  %280 = vperm.xlu0 %279, %v157
  %v281 = vpop.permute.xlu0 %280
  %284 = vset.pattern.permute.xlu0 0
  %285 = vperm.xlu0 %284, %v158
  %v286 = vpop.permute.xlu0 %285
  %289 = vset.pattern.permute.xlu0 0
  %290 = vperm.xlu0 %289, %v159
  %v291 = vpop.permute.xlu0 %290
  %294 = vset.pattern.permute.xlu0 0
  %295 = vperm.xlu0 %294, %v160
  %v296 = vpop.permute.xlu0 %295
  %299 = vset.pattern.permute.xlu0 0
  %300 = vperm.xlu0 %299, %v161
  %v301 = vpop.permute.xlu0 %300
  %304 = vset.pattern.permute.xlu0 0
  %305 = vperm.xlu0 %304, %v162
  %v306 = vpop.permute.xlu0 %305
  %309 = vset.pattern.permute.xlu0 0
  %310 = vperm.xlu0 %309, %v163
  %v311 = vpop.permute.xlu0 %310
  %314 = vset.pattern.permute.xlu0 0
  %315 = vperm.xlu0 %314, %v164
  %v316 = vpop.permute.xlu0 %315
  %319 = vset.pattern.permute.xlu0 0
  %320 = vperm.xlu0 %319, %v165
  %v321 = vpop.permute.xlu0 %320
  %324 = vset.pattern.permute.xlu0 0
  %325 = vperm.xlu0 %324, %v166
  %v326 = vpop.permute.xlu0 %325
  %329 = vset.pattern.permute.xlu0 0
  %330 = vperm.xlu0 %329, %v167
  %v331 = vpop.permute.xlu0 %330
  %334 = vset.pattern.permute.xlu0 0
  %335 = vperm.xlu0 %334, %v168
  %v336 = vpop.permute.xlu0 %335
  %339 = vset.pattern.permute.xlu0 0
  %340 = vperm.xlu0 %339, %v169
  %v341 = vpop.permute.xlu0 %340
  %344 = vset.pattern.permute.xlu0 0
  %345 = vperm.xlu0 %344, %v170
  %v346 = vpop.permute.xlu0 %345
  %349 = vset.pattern.permute.xlu0 0
  %350 = vperm.xlu0 %349, %v171
  %v351 = vpop.permute.xlu0 %350
  %354 = vset.pattern.permute.xlu0 0
  %355 = vperm.xlu0 %354, %v172
  %v356 = vpop.permute.xlu0 %355
  %359 = vset.pattern.permute.xlu0 0
  %360 = vperm.xlu0 %359, %v173
  %v361 = vpop.permute.xlu0 %360
  %364 = vset.pattern.permute.xlu0 0
  %365 = vperm.xlu0 %364, %v174
  %v366 = vpop.permute.xlu0 %365
  %369 = vset.pattern.permute.xlu0 0
  %370 = vperm.xlu0 %369, %v175
  %v371 = vpop.permute.xlu0 %370
  %374 = vset.pattern.permute.xlu0 0
  %375 = vperm.xlu0 %374, %v176
  %v376 = vpop.permute.xlu0 %375
  %379 = vset.pattern.permute.xlu0 0
  %380 = vperm.xlu0 %379, %v177
  %v381 = vpop.permute.xlu0 %380
  %384 = vset.pattern.permute.xlu0 0
  %385 = vperm.xlu0 %384, %v178
  %v386 = vpop.permute.xlu0 %385
  %389 = vset.pattern.permute.xlu0 0
  %390 = vperm.xlu0 %389, %v179
  %v391 = vpop.permute.xlu0 %390
  %394 = vset.pattern.permute.xlu0 0
  %395 = vperm.xlu0 %394, %v180
  %v396 = vpop.permute.xlu0 %395
  %399 = vset.pattern.permute.xlu0 0
  %400 = vperm.xlu0 %399, %v181
  %v401 = vpop.permute.xlu0 %400
  %404 = vset.pattern.permute.xlu0 0
  %405 = vperm.xlu0 %404, %v182
  %v406 = vpop.permute.xlu0 %405
  %409 = vset.pattern.permute.xlu0 0
  %410 = vperm.xlu0 %409, %v183
  %v411 = vpop.permute.xlu0 %410
  %414 = vset.pattern.permute.xlu0 0
  %415 = vperm.xlu0 %414, %v184
  %v416 = vpop.permute.xlu0 %415
  %419 = vset.pattern.permute.xlu0 0
  %420 = vperm.xlu0 %419, %v185
  %v421 = vpop.permute.xlu0 %420
  %424 = vset.pattern.permute.xlu0 0
  %425 = vperm.xlu0 %424, %v186
  %v426 = vpop.permute.xlu0 %425
  %429 = vset.pattern.permute.xlu0 0
  %430 = vperm.xlu0 %429, %v187
  %v431 = vpop.permute.xlu0 %430
  %434 = vset.pattern.permute.xlu0 0
  %435 = vperm.xlu0 %434, %v188
  %v436 = vpop.permute.xlu0 %435
  %439 = vset.pattern.permute.xlu0 0
  %440 = vperm.xlu0 %439, %v189
  %v441 = vpop.permute.xlu0 %440
  %444 = vset.pattern.permute.xlu0 0
  %445 = vperm.xlu0 %444, %v190
  %v446 = vpop.permute.xlu0 %445
  %449 = vset.pattern.permute.xlu0 0
  %450 = vperm.xlu0 %449, %v191
  %v451 = vpop.permute.xlu0 %450
  %454 = vset.pattern.permute.xlu0 0
  %455 = vperm.xlu0 %454, %v192
  %v456 = vpop.permute.xlu0 %455
  %459 = vset.pattern.permute.xlu0 0
  %460 = vperm.xlu0 %459, %v193
  %v461 = vpop.permute.xlu0 %460
  %464 = vset.pattern.permute.xlu0 0
  %465 = vperm.xlu0 %464, %v194
  %v466 = vpop.permute.xlu0 %465
  %469 = vset.pattern.permute.xlu0 0
  %470 = vperm.xlu0 %469, %v195
  %v471 = vpop.permute.xlu0 %470
  %474 = vset.pattern.permute.xlu0 0
  %475 = vperm.xlu0 %474, %v196
  %v476 = vpop.permute.xlu0 %475
  %479 = vset.pattern.permute.xlu0 0
  %480 = vperm.xlu0 %479, %v197
  %v481 = vpop.permute.xlu0 %480
  %484 = vset.pattern.permute.xlu0 0
  %485 = vperm.xlu0 %484, %v198
  %v486 = vpop.permute.xlu0 %485
  %489 = vset.pattern.permute.xlu0 0
  %490 = vperm.xlu0 %489, %v199
  %v491 = vpop.permute.xlu0 %490
  %494 = vset.pattern.permute.xlu0 0
  %495 = vperm.xlu0 %494, %v200
  %v496 = vpop.permute.xlu0 %495
  %499 = vset.pattern.permute.xlu0 0
  %500 = vperm.xlu0 %499, %v201
  %v501 = vpop.permute.xlu0 %500
  %504 = vset.pattern.permute.xlu0 0
  %505 = vperm.xlu0 %504, %v202
  %v506 = vpop.permute.xlu0 %505
  %509 = vset.pattern.permute.xlu0 0
  %510 = vperm.xlu0 %509, %v203
  %v511 = vpop.permute.xlu0 %510
  %514 = vset.pattern.permute.xlu0 0
  %515 = vperm.xlu0 %514, %v204
  %v516 = vpop.permute.xlu0 %515
  %519 = vset.pattern.permute.xlu0 0
  %520 = vperm.xlu0 %519, %v205
  %v521 = vpop.permute.xlu0 %520
  %524 = vset.pattern.permute.xlu0 0
  %525 = vperm.xlu0 %524, %v206
  %v526 = vpop.permute.xlu0 %525
  %v529 = vperm.slane %v207, 0
  %v531 = vmul.f32 %v211, %v529
  %v532 = vmul.f32 %v216, %v529
  %v533 = vmul.f32 %v221, %v529
  %v534 = vmul.f32 %v226, %v529
  %v535 = vmul.f32 %v231, %v529
  %v536 = vmul.f32 %v236, %v529
  %v537 = vmul.f32 %v241, %v529
  %v538 = vmul.f32 %v246, %v529
  %v539 = vmul.f32 %v251, %v529
  %v540 = vmul.f32 %v256, %v529
  %v541 = vmul.f32 %v261, %v529
  %v542 = vmul.f32 %v266, %v529
  %v543 = vmul.f32 %v271, %v529
  %v544 = vmul.f32 %v276, %v529
  %v545 = vmul.f32 %v281, %v529
  %v546 = vmul.f32 %v286, %v529
  %v547 = vmul.f32 %v291, %v529
  %v548 = vmul.f32 %v296, %v529
  %v549 = vmul.f32 %v301, %v529
  %v550 = vmul.f32 %v306, %v529
  %v551 = vmul.f32 %v311, %v529
  %v552 = vmul.f32 %v316, %v529
  %v553 = vmul.f32 %v321, %v529
  %v554 = vmul.f32 %v326, %v529
  %v555 = vmul.f32 %v331, %v529
  %v556 = vmul.f32 %v336, %v529
  %v557 = vmul.f32 %v341, %v529
  %v558 = vmul.f32 %v346, %v529
  %v559 = vmul.f32 %v351, %v529
  %v560 = vmul.f32 %v356, %v529
  %v561 = vmul.f32 %v361, %v529
  %v562 = vmul.f32 %v366, %v529
  %v563 = vmul.f32 %v371, %v529
  %v564 = vmul.f32 %v376, %v529
  %v565 = vmul.f32 %v381, %v529
  %v566 = vmul.f32 %v386, %v529
  %v567 = vmul.f32 %v391, %v529
  %v568 = vmul.f32 %v396, %v529
  %v569 = vmul.f32 %v401, %v529
  %v570 = vmul.f32 %v406, %v529
  %v571 = vmul.f32 %v411, %v529
  %v572 = vmul.f32 %v416, %v529
  %v573 = vmul.f32 %v421, %v529
  %v574 = vmul.f32 %v426, %v529
  %v575 = vmul.f32 %v431, %v529
  %v576 = vmul.f32 %v436, %v529
  %v577 = vmul.f32 %v441, %v529
  %v578 = vmul.f32 %v446, %v529
  %v579 = vmul.f32 %v451, %v529
  %v580 = vmul.f32 %v456, %v529
  %v581 = vmul.f32 %v461, %v529
  %v582 = vmul.f32 %v466, %v529
  %v583 = vmul.f32 %v471, %v529
  %v584 = vmul.f32 %v476, %v529
  %v585 = vmul.f32 %v481, %v529
  %v586 = vmul.f32 %v486, %v529
  %v587 = vmul.f32 %v491, %v529
  %v588 = vmul.f32 %v496, %v529
  %v589 = vmul.f32 %v501, %v529
  %v590 = vmul.f32 %v506, %v529
  %v591 = vmul.f32 %v511, %v529
  %v592 = vmul.f32 %v516, %v529
  %v593 = vmul.f32 %v521, %v529
  %v594 = vmul.f32 %v526, %v529
  %v595 = vadd.f32 %v531, 0.0
  %v596 = vadd.f32 %v532, 0.0
  %v597 = vadd.f32 %v533, 0.0
  %v598 = vadd.f32 %v534, 0.0
  %v599 = vadd.f32 %v535, 0.0
  %v600 = vadd.f32 %v536, 0.0
  %v601 = vadd.f32 %v537, 0.0
  %v602 = vadd.f32 %v538, 0.0
  %v603 = vadd.f32 %v539, 0.0
  %v604 = vadd.f32 %v540, 0.0
  %v605 = vadd.f32 %v541, 0.0
  %v606 = vadd.f32 %v542, 0.0
  %v607 = vadd.f32 %v543, 0.0
  %v608 = vadd.f32 %v544, 0.0
  %v609 = vadd.f32 %v545, 0.0
  %v610 = vadd.f32 %v546, 0.0
  %v611 = vadd.f32 %v547, 0.0
  %v612 = vadd.f32 %v548, 0.0
  %v613 = vadd.f32 %v549, 0.0
  %v614 = vadd.f32 %v550, 0.0
  %v615 = vadd.f32 %v551, 0.0
  %v616 = vadd.f32 %v552, 0.0
  %v617 = vadd.f32 %v553, 0.0
  %v618 = vadd.f32 %v554, 0.0
  %v619 = vadd.f32 %v555, 0.0
  %v620 = vadd.f32 %v556, 0.0
  %v621 = vadd.f32 %v557, 0.0
  %v622 = vadd.f32 %v558, 0.0
  %v623 = vadd.f32 %v559, 0.0
  %v624 = vadd.f32 %v560, 0.0
  %v625 = vadd.f32 %v561, 0.0
  %v626 = vadd.f32 %v562, 0.0
  %v627 = vadd.f32 %v563, 0.0
  %v628 = vadd.f32 %v564, 0.0
  %v629 = vadd.f32 %v565, 0.0
  %v630 = vadd.f32 %v566, 0.0
  %v631 = vadd.f32 %v567, 0.0
  %v632 = vadd.f32 %v568, 0.0
  %v633 = vadd.f32 %v569, 0.0
  %v634 = vadd.f32 %v570, 0.0
  %v635 = vadd.f32 %v571, 0.0
  %v636 = vadd.f32 %v572, 0.0
  %v637 = vadd.f32 %v573, 0.0
  %v638 = vadd.f32 %v574, 0.0
  %v639 = vadd.f32 %v575, 0.0
  %v640 = vadd.f32 %v576, 0.0
  %v641 = vadd.f32 %v577, 0.0
  %v642 = vadd.f32 %v578, 0.0
  %v643 = vadd.f32 %v579, 0.0
  %v644 = vadd.f32 %v580, 0.0
  %v645 = vadd.f32 %v581, 0.0
  %v646 = vadd.f32 %v582, 0.0
  %v647 = vadd.f32 %v583, 0.0
  %v648 = vadd.f32 %v584, 0.0
  %v649 = vadd.f32 %v585, 0.0
  %v650 = vadd.f32 %v586, 0.0
  %v651 = vadd.f32 %v587, 0.0
  %v652 = vadd.f32 %v588, 0.0
  %v653 = vadd.f32 %v589, 0.0
  %v654 = vadd.f32 %v590, 0.0
  %v655 = vadd.f32 %v591, 0.0
  %v656 = vadd.f32 %v592, 0.0
  %v657 = vadd.f32 %v593, 0.0
  %v658 = vadd.f32 %v594, 0.0
  %v659 = vld [vmem:[%s0 + $0x1] sm:$0xff]
  %v660 = vld [vmem:[%s0 + $0x9] sm:$0xff]
  %v661 = vld [vmem:[%s0 + $0x19] sm:$0xff]
  %v662 = vld [vmem:[%s0 + $0x21] sm:$0xff]
  %v663 = vld [vmem:[%s0 + $0x31] sm:$0xff]
  %v664 = vld [vmem:[%s0 + $0x39] sm:$0xff]
  %v665 = vld [vmem:[%s0 + $0x49] sm:$0xff]
  %v666 = vld [vmem:[%s0 + $0x51] sm:$0xff]
  %v667 = vld [vmem:[%s0 + $0x61] sm:$0xff]
  %v668 = vld [vmem:[%s0 + $0x69] sm:$0xff]
  %v669 = vld [vmem:[%s0 + $0x79] sm:$0xff]
  %v670 = vld [vmem:[%s0 + $0x81] sm:$0xff]
  %v671 = vld [vmem:[%s0 + $0x91] sm:$0xff]
  %v672 = vld [vmem:[%s0 + $0x99] sm:$0xff]
  %v673 = vld [vmem:[%s0 + $0xa9] sm:$0xff]
  %v674 = vld [vmem:[%s0 + $0xb1] sm:$0xff]
  %v675 = vld [vmem:[%s0 + $0xc1] sm:$0xff]
  %v676 = vld [vmem:[%s0 + $0xc9] sm:$0xff]
  %v677 = vld [vmem:[%s0 + $0xd9] sm:$0xff]
  %v678 = vld [vmem:[%s0 + $0xe1] sm:$0xff]
  %v679 = vld [vmem:[%s0 + $0xf1] sm:$0xff]
  %v680 = vld [vmem:[%s0 + $0xf9] sm:$0xff]
  %v681 = vld [vmem:[%s0 + $0x109] sm:$0xff]
  %v682 = vld [vmem:[%s0 + $0x111] sm:$0xff]
  %v683 = vld [vmem:[%s0 + $0x121] sm:$0xff]
  %v684 = vld [vmem:[%s0 + $0x129] sm:$0xff]
  %v685 = vld [vmem:[%s0 + $0x139] sm:$0xff]
  %v686 = vld [vmem:[%s0 + $0x141] sm:$0xff]
  %v687 = vld [vmem:[%s0 + $0x151] sm:$0xff]
  %v688 = vld [vmem:[%s0 + $0x159] sm:$0xff]
  %v689 = vld [vmem:[%s0 + $0x169] sm:$0xff]
  %v690 = vld [vmem:[%s0 + $0x171] sm:$0xff]
  %v691 = vld [vmem:[%s0 + $0x1b1] sm:$0xff]
  %v692 = vld [vmem:[%s0 + $0x1b9] sm:$0xff]
  %v693 = vld [vmem:[%s0 + $0x1c9] sm:$0xff]
  %v694 = vld [vmem:[%s0 + $0x1d1] sm:$0xff]
  %v695 = vld [vmem:[%s0 + $0x1e1] sm:$0xff]
  %v696 = vld [vmem:[%s0 + $0x1e9] sm:$0xff]
  %v697 = vld [vmem:[%s0 + $0x1f9] sm:$0xff]
  %v698 = vld [vmem:[%s0 + $0x201] sm:$0xff]
  %v699 = vld [vmem:[%s0 + $0x211] sm:$0xff]
  %v700 = vld [vmem:[%s0 + $0x219] sm:$0xff]
  %v701 = vld [vmem:[%s0 + $0x229] sm:$0xff]
  %v702 = vld [vmem:[%s0 + $0x231] sm:$0xff]
  %v703 = vld [vmem:[%s0 + $0x241] sm:$0xff]
  %v704 = vld [vmem:[%s0 + $0x249] sm:$0xff]
  %v705 = vld [vmem:[%s0 + $0x259] sm:$0xff]
  %v706 = vld [vmem:[%s0 + $0x261] sm:$0xff]
  %v707 = vld [vmem:[%s0 + $0x271] sm:$0xff]
  %v708 = vld [vmem:[%s0 + $0x279] sm:$0xff]
  %v709 = vld [vmem:[%s0 + $0x289] sm:$0xff]
  %v710 = vld [vmem:[%s0 + $0x291] sm:$0xff]
  %v711 = vld [vmem:[%s0 + $0x2a1] sm:$0xff]
  %v712 = vld [vmem:[%s0 + $0x2a9] sm:$0xff]
  %v713 = vld [vmem:[%s0 + $0x2b9] sm:$0xff]
  %v714 = vld [vmem:[%s0 + $0x2c1] sm:$0xff]
  %v715 = vld [vmem:[%s0 + $0x2d1] sm:$0xff]
  %v716 = vld [vmem:[%s0 + $0x2d9] sm:$0xff]
  %v717 = vld [vmem:[%s0 + $0x2e9] sm:$0xff]
  %v718 = vld [vmem:[%s0 + $0x2f1] sm:$0xff]
  %v719 = vld [vmem:[%s0 + $0x301] sm:$0xff]
  %v720 = vld [vmem:[%s0 + $0x309] sm:$0xff]
  %v721 = vld [vmem:[%s0 + $0x319] sm:$0xff]
  %v722 = vld [vmem:[%s0 + $0x321] sm:$0xff]
  %s723 = scalar_lea.vmem %s1, 1
  %v724 = vld [vmem:[%s723] sm:$0x1]
  %726 = vset.pattern.permute.xlu0 0
  %727 = vperm.xlu0 %726, %v659
  %v728 = vpop.permute.xlu0 %727
  %731 = vset.pattern.permute.xlu0 0
  %732 = vperm.xlu0 %731, %v660
  %v733 = vpop.permute.xlu0 %732
  %736 = vset.pattern.permute.xlu0 0
  %737 = vperm.xlu0 %736, %v661
  %v738 = vpop.permute.xlu0 %737
  %741 = vset.pattern.permute.xlu0 0
  %742 = vperm.xlu0 %741, %v662
  %v743 = vpop.permute.xlu0 %742
  %746 = vset.pattern.permute.xlu0 0
  %747 = vperm.xlu0 %746, %v663
  %v748 = vpop.permute.xlu0 %747
  %751 = vset.pattern.permute.xlu0 0
  %752 = vperm.xlu0 %751, %v664
  %v753 = vpop.permute.xlu0 %752
  %756 = vset.pattern.permute.xlu0 0
  %757 = vperm.xlu0 %756, %v665
  %v758 = vpop.permute.xlu0 %757
  %761 = vset.pattern.permute.xlu0 0
  %762 = vperm.xlu0 %761, %v666
  %v763 = vpop.permute.xlu0 %762
  %766 = vset.pattern.permute.xlu0 0
  %767 = vperm.xlu0 %766, %v667
  %v768 = vpop.permute.xlu0 %767
  %771 = vset.pattern.permute.xlu0 0
  %772 = vperm.xlu0 %771, %v668
  %v773 = vpop.permute.xlu0 %772
  %776 = vset.pattern.permute.xlu0 0
  %777 = vperm.xlu0 %776, %v669
  %v778 = vpop.permute.xlu0 %777
  %781 = vset.pattern.permute.xlu0 0
  %782 = vperm.xlu0 %781, %v670
  %v783 = vpop.permute.xlu0 %782
  %786 = vset.pattern.permute.xlu0 0
  %787 = vperm.xlu0 %786, %v671
  %v788 = vpop.permute.xlu0 %787
  %791 = vset.pattern.permute.xlu0 0
  %792 = vperm.xlu0 %791, %v672
  %v793 = vpop.permute.xlu0 %792
  %796 = vset.pattern.permute.xlu0 0
  %797 = vperm.xlu0 %796, %v673
  %v798 = vpop.permute.xlu0 %797
  %801 = vset.pattern.permute.xlu0 0
  %802 = vperm.xlu0 %801, %v674
  %v803 = vpop.permute.xlu0 %802
  %806 = vset.pattern.permute.xlu0 0
  %807 = vperm.xlu0 %806, %v675
  %v808 = vpop.permute.xlu0 %807
  %811 = vset.pattern.permute.xlu0 0
  %812 = vperm.xlu0 %811, %v676
  %v813 = vpop.permute.xlu0 %812
  %816 = vset.pattern.permute.xlu0 0
  %817 = vperm.xlu0 %816, %v677
  %v818 = vpop.permute.xlu0 %817
  %821 = vset.pattern.permute.xlu0 0
  %822 = vperm.xlu0 %821, %v678
  %v823 = vpop.permute.xlu0 %822
  %826 = vset.pattern.permute.xlu0 0
  %827 = vperm.xlu0 %826, %v679
  %v828 = vpop.permute.xlu0 %827
  %831 = vset.pattern.permute.xlu0 0
  %832 = vperm.xlu0 %831, %v680
  %v833 = vpop.permute.xlu0 %832
  %836 = vset.pattern.permute.xlu0 0
  %837 = vperm.xlu0 %836, %v681
  %v838 = vpop.permute.xlu0 %837
  %841 = vset.pattern.permute.xlu0 0
  %842 = vperm.xlu0 %841, %v682
  %v843 = vpop.permute.xlu0 %842
  %846 = vset.pattern.permute.xlu0 0
  %847 = vperm.xlu0 %846, %v683
  %v848 = vpop.permute.xlu0 %847
  %851 = vset.pattern.permute.xlu0 0
  %852 = vperm.xlu0 %851, %v684
  %v853 = vpop.permute.xlu0 %852
  %856 = vset.pattern.permute.xlu0 0
  %857 = vperm.xlu0 %856, %v685
  %v858 = vpop.permute.xlu0 %857
  %861 = vset.pattern.permute.xlu0 0
  %862 = vperm.xlu0 %861, %v686
  %v863 = vpop.permute.xlu0 %862
  %866 = vset.pattern.permute.xlu0 0
  %867 = vperm.xlu0 %866, %v687
  %v868 = vpop.permute.xlu0 %867
  %871 = vset.pattern.permute.xlu0 0
  %872 = vperm.xlu0 %871, %v688
  %v873 = vpop.permute.xlu0 %872
  %876 = vset.pattern.permute.xlu0 0
  %877 = vperm.xlu0 %876, %v689
  %v878 = vpop.permute.xlu0 %877
  %881 = vset.pattern.permute.xlu0 0
  %882 = vperm.xlu0 %881, %v690
  %v883 = vpop.permute.xlu0 %882
  %886 = vset.pattern.permute.xlu0 0
  %887 = vperm.xlu0 %886, %v691
  %v888 = vpop.permute.xlu0 %887
  %891 = vset.pattern.permute.xlu0 0
  %892 = vperm.xlu0 %891, %v692
  %v893 = vpop.permute.xlu0 %892
  %896 = vset.pattern.permute.xlu0 0
  %897 = vperm.xlu0 %896, %v693
  %v898 = vpop.permute.xlu0 %897
  %901 = vset.pattern.permute.xlu0 0
  %902 = vperm.xlu0 %901, %v694
  %v903 = vpop.permute.xlu0 %902
  %906 = vset.pattern.permute.xlu0 0
  %907 = vperm.xlu0 %906, %v695
  %v908 = vpop.permute.xlu0 %907
  %911 = vset.pattern.permute.xlu0 0
  %912 = vperm.xlu0 %911, %v696
  %v913 = vpop.permute.xlu0 %912
  %916 = vset.pattern.permute.xlu0 0
  %917 = vperm.xlu0 %916, %v697
  %v918 = vpop.permute.xlu0 %917
  %921 = vset.pattern.permute.xlu0 0
  %922 = vperm.xlu0 %921, %v698
  %v923 = vpop.permute.xlu0 %922
  %926 = vset.pattern.permute.xlu0 0
  %927 = vperm.xlu0 %926, %v699
  %v928 = vpop.permute.xlu0 %927
  %931 = vset.pattern.permute.xlu0 0
  %932 = vperm.xlu0 %931, %v700
  %v933 = vpop.permute.xlu0 %932
  %936 = vset.pattern.permute.xlu0 0
  %937 = vperm.xlu0 %936, %v701
  %v938 = vpop.permute.xlu0 %937
  %941 = vset.pattern.permute.xlu0 0
  %942 = vperm.xlu0 %941, %v702
  %v943 = vpop.permute.xlu0 %942
  %946 = vset.pattern.permute.xlu0 0
  %947 = vperm.xlu0 %946, %v703
  %v948 = vpop.permute.xlu0 %947
  %951 = vset.pattern.permute.xlu0 0
  %952 = vperm.xlu0 %951, %v704
  %v953 = vpop.permute.xlu0 %952
  %956 = vset.pattern.permute.xlu0 0
  %957 = vperm.xlu0 %956, %v705
  %v958 = vpop.permute.xlu0 %957
  %961 = vset.pattern.permute.xlu0 0
  %962 = vperm.xlu0 %961, %v706
  %v963 = vpop.permute.xlu0 %962
  %966 = vset.pattern.permute.xlu0 0
  %967 = vperm.xlu0 %966, %v707
  %v968 = vpop.permute.xlu0 %967
  %971 = vset.pattern.permute.xlu0 0
  %972 = vperm.xlu0 %971, %v708
  %v973 = vpop.permute.xlu0 %972
  %976 = vset.pattern.permute.xlu0 0
  %977 = vperm.xlu0 %976, %v709
  %v978 = vpop.permute.xlu0 %977
  %981 = vset.pattern.permute.xlu0 0
  %982 = vperm.xlu0 %981, %v710
  %v983 = vpop.permute.xlu0 %982
  %986 = vset.pattern.permute.xlu0 0
  %987 = vperm.xlu0 %986, %v711
  %v988 = vpop.permute.xlu0 %987
  %991 = vset.pattern.permute.xlu0 0
  %992 = vperm.xlu0 %991, %v712
  %v993 = vpop.permute.xlu0 %992
  %996 = vset.pattern.permute.xlu0 0
  %997 = vperm.xlu0 %996, %v713
  %v998 = vpop.permute.xlu0 %997
  %1001 = vset.pattern.permute.xlu0 0
  %1002 = vperm.xlu0 %1001, %v714
  %v1003 = vpop.permute.xlu0 %1002
  %1006 = vset.pattern.permute.xlu0 0
  %1007 = vperm.xlu0 %1006, %v715
  %v1008 = vpop.permute.xlu0 %1007
  %1011 = vset.pattern.permute.xlu0 0
  %1012 = vperm.xlu0 %1011, %v716
  %v1013 = vpop.permute.xlu0 %1012
  %1016 = vset.pattern.permute.xlu0 0
  %1017 = vperm.xlu0 %1016, %v717
  %v1018 = vpop.permute.xlu0 %1017
  %1021 = vset.pattern.permute.xlu0 0
  %1022 = vperm.xlu0 %1021, %v718
  %v1023 = vpop.permute.xlu0 %1022
  %1026 = vset.pattern.permute.xlu0 0
  %1027 = vperm.xlu0 %1026, %v719
  %v1028 = vpop.permute.xlu0 %1027
  %1031 = vset.pattern.permute.xlu0 0
  %1032 = vperm.xlu0 %1031, %v720
  %v1033 = vpop.permute.xlu0 %1032
  %1036 = vset.pattern.permute.xlu0 0
  %1037 = vperm.xlu0 %1036, %v721
  %v1038 = vpop.permute.xlu0 %1037
  %1041 = vset.pattern.permute.xlu0 0
  %1042 = vperm.xlu0 %1041, %v722
  %v1043 = vpop.permute.xlu0 %1042
  %v1046 = vperm.slane %v724, 0
  %v1048 = vmul.f32 %v728, %v1046
  %v1049 = vmul.f32 %v733, %v1046
  %v1050 = vmul.f32 %v738, %v1046
  %v1051 = vmul.f32 %v743, %v1046
  %v1052 = vmul.f32 %v748, %v1046
  %v1053 = vmul.f32 %v753, %v1046
  %v1054 = vmul.f32 %v758, %v1046
  %v1055 = vmul.f32 %v763, %v1046
  %v1056 = vmul.f32 %v768, %v1046
  %v1057 = vmul.f32 %v773, %v1046
  %v1058 = vmul.f32 %v778, %v1046
  %v1059 = vmul.f32 %v783, %v1046
  %v1060 = vmul.f32 %v788, %v1046
  %v1061 = vmul.f32 %v793, %v1046
  %v1062 = vmul.f32 %v798, %v1046
  %v1063 = vmul.f32 %v803, %v1046
  %v1064 = vmul.f32 %v808, %v1046
  %v1065 = vmul.f32 %v813, %v1046
  %v1066 = vmul.f32 %v818, %v1046
  %v1067 = vmul.f32 %v823, %v1046
  %v1068 = vmul.f32 %v828, %v1046
  %v1069 = vmul.f32 %v833, %v1046
  %v1070 = vmul.f32 %v838, %v1046
  %v1071 = vmul.f32 %v843, %v1046
  %v1072 = vmul.f32 %v848, %v1046
  %v1073 = vmul.f32 %v853, %v1046
  %v1074 = vmul.f32 %v858, %v1046
  %v1075 = vmul.f32 %v863, %v1046
  %v1076 = vmul.f32 %v868, %v1046
  %v1077 = vmul.f32 %v873, %v1046
  %v1078 = vmul.f32 %v878, %v1046
  %v1079 = vmul.f32 %v883, %v1046
  %v1080 = vmul.f32 %v888, %v1046
  %v1081 = vmul.f32 %v893, %v1046
  %v1082 = vmul.f32 %v898, %v1046
  %v1083 = vmul.f32 %v903, %v1046
  %v1084 = vmul.f32 %v908, %v1046
  %v1085 = vmul.f32 %v913, %v1046
  %v1086 = vmul.f32 %v918, %v1046
  %v1087 = vmul.f32 %v923, %v1046
  %v1088 = vmul.f32 %v928, %v1046
  %v1089 = vmul.f32 %v933, %v1046
  %v1090 = vmul.f32 %v938, %v1046
  %v1091 = vmul.f32 %v943, %v1046
  %v1092 = vmul.f32 %v948, %v1046
  %v1093 = vmul.f32 %v953, %v1046
  %v1094 = vmul.f32 %v958, %v1046
  %v1095 = vmul.f32 %v963, %v1046
  %v1096 = vmul.f32 %v968, %v1046
  %v1097 = vmul.f32 %v973, %v1046
  %v1098 = vmul.f32 %v978, %v1046
  %v1099 = vmul.f32 %v983, %v1046
  %v1100 = vmul.f32 %v988, %v1046
  %v1101 = vmul.f32 %v993, %v1046
  %v1102 = vmul.f32 %v998, %v1046
  %v1103 = vmul.f32 %v1003, %v1046
  %v1104 = vmul.f32 %v1008, %v1046
  %v1105 = vmul.f32 %v1013, %v1046
  %v1106 = vmul.f32 %v1018, %v1046
  %v1107 = vmul.f32 %v1023, %v1046
  %v1108 = vmul.f32 %v1028, %v1046
  %v1109 = vmul.f32 %v1033, %v1046
  %v1110 = vmul.f32 %v1038, %v1046
  %v1111 = vmul.f32 %v1043, %v1046
  %v1112 = vadd.f32 %v595, %v1048
  %v1113 = vadd.f32 %v596, %v1049
  %v1114 = vadd.f32 %v597, %v1050
  %v1115 = vadd.f32 %v598, %v1051
  %v1116 = vadd.f32 %v599, %v1052
  %v1117 = vadd.f32 %v600, %v1053
  %v1118 = vadd.f32 %v601, %v1054
  %v1119 = vadd.f32 %v602, %v1055
  %v1120 = vadd.f32 %v603, %v1056
  %v1121 = vadd.f32 %v604, %v1057
  %v1122 = vadd.f32 %v605, %v1058
  %v1123 = vadd.f32 %v606, %v1059
  %v1124 = vadd.f32 %v607, %v1060
  %v1125 = vadd.f32 %v608, %v1061
  %v1126 = vadd.f32 %v609, %v1062
  %v1127 = vadd.f32 %v610, %v1063
  %v1128 = vadd.f32 %v611, %v1064
  %v1129 = vadd.f32 %v612, %v1065
  %v1130 = vadd.f32 %v613, %v1066
  %v1131 = vadd.f32 %v614, %v1067
  %v1132 = vadd.f32 %v615, %v1068
  %v1133 = vadd.f32 %v616, %v1069
  %v1134 = vadd.f32 %v617, %v1070
  %v1135 = vadd.f32 %v618, %v1071
  %v1136 = vadd.f32 %v619, %v1072
  %v1137 = vadd.f32 %v620, %v1073
  %v1138 = vadd.f32 %v621, %v1074
  %v1139 = vadd.f32 %v622, %v1075
  %v1140 = vadd.f32 %v623, %v1076
  %v1141 = vadd.f32 %v624, %v1077
  %v1142 = vadd.f32 %v625, %v1078
  %v1143 = vadd.f32 %v626, %v1079
  %v1144 = vadd.f32 %v627, %v1080
  %v1145 = vadd.f32 %v628, %v1081
  %v1146 = vadd.f32 %v629, %v1082
  %v1147 = vadd.f32 %v630, %v1083
  %v1148 = vadd.f32 %v631, %v1084
  %v1149 = vadd.f32 %v632, %v1085
  %v1150 = vadd.f32 %v633, %v1086
  %v1151 = vadd.f32 %v634, %v1087
  %v1152 = vadd.f32 %v635, %v1088
  %v1153 = vadd.f32 %v636, %v1089
  %v1154 = vadd.f32 %v637, %v1090
  %v1155 = vadd.f32 %v638, %v1091
  %v1156 = vadd.f32 %v639, %v1092
  %v1157 = vadd.f32 %v640, %v1093
  %v1158 = vadd.f32 %v641, %v1094
  %v1159 = vadd.f32 %v642, %v1095
  %v1160 = vadd.f32 %v643, %v1096
  %v1161 = vadd.f32 %v644, %v1097
  %v1162 = vadd.f32 %v645, %v1098
  %v1163 = vadd.f32 %v646, %v1099
  %v1164 = vadd.f32 %v647, %v1100
  %v1165 = vadd.f32 %v648, %v1101
  %v1166 = vadd.f32 %v649, %v1102
  %v1167 = vadd.f32 %v650, %v1103
  %v1168 = vadd.f32 %v651, %v1104
  %v1169 = vadd.f32 %v652, %v1105
  %v1170 = vadd.f32 %v653, %v1106
  %v1171 = vadd.f32 %v654, %v1107
  %v1172 = vadd.f32 %v655, %v1108
  %v1173 = vadd.f32 %v656, %v1109
  %v1174 = vadd.f32 %v657, %v1110
  %v1175 = vadd.f32 %v658, %v1111
  %v1176 = vld [vmem:[%s0 + $0x2] sm:$0xff]
  %v1177 = vld [vmem:[%s0 + $0xa] sm:$0xff]
  %v1178 = vld [vmem:[%s0 + $0x1a] sm:$0xff]
  %v1179 = vld [vmem:[%s0 + $0x22] sm:$0xff]
  %v1180 = vld [vmem:[%s0 + $0x32] sm:$0xff]
  %v1181 = vld [vmem:[%s0 + $0x3a] sm:$0xff]
  %v1182 = vld [vmem:[%s0 + $0x4a] sm:$0xff]
  %v1183 = vld [vmem:[%s0 + $0x52] sm:$0xff]
  %v1184 = vld [vmem:[%s0 + $0x62] sm:$0xff]
  %v1185 = vld [vmem:[%s0 + $0x6a] sm:$0xff]
  %v1186 = vld [vmem:[%s0 + $0x7a] sm:$0xff]
  %v1187 = vld [vmem:[%s0 + $0x82] sm:$0xff]
  %v1188 = vld [vmem:[%s0 + $0x92] sm:$0xff]
  %v1189 = vld [vmem:[%s0 + $0x9a] sm:$0xff]
  %v1190 = vld [vmem:[%s0 + $0xaa] sm:$0xff]
  %v1191 = vld [vmem:[%s0 + $0xb2] sm:$0xff]
  %v1192 = vld [vmem:[%s0 + $0xc2] sm:$0xff]
  %v1193 = vld [vmem:[%s0 + $0xca] sm:$0xff]
  %v1194 = vld [vmem:[%s0 + $0xda] sm:$0xff]
  %v1195 = vld [vmem:[%s0 + $0xe2] sm:$0xff]
  %v1196 = vld [vmem:[%s0 + $0xf2] sm:$0xff]
  %v1197 = vld [vmem:[%s0 + $0xfa] sm:$0xff]
  %v1198 = vld [vmem:[%s0 + $0x10a] sm:$0xff]
  %v1199 = vld [vmem:[%s0 + $0x112] sm:$0xff]
  %v1200 = vld [vmem:[%s0 + $0x122] sm:$0xff]
  %v1201 = vld [vmem:[%s0 + $0x12a] sm:$0xff]
  %v1202 = vld [vmem:[%s0 + $0x13a] sm:$0xff]
  %v1203 = vld [vmem:[%s0 + $0x142] sm:$0xff]
  %v1204 = vld [vmem:[%s0 + $0x152] sm:$0xff]
  %v1205 = vld [vmem:[%s0 + $0x15a] sm:$0xff]
  %v1206 = vld [vmem:[%s0 + $0x16a] sm:$0xff]
  %v1207 = vld [vmem:[%s0 + $0x172] sm:$0xff]
  %v1208 = vld [vmem:[%s0 + $0x1b2] sm:$0xff]
  %v1209 = vld [vmem:[%s0 + $0x1ba] sm:$0xff]
  %v1210 = vld [vmem:[%s0 + $0x1ca] sm:$0xff]
  %v1211 = vld [vmem:[%s0 + $0x1d2] sm:$0xff]
  %v1212 = vld [vmem:[%s0 + $0x1e2] sm:$0xff]
  %v1213 = vld [vmem:[%s0 + $0x1ea] sm:$0xff]
  %v1214 = vld [vmem:[%s0 + $0x1fa] sm:$0xff]
  %v1215 = vld [vmem:[%s0 + $0x202] sm:$0xff]
  %v1216 = vld [vmem:[%s0 + $0x212] sm:$0xff]
  %v1217 = vld [vmem:[%s0 + $0x21a] sm:$0xff]
  %v1218 = vld [vmem:[%s0 + $0x22a] sm:$0xff]
  %v1219 = vld [vmem:[%s0 + $0x232] sm:$0xff]
  %v1220 = vld [vmem:[%s0 + $0x242] sm:$0xff]
  %v1221 = vld [vmem:[%s0 + $0x24a] sm:$0xff]
  %v1222 = vld [vmem:[%s0 + $0x25a] sm:$0xff]
  %v1223 = vld [vmem:[%s0 + $0x262] sm:$0xff]
  %v1224 = vld [vmem:[%s0 + $0x272] sm:$0xff]
  %v1225 = vld [vmem:[%s0 + $0x27a] sm:$0xff]
  %v1226 = vld [vmem:[%s0 + $0x28a] sm:$0xff]
  %v1227 = vld [vmem:[%s0 + $0x292] sm:$0xff]
  %v1228 = vld [vmem:[%s0 + $0x2a2] sm:$0xff]
  %v1229 = vld [vmem:[%s0 + $0x2aa] sm:$0xff]
  %v1230 = vld [vmem:[%s0 + $0x2ba] sm:$0xff]
  %v1231 = vld [vmem:[%s0 + $0x2c2] sm:$0xff]
  %v1232 = vld [vmem:[%s0 + $0x2d2] sm:$0xff]
  %v1233 = vld [vmem:[%s0 + $0x2da] sm:$0xff]
  %v1234 = vld [vmem:[%s0 + $0x2ea] sm:$0xff]
  %v1235 = vld [vmem:[%s0 + $0x2f2] sm:$0xff]
  %v1236 = vld [vmem:[%s0 + $0x302] sm:$0xff]
  %v1237 = vld [vmem:[%s0 + $0x30a] sm:$0xff]
  %v1238 = vld [vmem:[%s0 + $0x31a] sm:$0xff]
  %v1239 = vld [vmem:[%s0 + $0x322] sm:$0xff]
  %s1240 = scalar_lea.vmem %s1, 2
  %v1241 = vld [vmem:[%s1240] sm:$0x1]
  %1243 = vset.pattern.permute.xlu0 0
  %1244 = vperm.xlu0 %1243, %v1176
  %v1245 = vpop.permute.xlu0 %1244
  %1248 = vset.pattern.permute.xlu0 0
  %1249 = vperm.xlu0 %1248, %v1177
  %v1250 = vpop.permute.xlu0 %1249
  %1253 = vset.pattern.permute.xlu0 0
  %1254 = vperm.xlu0 %1253, %v1178
  %v1255 = vpop.permute.xlu0 %1254
  %1258 = vset.pattern.permute.xlu0 0
  %1259 = vperm.xlu0 %1258, %v1179
  %v1260 = vpop.permute.xlu0 %1259
  %1263 = vset.pattern.permute.xlu0 0
  %1264 = vperm.xlu0 %1263, %v1180
  %v1265 = vpop.permute.xlu0 %1264
  %1268 = vset.pattern.permute.xlu0 0
  %1269 = vperm.xlu0 %1268, %v1181
  %v1270 = vpop.permute.xlu0 %1269
  %1273 = vset.pattern.permute.xlu0 0
  %1274 = vperm.xlu0 %1273, %v1182
  %v1275 = vpop.permute.xlu0 %1274
  %1278 = vset.pattern.permute.xlu0 0
  %1279 = vperm.xlu0 %1278, %v1183
  %v1280 = vpop.permute.xlu0 %1279
  %1283 = vset.pattern.permute.xlu0 0
  %1284 = vperm.xlu0 %1283, %v1184
  %v1285 = vpop.permute.xlu0 %1284
  %1288 = vset.pattern.permute.xlu0 0
  %1289 = vperm.xlu0 %1288, %v1185
  %v1290 = vpop.permute.xlu0 %1289
  %1293 = vset.pattern.permute.xlu0 0
  %1294 = vperm.xlu0 %1293, %v1186
  %v1295 = vpop.permute.xlu0 %1294
  %1298 = vset.pattern.permute.xlu0 0
  %1299 = vperm.xlu0 %1298, %v1187
  %v1300 = vpop.permute.xlu0 %1299
  %1303 = vset.pattern.permute.xlu0 0
  %1304 = vperm.xlu0 %1303, %v1188
  %v1305 = vpop.permute.xlu0 %1304
  %1308 = vset.pattern.permute.xlu0 0
  %1309 = vperm.xlu0 %1308, %v1189
  %v1310 = vpop.permute.xlu0 %1309
  %1313 = vset.pattern.permute.xlu0 0
  %1314 = vperm.xlu0 %1313, %v1190
  %v1315 = vpop.permute.xlu0 %1314
  %1318 = vset.pattern.permute.xlu0 0
  %1319 = vperm.xlu0 %1318, %v1191
  %v1320 = vpop.permute.xlu0 %1319
  %1323 = vset.pattern.permute.xlu0 0
  %1324 = vperm.xlu0 %1323, %v1192
  %v1325 = vpop.permute.xlu0 %1324
  %1328 = vset.pattern.permute.xlu0 0
  %1329 = vperm.xlu0 %1328, %v1193
  %v1330 = vpop.permute.xlu0 %1329
  %1333 = vset.pattern.permute.xlu0 0
  %1334 = vperm.xlu0 %1333, %v1194
  %v1335 = vpop.permute.xlu0 %1334
  %1338 = vset.pattern.permute.xlu0 0
  %1339 = vperm.xlu0 %1338, %v1195
  %v1340 = vpop.permute.xlu0 %1339
  %1343 = vset.pattern.permute.xlu0 0
  %1344 = vperm.xlu0 %1343, %v1196
  %v1345 = vpop.permute.xlu0 %1344
  %1348 = vset.pattern.permute.xlu0 0
  %1349 = vperm.xlu0 %1348, %v1197
  %v1350 = vpop.permute.xlu0 %1349
  %1353 = vset.pattern.permute.xlu0 0
  %1354 = vperm.xlu0 %1353, %v1198
  %v1355 = vpop.permute.xlu0 %1354
  %1358 = vset.pattern.permute.xlu0 0
  %1359 = vperm.xlu0 %1358, %v1199
  %v1360 = vpop.permute.xlu0 %1359
  %1363 = vset.pattern.permute.xlu0 0
  %1364 = vperm.xlu0 %1363, %v1200
  %v1365 = vpop.permute.xlu0 %1364
  %1368 = vset.pattern.permute.xlu0 0
  %1369 = vperm.xlu0 %1368, %v1201
  %v1370 = vpop.permute.xlu0 %1369
  %1373 = vset.pattern.permute.xlu0 0
  %1374 = vperm.xlu0 %1373, %v1202
  %v1375 = vpop.permute.xlu0 %1374
  %1378 = vset.pattern.permute.xlu0 0
  %1379 = vperm.xlu0 %1378, %v1203
  %v1380 = vpop.permute.xlu0 %1379
  %1383 = vset.pattern.permute.xlu0 0
  %1384 = vperm.xlu0 %1383, %v1204
  %v1385 = vpop.permute.xlu0 %1384
  %1388 = vset.pattern.permute.xlu0 0
  %1389 = vperm.xlu0 %1388, %v1205
  %v1390 = vpop.permute.xlu0 %1389
  %1393 = vset.pattern.permute.xlu0 0
  %1394 = vperm.xlu0 %1393, %v1206
  %v1395 = vpop.permute.xlu0 %1394
  %1398 = vset.pattern.permute.xlu0 0
  %1399 = vperm.xlu0 %1398, %v1207
  %v1400 = vpop.permute.xlu0 %1399
  %1403 = vset.pattern.permute.xlu0 0
  %1404 = vperm.xlu0 %1403, %v1208
  %v1405 = vpop.permute.xlu0 %1404
  %1408 = vset.pattern.permute.xlu0 0
  %1409 = vperm.xlu0 %1408, %v1209
  %v1410 = vpop.permute.xlu0 %1409
  %1413 = vset.pattern.permute.xlu0 0
  %1414 = vperm.xlu0 %1413, %v1210
  %v1415 = vpop.permute.xlu0 %1414
  %1418 = vset.pattern.permute.xlu0 0
  %1419 = vperm.xlu0 %1418, %v1211
  %v1420 = vpop.permute.xlu0 %1419
  %1423 = vset.pattern.permute.xlu0 0
  %1424 = vperm.xlu0 %1423, %v1212
  %v1425 = vpop.permute.xlu0 %1424
  %1428 = vset.pattern.permute.xlu0 0
  %1429 = vperm.xlu0 %1428, %v1213
  %v1430 = vpop.permute.xlu0 %1429
  %1433 = vset.pattern.permute.xlu0 0
  %1434 = vperm.xlu0 %1433, %v1214
  %v1435 = vpop.permute.xlu0 %1434
  %1438 = vset.pattern.permute.xlu0 0
  %1439 = vperm.xlu0 %1438, %v1215
  %v1440 = vpop.permute.xlu0 %1439
  %1443 = vset.pattern.permute.xlu0 0
  %1444 = vperm.xlu0 %1443, %v1216
  %v1445 = vpop.permute.xlu0 %1444
  %1448 = vset.pattern.permute.xlu0 0
  %1449 = vperm.xlu0 %1448, %v1217
  %v1450 = vpop.permute.xlu0 %1449
  %1453 = vset.pattern.permute.xlu0 0
  %1454 = vperm.xlu0 %1453, %v1218
  %v1455 = vpop.permute.xlu0 %1454
  %1458 = vset.pattern.permute.xlu0 0
  %1459 = vperm.xlu0 %1458, %v1219
  %v1460 = vpop.permute.xlu0 %1459
  %1463 = vset.pattern.permute.xlu0 0
  %1464 = vperm.xlu0 %1463, %v1220
  %v1465 = vpop.permute.xlu0 %1464
  %1468 = vset.pattern.permute.xlu0 0
  %1469 = vperm.xlu0 %1468, %v1221
  %v1470 = vpop.permute.xlu0 %1469
  %1473 = vset.pattern.permute.xlu0 0
  %1474 = vperm.xlu0 %1473, %v1222
  %v1475 = vpop.permute.xlu0 %1474
  %1478 = vset.pattern.permute.xlu0 0
  %1479 = vperm.xlu0 %1478, %v1223
  %v1480 = vpop.permute.xlu0 %1479
  %1483 = vset.pattern.permute.xlu0 0
  %1484 = vperm.xlu0 %1483, %v1224
  %v1485 = vpop.permute.xlu0 %1484
  %1488 = vset.pattern.permute.xlu0 0
  %1489 = vperm.xlu0 %1488, %v1225
  %v1490 = vpop.permute.xlu0 %1489
  %1493 = vset.pattern.permute.xlu0 0
  %1494 = vperm.xlu0 %1493, %v1226
  %v1495 = vpop.permute.xlu0 %1494
  %1498 = vset.pattern.permute.xlu0 0
  %1499 = vperm.xlu0 %1498, %v1227
  %v1500 = vpop.permute.xlu0 %1499
  %1503 = vset.pattern.permute.xlu0 0
  %1504 = vperm.xlu0 %1503, %v1228
  %v1505 = vpop.permute.xlu0 %1504
  %1508 = vset.pattern.permute.xlu0 0
  %1509 = vperm.xlu0 %1508, %v1229
  %v1510 = vpop.permute.xlu0 %1509
  %1513 = vset.pattern.permute.xlu0 0
  %1514 = vperm.xlu0 %1513, %v1230
  %v1515 = vpop.permute.xlu0 %1514
  %1518 = vset.pattern.permute.xlu0 0
  %1519 = vperm.xlu0 %1518, %v1231
  %v1520 = vpop.permute.xlu0 %1519
  %1523 = vset.pattern.permute.xlu0 0
  %1524 = vperm.xlu0 %1523, %v1232
  %v1525 = vpop.permute.xlu0 %1524
  %1528 = vset.pattern.permute.xlu0 0
  %1529 = vperm.xlu0 %1528, %v1233
  %v1530 = vpop.permute.xlu0 %1529
  %1533 = vset.pattern.permute.xlu0 0
  %1534 = vperm.xlu0 %1533, %v1234
  %v1535 = vpop.permute.xlu0 %1534
  %1538 = vset.pattern.permute.xlu0 0
  %1539 = vperm.xlu0 %1538, %v1235
  %v1540 = vpop.permute.xlu0 %1539
  %1543 = vset.pattern.permute.xlu0 0
  %1544 = vperm.xlu0 %1543, %v1236
  %v1545 = vpop.permute.xlu0 %1544
  %1548 = vset.pattern.permute.xlu0 0
  %1549 = vperm.xlu0 %1548, %v1237
  %v1550 = vpop.permute.xlu0 %1549
  %1553 = vset.pattern.permute.xlu0 0
  %1554 = vperm.xlu0 %1553, %v1238
  %v1555 = vpop.permute.xlu0 %1554
  %1558 = vset.pattern.permute.xlu0 0
  %1559 = vperm.xlu0 %1558, %v1239
  %v1560 = vpop.permute.xlu0 %1559
  %v1563 = vperm.slane %v1241, 0
  %v1565 = vmul.f32 %v1245, %v1563
  %v1566 = vmul.f32 %v1250, %v1563
  %v1567 = vmul.f32 %v1255, %v1563
  %v1568 = vmul.f32 %v1260, %v1563
  %v1569 = vmul.f32 %v1265, %v1563
  %v1570 = vmul.f32 %v1270, %v1563
  %v1571 = vmul.f32 %v1275, %v1563
  %v1572 = vmul.f32 %v1280, %v1563
  %v1573 = vmul.f32 %v1285, %v1563
  %v1574 = vmul.f32 %v1290, %v1563
  %v1575 = vmul.f32 %v1295, %v1563
  %v1576 = vmul.f32 %v1300, %v1563
  %v1577 = vmul.f32 %v1305, %v1563
  %v1578 = vmul.f32 %v1310, %v1563
  %v1579 = vmul.f32 %v1315, %v1563
  %v1580 = vmul.f32 %v1320, %v1563
  %v1581 = vmul.f32 %v1325, %v1563
  %v1582 = vmul.f32 %v1330, %v1563
  %v1583 = vmul.f32 %v1335, %v1563
  %v1584 = vmul.f32 %v1340, %v1563
  %v1585 = vmul.f32 %v1345, %v1563
  %v1586 = vmul.f32 %v1350, %v1563
  %v1587 = vmul.f32 %v1355, %v1563
  %v1588 = vmul.f32 %v1360, %v1563
  %v1589 = vmul.f32 %v1365, %v1563
  %v1590 = vmul.f32 %v1370, %v1563
  %v1591 = vmul.f32 %v1375, %v1563
  %v1592 = vmul.f32 %v1380, %v1563
  %v1593 = vmul.f32 %v1385, %v1563
  %v1594 = vmul.f32 %v1390, %v1563
  %v1595 = vmul.f32 %v1395, %v1563
  %v1596 = vmul.f32 %v1400, %v1563
  %v1597 = vmul.f32 %v1405, %v1563
  %v1598 = vmul.f32 %v1410, %v1563
  %v1599 = vmul.f32 %v1415, %v1563
  %v1600 = vmul.f32 %v1420, %v1563
  %v1601 = vmul.f32 %v1425, %v1563
  %v1602 = vmul.f32 %v1430, %v1563
  %v1603 = vmul.f32 %v1435, %v1563
  %v1604 = vmul.f32 %v1440, %v1563
  %v1605 = vmul.f32 %v1445, %v1563
  %v1606 = vmul.f32 %v1450, %v1563
  %v1607 = vmul.f32 %v1455, %v1563
  %v1608 = vmul.f32 %v1460, %v1563
  %v1609 = vmul.f32 %v1465, %v1563
  %v1610 = vmul.f32 %v1470, %v1563
  %v1611 = vmul.f32 %v1475, %v1563
  %v1612 = vmul.f32 %v1480, %v1563
  %v1613 = vmul.f32 %v1485, %v1563
  %v1614 = vmul.f32 %v1490, %v1563
  %v1615 = vmul.f32 %v1495, %v1563
  %v1616 = vmul.f32 %v1500, %v1563
  %v1617 = vmul.f32 %v1505, %v1563
  %v1618 = vmul.f32 %v1510, %v1563
  %v1619 = vmul.f32 %v1515, %v1563
  %v1620 = vmul.f32 %v1520, %v1563
  %v1621 = vmul.f32 %v1525, %v1563
  %v1622 = vmul.f32 %v1530, %v1563
  %v1623 = vmul.f32 %v1535, %v1563
  %v1624 = vmul.f32 %v1540, %v1563
  %v1625 = vmul.f32 %v1545, %v1563
  %v1626 = vmul.f32 %v1550, %v1563
  %v1627 = vmul.f32 %v1555, %v1563
  %v1628 = vmul.f32 %v1560, %v1563
  %v1629 = vadd.f32 %v1112, %v1565
  %v1630 = vadd.f32 %v1113, %v1566
  %v1631 = vadd.f32 %v1114, %v1567
  %v1632 = vadd.f32 %v1115, %v1568
  %v1633 = vadd.f32 %v1116, %v1569
  %v1634 = vadd.f32 %v1117, %v1570
  %v1635 = vadd.f32 %v1118, %v1571
  %v1636 = vadd.f32 %v1119, %v1572
  %v1637 = vadd.f32 %v1120, %v1573
  %v1638 = vadd.f32 %v1121, %v1574
  %v1639 = vadd.f32 %v1122, %v1575
  %v1640 = vadd.f32 %v1123, %v1576
  %v1641 = vadd.f32 %v1124, %v1577
  %v1642 = vadd.f32 %v1125, %v1578
  %v1643 = vadd.f32 %v1126, %v1579
  %v1644 = vadd.f32 %v1127, %v1580
  %v1645 = vadd.f32 %v1128, %v1581
  %v1646 = vadd.f32 %v1129, %v1582
  %v1647 = vadd.f32 %v1130, %v1583
  %v1648 = vadd.f32 %v1131, %v1584
  %v1649 = vadd.f32 %v1132, %v1585
  %v1650 = vadd.f32 %v1133, %v1586
  %v1651 = vadd.f32 %v1134, %v1587
  %v1652 = vadd.f32 %v1135, %v1588
  %v1653 = vadd.f32 %v1136, %v1589
  %v1654 = vadd.f32 %v1137, %v1590
  %v1655 = vadd.f32 %v1138, %v1591
  %v1656 = vadd.f32 %v1139, %v1592
  %v1657 = vadd.f32 %v1140, %v1593
  %v1658 = vadd.f32 %v1141, %v1594
  %v1659 = vadd.f32 %v1142, %v1595
  %v1660 = vadd.f32 %v1143, %v1596
  %v1661 = vadd.f32 %v1144, %v1597
  %v1662 = vadd.f32 %v1145, %v1598
  %v1663 = vadd.f32 %v1146, %v1599
  %v1664 = vadd.f32 %v1147, %v1600
  %v1665 = vadd.f32 %v1148, %v1601
  %v1666 = vadd.f32 %v1149, %v1602
  %v1667 = vadd.f32 %v1150, %v1603
  %v1668 = vadd.f32 %v1151, %v1604
  %v1669 = vadd.f32 %v1152, %v1605
  %v1670 = vadd.f32 %v1153, %v1606
  %v1671 = vadd.f32 %v1154, %v1607
  %v1672 = vadd.f32 %v1155, %v1608
  %v1673 = vadd.f32 %v1156, %v1609
  %v1674 = vadd.f32 %v1157, %v1610
  %v1675 = vadd.f32 %v1158, %v1611
  %v1676 = vadd.f32 %v1159, %v1612
  %v1677 = vadd.f32 %v1160, %v1613
  %v1678 = vadd.f32 %v1161, %v1614
  %v1679 = vadd.f32 %v1162, %v1615
  %v1680 = vadd.f32 %v1163, %v1616
  %v1681 = vadd.f32 %v1164, %v1617
  %v1682 = vadd.f32 %v1165, %v1618
  %v1683 = vadd.f32 %v1166, %v1619
  %v1684 = vadd.f32 %v1167, %v1620
  %v1685 = vadd.f32 %v1168, %v1621
  %v1686 = vadd.f32 %v1169, %v1622
  %v1687 = vadd.f32 %v1170, %v1623
  %v1688 = vadd.f32 %v1171, %v1624
  %v1689 = vadd.f32 %v1172, %v1625
  %v1690 = vadd.f32 %v1173, %v1626
  %v1691 = vadd.f32 %v1174, %v1627
  %v1692 = vadd.f32 %v1175, %v1628
  %s1693 = scalar_lea.vmem %s0, 24
  %v1694 = vld [vmem:[%s1693] sm:$0xff]
  %v1695 = vld [vmem:[%s1693 + $0x8] sm:$0xff]
  %v1696 = vld [vmem:[%s1693 + $0x18] sm:$0xff]
  %v1697 = vld [vmem:[%s1693 + $0x20] sm:$0xff]
  %v1698 = vld [vmem:[%s1693 + $0x30] sm:$0xff]
  %v1699 = vld [vmem:[%s1693 + $0x38] sm:$0xff]
  %v1700 = vld [vmem:[%s1693 + $0x48] sm:$0xff]
  %v1701 = vld [vmem:[%s1693 + $0x50] sm:$0xff]
  %v1702 = vld [vmem:[%s1693 + $0x60] sm:$0xff]
  %v1703 = vld [vmem:[%s1693 + $0x68] sm:$0xff]
  %v1704 = vld [vmem:[%s1693 + $0x78] sm:$0xff]
  %v1705 = vld [vmem:[%s1693 + $0x80] sm:$0xff]
  %v1706 = vld [vmem:[%s1693 + $0x90] sm:$0xff]
  %v1707 = vld [vmem:[%s1693 + $0x98] sm:$0xff]
  %v1708 = vld [vmem:[%s1693 + $0xa8] sm:$0xff]
  %v1709 = vld [vmem:[%s1693 + $0xb0] sm:$0xff]
  %v1710 = vld [vmem:[%s1693 + $0xc0] sm:$0xff]
  %v1711 = vld [vmem:[%s1693 + $0xc8] sm:$0xff]
  %v1712 = vld [vmem:[%s1693 + $0xd8] sm:$0xff]
  %v1713 = vld [vmem:[%s1693 + $0xe0] sm:$0xff]
  %v1714 = vld [vmem:[%s1693 + $0xf0] sm:$0xff]
  %v1715 = vld [vmem:[%s1693 + $0xf8] sm:$0xff]
  %v1716 = vld [vmem:[%s1693 + $0x108] sm:$0xff]
  %v1717 = vld [vmem:[%s1693 + $0x110] sm:$0xff]
  %v1718 = vld [vmem:[%s1693 + $0x120] sm:$0xff]
  %v1719 = vld [vmem:[%s1693 + $0x128] sm:$0xff]
  %v1720 = vld [vmem:[%s1693 + $0x138] sm:$0xff]
  %v1721 = vld [vmem:[%s1693 + $0x140] sm:$0xff]
  %v1722 = vld [vmem:[%s1693 + $0x150] sm:$0xff]
  %v1723 = vld [vmem:[%s1693 + $0x158] sm:$0xff]
  %v1724 = vld [vmem:[%s1693 + $0x168] sm:$0xff]
  %v1725 = vld [vmem:[%s1693 + $0x170] sm:$0xff]
  %v1726 = vld [vmem:[%s1693 + $0x1b0] sm:$0xff]
  %v1727 = vld [vmem:[%s1693 + $0x1b8] sm:$0xff]
  %v1728 = vld [vmem:[%s1693 + $0x1c8] sm:$0xff]
  %v1729 = vld [vmem:[%s1693 + $0x1d0] sm:$0xff]
  %v1730 = vld [vmem:[%s1693 + $0x1e0] sm:$0xff]
  %v1731 = vld [vmem:[%s1693 + $0x1e8] sm:$0xff]
  %v1732 = vld [vmem:[%s1693 + $0x1f8] sm:$0xff]
  %v1733 = vld [vmem:[%s1693 + $0x200] sm:$0xff]
  %v1734 = vld [vmem:[%s1693 + $0x210] sm:$0xff]
  %v1735 = vld [vmem:[%s1693 + $0x218] sm:$0xff]
  %v1736 = vld [vmem:[%s1693 + $0x228] sm:$0xff]
  %v1737 = vld [vmem:[%s1693 + $0x230] sm:$0xff]
  %v1738 = vld [vmem:[%s1693 + $0x240] sm:$0xff]
  %v1739 = vld [vmem:[%s1693 + $0x248] sm:$0xff]
  %v1740 = vld [vmem:[%s1693 + $0x258] sm:$0xff]
  %v1741 = vld [vmem:[%s1693 + $0x260] sm:$0xff]
  %v1742 = vld [vmem:[%s1693 + $0x270] sm:$0xff]
  %v1743 = vld [vmem:[%s1693 + $0x278] sm:$0xff]
  %v1744 = vld [vmem:[%s1693 + $0x288] sm:$0xff]
  %v1745 = vld [vmem:[%s1693 + $0x290] sm:$0xff]
  %v1746 = vld [vmem:[%s1693 + $0x2a0] sm:$0xff]
  %v1747 = vld [vmem:[%s1693 + $0x2a8] sm:$0xff]
  %v1748 = vld [vmem:[%s1693 + $0x2b8] sm:$0xff]
  %v1749 = vld [vmem:[%s1693 + $0x2c0] sm:$0xff]
  %v1750 = vld [vmem:[%s1693 + $0x2d0] sm:$0xff]
  %v1751 = vld [vmem:[%s1693 + $0x2d8] sm:$0xff]
  %v1752 = vld [vmem:[%s1693 + $0x2e8] sm:$0xff]
  %v1753 = vld [vmem:[%s1693 + $0x2f0] sm:$0xff]
  %v1754 = vld [vmem:[%s1693 + $0x300] sm:$0xff]
  %v1755 = vld [vmem:[%s1693 + $0x308] sm:$0xff]
  %v1756 = vld [vmem:[%s1693 + $0x318] sm:$0xff]
  %v1757 = vld [vmem:[%s1693 + $0x320] sm:$0xff]
  %s1758 = scalar_lea.vmem %s1, 3
  %v1759 = vld [vmem:[%s1758] sm:$0x1]
  %1761 = vset.pattern.permute.xlu0 0
  %1762 = vperm.xlu0 %1761, %v1694
  %v1763 = vpop.permute.xlu0 %1762
  %1766 = vset.pattern.permute.xlu0 0
  %1767 = vperm.xlu0 %1766, %v1695
  %v1768 = vpop.permute.xlu0 %1767
  %1771 = vset.pattern.permute.xlu0 0
  %1772 = vperm.xlu0 %1771, %v1696
  %v1773 = vpop.permute.xlu0 %1772
  %1776 = vset.pattern.permute.xlu0 0
  %1777 = vperm.xlu0 %1776, %v1697
  %v1778 = vpop.permute.xlu0 %1777
  %1781 = vset.pattern.permute.xlu0 0
  %1782 = vperm.xlu0 %1781, %v1698
  %v1783 = vpop.permute.xlu0 %1782
  %1786 = vset.pattern.permute.xlu0 0
  %1787 = vperm.xlu0 %1786, %v1699
  %v1788 = vpop.permute.xlu0 %1787
  %1791 = vset.pattern.permute.xlu0 0
  %1792 = vperm.xlu0 %1791, %v1700
  %v1793 = vpop.permute.xlu0 %1792
  %1796 = vset.pattern.permute.xlu0 0
  %1797 = vperm.xlu0 %1796, %v1701
  %v1798 = vpop.permute.xlu0 %1797
  %1801 = vset.pattern.permute.xlu0 0
  %1802 = vperm.xlu0 %1801, %v1702
  %v1803 = vpop.permute.xlu0 %1802
  %1806 = vset.pattern.permute.xlu0 0
  %1807 = vperm.xlu0 %1806, %v1703
  %v1808 = vpop.permute.xlu0 %1807
  %1811 = vset.pattern.permute.xlu0 0
  %1812 = vperm.xlu0 %1811, %v1704
  %v1813 = vpop.permute.xlu0 %1812
  %1816 = vset.pattern.permute.xlu0 0
  %1817 = vperm.xlu0 %1816, %v1705
  %v1818 = vpop.permute.xlu0 %1817
  %1821 = vset.pattern.permute.xlu0 0
  %1822 = vperm.xlu0 %1821, %v1706
  %v1823 = vpop.permute.xlu0 %1822
  %1826 = vset.pattern.permute.xlu0 0
  %1827 = vperm.xlu0 %1826, %v1707
  %v1828 = vpop.permute.xlu0 %1827
  %1831 = vset.pattern.permute.xlu0 0
  %1832 = vperm.xlu0 %1831, %v1708
  %v1833 = vpop.permute.xlu0 %1832
  %1836 = vset.pattern.permute.xlu0 0
  %1837 = vperm.xlu0 %1836, %v1709
  %v1838 = vpop.permute.xlu0 %1837
  %1841 = vset.pattern.permute.xlu0 0
  %1842 = vperm.xlu0 %1841, %v1710
  %v1843 = vpop.permute.xlu0 %1842
  %1846 = vset.pattern.permute.xlu0 0
  %1847 = vperm.xlu0 %1846, %v1711
  %v1848 = vpop.permute.xlu0 %1847
  %1851 = vset.pattern.permute.xlu0 0
  %1852 = vperm.xlu0 %1851, %v1712
  %v1853 = vpop.permute.xlu0 %1852
  %1856 = vset.pattern.permute.xlu0 0
  %1857 = vperm.xlu0 %1856, %v1713
  %v1858 = vpop.permute.xlu0 %1857
  %1861 = vset.pattern.permute.xlu0 0
  %1862 = vperm.xlu0 %1861, %v1714
  %v1863 = vpop.permute.xlu0 %1862
  %1866 = vset.pattern.permute.xlu0 0
  %1867 = vperm.xlu0 %1866, %v1715
  %v1868 = vpop.permute.xlu0 %1867
  %1871 = vset.pattern.permute.xlu0 0
  %1872 = vperm.xlu0 %1871, %v1716
  %v1873 = vpop.permute.xlu0 %1872
  %1876 = vset.pattern.permute.xlu0 0
  %1877 = vperm.xlu0 %1876, %v1717
  %v1878 = vpop.permute.xlu0 %1877
  %1881 = vset.pattern.permute.xlu0 0
  %1882 = vperm.xlu0 %1881, %v1718
  %v1883 = vpop.permute.xlu0 %1882
  %1886 = vset.pattern.permute.xlu0 0
  %1887 = vperm.xlu0 %1886, %v1719
  %v1888 = vpop.permute.xlu0 %1887
  %1891 = vset.pattern.permute.xlu0 0
  %1892 = vperm.xlu0 %1891, %v1720
  %v1893 = vpop.permute.xlu0 %1892
  %1896 = vset.pattern.permute.xlu0 0
  %1897 = vperm.xlu0 %1896, %v1721
  %v1898 = vpop.permute.xlu0 %1897
  %1901 = vset.pattern.permute.xlu0 0
  %1902 = vperm.xlu0 %1901, %v1722
  %v1903 = vpop.permute.xlu0 %1902
  %1906 = vset.pattern.permute.xlu0 0
  %1907 = vperm.xlu0 %1906, %v1723
  %v1908 = vpop.permute.xlu0 %1907
  %1911 = vset.pattern.permute.xlu0 0
  %1912 = vperm.xlu0 %1911, %v1724
  %v1913 = vpop.permute.xlu0 %1912
  %1916 = vset.pattern.permute.xlu0 0
  %1917 = vperm.xlu0 %1916, %v1725
  %v1918 = vpop.permute.xlu0 %1917
  %1921 = vset.pattern.permute.xlu0 0
  %1922 = vperm.xlu0 %1921, %v1726
  %v1923 = vpop.permute.xlu0 %1922
  %1926 = vset.pattern.permute.xlu0 0
  %1927 = vperm.xlu0 %1926, %v1727
  %v1928 = vpop.permute.xlu0 %1927
  %1931 = vset.pattern.permute.xlu0 0
  %1932 = vperm.xlu0 %1931, %v1728
  %v1933 = vpop.permute.xlu0 %1932
  %1936 = vset.pattern.permute.xlu0 0
  %1937 = vperm.xlu0 %1936, %v1729
  %v1938 = vpop.permute.xlu0 %1937
  %1941 = vset.pattern.permute.xlu0 0
  %1942 = vperm.xlu0 %1941, %v1730
  %v1943 = vpop.permute.xlu0 %1942
  %1946 = vset.pattern.permute.xlu0 0
  %1947 = vperm.xlu0 %1946, %v1731
  %v1948 = vpop.permute.xlu0 %1947
  %1951 = vset.pattern.permute.xlu0 0
  %1952 = vperm.xlu0 %1951, %v1732
  %v1953 = vpop.permute.xlu0 %1952
  %1956 = vset.pattern.permute.xlu0 0
  %1957 = vperm.xlu0 %1956, %v1733
  %v1958 = vpop.permute.xlu0 %1957
  %1961 = vset.pattern.permute.xlu0 0
  %1962 = vperm.xlu0 %1961, %v1734
  %v1963 = vpop.permute.xlu0 %1962
  %1966 = vset.pattern.permute.xlu0 0
  %1967 = vperm.xlu0 %1966, %v1735
  %v1968 = vpop.permute.xlu0 %1967
  %1971 = vset.pattern.permute.xlu0 0
  %1972 = vperm.xlu0 %1971, %v1736
  %v1973 = vpop.permute.xlu0 %1972
  %1976 = vset.pattern.permute.xlu0 0
  %1977 = vperm.xlu0 %1976, %v1737
  %v1978 = vpop.permute.xlu0 %1977
  %1981 = vset.pattern.permute.xlu0 0
  %1982 = vperm.xlu0 %1981, %v1738
  %v1983 = vpop.permute.xlu0 %1982
  %1986 = vset.pattern.permute.xlu0 0
  %1987 = vperm.xlu0 %1986, %v1739
  %v1988 = vpop.permute.xlu0 %1987
  %1991 = vset.pattern.permute.xlu0 0
  %1992 = vperm.xlu0 %1991, %v1740
  %v1993 = vpop.permute.xlu0 %1992
  %1996 = vset.pattern.permute.xlu0 0
  %1997 = vperm.xlu0 %1996, %v1741
  %v1998 = vpop.permute.xlu0 %1997
  %2001 = vset.pattern.permute.xlu0 0
  %2002 = vperm.xlu0 %2001, %v1742
  %v2003 = vpop.permute.xlu0 %2002
  %2006 = vset.pattern.permute.xlu0 0
  %2007 = vperm.xlu0 %2006, %v1743
  %v2008 = vpop.permute.xlu0 %2007
  %2011 = vset.pattern.permute.xlu0 0
  %2012 = vperm.xlu0 %2011, %v1744
  %v2013 = vpop.permute.xlu0 %2012
  %2016 = vset.pattern.permute.xlu0 0
  %2017 = vperm.xlu0 %2016, %v1745
  %v2018 = vpop.permute.xlu0 %2017
  %2021 = vset.pattern.permute.xlu0 0
  %2022 = vperm.xlu0 %2021, %v1746
  %v2023 = vpop.permute.xlu0 %2022
  %2026 = vset.pattern.permute.xlu0 0
  %2027 = vperm.xlu0 %2026, %v1747
  %v2028 = vpop.permute.xlu0 %2027
  %2031 = vset.pattern.permute.xlu0 0
  %2032 = vperm.xlu0 %2031, %v1748
  %v2033 = vpop.permute.xlu0 %2032
  %2036 = vset.pattern.permute.xlu0 0
  %2037 = vperm.xlu0 %2036, %v1749
  %v2038 = vpop.permute.xlu0 %2037
  %2041 = vset.pattern.permute.xlu0 0
  %2042 = vperm.xlu0 %2041, %v1750
  %v2043 = vpop.permute.xlu0 %2042
  %2046 = vset.pattern.permute.xlu0 0
  %2047 = vperm.xlu0 %2046, %v1751
  %v2048 = vpop.permute.xlu0 %2047
  %2051 = vset.pattern.permute.xlu0 0
  %2052 = vperm.xlu0 %2051, %v1752
  %v2053 = vpop.permute.xlu0 %2052
  %2056 = vset.pattern.permute.xlu0 0
  %2057 = vperm.xlu0 %2056, %v1753
  %v2058 = vpop.permute.xlu0 %2057
  %2061 = vset.pattern.permute.xlu0 0
  %2062 = vperm.xlu0 %2061, %v1754
  %v2063 = vpop.permute.xlu0 %2062
  %2066 = vset.pattern.permute.xlu0 0
  %2067 = vperm.xlu0 %2066, %v1755
  %v2068 = vpop.permute.xlu0 %2067
  %2071 = vset.pattern.permute.xlu0 0
  %2072 = vperm.xlu0 %2071, %v1756
  %v2073 = vpop.permute.xlu0 %2072
  %2076 = vset.pattern.permute.xlu0 0
  %2077 = vperm.xlu0 %2076, %v1757
  %v2078 = vpop.permute.xlu0 %2077
  %v2081 = vperm.slane %v1759, 0
  %v2083 = vmul.f32 %v1763, %v2081
  %v2084 = vmul.f32 %v1768, %v2081
  %v2085 = vmul.f32 %v1773, %v2081
  %v2086 = vmul.f32 %v1778, %v2081
  %v2087 = vmul.f32 %v1783, %v2081
  %v2088 = vmul.f32 %v1788, %v2081
  %v2089 = vmul.f32 %v1793, %v2081
  %v2090 = vmul.f32 %v1798, %v2081
  %v2091 = vmul.f32 %v1803, %v2081
  %v2092 = vmul.f32 %v1808, %v2081
  %v2093 = vmul.f32 %v1813, %v2081
  %v2094 = vmul.f32 %v1818, %v2081
  %v2095 = vmul.f32 %v1823, %v2081
  %v2096 = vmul.f32 %v1828, %v2081
  %v2097 = vmul.f32 %v1833, %v2081
  %v2098 = vmul.f32 %v1838, %v2081
  %v2099 = vmul.f32 %v1843, %v2081
  %v2100 = vmul.f32 %v1848, %v2081
  %v2101 = vmul.f32 %v1853, %v2081
  %v2102 = vmul.f32 %v1858, %v2081
  %v2103 = vmul.f32 %v1863, %v2081
  %v2104 = vmul.f32 %v1868, %v2081
  %v2105 = vmul.f32 %v1873, %v2081
  %v2106 = vmul.f32 %v1878, %v2081
  %v2107 = vmul.f32 %v1883, %v2081
  %v2108 = vmul.f32 %v1888, %v2081
  %v2109 = vmul.f32 %v1893, %v2081
  %v2110 = vmul.f32 %v1898, %v2081
  %v2111 = vmul.f32 %v1903, %v2081
  %v2112 = vmul.f32 %v1908, %v2081
  %v2113 = vmul.f32 %v1913, %v2081
  %v2114 = vmul.f32 %v1918, %v2081
  %v2115 = vmul.f32 %v1923, %v2081
  %v2116 = vmul.f32 %v1928, %v2081
  %v2117 = vmul.f32 %v1933, %v2081
  %v2118 = vmul.f32 %v1938, %v2081
  %v2119 = vmul.f32 %v1943, %v2081
  %v2120 = vmul.f32 %v1948, %v2081
  %v2121 = vmul.f32 %v1953, %v2081
  %v2122 = vmul.f32 %v1958, %v2081
  %v2123 = vmul.f32 %v1963, %v2081
  %v2124 = vmul.f32 %v1968, %v2081
  %v2125 = vmul.f32 %v1973, %v2081
  %v2126 = vmul.f32 %v1978, %v2081
  %v2127 = vmul.f32 %v1983, %v2081
  %v2128 = vmul.f32 %v1988, %v2081
  %v2129 = vmul.f32 %v1993, %v2081
  %v2130 = vmul.f32 %v1998, %v2081
  %v2131 = vmul.f32 %v2003, %v2081
  %v2132 = vmul.f32 %v2008, %v2081
  %v2133 = vmul.f32 %v2013, %v2081
  %v2134 = vmul.f32 %v2018, %v2081
  %v2135 = vmul.f32 %v2023, %v2081
  %v2136 = vmul.f32 %v2028, %v2081
  %v2137 = vmul.f32 %v2033, %v2081
  %v2138 = vmul.f32 %v2038, %v2081
  %v2139 = vmul.f32 %v2043, %v2081
  %v2140 = vmul.f32 %v2048, %v2081
  %v2141 = vmul.f32 %v2053, %v2081
  %v2142 = vmul.f32 %v2058, %v2081
  %v2143 = vmul.f32 %v2063, %v2081
  %v2144 = vmul.f32 %v2068, %v2081
  %v2145 = vmul.f32 %v2073, %v2081
  %v2146 = vmul.f32 %v2078, %v2081
  %v2147 = vadd.f32 %v1629, %v2083
  %v2148 = vadd.f32 %v1630, %v2084
  %v2149 = vadd.f32 %v1631, %v2085
  %v2150 = vadd.f32 %v1632, %v2086
  %v2151 = vadd.f32 %v1633, %v2087
  %v2152 = vadd.f32 %v1634, %v2088
  %v2153 = vadd.f32 %v1635, %v2089
  %v2154 = vadd.f32 %v1636, %v2090
  %v2155 = vadd.f32 %v1637, %v2091
  %v2156 = vadd.f32 %v1638, %v2092
  %v2157 = vadd.f32 %v1639, %v2093
  %v2158 = vadd.f32 %v1640, %v2094
  %v2159 = vadd.f32 %v1641, %v2095
  %v2160 = vadd.f32 %v1642, %v2096
  %v2161 = vadd.f32 %v1643, %v2097
  %v2162 = vadd.f32 %v1644, %v2098
  %v2163 = vadd.f32 %v1645, %v2099
  %v2164 = vadd.f32 %v1646, %v2100
  %v2165 = vadd.f32 %v1647, %v2101
  %v2166 = vadd.f32 %v1648, %v2102
  %v2167 = vadd.f32 %v1649, %v2103
  %v2168 = vadd.f32 %v1650, %v2104
  %v2169 = vadd.f32 %v1651, %v2105
  %v2170 = vadd.f32 %v1652, %v2106
  %v2171 = vadd.f32 %v1653, %v2107
  %v2172 = vadd.f32 %v1654, %v2108
  %v2173 = vadd.f32 %v1655, %v2109
  %v2174 = vadd.f32 %v1656, %v2110
  %v2175 = vadd.f32 %v1657, %v2111
  %v2176 = vadd.f32 %v1658, %v2112
  %v2177 = vadd.f32 %v1659, %v2113
  %v2178 = vadd.f32 %v1660, %v2114
  %v2179 = vadd.f32 %v1661, %v2115
  %v2180 = vadd.f32 %v1662, %v2116
  %v2181 = vadd.f32 %v1663, %v2117
  %v2182 = vadd.f32 %v1664, %v2118
  %v2183 = vadd.f32 %v1665, %v2119
  %v2184 = vadd.f32 %v1666, %v2120
  %v2185 = vadd.f32 %v1667, %v2121
  %v2186 = vadd.f32 %v1668, %v2122
  %v2187 = vadd.f32 %v1669, %v2123
  %v2188 = vadd.f32 %v1670, %v2124
  %v2189 = vadd.f32 %v1671, %v2125
  %v2190 = vadd.f32 %v1672, %v2126
  %v2191 = vadd.f32 %v1673, %v2127
  %v2192 = vadd.f32 %v1674, %v2128
  %v2193 = vadd.f32 %v1675, %v2129
  %v2194 = vadd.f32 %v1676, %v2130
  %v2195 = vadd.f32 %v1677, %v2131
  %v2196 = vadd.f32 %v1678, %v2132
  %v2197 = vadd.f32 %v1679, %v2133
  %v2198 = vadd.f32 %v1680, %v2134
  %v2199 = vadd.f32 %v1681, %v2135
  %v2200 = vadd.f32 %v1682, %v2136
  %v2201 = vadd.f32 %v1683, %v2137
  %v2202 = vadd.f32 %v1684, %v2138
  %v2203 = vadd.f32 %v1685, %v2139
  %v2204 = vadd.f32 %v1686, %v2140
  %v2205 = vadd.f32 %v1687, %v2141
  %v2206 = vadd.f32 %v1688, %v2142
  %v2207 = vadd.f32 %v1689, %v2143
  %v2208 = vadd.f32 %v1690, %v2144
  %v2209 = vadd.f32 %v1691, %v2145
  %v2210 = vadd.f32 %v1692, %v2146
  %v2211 = vld [vmem:[%s1693 + $0x1] sm:$0xff]
  %v2212 = vld [vmem:[%s1693 + $0x9] sm:$0xff]
  %v2213 = vld [vmem:[%s1693 + $0x19] sm:$0xff]
  %v2214 = vld [vmem:[%s1693 + $0x21] sm:$0xff]
  %v2215 = vld [vmem:[%s1693 + $0x31] sm:$0xff]
  %v2216 = vld [vmem:[%s1693 + $0x39] sm:$0xff]
  %v2217 = vld [vmem:[%s1693 + $0x49] sm:$0xff]
  %v2218 = vld [vmem:[%s1693 + $0x51] sm:$0xff]
  %v2219 = vld [vmem:[%s1693 + $0x61] sm:$0xff]
  %v2220 = vld [vmem:[%s1693 + $0x69] sm:$0xff]
  %v2221 = vld [vmem:[%s1693 + $0x79] sm:$0xff]
  %v2222 = vld [vmem:[%s1693 + $0x81] sm:$0xff]
  %v2223 = vld [vmem:[%s1693 + $0x91] sm:$0xff]
  %v2224 = vld [vmem:[%s1693 + $0x99] sm:$0xff]
  %v2225 = vld [vmem:[%s1693 + $0xa9] sm:$0xff]
  %v2226 = vld [vmem:[%s1693 + $0xb1] sm:$0xff]
  %v2227 = vld [vmem:[%s1693 + $0xc1] sm:$0xff]
  %v2228 = vld [vmem:[%s1693 + $0xc9] sm:$0xff]
  %v2229 = vld [vmem:[%s1693 + $0xd9] sm:$0xff]
  %v2230 = vld [vmem:[%s1693 + $0xe1] sm:$0xff]
  %v2231 = vld [vmem:[%s1693 + $0xf1] sm:$0xff]
  %v2232 = vld [vmem:[%s1693 + $0xf9] sm:$0xff]
  %v2233 = vld [vmem:[%s1693 + $0x109] sm:$0xff]
  %v2234 = vld [vmem:[%s1693 + $0x111] sm:$0xff]
  %v2235 = vld [vmem:[%s1693 + $0x121] sm:$0xff]
  %v2236 = vld [vmem:[%s1693 + $0x129] sm:$0xff]
  %v2237 = vld [vmem:[%s1693 + $0x139] sm:$0xff]
  %v2238 = vld [vmem:[%s1693 + $0x141] sm:$0xff]
  %v2239 = vld [vmem:[%s1693 + $0x151] sm:$0xff]
  %v2240 = vld [vmem:[%s1693 + $0x159] sm:$0xff]
  %v2241 = vld [vmem:[%s1693 + $0x169] sm:$0xff]
  %v2242 = vld [vmem:[%s1693 + $0x171] sm:$0xff]
  %v2243 = vld [vmem:[%s1693 + $0x1b1] sm:$0xff]
  %v2244 = vld [vmem:[%s1693 + $0x1b9] sm:$0xff]
  %v2245 = vld [vmem:[%s1693 + $0x1c9] sm:$0xff]
  %v2246 = vld [vmem:[%s1693 + $0x1d1] sm:$0xff]
  %v2247 = vld [vmem:[%s1693 + $0x1e1] sm:$0xff]
  %v2248 = vld [vmem:[%s1693 + $0x1e9] sm:$0xff]
  %v2249 = vld [vmem:[%s1693 + $0x1f9] sm:$0xff]
  %v2250 = vld [vmem:[%s1693 + $0x201] sm:$0xff]
  %v2251 = vld [vmem:[%s1693 + $0x211] sm:$0xff]
  %v2252 = vld [vmem:[%s1693 + $0x219] sm:$0xff]
  %v2253 = vld [vmem:[%s1693 + $0x229] sm:$0xff]
  %v2254 = vld [vmem:[%s1693 + $0x231] sm:$0xff]
  %v2255 = vld [vmem:[%s1693 + $0x241] sm:$0xff]
  %v2256 = vld [vmem:[%s1693 + $0x249] sm:$0xff]
  %v2257 = vld [vmem:[%s1693 + $0x259] sm:$0xff]
  %v2258 = vld [vmem:[%s1693 + $0x261] sm:$0xff]
  %v2259 = vld [vmem:[%s1693 + $0x271] sm:$0xff]
  %v2260 = vld [vmem:[%s1693 + $0x279] sm:$0xff]
  %v2261 = vld [vmem:[%s1693 + $0x289] sm:$0xff]
  %v2262 = vld [vmem:[%s1693 + $0x291] sm:$0xff]
  %v2263 = vld [vmem:[%s1693 + $0x2a1] sm:$0xff]
  %v2264 = vld [vmem:[%s1693 + $0x2a9] sm:$0xff]
  %v2265 = vld [vmem:[%s1693 + $0x2b9] sm:$0xff]
  %v2266 = vld [vmem:[%s1693 + $0x2c1] sm:$0xff]
  %v2267 = vld [vmem:[%s1693 + $0x2d1] sm:$0xff]
  %v2268 = vld [vmem:[%s1693 + $0x2d9] sm:$0xff]
  %v2269 = vld [vmem:[%s1693 + $0x2e9] sm:$0xff]
  %v2270 = vld [vmem:[%s1693 + $0x2f1] sm:$0xff]
  %v2271 = vld [vmem:[%s1693 + $0x301] sm:$0xff]
  %v2272 = vld [vmem:[%s1693 + $0x309] sm:$0xff]
  %v2273 = vld [vmem:[%s1693 + $0x319] sm:$0xff]
  %v2274 = vld [vmem:[%s1693 + $0x321] sm:$0xff]
  %s2275 = scalar_lea.vmem %s1, 4
  %v2276 = vld [vmem:[%s2275] sm:$0x1]
  %2278 = vset.pattern.permute.xlu0 0
  %2279 = vperm.xlu0 %2278, %v2211
  %v2280 = vpop.permute.xlu0 %2279
  %2283 = vset.pattern.permute.xlu0 0
  %2284 = vperm.xlu0 %2283, %v2212
  %v2285 = vpop.permute.xlu0 %2284
  %2288 = vset.pattern.permute.xlu0 0
  %2289 = vperm.xlu0 %2288, %v2213
  %v2290 = vpop.permute.xlu0 %2289
  %2293 = vset.pattern.permute.xlu0 0
  %2294 = vperm.xlu0 %2293, %v2214
  %v2295 = vpop.permute.xlu0 %2294
  %2298 = vset.pattern.permute.xlu0 0
  %2299 = vperm.xlu0 %2298, %v2215
  %v2300 = vpop.permute.xlu0 %2299
  %2303 = vset.pattern.permute.xlu0 0
  %2304 = vperm.xlu0 %2303, %v2216
  %v2305 = vpop.permute.xlu0 %2304
  %2308 = vset.pattern.permute.xlu0 0
  %2309 = vperm.xlu0 %2308, %v2217
  %v2310 = vpop.permute.xlu0 %2309
  %2313 = vset.pattern.permute.xlu0 0
  %2314 = vperm.xlu0 %2313, %v2218
  %v2315 = vpop.permute.xlu0 %2314
  %2318 = vset.pattern.permute.xlu0 0
  %2319 = vperm.xlu0 %2318, %v2219
  %v2320 = vpop.permute.xlu0 %2319
  %2323 = vset.pattern.permute.xlu0 0
  %2324 = vperm.xlu0 %2323, %v2220
  %v2325 = vpop.permute.xlu0 %2324
  %2328 = vset.pattern.permute.xlu0 0
  %2329 = vperm.xlu0 %2328, %v2221
  %v2330 = vpop.permute.xlu0 %2329
  %2333 = vset.pattern.permute.xlu0 0
  %2334 = vperm.xlu0 %2333, %v2222
  %v2335 = vpop.permute.xlu0 %2334
  %2338 = vset.pattern.permute.xlu0 0
  %2339 = vperm.xlu0 %2338, %v2223
  %v2340 = vpop.permute.xlu0 %2339
  %2343 = vset.pattern.permute.xlu0 0
  %2344 = vperm.xlu0 %2343, %v2224
  %v2345 = vpop.permute.xlu0 %2344
  %2348 = vset.pattern.permute.xlu0 0
  %2349 = vperm.xlu0 %2348, %v2225
  %v2350 = vpop.permute.xlu0 %2349
  %2353 = vset.pattern.permute.xlu0 0
  %2354 = vperm.xlu0 %2353, %v2226
  %v2355 = vpop.permute.xlu0 %2354
  %2358 = vset.pattern.permute.xlu0 0
  %2359 = vperm.xlu0 %2358, %v2227
  %v2360 = vpop.permute.xlu0 %2359
  %2363 = vset.pattern.permute.xlu0 0
  %2364 = vperm.xlu0 %2363, %v2228
  %v2365 = vpop.permute.xlu0 %2364
  %2368 = vset.pattern.permute.xlu0 0
  %2369 = vperm.xlu0 %2368, %v2229
  %v2370 = vpop.permute.xlu0 %2369
  %2373 = vset.pattern.permute.xlu0 0
  %2374 = vperm.xlu0 %2373, %v2230
  %v2375 = vpop.permute.xlu0 %2374
  %2378 = vset.pattern.permute.xlu0 0
  %2379 = vperm.xlu0 %2378, %v2231
  %v2380 = vpop.permute.xlu0 %2379
  %2383 = vset.pattern.permute.xlu0 0
  %2384 = vperm.xlu0 %2383, %v2232
  %v2385 = vpop.permute.xlu0 %2384
  %2388 = vset.pattern.permute.xlu0 0
  %2389 = vperm.xlu0 %2388, %v2233
  %v2390 = vpop.permute.xlu0 %2389
  %2393 = vset.pattern.permute.xlu0 0
  %2394 = vperm.xlu0 %2393, %v2234
  %v2395 = vpop.permute.xlu0 %2394
  %2398 = vset.pattern.permute.xlu0 0
  %2399 = vperm.xlu0 %2398, %v2235
  %v2400 = vpop.permute.xlu0 %2399
  %2403 = vset.pattern.permute.xlu0 0
  %2404 = vperm.xlu0 %2403, %v2236
  %v2405 = vpop.permute.xlu0 %2404
  %2408 = vset.pattern.permute.xlu0 0
  %2409 = vperm.xlu0 %2408, %v2237
  %v2410 = vpop.permute.xlu0 %2409
  %2413 = vset.pattern.permute.xlu0 0
  %2414 = vperm.xlu0 %2413, %v2238
  %v2415 = vpop.permute.xlu0 %2414
  %2418 = vset.pattern.permute.xlu0 0
  %2419 = vperm.xlu0 %2418, %v2239
  %v2420 = vpop.permute.xlu0 %2419
  %2423 = vset.pattern.permute.xlu0 0
  %2424 = vperm.xlu0 %2423, %v2240
  %v2425 = vpop.permute.xlu0 %2424
  %2428 = vset.pattern.permute.xlu0 0
  %2429 = vperm.xlu0 %2428, %v2241
  %v2430 = vpop.permute.xlu0 %2429
  %2433 = vset.pattern.permute.xlu0 0
  %2434 = vperm.xlu0 %2433, %v2242
  %v2435 = vpop.permute.xlu0 %2434
  %2438 = vset.pattern.permute.xlu0 0
  %2439 = vperm.xlu0 %2438, %v2243
  %v2440 = vpop.permute.xlu0 %2439
  %2443 = vset.pattern.permute.xlu0 0
  %2444 = vperm.xlu0 %2443, %v2244
  %v2445 = vpop.permute.xlu0 %2444
  %2448 = vset.pattern.permute.xlu0 0
  %2449 = vperm.xlu0 %2448, %v2245
  %v2450 = vpop.permute.xlu0 %2449
  %2453 = vset.pattern.permute.xlu0 0
  %2454 = vperm.xlu0 %2453, %v2246
  %v2455 = vpop.permute.xlu0 %2454
  %2458 = vset.pattern.permute.xlu0 0
  %2459 = vperm.xlu0 %2458, %v2247
  %v2460 = vpop.permute.xlu0 %2459
  %2463 = vset.pattern.permute.xlu0 0
  %2464 = vperm.xlu0 %2463, %v2248
  %v2465 = vpop.permute.xlu0 %2464
  %2468 = vset.pattern.permute.xlu0 0
  %2469 = vperm.xlu0 %2468, %v2249
  %v2470 = vpop.permute.xlu0 %2469
  %2473 = vset.pattern.permute.xlu0 0
  %2474 = vperm.xlu0 %2473, %v2250
  %v2475 = vpop.permute.xlu0 %2474
  %2478 = vset.pattern.permute.xlu0 0
  %2479 = vperm.xlu0 %2478, %v2251
  %v2480 = vpop.permute.xlu0 %2479
  %2483 = vset.pattern.permute.xlu0 0
  %2484 = vperm.xlu0 %2483, %v2252
  %v2485 = vpop.permute.xlu0 %2484
  %2488 = vset.pattern.permute.xlu0 0
  %2489 = vperm.xlu0 %2488, %v2253
  %v2490 = vpop.permute.xlu0 %2489
  %2493 = vset.pattern.permute.xlu0 0
  %2494 = vperm.xlu0 %2493, %v2254
  %v2495 = vpop.permute.xlu0 %2494
  %2498 = vset.pattern.permute.xlu0 0
  %2499 = vperm.xlu0 %2498, %v2255
  %v2500 = vpop.permute.xlu0 %2499
  %2503 = vset.pattern.permute.xlu0 0
  %2504 = vperm.xlu0 %2503, %v2256
  %v2505 = vpop.permute.xlu0 %2504
  %2508 = vset.pattern.permute.xlu0 0
  %2509 = vperm.xlu0 %2508, %v2257
  %v2510 = vpop.permute.xlu0 %2509
  %2513 = vset.pattern.permute.xlu0 0
  %2514 = vperm.xlu0 %2513, %v2258
  %v2515 = vpop.permute.xlu0 %2514
  %2518 = vset.pattern.permute.xlu0 0
  %2519 = vperm.xlu0 %2518, %v2259
  %v2520 = vpop.permute.xlu0 %2519
  %2523 = vset.pattern.permute.xlu0 0
  %2524 = vperm.xlu0 %2523, %v2260
  %v2525 = vpop.permute.xlu0 %2524
  %2528 = vset.pattern.permute.xlu0 0
  %2529 = vperm.xlu0 %2528, %v2261
  %v2530 = vpop.permute.xlu0 %2529
  %2533 = vset.pattern.permute.xlu0 0
  %2534 = vperm.xlu0 %2533, %v2262
  %v2535 = vpop.permute.xlu0 %2534
  %2538 = vset.pattern.permute.xlu0 0
  %2539 = vperm.xlu0 %2538, %v2263
  %v2540 = vpop.permute.xlu0 %2539
  %2543 = vset.pattern.permute.xlu0 0
  %2544 = vperm.xlu0 %2543, %v2264
  %v2545 = vpop.permute.xlu0 %2544
  %2548 = vset.pattern.permute.xlu0 0
  %2549 = vperm.xlu0 %2548, %v2265
  %v2550 = vpop.permute.xlu0 %2549
  %2553 = vset.pattern.permute.xlu0 0
  %2554 = vperm.xlu0 %2553, %v2266
  %v2555 = vpop.permute.xlu0 %2554
  %2558 = vset.pattern.permute.xlu0 0
  %2559 = vperm.xlu0 %2558, %v2267
  %v2560 = vpop.permute.xlu0 %2559
  %2563 = vset.pattern.permute.xlu0 0
  %2564 = vperm.xlu0 %2563, %v2268
  %v2565 = vpop.permute.xlu0 %2564
  %2568 = vset.pattern.permute.xlu0 0
  %2569 = vperm.xlu0 %2568, %v2269
  %v2570 = vpop.permute.xlu0 %2569
  %2573 = vset.pattern.permute.xlu0 0
  %2574 = vperm.xlu0 %2573, %v2270
  %v2575 = vpop.permute.xlu0 %2574
  %2578 = vset.pattern.permute.xlu0 0
  %2579 = vperm.xlu0 %2578, %v2271
  %v2580 = vpop.permute.xlu0 %2579
  %2583 = vset.pattern.permute.xlu0 0
  %2584 = vperm.xlu0 %2583, %v2272
  %v2585 = vpop.permute.xlu0 %2584
  %2588 = vset.pattern.permute.xlu0 0
  %2589 = vperm.xlu0 %2588, %v2273
  %v2590 = vpop.permute.xlu0 %2589
  %2593 = vset.pattern.permute.xlu0 0
  %2594 = vperm.xlu0 %2593, %v2274
  %v2595 = vpop.permute.xlu0 %2594
  %v2598 = vperm.slane %v2276, 0
  %v2600 = vmul.f32 %v2280, %v2598
  %v2601 = vmul.f32 %v2285, %v2598
  %v2602 = vmul.f32 %v2290, %v2598
  %v2603 = vmul.f32 %v2295, %v2598
  %v2604 = vmul.f32 %v2300, %v2598
  %v2605 = vmul.f32 %v2305, %v2598
  %v2606 = vmul.f32 %v2310, %v2598
  %v2607 = vmul.f32 %v2315, %v2598
  %v2608 = vmul.f32 %v2320, %v2598
  %v2609 = vmul.f32 %v2325, %v2598
  %v2610 = vmul.f32 %v2330, %v2598
  %v2611 = vmul.f32 %v2335, %v2598
  %v2612 = vmul.f32 %v2340, %v2598
  %v2613 = vmul.f32 %v2345, %v2598
  %v2614 = vmul.f32 %v2350, %v2598
  %v2615 = vmul.f32 %v2355, %v2598
  %v2616 = vmul.f32 %v2360, %v2598
  %v2617 = vmul.f32 %v2365, %v2598
  %v2618 = vmul.f32 %v2370, %v2598
  %v2619 = vmul.f32 %v2375, %v2598
  %v2620 = vmul.f32 %v2380, %v2598
  %v2621 = vmul.f32 %v2385, %v2598
  %v2622 = vmul.f32 %v2390, %v2598
  %v2623 = vmul.f32 %v2395, %v2598
  %v2624 = vmul.f32 %v2400, %v2598
  %v2625 = vmul.f32 %v2405, %v2598
  %v2626 = vmul.f32 %v2410, %v2598
  %v2627 = vmul.f32 %v2415, %v2598
  %v2628 = vmul.f32 %v2420, %v2598
  %v2629 = vmul.f32 %v2425, %v2598
  %v2630 = vmul.f32 %v2430, %v2598
  %v2631 = vmul.f32 %v2435, %v2598
  %v2632 = vmul.f32 %v2440, %v2598
  %v2633 = vmul.f32 %v2445, %v2598
  %v2634 = vmul.f32 %v2450, %v2598
  %v2635 = vmul.f32 %v2455, %v2598
  %v2636 = vmul.f32 %v2460, %v2598
  %v2637 = vmul.f32 %v2465, %v2598
  %v2638 = vmul.f32 %v2470, %v2598
  %v2639 = vmul.f32 %v2475, %v2598
  %v2640 = vmul.f32 %v2480, %v2598
  %v2641 = vmul.f32 %v2485, %v2598
  %v2642 = vmul.f32 %v2490, %v2598
  %v2643 = vmul.f32 %v2495, %v2598
  %v2644 = vmul.f32 %v2500, %v2598
  %v2645 = vmul.f32 %v2505, %v2598
  %v2646 = vmul.f32 %v2510, %v2598
  %v2647 = vmul.f32 %v2515, %v2598
  %v2648 = vmul.f32 %v2520, %v2598
  %v2649 = vmul.f32 %v2525, %v2598
  %v2650 = vmul.f32 %v2530, %v2598
  %v2651 = vmul.f32 %v2535, %v2598
  %v2652 = vmul.f32 %v2540, %v2598
  %v2653 = vmul.f32 %v2545, %v2598
  %v2654 = vmul.f32 %v2550, %v2598
  %v2655 = vmul.f32 %v2555, %v2598
  %v2656 = vmul.f32 %v2560, %v2598
  %v2657 = vmul.f32 %v2565, %v2598
  %v2658 = vmul.f32 %v2570, %v2598
  %v2659 = vmul.f32 %v2575, %v2598
  %v2660 = vmul.f32 %v2580, %v2598
  %v2661 = vmul.f32 %v2585, %v2598
  %v2662 = vmul.f32 %v2590, %v2598
  %v2663 = vmul.f32 %v2595, %v2598
  %v2664 = vadd.f32 %v2147, %v2600
  %v2665 = vadd.f32 %v2148, %v2601
  %v2666 = vadd.f32 %v2149, %v2602
  %v2667 = vadd.f32 %v2150, %v2603
  %v2668 = vadd.f32 %v2151, %v2604
  %v2669 = vadd.f32 %v2152, %v2605
  %v2670 = vadd.f32 %v2153, %v2606
  %v2671 = vadd.f32 %v2154, %v2607
  %v2672 = vadd.f32 %v2155, %v2608
  %v2673 = vadd.f32 %v2156, %v2609
  %v2674 = vadd.f32 %v2157, %v2610
  %v2675 = vadd.f32 %v2158, %v2611
  %v2676 = vadd.f32 %v2159, %v2612
  %v2677 = vadd.f32 %v2160, %v2613
  %v2678 = vadd.f32 %v2161, %v2614
  %v2679 = vadd.f32 %v2162, %v2615
  %v2680 = vadd.f32 %v2163, %v2616
  %v2681 = vadd.f32 %v2164, %v2617
  %v2682 = vadd.f32 %v2165, %v2618
  %v2683 = vadd.f32 %v2166, %v2619
  %v2684 = vadd.f32 %v2167, %v2620
  %v2685 = vadd.f32 %v2168, %v2621
  %v2686 = vadd.f32 %v2169, %v2622
  %v2687 = vadd.f32 %v2170, %v2623
  %v2688 = vadd.f32 %v2171, %v2624
  %v2689 = vadd.f32 %v2172, %v2625
  %v2690 = vadd.f32 %v2173, %v2626
  %v2691 = vadd.f32 %v2174, %v2627
  %v2692 = vadd.f32 %v2175, %v2628
  %v2693 = vadd.f32 %v2176, %v2629
  %v2694 = vadd.f32 %v2177, %v2630
  %v2695 = vadd.f32 %v2178, %v2631
  %v2696 = vadd.f32 %v2179, %v2632
  %v2697 = vadd.f32 %v2180, %v2633
  %v2698 = vadd.f32 %v2181, %v2634
  %v2699 = vadd.f32 %v2182, %v2635
  %v2700 = vadd.f32 %v2183, %v2636
  %v2701 = vadd.f32 %v2184, %v2637
  %v2702 = vadd.f32 %v2185, %v2638
  %v2703 = vadd.f32 %v2186, %v2639
  %v2704 = vadd.f32 %v2187, %v2640
  %v2705 = vadd.f32 %v2188, %v2641
  %v2706 = vadd.f32 %v2189, %v2642
  %v2707 = vadd.f32 %v2190, %v2643
  %v2708 = vadd.f32 %v2191, %v2644
  %v2709 = vadd.f32 %v2192, %v2645
  %v2710 = vadd.f32 %v2193, %v2646
  %v2711 = vadd.f32 %v2194, %v2647
  %v2712 = vadd.f32 %v2195, %v2648
  %v2713 = vadd.f32 %v2196, %v2649
  %v2714 = vadd.f32 %v2197, %v2650
  %v2715 = vadd.f32 %v2198, %v2651
  %v2716 = vadd.f32 %v2199, %v2652
  %v2717 = vadd.f32 %v2200, %v2653
  %v2718 = vadd.f32 %v2201, %v2654
  %v2719 = vadd.f32 %v2202, %v2655
  %v2720 = vadd.f32 %v2203, %v2656
  %v2721 = vadd.f32 %v2204, %v2657
  %v2722 = vadd.f32 %v2205, %v2658
  %v2723 = vadd.f32 %v2206, %v2659
  %v2724 = vadd.f32 %v2207, %v2660
  %v2725 = vadd.f32 %v2208, %v2661
  %v2726 = vadd.f32 %v2209, %v2662
  %v2727 = vadd.f32 %v2210, %v2663
  %v2728 = vld [vmem:[%s1693 + $0x2] sm:$0xff]
  %v2729 = vld [vmem:[%s1693 + $0xa] sm:$0xff]
  %v2730 = vld [vmem:[%s1693 + $0x1a] sm:$0xff]
  %v2731 = vld [vmem:[%s1693 + $0x22] sm:$0xff]
  %v2732 = vld [vmem:[%s1693 + $0x32] sm:$0xff]
  %v2733 = vld [vmem:[%s1693 + $0x3a] sm:$0xff]
  %v2734 = vld [vmem:[%s1693 + $0x4a] sm:$0xff]
  %v2735 = vld [vmem:[%s1693 + $0x52] sm:$0xff]
  %v2736 = vld [vmem:[%s1693 + $0x62] sm:$0xff]
  %v2737 = vld [vmem:[%s1693 + $0x6a] sm:$0xff]
  %v2738 = vld [vmem:[%s1693 + $0x7a] sm:$0xff]
  %v2739 = vld [vmem:[%s1693 + $0x82] sm:$0xff]
  %v2740 = vld [vmem:[%s1693 + $0x92] sm:$0xff]
  %v2741 = vld [vmem:[%s1693 + $0x9a] sm:$0xff]
  %v2742 = vld [vmem:[%s1693 + $0xaa] sm:$0xff]
  %v2743 = vld [vmem:[%s1693 + $0xb2] sm:$0xff]
  %v2744 = vld [vmem:[%s1693 + $0xc2] sm:$0xff]
  %v2745 = vld [vmem:[%s1693 + $0xca] sm:$0xff]
  %v2746 = vld [vmem:[%s1693 + $0xda] sm:$0xff]
  %v2747 = vld [vmem:[%s1693 + $0xe2] sm:$0xff]
  %v2748 = vld [vmem:[%s1693 + $0xf2] sm:$0xff]
  %v2749 = vld [vmem:[%s1693 + $0xfa] sm:$0xff]
  %v2750 = vld [vmem:[%s1693 + $0x10a] sm:$0xff]
  %v2751 = vld [vmem:[%s1693 + $0x112] sm:$0xff]
  %v2752 = vld [vmem:[%s1693 + $0x122] sm:$0xff]
  %v2753 = vld [vmem:[%s1693 + $0x12a] sm:$0xff]
  %v2754 = vld [vmem:[%s1693 + $0x13a] sm:$0xff]
  %v2755 = vld [vmem:[%s1693 + $0x142] sm:$0xff]
  %v2756 = vld [vmem:[%s1693 + $0x152] sm:$0xff]
  %v2757 = vld [vmem:[%s1693 + $0x15a] sm:$0xff]
  %v2758 = vld [vmem:[%s1693 + $0x16a] sm:$0xff]
  %v2759 = vld [vmem:[%s1693 + $0x172] sm:$0xff]
  %v2760 = vld [vmem:[%s1693 + $0x1b2] sm:$0xff]
  %v2761 = vld [vmem:[%s1693 + $0x1ba] sm:$0xff]
  %v2762 = vld [vmem:[%s1693 + $0x1ca] sm:$0xff]
  %v2763 = vld [vmem:[%s1693 + $0x1d2] sm:$0xff]
  %v2764 = vld [vmem:[%s1693 + $0x1e2] sm:$0xff]
  %v2765 = vld [vmem:[%s1693 + $0x1ea] sm:$0xff]
  %v2766 = vld [vmem:[%s1693 + $0x1fa] sm:$0xff]
  %v2767 = vld [vmem:[%s1693 + $0x202] sm:$0xff]
  %v2768 = vld [vmem:[%s1693 + $0x212] sm:$0xff]
  %v2769 = vld [vmem:[%s1693 + $0x21a] sm:$0xff]
  %v2770 = vld [vmem:[%s1693 + $0x22a] sm:$0xff]
  %v2771 = vld [vmem:[%s1693 + $0x232] sm:$0xff]
  %v2772 = vld [vmem:[%s1693 + $0x242] sm:$0xff]
  %v2773 = vld [vmem:[%s1693 + $0x24a] sm:$0xff]
  %v2774 = vld [vmem:[%s1693 + $0x25a] sm:$0xff]
  %v2775 = vld [vmem:[%s1693 + $0x262] sm:$0xff]
  %v2776 = vld [vmem:[%s1693 + $0x272] sm:$0xff]
  %v2777 = vld [vmem:[%s1693 + $0x27a] sm:$0xff]
  %v2778 = vld [vmem:[%s1693 + $0x28a] sm:$0xff]
  %v2779 = vld [vmem:[%s1693 + $0x292] sm:$0xff]
  %v2780 = vld [vmem:[%s1693 + $0x2a2] sm:$0xff]
  %v2781 = vld [vmem:[%s1693 + $0x2aa] sm:$0xff]
  %v2782 = vld [vmem:[%s1693 + $0x2ba] sm:$0xff]
  %v2783 = vld [vmem:[%s1693 + $0x2c2] sm:$0xff]
  %v2784 = vld [vmem:[%s1693 + $0x2d2] sm:$0xff]
  %v2785 = vld [vmem:[%s1693 + $0x2da] sm:$0xff]
  %v2786 = vld [vmem:[%s1693 + $0x2ea] sm:$0xff]
  %v2787 = vld [vmem:[%s1693 + $0x2f2] sm:$0xff]
  %v2788 = vld [vmem:[%s1693 + $0x302] sm:$0xff]
  %v2789 = vld [vmem:[%s1693 + $0x30a] sm:$0xff]
  %v2790 = vld [vmem:[%s1693 + $0x31a] sm:$0xff]
  %v2791 = vld [vmem:[%s1693 + $0x322] sm:$0xff]
  %s2792 = scalar_lea.vmem %s1, 5
  %v2793 = vld [vmem:[%s2792] sm:$0x1]
  %2795 = vset.pattern.permute.xlu0 0
  %2796 = vperm.xlu0 %2795, %v2728
  %v2797 = vpop.permute.xlu0 %2796
  %2800 = vset.pattern.permute.xlu0 0
  %2801 = vperm.xlu0 %2800, %v2729
  %v2802 = vpop.permute.xlu0 %2801
  %2805 = vset.pattern.permute.xlu0 0
  %2806 = vperm.xlu0 %2805, %v2730
  %v2807 = vpop.permute.xlu0 %2806
  %2810 = vset.pattern.permute.xlu0 0
  %2811 = vperm.xlu0 %2810, %v2731
  %v2812 = vpop.permute.xlu0 %2811
  %2815 = vset.pattern.permute.xlu0 0
  %2816 = vperm.xlu0 %2815, %v2732
  %v2817 = vpop.permute.xlu0 %2816
  %2820 = vset.pattern.permute.xlu0 0
  %2821 = vperm.xlu0 %2820, %v2733
  %v2822 = vpop.permute.xlu0 %2821
  %2825 = vset.pattern.permute.xlu0 0
  %2826 = vperm.xlu0 %2825, %v2734
  %v2827 = vpop.permute.xlu0 %2826
  %2830 = vset.pattern.permute.xlu0 0
  %2831 = vperm.xlu0 %2830, %v2735
  %v2832 = vpop.permute.xlu0 %2831
  %2835 = vset.pattern.permute.xlu0 0
  %2836 = vperm.xlu0 %2835, %v2736
  %v2837 = vpop.permute.xlu0 %2836
  %2840 = vset.pattern.permute.xlu0 0
  %2841 = vperm.xlu0 %2840, %v2737
  %v2842 = vpop.permute.xlu0 %2841
  %2845 = vset.pattern.permute.xlu0 0
  %2846 = vperm.xlu0 %2845, %v2738
  %v2847 = vpop.permute.xlu0 %2846
  %2850 = vset.pattern.permute.xlu0 0
  %2851 = vperm.xlu0 %2850, %v2739
  %v2852 = vpop.permute.xlu0 %2851
  %2855 = vset.pattern.permute.xlu0 0
  %2856 = vperm.xlu0 %2855, %v2740
  %v2857 = vpop.permute.xlu0 %2856
  %2860 = vset.pattern.permute.xlu0 0
  %2861 = vperm.xlu0 %2860, %v2741
  %v2862 = vpop.permute.xlu0 %2861
  %2865 = vset.pattern.permute.xlu0 0
  %2866 = vperm.xlu0 %2865, %v2742
  %v2867 = vpop.permute.xlu0 %2866
  %2870 = vset.pattern.permute.xlu0 0
  %2871 = vperm.xlu0 %2870, %v2743
  %v2872 = vpop.permute.xlu0 %2871
  %2875 = vset.pattern.permute.xlu0 0
  %2876 = vperm.xlu0 %2875, %v2744
  %v2877 = vpop.permute.xlu0 %2876
  %2880 = vset.pattern.permute.xlu0 0
  %2881 = vperm.xlu0 %2880, %v2745
  %v2882 = vpop.permute.xlu0 %2881
  %2885 = vset.pattern.permute.xlu0 0
  %2886 = vperm.xlu0 %2885, %v2746
  %v2887 = vpop.permute.xlu0 %2886
  %2890 = vset.pattern.permute.xlu0 0
  %2891 = vperm.xlu0 %2890, %v2747
  %v2892 = vpop.permute.xlu0 %2891
  %2895 = vset.pattern.permute.xlu0 0
  %2896 = vperm.xlu0 %2895, %v2748
  %v2897 = vpop.permute.xlu0 %2896
  %2900 = vset.pattern.permute.xlu0 0
  %2901 = vperm.xlu0 %2900, %v2749
  %v2902 = vpop.permute.xlu0 %2901
  %2905 = vset.pattern.permute.xlu0 0
  %2906 = vperm.xlu0 %2905, %v2750
  %v2907 = vpop.permute.xlu0 %2906
  %2910 = vset.pattern.permute.xlu0 0
  %2911 = vperm.xlu0 %2910, %v2751
  %v2912 = vpop.permute.xlu0 %2911
  %2915 = vset.pattern.permute.xlu0 0
  %2916 = vperm.xlu0 %2915, %v2752
  %v2917 = vpop.permute.xlu0 %2916
  %2920 = vset.pattern.permute.xlu0 0
  %2921 = vperm.xlu0 %2920, %v2753
  %v2922 = vpop.permute.xlu0 %2921
  %2925 = vset.pattern.permute.xlu0 0
  %2926 = vperm.xlu0 %2925, %v2754
  %v2927 = vpop.permute.xlu0 %2926
  %2930 = vset.pattern.permute.xlu0 0
  %2931 = vperm.xlu0 %2930, %v2755
  %v2932 = vpop.permute.xlu0 %2931
  %2935 = vset.pattern.permute.xlu0 0
  %2936 = vperm.xlu0 %2935, %v2756
  %v2937 = vpop.permute.xlu0 %2936
  %2940 = vset.pattern.permute.xlu0 0
  %2941 = vperm.xlu0 %2940, %v2757
  %v2942 = vpop.permute.xlu0 %2941
  %2945 = vset.pattern.permute.xlu0 0
  %2946 = vperm.xlu0 %2945, %v2758
  %v2947 = vpop.permute.xlu0 %2946
  %2950 = vset.pattern.permute.xlu0 0
  %2951 = vperm.xlu0 %2950, %v2759
  %v2952 = vpop.permute.xlu0 %2951
  %2955 = vset.pattern.permute.xlu0 0
  %2956 = vperm.xlu0 %2955, %v2760
  %v2957 = vpop.permute.xlu0 %2956
  %2960 = vset.pattern.permute.xlu0 0
  %2961 = vperm.xlu0 %2960, %v2761
  %v2962 = vpop.permute.xlu0 %2961
  %2965 = vset.pattern.permute.xlu0 0
  %2966 = vperm.xlu0 %2965, %v2762
  %v2967 = vpop.permute.xlu0 %2966
  %2970 = vset.pattern.permute.xlu0 0
  %2971 = vperm.xlu0 %2970, %v2763
  %v2972 = vpop.permute.xlu0 %2971
  %2975 = vset.pattern.permute.xlu0 0
  %2976 = vperm.xlu0 %2975, %v2764
  %v2977 = vpop.permute.xlu0 %2976
  %2980 = vset.pattern.permute.xlu0 0
  %2981 = vperm.xlu0 %2980, %v2765
  %v2982 = vpop.permute.xlu0 %2981
  %2985 = vset.pattern.permute.xlu0 0
  %2986 = vperm.xlu0 %2985, %v2766
  %v2987 = vpop.permute.xlu0 %2986
  %2990 = vset.pattern.permute.xlu0 0
  %2991 = vperm.xlu0 %2990, %v2767
  %v2992 = vpop.permute.xlu0 %2991
  %2995 = vset.pattern.permute.xlu0 0
  %2996 = vperm.xlu0 %2995, %v2768
  %v2997 = vpop.permute.xlu0 %2996
  %3000 = vset.pattern.permute.xlu0 0
  %3001 = vperm.xlu0 %3000, %v2769
  %v3002 = vpop.permute.xlu0 %3001
  %3005 = vset.pattern.permute.xlu0 0
  %3006 = vperm.xlu0 %3005, %v2770
  %v3007 = vpop.permute.xlu0 %3006
  %3010 = vset.pattern.permute.xlu0 0
  %3011 = vperm.xlu0 %3010, %v2771
  %v3012 = vpop.permute.xlu0 %3011
  %3015 = vset.pattern.permute.xlu0 0
  %3016 = vperm.xlu0 %3015, %v2772
  %v3017 = vpop.permute.xlu0 %3016
  %3020 = vset.pattern.permute.xlu0 0
  %3021 = vperm.xlu0 %3020, %v2773
  %v3022 = vpop.permute.xlu0 %3021
  %3025 = vset.pattern.permute.xlu0 0
  %3026 = vperm.xlu0 %3025, %v2774
  %v3027 = vpop.permute.xlu0 %3026
  %3030 = vset.pattern.permute.xlu0 0
  %3031 = vperm.xlu0 %3030, %v2775
  %v3032 = vpop.permute.xlu0 %3031
  %3035 = vset.pattern.permute.xlu0 0
  %3036 = vperm.xlu0 %3035, %v2776
  %v3037 = vpop.permute.xlu0 %3036
  %3040 = vset.pattern.permute.xlu0 0
  %3041 = vperm.xlu0 %3040, %v2777
  %v3042 = vpop.permute.xlu0 %3041
  %3045 = vset.pattern.permute.xlu0 0
  %3046 = vperm.xlu0 %3045, %v2778
  %v3047 = vpop.permute.xlu0 %3046
  %3050 = vset.pattern.permute.xlu0 0
  %3051 = vperm.xlu0 %3050, %v2779
  %v3052 = vpop.permute.xlu0 %3051
  %3055 = vset.pattern.permute.xlu0 0
  %3056 = vperm.xlu0 %3055, %v2780
  %v3057 = vpop.permute.xlu0 %3056
  %3060 = vset.pattern.permute.xlu0 0
  %3061 = vperm.xlu0 %3060, %v2781
  %v3062 = vpop.permute.xlu0 %3061
  %3065 = vset.pattern.permute.xlu0 0
  %3066 = vperm.xlu0 %3065, %v2782
  %v3067 = vpop.permute.xlu0 %3066
  %3070 = vset.pattern.permute.xlu0 0
  %3071 = vperm.xlu0 %3070, %v2783
  %v3072 = vpop.permute.xlu0 %3071
  %3075 = vset.pattern.permute.xlu0 0
  %3076 = vperm.xlu0 %3075, %v2784
  %v3077 = vpop.permute.xlu0 %3076
  %3080 = vset.pattern.permute.xlu0 0
  %3081 = vperm.xlu0 %3080, %v2785
  %v3082 = vpop.permute.xlu0 %3081
  %3085 = vset.pattern.permute.xlu0 0
  %3086 = vperm.xlu0 %3085, %v2786
  %v3087 = vpop.permute.xlu0 %3086
  %3090 = vset.pattern.permute.xlu0 0
  %3091 = vperm.xlu0 %3090, %v2787
  %v3092 = vpop.permute.xlu0 %3091
  %3095 = vset.pattern.permute.xlu0 0
  %3096 = vperm.xlu0 %3095, %v2788
  %v3097 = vpop.permute.xlu0 %3096
  %3100 = vset.pattern.permute.xlu0 0
  %3101 = vperm.xlu0 %3100, %v2789
  %v3102 = vpop.permute.xlu0 %3101
  %3105 = vset.pattern.permute.xlu0 0
  %3106 = vperm.xlu0 %3105, %v2790
  %v3107 = vpop.permute.xlu0 %3106
  %3110 = vset.pattern.permute.xlu0 0
  %3111 = vperm.xlu0 %3110, %v2791
  %v3112 = vpop.permute.xlu0 %3111
  %v3115 = vperm.slane %v2793, 0
  %v3117 = vmul.f32 %v2797, %v3115
  %v3118 = vmul.f32 %v2802, %v3115
  %v3119 = vmul.f32 %v2807, %v3115
  %v3120 = vmul.f32 %v2812, %v3115
  %v3121 = vmul.f32 %v2817, %v3115
  %v3122 = vmul.f32 %v2822, %v3115
  %v3123 = vmul.f32 %v2827, %v3115
  %v3124 = vmul.f32 %v2832, %v3115
  %v3125 = vmul.f32 %v2837, %v3115
  %v3126 = vmul.f32 %v2842, %v3115
  %v3127 = vmul.f32 %v2847, %v3115
  %v3128 = vmul.f32 %v2852, %v3115
  %v3129 = vmul.f32 %v2857, %v3115
  %v3130 = vmul.f32 %v2862, %v3115
  %v3131 = vmul.f32 %v2867, %v3115
  %v3132 = vmul.f32 %v2872, %v3115
  %v3133 = vmul.f32 %v2877, %v3115
  %v3134 = vmul.f32 %v2882, %v3115
  %v3135 = vmul.f32 %v2887, %v3115
  %v3136 = vmul.f32 %v2892, %v3115
  %v3137 = vmul.f32 %v2897, %v3115
  %v3138 = vmul.f32 %v2902, %v3115
  %v3139 = vmul.f32 %v2907, %v3115
  %v3140 = vmul.f32 %v2912, %v3115
  %v3141 = vmul.f32 %v2917, %v3115
  %v3142 = vmul.f32 %v2922, %v3115
  %v3143 = vmul.f32 %v2927, %v3115
  %v3144 = vmul.f32 %v2932, %v3115
  %v3145 = vmul.f32 %v2937, %v3115
  %v3146 = vmul.f32 %v2942, %v3115
  %v3147 = vmul.f32 %v2947, %v3115
  %v3148 = vmul.f32 %v2952, %v3115
  %v3149 = vmul.f32 %v2957, %v3115
  %v3150 = vmul.f32 %v2962, %v3115
  %v3151 = vmul.f32 %v2967, %v3115
  %v3152 = vmul.f32 %v2972, %v3115
  %v3153 = vmul.f32 %v2977, %v3115
  %v3154 = vmul.f32 %v2982, %v3115
  %v3155 = vmul.f32 %v2987, %v3115
  %v3156 = vmul.f32 %v2992, %v3115
  %v3157 = vmul.f32 %v2997, %v3115
  %v3158 = vmul.f32 %v3002, %v3115
  %v3159 = vmul.f32 %v3007, %v3115
  %v3160 = vmul.f32 %v3012, %v3115
  %v3161 = vmul.f32 %v3017, %v3115
  %v3162 = vmul.f32 %v3022, %v3115
  %v3163 = vmul.f32 %v3027, %v3115
  %v3164 = vmul.f32 %v3032, %v3115
  %v3165 = vmul.f32 %v3037, %v3115
  %v3166 = vmul.f32 %v3042, %v3115
  %v3167 = vmul.f32 %v3047, %v3115
  %v3168 = vmul.f32 %v3052, %v3115
  %v3169 = vmul.f32 %v3057, %v3115
  %v3170 = vmul.f32 %v3062, %v3115
  %v3171 = vmul.f32 %v3067, %v3115
  %v3172 = vmul.f32 %v3072, %v3115
  %v3173 = vmul.f32 %v3077, %v3115
  %v3174 = vmul.f32 %v3082, %v3115
  %v3175 = vmul.f32 %v3087, %v3115
  %v3176 = vmul.f32 %v3092, %v3115
  %v3177 = vmul.f32 %v3097, %v3115
  %v3178 = vmul.f32 %v3102, %v3115
  %v3179 = vmul.f32 %v3107, %v3115
  %v3180 = vmul.f32 %v3112, %v3115
  %v3181 = vadd.f32 %v2664, %v3117
  %v3182 = vadd.f32 %v2665, %v3118
  %v3183 = vadd.f32 %v2666, %v3119
  %v3184 = vadd.f32 %v2667, %v3120
  %v3185 = vadd.f32 %v2668, %v3121
  %v3186 = vadd.f32 %v2669, %v3122
  %v3187 = vadd.f32 %v2670, %v3123
  %v3188 = vadd.f32 %v2671, %v3124
  %v3189 = vadd.f32 %v2672, %v3125
  %v3190 = vadd.f32 %v2673, %v3126
  %v3191 = vadd.f32 %v2674, %v3127
  %v3192 = vadd.f32 %v2675, %v3128
  %v3193 = vadd.f32 %v2676, %v3129
  %v3194 = vadd.f32 %v2677, %v3130
  %v3195 = vadd.f32 %v2678, %v3131
  %v3196 = vadd.f32 %v2679, %v3132
  %v3197 = vadd.f32 %v2680, %v3133
  %v3198 = vadd.f32 %v2681, %v3134
  %v3199 = vadd.f32 %v2682, %v3135
  %v3200 = vadd.f32 %v2683, %v3136
  %v3201 = vadd.f32 %v2684, %v3137
  %v3202 = vadd.f32 %v2685, %v3138
  %v3203 = vadd.f32 %v2686, %v3139
  %v3204 = vadd.f32 %v2687, %v3140
  %v3205 = vadd.f32 %v2688, %v3141
  %v3206 = vadd.f32 %v2689, %v3142
  %v3207 = vadd.f32 %v2690, %v3143
  %v3208 = vadd.f32 %v2691, %v3144
  %v3209 = vadd.f32 %v2692, %v3145
  %v3210 = vadd.f32 %v2693, %v3146
  %v3211 = vadd.f32 %v2694, %v3147
  %v3212 = vadd.f32 %v2695, %v3148
  %v3213 = vadd.f32 %v2696, %v3149
  %v3214 = vadd.f32 %v2697, %v3150
  %v3215 = vadd.f32 %v2698, %v3151
  %v3216 = vadd.f32 %v2699, %v3152
  %v3217 = vadd.f32 %v2700, %v3153
  %v3218 = vadd.f32 %v2701, %v3154
  %v3219 = vadd.f32 %v2702, %v3155
  %v3220 = vadd.f32 %v2703, %v3156
  %v3221 = vadd.f32 %v2704, %v3157
  %v3222 = vadd.f32 %v2705, %v3158
  %v3223 = vadd.f32 %v2706, %v3159
  %v3224 = vadd.f32 %v2707, %v3160
  %v3225 = vadd.f32 %v2708, %v3161
  %v3226 = vadd.f32 %v2709, %v3162
  %v3227 = vadd.f32 %v2710, %v3163
  %v3228 = vadd.f32 %v2711, %v3164
  %v3229 = vadd.f32 %v2712, %v3165
  %v3230 = vadd.f32 %v2713, %v3166
  %v3231 = vadd.f32 %v2714, %v3167
  %v3232 = vadd.f32 %v2715, %v3168
  %v3233 = vadd.f32 %v2716, %v3169
  %v3234 = vadd.f32 %v2717, %v3170
  %v3235 = vadd.f32 %v2718, %v3171
  %v3236 = vadd.f32 %v2719, %v3172
  %v3237 = vadd.f32 %v2720, %v3173
  %v3238 = vadd.f32 %v2721, %v3174
  %v3239 = vadd.f32 %v2722, %v3175
  %v3240 = vadd.f32 %v2723, %v3176
  %v3241 = vadd.f32 %v2724, %v3177
  %v3242 = vadd.f32 %v2725, %v3178
  %v3243 = vadd.f32 %v2726, %v3179
  %v3244 = vadd.f32 %v2727, %v3180
  %s3245 = scalar_lea.vmem %s0, 48
  %v3246 = vld [vmem:[%s3245] sm:$0xff]
  %v3247 = vld [vmem:[%s3245 + $0x8] sm:$0xff]
  %v3248 = vld [vmem:[%s3245 + $0x18] sm:$0xff]
  %v3249 = vld [vmem:[%s3245 + $0x20] sm:$0xff]
  %v3250 = vld [vmem:[%s3245 + $0x30] sm:$0xff]
  %v3251 = vld [vmem:[%s3245 + $0x38] sm:$0xff]
  %v3252 = vld [vmem:[%s3245 + $0x48] sm:$0xff]
  %v3253 = vld [vmem:[%s3245 + $0x50] sm:$0xff]
  %v3254 = vld [vmem:[%s3245 + $0x60] sm:$0xff]
  %v3255 = vld [vmem:[%s3245 + $0x68] sm:$0xff]
  %v3256 = vld [vmem:[%s3245 + $0x78] sm:$0xff]
  %v3257 = vld [vmem:[%s3245 + $0x80] sm:$0xff]
  %v3258 = vld [vmem:[%s3245 + $0x90] sm:$0xff]
  %v3259 = vld [vmem:[%s3245 + $0x98] sm:$0xff]
  %v3260 = vld [vmem:[%s3245 + $0xa8] sm:$0xff]
  %v3261 = vld [vmem:[%s3245 + $0xb0] sm:$0xff]
  %v3262 = vld [vmem:[%s3245 + $0xc0] sm:$0xff]
  %v3263 = vld [vmem:[%s3245 + $0xc8] sm:$0xff]
  %v3264 = vld [vmem:[%s3245 + $0xd8] sm:$0xff]
  %v3265 = vld [vmem:[%s3245 + $0xe0] sm:$0xff]
  %v3266 = vld [vmem:[%s3245 + $0xf0] sm:$0xff]
  %v3267 = vld [vmem:[%s3245 + $0xf8] sm:$0xff]
  %v3268 = vld [vmem:[%s3245 + $0x108] sm:$0xff]
  %v3269 = vld [vmem:[%s3245 + $0x110] sm:$0xff]
  %v3270 = vld [vmem:[%s3245 + $0x120] sm:$0xff]
  %v3271 = vld [vmem:[%s3245 + $0x128] sm:$0xff]
  %v3272 = vld [vmem:[%s3245 + $0x138] sm:$0xff]
  %v3273 = vld [vmem:[%s3245 + $0x140] sm:$0xff]
  %v3274 = vld [vmem:[%s3245 + $0x150] sm:$0xff]
  %v3275 = vld [vmem:[%s3245 + $0x158] sm:$0xff]
  %v3276 = vld [vmem:[%s3245 + $0x168] sm:$0xff]
  %v3277 = vld [vmem:[%s3245 + $0x170] sm:$0xff]
  %v3278 = vld [vmem:[%s3245 + $0x1b0] sm:$0xff]
  %v3279 = vld [vmem:[%s3245 + $0x1b8] sm:$0xff]
  %v3280 = vld [vmem:[%s3245 + $0x1c8] sm:$0xff]
  %v3281 = vld [vmem:[%s3245 + $0x1d0] sm:$0xff]
  %v3282 = vld [vmem:[%s3245 + $0x1e0] sm:$0xff]
  %v3283 = vld [vmem:[%s3245 + $0x1e8] sm:$0xff]
  %v3284 = vld [vmem:[%s3245 + $0x1f8] sm:$0xff]
  %v3285 = vld [vmem:[%s3245 + $0x200] sm:$0xff]
  %v3286 = vld [vmem:[%s3245 + $0x210] sm:$0xff]
  %v3287 = vld [vmem:[%s3245 + $0x218] sm:$0xff]
  %v3288 = vld [vmem:[%s3245 + $0x228] sm:$0xff]
  %v3289 = vld [vmem:[%s3245 + $0x230] sm:$0xff]
  %v3290 = vld [vmem:[%s3245 + $0x240] sm:$0xff]
  %v3291 = vld [vmem:[%s3245 + $0x248] sm:$0xff]
  %v3292 = vld [vmem:[%s3245 + $0x258] sm:$0xff]
  %v3293 = vld [vmem:[%s3245 + $0x260] sm:$0xff]
  %v3294 = vld [vmem:[%s3245 + $0x270] sm:$0xff]
  %v3295 = vld [vmem:[%s3245 + $0x278] sm:$0xff]
  %v3296 = vld [vmem:[%s3245 + $0x288] sm:$0xff]
  %v3297 = vld [vmem:[%s3245 + $0x290] sm:$0xff]
  %v3298 = vld [vmem:[%s3245 + $0x2a0] sm:$0xff]
  %v3299 = vld [vmem:[%s3245 + $0x2a8] sm:$0xff]
  %v3300 = vld [vmem:[%s3245 + $0x2b8] sm:$0xff]
  %v3301 = vld [vmem:[%s3245 + $0x2c0] sm:$0xff]
  %v3302 = vld [vmem:[%s3245 + $0x2d0] sm:$0xff]
  %v3303 = vld [vmem:[%s3245 + $0x2d8] sm:$0xff]
  %v3304 = vld [vmem:[%s3245 + $0x2e8] sm:$0xff]
  %v3305 = vld [vmem:[%s3245 + $0x2f0] sm:$0xff]
  %v3306 = vld [vmem:[%s3245 + $0x300] sm:$0xff]
  %v3307 = vld [vmem:[%s3245 + $0x308] sm:$0xff]
  %v3308 = vld [vmem:[%s3245 + $0x318] sm:$0xff]
  %v3309 = vld [vmem:[%s3245 + $0x320] sm:$0xff]
  %s3310 = scalar_lea.vmem %s1, 6
  %v3311 = vld [vmem:[%s3310] sm:$0x1]
  %3313 = vset.pattern.permute.xlu0 0
  %3314 = vperm.xlu0 %3313, %v3246
  %v3315 = vpop.permute.xlu0 %3314
  %3318 = vset.pattern.permute.xlu0 0
  %3319 = vperm.xlu0 %3318, %v3247
  %v3320 = vpop.permute.xlu0 %3319
  %3323 = vset.pattern.permute.xlu0 0
  %3324 = vperm.xlu0 %3323, %v3248
  %v3325 = vpop.permute.xlu0 %3324
  %3328 = vset.pattern.permute.xlu0 0
  %3329 = vperm.xlu0 %3328, %v3249
  %v3330 = vpop.permute.xlu0 %3329
  %3333 = vset.pattern.permute.xlu0 0
  %3334 = vperm.xlu0 %3333, %v3250
  %v3335 = vpop.permute.xlu0 %3334
  %3338 = vset.pattern.permute.xlu0 0
  %3339 = vperm.xlu0 %3338, %v3251
  %v3340 = vpop.permute.xlu0 %3339
  %3343 = vset.pattern.permute.xlu0 0
  %3344 = vperm.xlu0 %3343, %v3252
  %v3345 = vpop.permute.xlu0 %3344
  %3348 = vset.pattern.permute.xlu0 0
  %3349 = vperm.xlu0 %3348, %v3253
  %v3350 = vpop.permute.xlu0 %3349
  %3353 = vset.pattern.permute.xlu0 0
  %3354 = vperm.xlu0 %3353, %v3254
  %v3355 = vpop.permute.xlu0 %3354
  %3358 = vset.pattern.permute.xlu0 0
  %3359 = vperm.xlu0 %3358, %v3255
  %v3360 = vpop.permute.xlu0 %3359
  %3363 = vset.pattern.permute.xlu0 0
  %3364 = vperm.xlu0 %3363, %v3256
  %v3365 = vpop.permute.xlu0 %3364
  %3368 = vset.pattern.permute.xlu0 0
  %3369 = vperm.xlu0 %3368, %v3257
  %v3370 = vpop.permute.xlu0 %3369
  %3373 = vset.pattern.permute.xlu0 0
  %3374 = vperm.xlu0 %3373, %v3258
  %v3375 = vpop.permute.xlu0 %3374
  %3378 = vset.pattern.permute.xlu0 0
  %3379 = vperm.xlu0 %3378, %v3259
  %v3380 = vpop.permute.xlu0 %3379
  %3383 = vset.pattern.permute.xlu0 0
  %3384 = vperm.xlu0 %3383, %v3260
  %v3385 = vpop.permute.xlu0 %3384
  %3388 = vset.pattern.permute.xlu0 0
  %3389 = vperm.xlu0 %3388, %v3261
  %v3390 = vpop.permute.xlu0 %3389
  %3393 = vset.pattern.permute.xlu0 0
  %3394 = vperm.xlu0 %3393, %v3262
  %v3395 = vpop.permute.xlu0 %3394
  %3398 = vset.pattern.permute.xlu0 0
  %3399 = vperm.xlu0 %3398, %v3263
  %v3400 = vpop.permute.xlu0 %3399
  %3403 = vset.pattern.permute.xlu0 0
  %3404 = vperm.xlu0 %3403, %v3264
  %v3405 = vpop.permute.xlu0 %3404
  %3408 = vset.pattern.permute.xlu0 0
  %3409 = vperm.xlu0 %3408, %v3265
  %v3410 = vpop.permute.xlu0 %3409
  %3413 = vset.pattern.permute.xlu0 0
  %3414 = vperm.xlu0 %3413, %v3266
  %v3415 = vpop.permute.xlu0 %3414
  %3418 = vset.pattern.permute.xlu0 0
  %3419 = vperm.xlu0 %3418, %v3267
  %v3420 = vpop.permute.xlu0 %3419
  %3423 = vset.pattern.permute.xlu0 0
  %3424 = vperm.xlu0 %3423, %v3268
  %v3425 = vpop.permute.xlu0 %3424
  %3428 = vset.pattern.permute.xlu0 0
  %3429 = vperm.xlu0 %3428, %v3269
  %v3430 = vpop.permute.xlu0 %3429
  %3433 = vset.pattern.permute.xlu0 0
  %3434 = vperm.xlu0 %3433, %v3270
  %v3435 = vpop.permute.xlu0 %3434
  %3438 = vset.pattern.permute.xlu0 0
  %3439 = vperm.xlu0 %3438, %v3271
  %v3440 = vpop.permute.xlu0 %3439
  %3443 = vset.pattern.permute.xlu0 0
  %3444 = vperm.xlu0 %3443, %v3272
  %v3445 = vpop.permute.xlu0 %3444
  %3448 = vset.pattern.permute.xlu0 0
  %3449 = vperm.xlu0 %3448, %v3273
  %v3450 = vpop.permute.xlu0 %3449
  %3453 = vset.pattern.permute.xlu0 0
  %3454 = vperm.xlu0 %3453, %v3274
  %v3455 = vpop.permute.xlu0 %3454
  %3458 = vset.pattern.permute.xlu0 0
  %3459 = vperm.xlu0 %3458, %v3275
  %v3460 = vpop.permute.xlu0 %3459
  %3463 = vset.pattern.permute.xlu0 0
  %3464 = vperm.xlu0 %3463, %v3276
  %v3465 = vpop.permute.xlu0 %3464
  %3468 = vset.pattern.permute.xlu0 0
  %3469 = vperm.xlu0 %3468, %v3277
  %v3470 = vpop.permute.xlu0 %3469
  %3473 = vset.pattern.permute.xlu0 0
  %3474 = vperm.xlu0 %3473, %v3278
  %v3475 = vpop.permute.xlu0 %3474
  %3478 = vset.pattern.permute.xlu0 0
  %3479 = vperm.xlu0 %3478, %v3279
  %v3480 = vpop.permute.xlu0 %3479
  %3483 = vset.pattern.permute.xlu0 0
  %3484 = vperm.xlu0 %3483, %v3280
  %v3485 = vpop.permute.xlu0 %3484
  %3488 = vset.pattern.permute.xlu0 0
  %3489 = vperm.xlu0 %3488, %v3281
  %v3490 = vpop.permute.xlu0 %3489
  %3493 = vset.pattern.permute.xlu0 0
  %3494 = vperm.xlu0 %3493, %v3282
  %v3495 = vpop.permute.xlu0 %3494
  %3498 = vset.pattern.permute.xlu0 0
  %3499 = vperm.xlu0 %3498, %v3283
  %v3500 = vpop.permute.xlu0 %3499
  %3503 = vset.pattern.permute.xlu0 0
  %3504 = vperm.xlu0 %3503, %v3284
  %v3505 = vpop.permute.xlu0 %3504
  %3508 = vset.pattern.permute.xlu0 0
  %3509 = vperm.xlu0 %3508, %v3285
  %v3510 = vpop.permute.xlu0 %3509
  %3513 = vset.pattern.permute.xlu0 0
  %3514 = vperm.xlu0 %3513, %v3286
  %v3515 = vpop.permute.xlu0 %3514
  %3518 = vset.pattern.permute.xlu0 0
  %3519 = vperm.xlu0 %3518, %v3287
  %v3520 = vpop.permute.xlu0 %3519
  %3523 = vset.pattern.permute.xlu0 0
  %3524 = vperm.xlu0 %3523, %v3288
  %v3525 = vpop.permute.xlu0 %3524
  %3528 = vset.pattern.permute.xlu0 0
  %3529 = vperm.xlu0 %3528, %v3289
  %v3530 = vpop.permute.xlu0 %3529
  %3533 = vset.pattern.permute.xlu0 0
  %3534 = vperm.xlu0 %3533, %v3290
  %v3535 = vpop.permute.xlu0 %3534
  %3538 = vset.pattern.permute.xlu0 0
  %3539 = vperm.xlu0 %3538, %v3291
  %v3540 = vpop.permute.xlu0 %3539
  %3543 = vset.pattern.permute.xlu0 0
  %3544 = vperm.xlu0 %3543, %v3292
  %v3545 = vpop.permute.xlu0 %3544
  %3548 = vset.pattern.permute.xlu0 0
  %3549 = vperm.xlu0 %3548, %v3293
  %v3550 = vpop.permute.xlu0 %3549
  %3553 = vset.pattern.permute.xlu0 0
  %3554 = vperm.xlu0 %3553, %v3294
  %v3555 = vpop.permute.xlu0 %3554
  %3558 = vset.pattern.permute.xlu0 0
  %3559 = vperm.xlu0 %3558, %v3295
  %v3560 = vpop.permute.xlu0 %3559
  %3563 = vset.pattern.permute.xlu0 0
  %3564 = vperm.xlu0 %3563, %v3296
  %v3565 = vpop.permute.xlu0 %3564
  %3568 = vset.pattern.permute.xlu0 0
  %3569 = vperm.xlu0 %3568, %v3297
  %v3570 = vpop.permute.xlu0 %3569
  %3573 = vset.pattern.permute.xlu0 0
  %3574 = vperm.xlu0 %3573, %v3298
  %v3575 = vpop.permute.xlu0 %3574
  %3578 = vset.pattern.permute.xlu0 0
  %3579 = vperm.xlu0 %3578, %v3299
  %v3580 = vpop.permute.xlu0 %3579
  %3583 = vset.pattern.permute.xlu0 0
  %3584 = vperm.xlu0 %3583, %v3300
  %v3585 = vpop.permute.xlu0 %3584
  %3588 = vset.pattern.permute.xlu0 0
  %3589 = vperm.xlu0 %3588, %v3301
  %v3590 = vpop.permute.xlu0 %3589
  %3593 = vset.pattern.permute.xlu0 0
  %3594 = vperm.xlu0 %3593, %v3302
  %v3595 = vpop.permute.xlu0 %3594
  %3598 = vset.pattern.permute.xlu0 0
  %3599 = vperm.xlu0 %3598, %v3303
  %v3600 = vpop.permute.xlu0 %3599
  %3603 = vset.pattern.permute.xlu0 0
  %3604 = vperm.xlu0 %3603, %v3304
  %v3605 = vpop.permute.xlu0 %3604
  %3608 = vset.pattern.permute.xlu0 0
  %3609 = vperm.xlu0 %3608, %v3305
  %v3610 = vpop.permute.xlu0 %3609
  %3613 = vset.pattern.permute.xlu0 0
  %3614 = vperm.xlu0 %3613, %v3306
  %v3615 = vpop.permute.xlu0 %3614
  %3618 = vset.pattern.permute.xlu0 0
  %3619 = vperm.xlu0 %3618, %v3307
  %v3620 = vpop.permute.xlu0 %3619
  %3623 = vset.pattern.permute.xlu0 0
  %3624 = vperm.xlu0 %3623, %v3308
  %v3625 = vpop.permute.xlu0 %3624
  %3628 = vset.pattern.permute.xlu0 0
  %3629 = vperm.xlu0 %3628, %v3309
  %v3630 = vpop.permute.xlu0 %3629
  %v3633 = vperm.slane %v3311, 0
  %v3635 = vmul.f32 %v3315, %v3633
  %v3636 = vmul.f32 %v3320, %v3633
  %v3637 = vmul.f32 %v3325, %v3633
  %v3638 = vmul.f32 %v3330, %v3633
  %v3639 = vmul.f32 %v3335, %v3633
  %v3640 = vmul.f32 %v3340, %v3633
  %v3641 = vmul.f32 %v3345, %v3633
  %v3642 = vmul.f32 %v3350, %v3633
  %v3643 = vmul.f32 %v3355, %v3633
  %v3644 = vmul.f32 %v3360, %v3633
  %v3645 = vmul.f32 %v3365, %v3633
  %v3646 = vmul.f32 %v3370, %v3633
  %v3647 = vmul.f32 %v3375, %v3633
  %v3648 = vmul.f32 %v3380, %v3633
  %v3649 = vmul.f32 %v3385, %v3633
  %v3650 = vmul.f32 %v3390, %v3633
  %v3651 = vmul.f32 %v3395, %v3633
  %v3652 = vmul.f32 %v3400, %v3633
  %v3653 = vmul.f32 %v3405, %v3633
  %v3654 = vmul.f32 %v3410, %v3633
  %v3655 = vmul.f32 %v3415, %v3633
  %v3656 = vmul.f32 %v3420, %v3633
  %v3657 = vmul.f32 %v3425, %v3633
  %v3658 = vmul.f32 %v3430, %v3633
  %v3659 = vmul.f32 %v3435, %v3633
  %v3660 = vmul.f32 %v3440, %v3633
  %v3661 = vmul.f32 %v3445, %v3633
  %v3662 = vmul.f32 %v3450, %v3633
  %v3663 = vmul.f32 %v3455, %v3633
  %v3664 = vmul.f32 %v3460, %v3633
  %v3665 = vmul.f32 %v3465, %v3633
  %v3666 = vmul.f32 %v3470, %v3633
  %v3667 = vmul.f32 %v3475, %v3633
  %v3668 = vmul.f32 %v3480, %v3633
  %v3669 = vmul.f32 %v3485, %v3633
  %v3670 = vmul.f32 %v3490, %v3633
  %v3671 = vmul.f32 %v3495, %v3633
  %v3672 = vmul.f32 %v3500, %v3633
  %v3673 = vmul.f32 %v3505, %v3633
  %v3674 = vmul.f32 %v3510, %v3633
  %v3675 = vmul.f32 %v3515, %v3633
  %v3676 = vmul.f32 %v3520, %v3633
  %v3677 = vmul.f32 %v3525, %v3633
  %v3678 = vmul.f32 %v3530, %v3633
  %v3679 = vmul.f32 %v3535, %v3633
  %v3680 = vmul.f32 %v3540, %v3633
  %v3681 = vmul.f32 %v3545, %v3633
  %v3682 = vmul.f32 %v3550, %v3633
  %v3683 = vmul.f32 %v3555, %v3633
  %v3684 = vmul.f32 %v3560, %v3633
  %v3685 = vmul.f32 %v3565, %v3633
  %v3686 = vmul.f32 %v3570, %v3633
  %v3687 = vmul.f32 %v3575, %v3633
  %v3688 = vmul.f32 %v3580, %v3633
  %v3689 = vmul.f32 %v3585, %v3633
  %v3690 = vmul.f32 %v3590, %v3633
  %v3691 = vmul.f32 %v3595, %v3633
  %v3692 = vmul.f32 %v3600, %v3633
  %v3693 = vmul.f32 %v3605, %v3633
  %v3694 = vmul.f32 %v3610, %v3633
  %v3695 = vmul.f32 %v3615, %v3633
  %v3696 = vmul.f32 %v3620, %v3633
  %v3697 = vmul.f32 %v3625, %v3633
  %v3698 = vmul.f32 %v3630, %v3633
  %v3699 = vadd.f32 %v3181, %v3635
  %v3700 = vadd.f32 %v3182, %v3636
  %v3701 = vadd.f32 %v3183, %v3637
  %v3702 = vadd.f32 %v3184, %v3638
  %v3703 = vadd.f32 %v3185, %v3639
  %v3704 = vadd.f32 %v3186, %v3640
  %v3705 = vadd.f32 %v3187, %v3641
  %v3706 = vadd.f32 %v3188, %v3642
  %v3707 = vadd.f32 %v3189, %v3643
  %v3708 = vadd.f32 %v3190, %v3644
  %v3709 = vadd.f32 %v3191, %v3645
  %v3710 = vadd.f32 %v3192, %v3646
  %v3711 = vadd.f32 %v3193, %v3647
  %v3712 = vadd.f32 %v3194, %v3648
  %v3713 = vadd.f32 %v3195, %v3649
  %v3714 = vadd.f32 %v3196, %v3650
  %v3715 = vadd.f32 %v3197, %v3651
  %v3716 = vadd.f32 %v3198, %v3652
  %v3717 = vadd.f32 %v3199, %v3653
  %v3718 = vadd.f32 %v3200, %v3654
  %v3719 = vadd.f32 %v3201, %v3655
  %v3720 = vadd.f32 %v3202, %v3656
  %v3721 = vadd.f32 %v3203, %v3657
  %v3722 = vadd.f32 %v3204, %v3658
  %v3723 = vadd.f32 %v3205, %v3659
  %v3724 = vadd.f32 %v3206, %v3660
  %v3725 = vadd.f32 %v3207, %v3661
  %v3726 = vadd.f32 %v3208, %v3662
  %v3727 = vadd.f32 %v3209, %v3663
  %v3728 = vadd.f32 %v3210, %v3664
  %v3729 = vadd.f32 %v3211, %v3665
  %v3730 = vadd.f32 %v3212, %v3666
  %v3731 = vadd.f32 %v3213, %v3667
  %v3732 = vadd.f32 %v3214, %v3668
  %v3733 = vadd.f32 %v3215, %v3669
  %v3734 = vadd.f32 %v3216, %v3670
  %v3735 = vadd.f32 %v3217, %v3671
  %v3736 = vadd.f32 %v3218, %v3672
  %v3737 = vadd.f32 %v3219, %v3673
  %v3738 = vadd.f32 %v3220, %v3674
  %v3739 = vadd.f32 %v3221, %v3675
  %v3740 = vadd.f32 %v3222, %v3676
  %v3741 = vadd.f32 %v3223, %v3677
  %v3742 = vadd.f32 %v3224, %v3678
  %v3743 = vadd.f32 %v3225, %v3679
  %v3744 = vadd.f32 %v3226, %v3680
  %v3745 = vadd.f32 %v3227, %v3681
  %v3746 = vadd.f32 %v3228, %v3682
  %v3747 = vadd.f32 %v3229, %v3683
  %v3748 = vadd.f32 %v3230, %v3684
  %v3749 = vadd.f32 %v3231, %v3685
  %v3750 = vadd.f32 %v3232, %v3686
  %v3751 = vadd.f32 %v3233, %v3687
  %v3752 = vadd.f32 %v3234, %v3688
  %v3753 = vadd.f32 %v3235, %v3689
  %v3754 = vadd.f32 %v3236, %v3690
  %v3755 = vadd.f32 %v3237, %v3691
  %v3756 = vadd.f32 %v3238, %v3692
  %v3757 = vadd.f32 %v3239, %v3693
  %v3758 = vadd.f32 %v3240, %v3694
  %v3759 = vadd.f32 %v3241, %v3695
  %v3760 = vadd.f32 %v3242, %v3696
  %v3761 = vadd.f32 %v3243, %v3697
  %v3762 = vadd.f32 %v3244, %v3698
  %v3763 = vld [vmem:[%s3245 + $0x1] sm:$0xff]
  %v3764 = vld [vmem:[%s3245 + $0x9] sm:$0xff]
  %v3765 = vld [vmem:[%s3245 + $0x19] sm:$0xff]
  %v3766 = vld [vmem:[%s3245 + $0x21] sm:$0xff]
  %v3767 = vld [vmem:[%s3245 + $0x31] sm:$0xff]
  %v3768 = vld [vmem:[%s3245 + $0x39] sm:$0xff]
  %v3769 = vld [vmem:[%s3245 + $0x49] sm:$0xff]
  %v3770 = vld [vmem:[%s3245 + $0x51] sm:$0xff]
  %v3771 = vld [vmem:[%s3245 + $0x61] sm:$0xff]
  %v3772 = vld [vmem:[%s3245 + $0x69] sm:$0xff]
  %v3773 = vld [vmem:[%s3245 + $0x79] sm:$0xff]
  %v3774 = vld [vmem:[%s3245 + $0x81] sm:$0xff]
  %v3775 = vld [vmem:[%s3245 + $0x91] sm:$0xff]
  %v3776 = vld [vmem:[%s3245 + $0x99] sm:$0xff]
  %v3777 = vld [vmem:[%s3245 + $0xa9] sm:$0xff]
  %v3778 = vld [vmem:[%s3245 + $0xb1] sm:$0xff]
  %v3779 = vld [vmem:[%s3245 + $0xc1] sm:$0xff]
  %v3780 = vld [vmem:[%s3245 + $0xc9] sm:$0xff]
  %v3781 = vld [vmem:[%s3245 + $0xd9] sm:$0xff]
  %v3782 = vld [vmem:[%s3245 + $0xe1] sm:$0xff]
  %v3783 = vld [vmem:[%s3245 + $0xf1] sm:$0xff]
  %v3784 = vld [vmem:[%s3245 + $0xf9] sm:$0xff]
  %v3785 = vld [vmem:[%s3245 + $0x109] sm:$0xff]
  %v3786 = vld [vmem:[%s3245 + $0x111] sm:$0xff]
  %v3787 = vld [vmem:[%s3245 + $0x121] sm:$0xff]
  %v3788 = vld [vmem:[%s3245 + $0x129] sm:$0xff]
  %v3789 = vld [vmem:[%s3245 + $0x139] sm:$0xff]
  %v3790 = vld [vmem:[%s3245 + $0x141] sm:$0xff]
  %v3791 = vld [vmem:[%s3245 + $0x151] sm:$0xff]
  %v3792 = vld [vmem:[%s3245 + $0x159] sm:$0xff]
  %v3793 = vld [vmem:[%s3245 + $0x169] sm:$0xff]
  %v3794 = vld [vmem:[%s3245 + $0x171] sm:$0xff]
  %v3795 = vld [vmem:[%s3245 + $0x1b1] sm:$0xff]
  %v3796 = vld [vmem:[%s3245 + $0x1b9] sm:$0xff]
  %v3797 = vld [vmem:[%s3245 + $0x1c9] sm:$0xff]
  %v3798 = vld [vmem:[%s3245 + $0x1d1] sm:$0xff]
  %v3799 = vld [vmem:[%s3245 + $0x1e1] sm:$0xff]
  %v3800 = vld [vmem:[%s3245 + $0x1e9] sm:$0xff]
  %v3801 = vld [vmem:[%s3245 + $0x1f9] sm:$0xff]
  %v3802 = vld [vmem:[%s3245 + $0x201] sm:$0xff]
  %v3803 = vld [vmem:[%s3245 + $0x211] sm:$0xff]
  %v3804 = vld [vmem:[%s3245 + $0x219] sm:$0xff]
  %v3805 = vld [vmem:[%s3245 + $0x229] sm:$0xff]
  %v3806 = vld [vmem:[%s3245 + $0x231] sm:$0xff]
  %v3807 = vld [vmem:[%s3245 + $0x241] sm:$0xff]
  %v3808 = vld [vmem:[%s3245 + $0x249] sm:$0xff]
  %v3809 = vld [vmem:[%s3245 + $0x259] sm:$0xff]
  %v3810 = vld [vmem:[%s3245 + $0x261] sm:$0xff]
  %v3811 = vld [vmem:[%s3245 + $0x271] sm:$0xff]
  %v3812 = vld [vmem:[%s3245 + $0x279] sm:$0xff]
  %v3813 = vld [vmem:[%s3245 + $0x289] sm:$0xff]
  %v3814 = vld [vmem:[%s3245 + $0x291] sm:$0xff]
  %v3815 = vld [vmem:[%s3245 + $0x2a1] sm:$0xff]
  %v3816 = vld [vmem:[%s3245 + $0x2a9] sm:$0xff]
  %v3817 = vld [vmem:[%s3245 + $0x2b9] sm:$0xff]
  %v3818 = vld [vmem:[%s3245 + $0x2c1] sm:$0xff]
  %v3819 = vld [vmem:[%s3245 + $0x2d1] sm:$0xff]
  %v3820 = vld [vmem:[%s3245 + $0x2d9] sm:$0xff]
  %v3821 = vld [vmem:[%s3245 + $0x2e9] sm:$0xff]
  %v3822 = vld [vmem:[%s3245 + $0x2f1] sm:$0xff]
  %v3823 = vld [vmem:[%s3245 + $0x301] sm:$0xff]
  %v3824 = vld [vmem:[%s3245 + $0x309] sm:$0xff]
  %v3825 = vld [vmem:[%s3245 + $0x319] sm:$0xff]
  %v3826 = vld [vmem:[%s3245 + $0x321] sm:$0xff]
  %s3827 = scalar_lea.vmem %s1, 7
  %v3828 = vld [vmem:[%s3827] sm:$0x1]
  %3830 = vset.pattern.permute.xlu0 0
  %3831 = vperm.xlu0 %3830, %v3763
  %v3832 = vpop.permute.xlu0 %3831
  %3835 = vset.pattern.permute.xlu0 0
  %3836 = vperm.xlu0 %3835, %v3764
  %v3837 = vpop.permute.xlu0 %3836
  %3840 = vset.pattern.permute.xlu0 0
  %3841 = vperm.xlu0 %3840, %v3765
  %v3842 = vpop.permute.xlu0 %3841
  %3845 = vset.pattern.permute.xlu0 0
  %3846 = vperm.xlu0 %3845, %v3766
  %v3847 = vpop.permute.xlu0 %3846
  %3850 = vset.pattern.permute.xlu0 0
  %3851 = vperm.xlu0 %3850, %v3767
  %v3852 = vpop.permute.xlu0 %3851
  %3855 = vset.pattern.permute.xlu0 0
  %3856 = vperm.xlu0 %3855, %v3768
  %v3857 = vpop.permute.xlu0 %3856
  %3860 = vset.pattern.permute.xlu0 0
  %3861 = vperm.xlu0 %3860, %v3769
  %v3862 = vpop.permute.xlu0 %3861
  %3865 = vset.pattern.permute.xlu0 0
  %3866 = vperm.xlu0 %3865, %v3770
  %v3867 = vpop.permute.xlu0 %3866
  %3870 = vset.pattern.permute.xlu0 0
  %3871 = vperm.xlu0 %3870, %v3771
  %v3872 = vpop.permute.xlu0 %3871
  %3875 = vset.pattern.permute.xlu0 0
  %3876 = vperm.xlu0 %3875, %v3772
  %v3877 = vpop.permute.xlu0 %3876
  %3880 = vset.pattern.permute.xlu0 0
  %3881 = vperm.xlu0 %3880, %v3773
  %v3882 = vpop.permute.xlu0 %3881
  %3885 = vset.pattern.permute.xlu0 0
  %3886 = vperm.xlu0 %3885, %v3774
  %v3887 = vpop.permute.xlu0 %3886
  %3890 = vset.pattern.permute.xlu0 0
  %3891 = vperm.xlu0 %3890, %v3775
  %v3892 = vpop.permute.xlu0 %3891
  %3895 = vset.pattern.permute.xlu0 0
  %3896 = vperm.xlu0 %3895, %v3776
  %v3897 = vpop.permute.xlu0 %3896
  %3900 = vset.pattern.permute.xlu0 0
  %3901 = vperm.xlu0 %3900, %v3777
  %v3902 = vpop.permute.xlu0 %3901
  %3905 = vset.pattern.permute.xlu0 0
  %3906 = vperm.xlu0 %3905, %v3778
  %v3907 = vpop.permute.xlu0 %3906
  %3910 = vset.pattern.permute.xlu0 0
  %3911 = vperm.xlu0 %3910, %v3779
  %v3912 = vpop.permute.xlu0 %3911
  %3915 = vset.pattern.permute.xlu0 0
  %3916 = vperm.xlu0 %3915, %v3780
  %v3917 = vpop.permute.xlu0 %3916
  %3920 = vset.pattern.permute.xlu0 0
  %3921 = vperm.xlu0 %3920, %v3781
  %v3922 = vpop.permute.xlu0 %3921
  %3925 = vset.pattern.permute.xlu0 0
  %3926 = vperm.xlu0 %3925, %v3782
  %v3927 = vpop.permute.xlu0 %3926
  %3930 = vset.pattern.permute.xlu0 0
  %3931 = vperm.xlu0 %3930, %v3783
  %v3932 = vpop.permute.xlu0 %3931
  %3935 = vset.pattern.permute.xlu0 0
  %3936 = vperm.xlu0 %3935, %v3784
  %v3937 = vpop.permute.xlu0 %3936
  %3940 = vset.pattern.permute.xlu0 0
  %3941 = vperm.xlu0 %3940, %v3785
  %v3942 = vpop.permute.xlu0 %3941
  %3945 = vset.pattern.permute.xlu0 0
  %3946 = vperm.xlu0 %3945, %v3786
  %v3947 = vpop.permute.xlu0 %3946
  %3950 = vset.pattern.permute.xlu0 0
  %3951 = vperm.xlu0 %3950, %v3787
  %v3952 = vpop.permute.xlu0 %3951
  %3955 = vset.pattern.permute.xlu0 0
  %3956 = vperm.xlu0 %3955, %v3788
  %v3957 = vpop.permute.xlu0 %3956
  %3960 = vset.pattern.permute.xlu0 0
  %3961 = vperm.xlu0 %3960, %v3789
  %v3962 = vpop.permute.xlu0 %3961
  %3965 = vset.pattern.permute.xlu0 0
  %3966 = vperm.xlu0 %3965, %v3790
  %v3967 = vpop.permute.xlu0 %3966
  %3970 = vset.pattern.permute.xlu0 0
  %3971 = vperm.xlu0 %3970, %v3791
  %v3972 = vpop.permute.xlu0 %3971
  %3975 = vset.pattern.permute.xlu0 0
  %3976 = vperm.xlu0 %3975, %v3792
  %v3977 = vpop.permute.xlu0 %3976
  %3980 = vset.pattern.permute.xlu0 0
  %3981 = vperm.xlu0 %3980, %v3793
  %v3982 = vpop.permute.xlu0 %3981
  %3985 = vset.pattern.permute.xlu0 0
  %3986 = vperm.xlu0 %3985, %v3794
  %v3987 = vpop.permute.xlu0 %3986
  %3990 = vset.pattern.permute.xlu0 0
  %3991 = vperm.xlu0 %3990, %v3795
  %v3992 = vpop.permute.xlu0 %3991
  %3995 = vset.pattern.permute.xlu0 0
  %3996 = vperm.xlu0 %3995, %v3796
  %v3997 = vpop.permute.xlu0 %3996
  %4000 = vset.pattern.permute.xlu0 0
  %4001 = vperm.xlu0 %4000, %v3797
  %v4002 = vpop.permute.xlu0 %4001
  %4005 = vset.pattern.permute.xlu0 0
  %4006 = vperm.xlu0 %4005, %v3798
  %v4007 = vpop.permute.xlu0 %4006
  %4010 = vset.pattern.permute.xlu0 0
  %4011 = vperm.xlu0 %4010, %v3799
  %v4012 = vpop.permute.xlu0 %4011
  %4015 = vset.pattern.permute.xlu0 0
  %4016 = vperm.xlu0 %4015, %v3800
  %v4017 = vpop.permute.xlu0 %4016
  %4020 = vset.pattern.permute.xlu0 0
  %4021 = vperm.xlu0 %4020, %v3801
  %v4022 = vpop.permute.xlu0 %4021
  %4025 = vset.pattern.permute.xlu0 0
  %4026 = vperm.xlu0 %4025, %v3802
  %v4027 = vpop.permute.xlu0 %4026
  %4030 = vset.pattern.permute.xlu0 0
  %4031 = vperm.xlu0 %4030, %v3803
  %v4032 = vpop.permute.xlu0 %4031
  %4035 = vset.pattern.permute.xlu0 0
  %4036 = vperm.xlu0 %4035, %v3804
  %v4037 = vpop.permute.xlu0 %4036
  %4040 = vset.pattern.permute.xlu0 0
  %4041 = vperm.xlu0 %4040, %v3805
  %v4042 = vpop.permute.xlu0 %4041
  %4045 = vset.pattern.permute.xlu0 0
  %4046 = vperm.xlu0 %4045, %v3806
  %v4047 = vpop.permute.xlu0 %4046
  %4050 = vset.pattern.permute.xlu0 0
  %4051 = vperm.xlu0 %4050, %v3807
  %v4052 = vpop.permute.xlu0 %4051
  %4055 = vset.pattern.permute.xlu0 0
  %4056 = vperm.xlu0 %4055, %v3808
  %v4057 = vpop.permute.xlu0 %4056
  %4060 = vset.pattern.permute.xlu0 0
  %4061 = vperm.xlu0 %4060, %v3809
  %v4062 = vpop.permute.xlu0 %4061
  %4065 = vset.pattern.permute.xlu0 0
  %4066 = vperm.xlu0 %4065, %v3810
  %v4067 = vpop.permute.xlu0 %4066
  %4070 = vset.pattern.permute.xlu0 0
  %4071 = vperm.xlu0 %4070, %v3811
  %v4072 = vpop.permute.xlu0 %4071
  %4075 = vset.pattern.permute.xlu0 0
  %4076 = vperm.xlu0 %4075, %v3812
  %v4077 = vpop.permute.xlu0 %4076
  %4080 = vset.pattern.permute.xlu0 0
  %4081 = vperm.xlu0 %4080, %v3813
  %v4082 = vpop.permute.xlu0 %4081
  %4085 = vset.pattern.permute.xlu0 0
  %4086 = vperm.xlu0 %4085, %v3814
  %v4087 = vpop.permute.xlu0 %4086
  %4090 = vset.pattern.permute.xlu0 0
  %4091 = vperm.xlu0 %4090, %v3815
  %v4092 = vpop.permute.xlu0 %4091
  %4095 = vset.pattern.permute.xlu0 0
  %4096 = vperm.xlu0 %4095, %v3816
  %v4097 = vpop.permute.xlu0 %4096
  %4100 = vset.pattern.permute.xlu0 0
  %4101 = vperm.xlu0 %4100, %v3817
  %v4102 = vpop.permute.xlu0 %4101
  %4105 = vset.pattern.permute.xlu0 0
  %4106 = vperm.xlu0 %4105, %v3818
  %v4107 = vpop.permute.xlu0 %4106
  %4110 = vset.pattern.permute.xlu0 0
  %4111 = vperm.xlu0 %4110, %v3819
  %v4112 = vpop.permute.xlu0 %4111
  %4115 = vset.pattern.permute.xlu0 0
  %4116 = vperm.xlu0 %4115, %v3820
  %v4117 = vpop.permute.xlu0 %4116
  %4120 = vset.pattern.permute.xlu0 0
  %4121 = vperm.xlu0 %4120, %v3821
  %v4122 = vpop.permute.xlu0 %4121
  %4125 = vset.pattern.permute.xlu0 0
  %4126 = vperm.xlu0 %4125, %v3822
  %v4127 = vpop.permute.xlu0 %4126
  %4130 = vset.pattern.permute.xlu0 0
  %4131 = vperm.xlu0 %4130, %v3823
  %v4132 = vpop.permute.xlu0 %4131
  %4135 = vset.pattern.permute.xlu0 0
  %4136 = vperm.xlu0 %4135, %v3824
  %v4137 = vpop.permute.xlu0 %4136
  %4140 = vset.pattern.permute.xlu0 0
  %4141 = vperm.xlu0 %4140, %v3825
  %v4142 = vpop.permute.xlu0 %4141
  %4145 = vset.pattern.permute.xlu0 0
  %4146 = vperm.xlu0 %4145, %v3826
  %v4147 = vpop.permute.xlu0 %4146
  %v4150 = vperm.slane %v3828, 0
  %v4152 = vmul.f32 %v3832, %v4150
  %v4153 = vmul.f32 %v3837, %v4150
  %v4154 = vmul.f32 %v3842, %v4150
  %v4155 = vmul.f32 %v3847, %v4150
  %v4156 = vmul.f32 %v3852, %v4150
  %v4157 = vmul.f32 %v3857, %v4150
  %v4158 = vmul.f32 %v3862, %v4150
  %v4159 = vmul.f32 %v3867, %v4150
  %v4160 = vmul.f32 %v3872, %v4150
  %v4161 = vmul.f32 %v3877, %v4150
  %v4162 = vmul.f32 %v3882, %v4150
  %v4163 = vmul.f32 %v3887, %v4150
  %v4164 = vmul.f32 %v3892, %v4150
  %v4165 = vmul.f32 %v3897, %v4150
  %v4166 = vmul.f32 %v3902, %v4150
  %v4167 = vmul.f32 %v3907, %v4150
  %v4168 = vmul.f32 %v3912, %v4150
  %v4169 = vmul.f32 %v3917, %v4150
  %v4170 = vmul.f32 %v3922, %v4150
  %v4171 = vmul.f32 %v3927, %v4150
  %v4172 = vmul.f32 %v3932, %v4150
  %v4173 = vmul.f32 %v3937, %v4150
  %v4174 = vmul.f32 %v3942, %v4150
  %v4175 = vmul.f32 %v3947, %v4150
  %v4176 = vmul.f32 %v3952, %v4150
  %v4177 = vmul.f32 %v3957, %v4150
  %v4178 = vmul.f32 %v3962, %v4150
  %v4179 = vmul.f32 %v3967, %v4150
  %v4180 = vmul.f32 %v3972, %v4150
  %v4181 = vmul.f32 %v3977, %v4150
  %v4182 = vmul.f32 %v3982, %v4150
  %v4183 = vmul.f32 %v3987, %v4150
  %v4184 = vmul.f32 %v3992, %v4150
  %v4185 = vmul.f32 %v3997, %v4150
  %v4186 = vmul.f32 %v4002, %v4150
  %v4187 = vmul.f32 %v4007, %v4150
  %v4188 = vmul.f32 %v4012, %v4150
  %v4189 = vmul.f32 %v4017, %v4150
  %v4190 = vmul.f32 %v4022, %v4150
  %v4191 = vmul.f32 %v4027, %v4150
  %v4192 = vmul.f32 %v4032, %v4150
  %v4193 = vmul.f32 %v4037, %v4150
  %v4194 = vmul.f32 %v4042, %v4150
  %v4195 = vmul.f32 %v4047, %v4150
  %v4196 = vmul.f32 %v4052, %v4150
  %v4197 = vmul.f32 %v4057, %v4150
  %v4198 = vmul.f32 %v4062, %v4150
  %v4199 = vmul.f32 %v4067, %v4150
  %v4200 = vmul.f32 %v4072, %v4150
  %v4201 = vmul.f32 %v4077, %v4150
  %v4202 = vmul.f32 %v4082, %v4150
  %v4203 = vmul.f32 %v4087, %v4150
  %v4204 = vmul.f32 %v4092, %v4150
  %v4205 = vmul.f32 %v4097, %v4150
  %v4206 = vmul.f32 %v4102, %v4150
  %v4207 = vmul.f32 %v4107, %v4150
  %v4208 = vmul.f32 %v4112, %v4150
  %v4209 = vmul.f32 %v4117, %v4150
  %v4210 = vmul.f32 %v4122, %v4150
  %v4211 = vmul.f32 %v4127, %v4150
  %v4212 = vmul.f32 %v4132, %v4150
  %v4213 = vmul.f32 %v4137, %v4150
  %v4214 = vmul.f32 %v4142, %v4150
  %v4215 = vmul.f32 %v4147, %v4150
  %v4216 = vadd.f32 %v3699, %v4152
  %v4217 = vadd.f32 %v3700, %v4153
  %v4218 = vadd.f32 %v3701, %v4154
  %v4219 = vadd.f32 %v3702, %v4155
  %v4220 = vadd.f32 %v3703, %v4156
  %v4221 = vadd.f32 %v3704, %v4157
  %v4222 = vadd.f32 %v3705, %v4158
  %v4223 = vadd.f32 %v3706, %v4159
  %v4224 = vadd.f32 %v3707, %v4160
  %v4225 = vadd.f32 %v3708, %v4161
  %v4226 = vadd.f32 %v3709, %v4162
  %v4227 = vadd.f32 %v3710, %v4163
  %v4228 = vadd.f32 %v3711, %v4164
  %v4229 = vadd.f32 %v3712, %v4165
  %v4230 = vadd.f32 %v3713, %v4166
  %v4231 = vadd.f32 %v3714, %v4167
  %v4232 = vadd.f32 %v3715, %v4168
  %v4233 = vadd.f32 %v3716, %v4169
  %v4234 = vadd.f32 %v3717, %v4170
  %v4235 = vadd.f32 %v3718, %v4171
  %v4236 = vadd.f32 %v3719, %v4172
  %v4237 = vadd.f32 %v3720, %v4173
  %v4238 = vadd.f32 %v3721, %v4174
  %v4239 = vadd.f32 %v3722, %v4175
  %v4240 = vadd.f32 %v3723, %v4176
  %v4241 = vadd.f32 %v3724, %v4177
  %v4242 = vadd.f32 %v3725, %v4178
  %v4243 = vadd.f32 %v3726, %v4179
  %v4244 = vadd.f32 %v3727, %v4180
  %v4245 = vadd.f32 %v3728, %v4181
  %v4246 = vadd.f32 %v3729, %v4182
  %v4247 = vadd.f32 %v3730, %v4183
  %v4248 = vadd.f32 %v3731, %v4184
  %v4249 = vadd.f32 %v3732, %v4185
  %v4250 = vadd.f32 %v3733, %v4186
  %v4251 = vadd.f32 %v3734, %v4187
  %v4252 = vadd.f32 %v3735, %v4188
  %v4253 = vadd.f32 %v3736, %v4189
  %v4254 = vadd.f32 %v3737, %v4190
  %v4255 = vadd.f32 %v3738, %v4191
  %v4256 = vadd.f32 %v3739, %v4192
  %v4257 = vadd.f32 %v3740, %v4193
  %v4258 = vadd.f32 %v3741, %v4194
  %v4259 = vadd.f32 %v3742, %v4195
  %v4260 = vadd.f32 %v3743, %v4196
  %v4261 = vadd.f32 %v3744, %v4197
  %v4262 = vadd.f32 %v3745, %v4198
  %v4263 = vadd.f32 %v3746, %v4199
  %v4264 = vadd.f32 %v3747, %v4200
  %v4265 = vadd.f32 %v3748, %v4201
  %v4266 = vadd.f32 %v3749, %v4202
  %v4267 = vadd.f32 %v3750, %v4203
  %v4268 = vadd.f32 %v3751, %v4204
  %v4269 = vadd.f32 %v3752, %v4205
  %v4270 = vadd.f32 %v3753, %v4206
  %v4271 = vadd.f32 %v3754, %v4207
  %v4272 = vadd.f32 %v3755, %v4208
  %v4273 = vadd.f32 %v3756, %v4209
  %v4274 = vadd.f32 %v3757, %v4210
  %v4275 = vadd.f32 %v3758, %v4211
  %v4276 = vadd.f32 %v3759, %v4212
  %v4277 = vadd.f32 %v3760, %v4213
  %v4278 = vadd.f32 %v3761, %v4214
  %v4279 = vadd.f32 %v3762, %v4215
  %v4280 = vld [vmem:[%s3245 + $0x2] sm:$0xff]
  %v4281 = vld [vmem:[%s3245 + $0xa] sm:$0xff]
  %v4282 = vld [vmem:[%s3245 + $0x1a] sm:$0xff]
  %v4283 = vld [vmem:[%s3245 + $0x22] sm:$0xff]
  %v4284 = vld [vmem:[%s3245 + $0x32] sm:$0xff]
  %v4285 = vld [vmem:[%s3245 + $0x3a] sm:$0xff]
  %v4286 = vld [vmem:[%s3245 + $0x4a] sm:$0xff]
  %v4287 = vld [vmem:[%s3245 + $0x52] sm:$0xff]
  %v4288 = vld [vmem:[%s3245 + $0x62] sm:$0xff]
  %v4289 = vld [vmem:[%s3245 + $0x6a] sm:$0xff]
  %v4290 = vld [vmem:[%s3245 + $0x7a] sm:$0xff]
  %v4291 = vld [vmem:[%s3245 + $0x82] sm:$0xff]
  %v4292 = vld [vmem:[%s3245 + $0x92] sm:$0xff]
  %v4293 = vld [vmem:[%s3245 + $0x9a] sm:$0xff]
  %v4294 = vld [vmem:[%s3245 + $0xaa] sm:$0xff]
  %v4295 = vld [vmem:[%s3245 + $0xb2] sm:$0xff]
  %v4296 = vld [vmem:[%s3245 + $0xc2] sm:$0xff]
  %v4297 = vld [vmem:[%s3245 + $0xca] sm:$0xff]
  %v4298 = vld [vmem:[%s3245 + $0xda] sm:$0xff]
  %v4299 = vld [vmem:[%s3245 + $0xe2] sm:$0xff]
  %v4300 = vld [vmem:[%s3245 + $0xf2] sm:$0xff]
  %v4301 = vld [vmem:[%s3245 + $0xfa] sm:$0xff]
  %v4302 = vld [vmem:[%s3245 + $0x10a] sm:$0xff]
  %v4303 = vld [vmem:[%s3245 + $0x112] sm:$0xff]
  %v4304 = vld [vmem:[%s3245 + $0x122] sm:$0xff]
  %v4305 = vld [vmem:[%s3245 + $0x12a] sm:$0xff]
  %v4306 = vld [vmem:[%s3245 + $0x13a] sm:$0xff]
  %v4307 = vld [vmem:[%s3245 + $0x142] sm:$0xff]
  %v4308 = vld [vmem:[%s3245 + $0x152] sm:$0xff]
  %v4309 = vld [vmem:[%s3245 + $0x15a] sm:$0xff]
  %v4310 = vld [vmem:[%s3245 + $0x16a] sm:$0xff]
  %v4311 = vld [vmem:[%s3245 + $0x172] sm:$0xff]
  %v4312 = vld [vmem:[%s3245 + $0x1b2] sm:$0xff]
  %v4313 = vld [vmem:[%s3245 + $0x1ba] sm:$0xff]
  %v4314 = vld [vmem:[%s3245 + $0x1ca] sm:$0xff]
  %v4315 = vld [vmem:[%s3245 + $0x1d2] sm:$0xff]
  %v4316 = vld [vmem:[%s3245 + $0x1e2] sm:$0xff]
  %v4317 = vld [vmem:[%s3245 + $0x1ea] sm:$0xff]
  %v4318 = vld [vmem:[%s3245 + $0x1fa] sm:$0xff]
  %v4319 = vld [vmem:[%s3245 + $0x202] sm:$0xff]
  %v4320 = vld [vmem:[%s3245 + $0x212] sm:$0xff]
  %v4321 = vld [vmem:[%s3245 + $0x21a] sm:$0xff]
  %v4322 = vld [vmem:[%s3245 + $0x22a] sm:$0xff]
  %v4323 = vld [vmem:[%s3245 + $0x232] sm:$0xff]
  %v4324 = vld [vmem:[%s3245 + $0x242] sm:$0xff]
  %v4325 = vld [vmem:[%s3245 + $0x24a] sm:$0xff]
  %v4326 = vld [vmem:[%s3245 + $0x25a] sm:$0xff]
  %v4327 = vld [vmem:[%s3245 + $0x262] sm:$0xff]
  %v4328 = vld [vmem:[%s3245 + $0x272] sm:$0xff]
  %v4329 = vld [vmem:[%s3245 + $0x27a] sm:$0xff]
  %v4330 = vld [vmem:[%s3245 + $0x28a] sm:$0xff]
  %v4331 = vld [vmem:[%s3245 + $0x292] sm:$0xff]
  %v4332 = vld [vmem:[%s3245 + $0x2a2] sm:$0xff]
  %v4333 = vld [vmem:[%s3245 + $0x2aa] sm:$0xff]
  %v4334 = vld [vmem:[%s3245 + $0x2ba] sm:$0xff]
  %v4335 = vld [vmem:[%s3245 + $0x2c2] sm:$0xff]
  %v4336 = vld [vmem:[%s3245 + $0x2d2] sm:$0xff]
  %v4337 = vld [vmem:[%s3245 + $0x2da] sm:$0xff]
  %v4338 = vld [vmem:[%s3245 + $0x2ea] sm:$0xff]
  %v4339 = vld [vmem:[%s3245 + $0x2f2] sm:$0xff]
  %v4340 = vld [vmem:[%s3245 + $0x302] sm:$0xff]
  %v4341 = vld [vmem:[%s3245 + $0x30a] sm:$0xff]
  %v4342 = vld [vmem:[%s3245 + $0x31a] sm:$0xff]
  %v4343 = vld [vmem:[%s3245 + $0x322] sm:$0xff]
  %s4344 = scalar_lea.vmem %s1, 8
  %v4345 = vld [vmem:[%s4344] sm:$0x1]
  %4347 = vset.pattern.permute.xlu0 0
  %4348 = vperm.xlu0 %4347, %v4280
  %v4349 = vpop.permute.xlu0 %4348
  %4352 = vset.pattern.permute.xlu0 0
  %4353 = vperm.xlu0 %4352, %v4281
  %v4354 = vpop.permute.xlu0 %4353
  %4357 = vset.pattern.permute.xlu0 0
  %4358 = vperm.xlu0 %4357, %v4282
  %v4359 = vpop.permute.xlu0 %4358
  %4362 = vset.pattern.permute.xlu0 0
  %4363 = vperm.xlu0 %4362, %v4283
  %v4364 = vpop.permute.xlu0 %4363
  %4367 = vset.pattern.permute.xlu0 0
  %4368 = vperm.xlu0 %4367, %v4284
  %v4369 = vpop.permute.xlu0 %4368
  %4372 = vset.pattern.permute.xlu0 0
  %4373 = vperm.xlu0 %4372, %v4285
  %v4374 = vpop.permute.xlu0 %4373
  %4377 = vset.pattern.permute.xlu0 0
  %4378 = vperm.xlu0 %4377, %v4286
  %v4379 = vpop.permute.xlu0 %4378
  %4382 = vset.pattern.permute.xlu0 0
  %4383 = vperm.xlu0 %4382, %v4287
  %v4384 = vpop.permute.xlu0 %4383
  %4387 = vset.pattern.permute.xlu0 0
  %4388 = vperm.xlu0 %4387, %v4288
  %v4389 = vpop.permute.xlu0 %4388
  %4392 = vset.pattern.permute.xlu0 0
  %4393 = vperm.xlu0 %4392, %v4289
  %v4394 = vpop.permute.xlu0 %4393
  %4397 = vset.pattern.permute.xlu0 0
  %4398 = vperm.xlu0 %4397, %v4290
  %v4399 = vpop.permute.xlu0 %4398
  %4402 = vset.pattern.permute.xlu0 0
  %4403 = vperm.xlu0 %4402, %v4291
  %v4404 = vpop.permute.xlu0 %4403
  %4407 = vset.pattern.permute.xlu0 0
  %4408 = vperm.xlu0 %4407, %v4292
  %v4409 = vpop.permute.xlu0 %4408
  %4412 = vset.pattern.permute.xlu0 0
  %4413 = vperm.xlu0 %4412, %v4293
  %v4414 = vpop.permute.xlu0 %4413
  %4417 = vset.pattern.permute.xlu0 0
  %4418 = vperm.xlu0 %4417, %v4294
  %v4419 = vpop.permute.xlu0 %4418
  %4422 = vset.pattern.permute.xlu0 0
  %4423 = vperm.xlu0 %4422, %v4295
  %v4424 = vpop.permute.xlu0 %4423
  %4427 = vset.pattern.permute.xlu0 0
  %4428 = vperm.xlu0 %4427, %v4296
  %v4429 = vpop.permute.xlu0 %4428
  %4432 = vset.pattern.permute.xlu0 0
  %4433 = vperm.xlu0 %4432, %v4297
  %v4434 = vpop.permute.xlu0 %4433
  %4437 = vset.pattern.permute.xlu0 0
  %4438 = vperm.xlu0 %4437, %v4298
  %v4439 = vpop.permute.xlu0 %4438
  %4442 = vset.pattern.permute.xlu0 0
  %4443 = vperm.xlu0 %4442, %v4299
  %v4444 = vpop.permute.xlu0 %4443
  %4447 = vset.pattern.permute.xlu0 0
  %4448 = vperm.xlu0 %4447, %v4300
  %v4449 = vpop.permute.xlu0 %4448
  %4452 = vset.pattern.permute.xlu0 0
  %4453 = vperm.xlu0 %4452, %v4301
  %v4454 = vpop.permute.xlu0 %4453
  %4457 = vset.pattern.permute.xlu0 0
  %4458 = vperm.xlu0 %4457, %v4302
  %v4459 = vpop.permute.xlu0 %4458
  %4462 = vset.pattern.permute.xlu0 0
  %4463 = vperm.xlu0 %4462, %v4303
  %v4464 = vpop.permute.xlu0 %4463
  %4467 = vset.pattern.permute.xlu0 0
  %4468 = vperm.xlu0 %4467, %v4304
  %v4469 = vpop.permute.xlu0 %4468
  %4472 = vset.pattern.permute.xlu0 0
  %4473 = vperm.xlu0 %4472, %v4305
  %v4474 = vpop.permute.xlu0 %4473
  %4477 = vset.pattern.permute.xlu0 0
  %4478 = vperm.xlu0 %4477, %v4306
  %v4479 = vpop.permute.xlu0 %4478
  %4482 = vset.pattern.permute.xlu0 0
  %4483 = vperm.xlu0 %4482, %v4307
  %v4484 = vpop.permute.xlu0 %4483
  %4487 = vset.pattern.permute.xlu0 0
  %4488 = vperm.xlu0 %4487, %v4308
  %v4489 = vpop.permute.xlu0 %4488
  %4492 = vset.pattern.permute.xlu0 0
  %4493 = vperm.xlu0 %4492, %v4309
  %v4494 = vpop.permute.xlu0 %4493
  %4497 = vset.pattern.permute.xlu0 0
  %4498 = vperm.xlu0 %4497, %v4310
  %v4499 = vpop.permute.xlu0 %4498
  %4502 = vset.pattern.permute.xlu0 0
  %4503 = vperm.xlu0 %4502, %v4311
  %v4504 = vpop.permute.xlu0 %4503
  %4507 = vset.pattern.permute.xlu0 0
  %4508 = vperm.xlu0 %4507, %v4312
  %v4509 = vpop.permute.xlu0 %4508
  %4512 = vset.pattern.permute.xlu0 0
  %4513 = vperm.xlu0 %4512, %v4313
  %v4514 = vpop.permute.xlu0 %4513
  %4517 = vset.pattern.permute.xlu0 0
  %4518 = vperm.xlu0 %4517, %v4314
  %v4519 = vpop.permute.xlu0 %4518
  %4522 = vset.pattern.permute.xlu0 0
  %4523 = vperm.xlu0 %4522, %v4315
  %v4524 = vpop.permute.xlu0 %4523
  %4527 = vset.pattern.permute.xlu0 0
  %4528 = vperm.xlu0 %4527, %v4316
  %v4529 = vpop.permute.xlu0 %4528
  %4532 = vset.pattern.permute.xlu0 0
  %4533 = vperm.xlu0 %4532, %v4317
  %v4534 = vpop.permute.xlu0 %4533
  %4537 = vset.pattern.permute.xlu0 0
  %4538 = vperm.xlu0 %4537, %v4318
  %v4539 = vpop.permute.xlu0 %4538
  %4542 = vset.pattern.permute.xlu0 0
  %4543 = vperm.xlu0 %4542, %v4319
  %v4544 = vpop.permute.xlu0 %4543
  %4547 = vset.pattern.permute.xlu0 0
  %4548 = vperm.xlu0 %4547, %v4320
  %v4549 = vpop.permute.xlu0 %4548
  %4552 = vset.pattern.permute.xlu0 0
  %4553 = vperm.xlu0 %4552, %v4321
  %v4554 = vpop.permute.xlu0 %4553
  %4557 = vset.pattern.permute.xlu0 0
  %4558 = vperm.xlu0 %4557, %v4322
  %v4559 = vpop.permute.xlu0 %4558
  %4562 = vset.pattern.permute.xlu0 0
  %4563 = vperm.xlu0 %4562, %v4323
  %v4564 = vpop.permute.xlu0 %4563
  %4567 = vset.pattern.permute.xlu0 0
  %4568 = vperm.xlu0 %4567, %v4324
  %v4569 = vpop.permute.xlu0 %4568
  %4572 = vset.pattern.permute.xlu0 0
  %4573 = vperm.xlu0 %4572, %v4325
  %v4574 = vpop.permute.xlu0 %4573
  %4577 = vset.pattern.permute.xlu0 0
  %4578 = vperm.xlu0 %4577, %v4326
  %v4579 = vpop.permute.xlu0 %4578
  %4582 = vset.pattern.permute.xlu0 0
  %4583 = vperm.xlu0 %4582, %v4327
  %v4584 = vpop.permute.xlu0 %4583
  %4587 = vset.pattern.permute.xlu0 0
  %4588 = vperm.xlu0 %4587, %v4328
  %v4589 = vpop.permute.xlu0 %4588
  %4592 = vset.pattern.permute.xlu0 0
  %4593 = vperm.xlu0 %4592, %v4329
  %v4594 = vpop.permute.xlu0 %4593
  %4597 = vset.pattern.permute.xlu0 0
  %4598 = vperm.xlu0 %4597, %v4330
  %v4599 = vpop.permute.xlu0 %4598
  %4602 = vset.pattern.permute.xlu0 0
  %4603 = vperm.xlu0 %4602, %v4331
  %v4604 = vpop.permute.xlu0 %4603
  %4607 = vset.pattern.permute.xlu0 0
  %4608 = vperm.xlu0 %4607, %v4332
  %v4609 = vpop.permute.xlu0 %4608
  %4612 = vset.pattern.permute.xlu0 0
  %4613 = vperm.xlu0 %4612, %v4333
  %v4614 = vpop.permute.xlu0 %4613
  %4617 = vset.pattern.permute.xlu0 0
  %4618 = vperm.xlu0 %4617, %v4334
  %v4619 = vpop.permute.xlu0 %4618
  %4622 = vset.pattern.permute.xlu0 0
  %4623 = vperm.xlu0 %4622, %v4335
  %v4624 = vpop.permute.xlu0 %4623
  %4627 = vset.pattern.permute.xlu0 0
  %4628 = vperm.xlu0 %4627, %v4336
  %v4629 = vpop.permute.xlu0 %4628
  %4632 = vset.pattern.permute.xlu0 0
  %4633 = vperm.xlu0 %4632, %v4337
  %v4634 = vpop.permute.xlu0 %4633
  %4637 = vset.pattern.permute.xlu0 0
  %4638 = vperm.xlu0 %4637, %v4338
  %v4639 = vpop.permute.xlu0 %4638
  %4642 = vset.pattern.permute.xlu0 0
  %4643 = vperm.xlu0 %4642, %v4339
  %v4644 = vpop.permute.xlu0 %4643
  %4647 = vset.pattern.permute.xlu0 0
  %4648 = vperm.xlu0 %4647, %v4340
  %v4649 = vpop.permute.xlu0 %4648
  %4652 = vset.pattern.permute.xlu0 0
  %4653 = vperm.xlu0 %4652, %v4341
  %v4654 = vpop.permute.xlu0 %4653
  %4657 = vset.pattern.permute.xlu0 0
  %4658 = vperm.xlu0 %4657, %v4342
  %v4659 = vpop.permute.xlu0 %4658
  %4662 = vset.pattern.permute.xlu0 0
  %4663 = vperm.xlu0 %4662, %v4343
  %v4664 = vpop.permute.xlu0 %4663
  %v4667 = vperm.slane %v4345, 0
  %v4669 = vmul.f32 %v4349, %v4667
  %v4670 = vmul.f32 %v4354, %v4667
  %v4671 = vmul.f32 %v4359, %v4667
  %v4672 = vmul.f32 %v4364, %v4667
  %v4673 = vmul.f32 %v4369, %v4667
  %v4674 = vmul.f32 %v4374, %v4667
  %v4675 = vmul.f32 %v4379, %v4667
  %v4676 = vmul.f32 %v4384, %v4667
  %v4677 = vmul.f32 %v4389, %v4667
  %v4678 = vmul.f32 %v4394, %v4667
  %v4679 = vmul.f32 %v4399, %v4667
  %v4680 = vmul.f32 %v4404, %v4667
  %v4681 = vmul.f32 %v4409, %v4667
  %v4682 = vmul.f32 %v4414, %v4667
  %v4683 = vmul.f32 %v4419, %v4667
  %v4684 = vmul.f32 %v4424, %v4667
  %v4685 = vmul.f32 %v4429, %v4667
  %v4686 = vmul.f32 %v4434, %v4667
  %v4687 = vmul.f32 %v4439, %v4667
  %v4688 = vmul.f32 %v4444, %v4667
  %v4689 = vmul.f32 %v4449, %v4667
  %v4690 = vmul.f32 %v4454, %v4667
  %v4691 = vmul.f32 %v4459, %v4667
  %v4692 = vmul.f32 %v4464, %v4667
  %v4693 = vmul.f32 %v4469, %v4667
  %v4694 = vmul.f32 %v4474, %v4667
  %v4695 = vmul.f32 %v4479, %v4667
  %v4696 = vmul.f32 %v4484, %v4667
  %v4697 = vmul.f32 %v4489, %v4667
  %v4698 = vmul.f32 %v4494, %v4667
  %v4699 = vmul.f32 %v4499, %v4667
  %v4700 = vmul.f32 %v4504, %v4667
  %v4701 = vmul.f32 %v4509, %v4667
  %v4702 = vmul.f32 %v4514, %v4667
  %v4703 = vmul.f32 %v4519, %v4667
  %v4704 = vmul.f32 %v4524, %v4667
  %v4705 = vmul.f32 %v4529, %v4667
  %v4706 = vmul.f32 %v4534, %v4667
  %v4707 = vmul.f32 %v4539, %v4667
  %v4708 = vmul.f32 %v4544, %v4667
  %v4709 = vmul.f32 %v4549, %v4667
  %v4710 = vmul.f32 %v4554, %v4667
  %v4711 = vmul.f32 %v4559, %v4667
  %v4712 = vmul.f32 %v4564, %v4667
  %v4713 = vmul.f32 %v4569, %v4667
  %v4714 = vmul.f32 %v4574, %v4667
  %v4715 = vmul.f32 %v4579, %v4667
  %v4716 = vmul.f32 %v4584, %v4667
  %v4717 = vmul.f32 %v4589, %v4667
  %v4718 = vmul.f32 %v4594, %v4667
  %v4719 = vmul.f32 %v4599, %v4667
  %v4720 = vmul.f32 %v4604, %v4667
  %v4721 = vmul.f32 %v4609, %v4667
  %v4722 = vmul.f32 %v4614, %v4667
  %v4723 = vmul.f32 %v4619, %v4667
  %v4724 = vmul.f32 %v4624, %v4667
  %v4725 = vmul.f32 %v4629, %v4667
  %v4726 = vmul.f32 %v4634, %v4667
  %v4727 = vmul.f32 %v4639, %v4667
  %v4728 = vmul.f32 %v4644, %v4667
  %v4729 = vmul.f32 %v4649, %v4667
  %v4730 = vmul.f32 %v4654, %v4667
  %v4731 = vmul.f32 %v4659, %v4667
  %v4732 = vmul.f32 %v4664, %v4667
  %v4733 = vadd.f32 %v4216, %v4669
  %v4734 = vadd.f32 %v4217, %v4670
  %v4735 = vadd.f32 %v4218, %v4671
  %v4736 = vadd.f32 %v4219, %v4672
  %v4737 = vadd.f32 %v4220, %v4673
  %v4738 = vadd.f32 %v4221, %v4674
  %v4739 = vadd.f32 %v4222, %v4675
  %v4740 = vadd.f32 %v4223, %v4676
  %v4741 = vadd.f32 %v4224, %v4677
  %v4742 = vadd.f32 %v4225, %v4678
  %v4743 = vadd.f32 %v4226, %v4679
  %v4744 = vadd.f32 %v4227, %v4680
  %v4745 = vadd.f32 %v4228, %v4681
  %v4746 = vadd.f32 %v4229, %v4682
  %v4747 = vadd.f32 %v4230, %v4683
  %v4748 = vadd.f32 %v4231, %v4684
  %v4749 = vadd.f32 %v4232, %v4685
  %v4750 = vadd.f32 %v4233, %v4686
  %v4751 = vadd.f32 %v4234, %v4687
  %v4752 = vadd.f32 %v4235, %v4688
  %v4753 = vadd.f32 %v4236, %v4689
  %v4754 = vadd.f32 %v4237, %v4690
  %v4755 = vadd.f32 %v4238, %v4691
  %v4756 = vadd.f32 %v4239, %v4692
  %v4757 = vadd.f32 %v4240, %v4693
  %v4758 = vadd.f32 %v4241, %v4694
  %v4759 = vadd.f32 %v4242, %v4695
  %v4760 = vadd.f32 %v4243, %v4696
  %v4761 = vadd.f32 %v4244, %v4697
  %v4762 = vadd.f32 %v4245, %v4698
  %v4763 = vadd.f32 %v4246, %v4699
  %v4764 = vadd.f32 %v4247, %v4700
  %v4765 = vadd.f32 %v4248, %v4701
  %v4766 = vadd.f32 %v4249, %v4702
  %v4767 = vadd.f32 %v4250, %v4703
  %v4768 = vadd.f32 %v4251, %v4704
  %v4769 = vadd.f32 %v4252, %v4705
  %v4770 = vadd.f32 %v4253, %v4706
  %v4771 = vadd.f32 %v4254, %v4707
  %v4772 = vadd.f32 %v4255, %v4708
  %v4773 = vadd.f32 %v4256, %v4709
  %v4774 = vadd.f32 %v4257, %v4710
  %v4775 = vadd.f32 %v4258, %v4711
  %v4776 = vadd.f32 %v4259, %v4712
  %v4777 = vadd.f32 %v4260, %v4713
  %v4778 = vadd.f32 %v4261, %v4714
  %v4779 = vadd.f32 %v4262, %v4715
  %v4780 = vadd.f32 %v4263, %v4716
  %v4781 = vadd.f32 %v4264, %v4717
  %v4782 = vadd.f32 %v4265, %v4718
  %v4783 = vadd.f32 %v4266, %v4719
  %v4784 = vadd.f32 %v4267, %v4720
  %v4785 = vadd.f32 %v4268, %v4721
  %v4786 = vadd.f32 %v4269, %v4722
  %v4787 = vadd.f32 %v4270, %v4723
  %v4788 = vadd.f32 %v4271, %v4724
  %v4789 = vadd.f32 %v4272, %v4725
  %v4790 = vadd.f32 %v4273, %v4726
  %v4791 = vadd.f32 %v4274, %v4727
  %v4792 = vadd.f32 %v4275, %v4728
  %v4793 = vadd.f32 %v4276, %v4729
  %v4794 = vadd.f32 %v4277, %v4730
  %v4795 = vadd.f32 %v4278, %v4731
  %v4796 = vadd.f32 %v4279, %v4732
  %v4797 = vld [vmem:[%s2] sm:$0x1]
  %v4799 = vperm.slane %v4797, 0
  %v4801 = vadd.f32 %v4733, %v4799
  %v4802 = vadd.f32 %v4734, %v4799
  %v4803 = vadd.f32 %v4735, %v4799
  %v4804 = vadd.f32 %v4736, %v4799
  %v4805 = vadd.f32 %v4737, %v4799
  %v4806 = vadd.f32 %v4738, %v4799
  %v4807 = vadd.f32 %v4739, %v4799
  %v4808 = vadd.f32 %v4740, %v4799
  %v4809 = vadd.f32 %v4741, %v4799
  %v4810 = vadd.f32 %v4742, %v4799
  %v4811 = vadd.f32 %v4743, %v4799
  %v4812 = vadd.f32 %v4744, %v4799
  %v4813 = vadd.f32 %v4745, %v4799
  %v4814 = vadd.f32 %v4746, %v4799
  %v4815 = vadd.f32 %v4747, %v4799
  %v4816 = vadd.f32 %v4748, %v4799
  %v4817 = vadd.f32 %v4749, %v4799
  %v4818 = vadd.f32 %v4750, %v4799
  %v4819 = vadd.f32 %v4751, %v4799
  %v4820 = vadd.f32 %v4752, %v4799
  %v4821 = vadd.f32 %v4753, %v4799
  %v4822 = vadd.f32 %v4754, %v4799
  %v4823 = vadd.f32 %v4755, %v4799
  %v4824 = vadd.f32 %v4756, %v4799
  %v4825 = vadd.f32 %v4757, %v4799
  %v4826 = vadd.f32 %v4758, %v4799
  %v4827 = vadd.f32 %v4759, %v4799
  %v4828 = vadd.f32 %v4760, %v4799
  %v4829 = vadd.f32 %v4761, %v4799
  %v4830 = vadd.f32 %v4762, %v4799
  %v4831 = vadd.f32 %v4763, %v4799
  %v4832 = vadd.f32 %v4764, %v4799
  %v4833 = vadd.f32 %v4765, %v4799
  %v4834 = vadd.f32 %v4766, %v4799
  %v4835 = vadd.f32 %v4767, %v4799
  %v4836 = vadd.f32 %v4768, %v4799
  %v4837 = vadd.f32 %v4769, %v4799
  %v4838 = vadd.f32 %v4770, %v4799
  %v4839 = vadd.f32 %v4771, %v4799
  %v4840 = vadd.f32 %v4772, %v4799
  %v4841 = vadd.f32 %v4773, %v4799
  %v4842 = vadd.f32 %v4774, %v4799
  %v4843 = vadd.f32 %v4775, %v4799
  %v4844 = vadd.f32 %v4776, %v4799
  %v4845 = vadd.f32 %v4777, %v4799
  %v4846 = vadd.f32 %v4778, %v4799
  %v4847 = vadd.f32 %v4779, %v4799
  %v4848 = vadd.f32 %v4780, %v4799
  %v4849 = vadd.f32 %v4781, %v4799
  %v4850 = vadd.f32 %v4782, %v4799
  %v4851 = vadd.f32 %v4783, %v4799
  %v4852 = vadd.f32 %v4784, %v4799
  %v4853 = vadd.f32 %v4785, %v4799
  %v4854 = vadd.f32 %v4786, %v4799
  %v4855 = vadd.f32 %v4787, %v4799
  %v4856 = vadd.f32 %v4788, %v4799
  %v4857 = vadd.f32 %v4789, %v4799
  %v4858 = vadd.f32 %v4790, %v4799
  %v4859 = vadd.f32 %v4791, %v4799
  %v4860 = vadd.f32 %v4792, %v4799
  %v4861 = vadd.f32 %v4793, %v4799
  %v4862 = vadd.f32 %v4794, %v4799
  %v4863 = vadd.f32 %v4795, %v4799
  %v4864 = vadd.f32 %v4796, %v4799
  %v4865 = vmax.f32 %v4801, 0.0
  %v4866 = vmax.f32 %v4802, 0.0
  %v4867 = vmax.f32 %v4803, 0.0
  %v4868 = vmax.f32 %v4804, 0.0
  %v4869 = vmax.f32 %v4805, 0.0
  %v4870 = vmax.f32 %v4806, 0.0
  %v4871 = vmax.f32 %v4807, 0.0
  %v4872 = vmax.f32 %v4808, 0.0
  %v4873 = vmax.f32 %v4809, 0.0
  %v4874 = vmax.f32 %v4810, 0.0
  %v4875 = vmax.f32 %v4811, 0.0
  %v4876 = vmax.f32 %v4812, 0.0
  %v4877 = vmax.f32 %v4813, 0.0
  %v4878 = vmax.f32 %v4814, 0.0
  %v4879 = vmax.f32 %v4815, 0.0
  %v4880 = vmax.f32 %v4816, 0.0
  %v4881 = vmax.f32 %v4817, 0.0
  %v4882 = vmax.f32 %v4818, 0.0
  %v4883 = vmax.f32 %v4819, 0.0
  %v4884 = vmax.f32 %v4820, 0.0
  %v4885 = vmax.f32 %v4821, 0.0
  %v4886 = vmax.f32 %v4822, 0.0
  %v4887 = vmax.f32 %v4823, 0.0
  %v4888 = vmax.f32 %v4824, 0.0
  %v4889 = vmax.f32 %v4825, 0.0
  %v4890 = vmax.f32 %v4826, 0.0
  %v4891 = vmax.f32 %v4827, 0.0
  %v4892 = vmax.f32 %v4828, 0.0
  %v4893 = vmax.f32 %v4829, 0.0
  %v4894 = vmax.f32 %v4830, 0.0
  %v4895 = vmax.f32 %v4831, 0.0
  %v4896 = vmax.f32 %v4832, 0.0
  %v4897 = vmax.f32 %v4833, 0.0
  %v4898 = vmax.f32 %v4834, 0.0
  %v4899 = vmax.f32 %v4835, 0.0
  %v4900 = vmax.f32 %v4836, 0.0
  %v4901 = vmax.f32 %v4837, 0.0
  %v4902 = vmax.f32 %v4838, 0.0
  %v4903 = vmax.f32 %v4839, 0.0
  %v4904 = vmax.f32 %v4840, 0.0
  %v4905 = vmax.f32 %v4841, 0.0
  %v4906 = vmax.f32 %v4842, 0.0
  %v4907 = vmax.f32 %v4843, 0.0
  %v4908 = vmax.f32 %v4844, 0.0
  %v4909 = vmax.f32 %v4845, 0.0
  %v4910 = vmax.f32 %v4846, 0.0
  %v4911 = vmax.f32 %v4847, 0.0
  %v4912 = vmax.f32 %v4848, 0.0
  %v4913 = vmax.f32 %v4849, 0.0
  %v4914 = vmax.f32 %v4850, 0.0
  %v4915 = vmax.f32 %v4851, 0.0
  %v4916 = vmax.f32 %v4852, 0.0
  %v4917 = vmax.f32 %v4853, 0.0
  %v4918 = vmax.f32 %v4854, 0.0
  %v4919 = vmax.f32 %v4855, 0.0
  %v4920 = vmax.f32 %v4856, 0.0
  %v4921 = vmax.f32 %v4857, 0.0
  %v4922 = vmax.f32 %v4858, 0.0
  %v4923 = vmax.f32 %v4859, 0.0
  %v4924 = vmax.f32 %v4860, 0.0
  %v4925 = vmax.f32 %v4861, 0.0
  %v4926 = vmax.f32 %v4862, 0.0
  %v4927 = vmax.f32 %v4863, 0.0
  %v4928 = vmax.f32 %v4864, 0.0
  %s4929 = scalar_lea.vmem [#allocation2], 24
  %4930 = vst.msk [vmem:[%s4929 + $0x1] sm:$0xff] %vm33, %v4865
  %4931 = vst.msk [vmem:[%s4929 + $0x9] sm:$0xff] %vm33, %v4866
  %4932 = vst.msk [vmem:[%s4929 + $0x19] sm:$0xff] %vm33, %v4867
  %4933 = vst.msk [vmem:[%s4929 + $0x21] sm:$0xff] %vm33, %v4868
  %4934 = vst.msk [vmem:[%s4929 + $0x31] sm:$0xff] %vm33, %v4869
  %4935 = vst.msk [vmem:[%s4929 + $0x39] sm:$0xff] %vm33, %v4870
  %4936 = vst.msk [vmem:[%s4929 + $0x49] sm:$0xff] %vm33, %v4871
  %4937 = vst.msk [vmem:[%s4929 + $0x51] sm:$0xff] %vm33, %v4872
  %4938 = vst.msk [vmem:[%s4929 + $0x61] sm:$0xff] %vm33, %v4873
  %4939 = vst.msk [vmem:[%s4929 + $0x69] sm:$0xff] %vm33, %v4874
  %4940 = vst.msk [vmem:[%s4929 + $0x79] sm:$0xff] %vm33, %v4875
  %4941 = vst.msk [vmem:[%s4929 + $0x81] sm:$0xff] %vm33, %v4876
  %4942 = vst.msk [vmem:[%s4929 + $0x91] sm:$0xff] %vm33, %v4877
  %4943 = vst.msk [vmem:[%s4929 + $0x99] sm:$0xff] %vm33, %v4878
  %4944 = vst.msk [vmem:[%s4929 + $0xa9] sm:$0xff] %vm33, %v4879
  %4945 = vst.msk [vmem:[%s4929 + $0xb1] sm:$0xff] %vm33, %v4880
  %4946 = vst.msk [vmem:[%s4929 + $0xc1] sm:$0xff] %vm33, %v4881
  %4947 = vst.msk [vmem:[%s4929 + $0xc9] sm:$0xff] %vm33, %v4882
  %4948 = vst.msk [vmem:[%s4929 + $0xd9] sm:$0xff] %vm33, %v4883
  %4949 = vst.msk [vmem:[%s4929 + $0xe1] sm:$0xff] %vm33, %v4884
  %4950 = vst.msk [vmem:[%s4929 + $0xf1] sm:$0xff] %vm33, %v4885
  %4951 = vst.msk [vmem:[%s4929 + $0xf9] sm:$0xff] %vm33, %v4886
  %4952 = vst.msk [vmem:[%s4929 + $0x109] sm:$0xff] %vm33, %v4887
  %4953 = vst.msk [vmem:[%s4929 + $0x111] sm:$0xff] %vm33, %v4888
  %4954 = vst.msk [vmem:[%s4929 + $0x121] sm:$0xff] %vm33, %v4889
  %4955 = vst.msk [vmem:[%s4929 + $0x129] sm:$0xff] %vm33, %v4890
  %4956 = vst.msk [vmem:[%s4929 + $0x139] sm:$0xff] %vm33, %v4891
  %4957 = vst.msk [vmem:[%s4929 + $0x141] sm:$0xff] %vm33, %v4892
  %4958 = vst.msk [vmem:[%s4929 + $0x151] sm:$0xff] %vm33, %v4893
  %4959 = vst.msk [vmem:[%s4929 + $0x159] sm:$0xff] %vm33, %v4894
  %4960 = vst.msk [vmem:[%s4929 + $0x169] sm:$0xff] %vm33, %v4895
  %4961 = vst.msk [vmem:[%s4929 + $0x171] sm:$0xff] %vm33, %v4896
  %4962 = vst.msk [vmem:[%s4929 + $0x1b1] sm:$0xff] %vm33, %v4897
  %4963 = vst.msk [vmem:[%s4929 + $0x1b9] sm:$0xff] %vm33, %v4898
  %4964 = vst.msk [vmem:[%s4929 + $0x1c9] sm:$0xff] %vm33, %v4899
  %4965 = vst.msk [vmem:[%s4929 + $0x1d1] sm:$0xff] %vm33, %v4900
  %4966 = vst.msk [vmem:[%s4929 + $0x1e1] sm:$0xff] %vm33, %v4901
  %4967 = vst.msk [vmem:[%s4929 + $0x1e9] sm:$0xff] %vm33, %v4902
  %4968 = vst.msk [vmem:[%s4929 + $0x1f9] sm:$0xff] %vm33, %v4903
  %4969 = vst.msk [vmem:[%s4929 + $0x201] sm:$0xff] %vm33, %v4904
  %4970 = vst.msk [vmem:[%s4929 + $0x211] sm:$0xff] %vm33, %v4905
  %4971 = vst.msk [vmem:[%s4929 + $0x219] sm:$0xff] %vm33, %v4906
  %4972 = vst.msk [vmem:[%s4929 + $0x229] sm:$0xff] %vm33, %v4907
  %4973 = vst.msk [vmem:[%s4929 + $0x231] sm:$0xff] %vm33, %v4908
  %4974 = vst.msk [vmem:[%s4929 + $0x241] sm:$0xff] %vm33, %v4909
  %4975 = vst.msk [vmem:[%s4929 + $0x249] sm:$0xff] %vm33, %v4910
  %4976 = vst.msk [vmem:[%s4929 + $0x259] sm:$0xff] %vm33, %v4911
  %4977 = vst.msk [vmem:[%s4929 + $0x261] sm:$0xff] %vm33, %v4912
  %4978 = vst.msk [vmem:[%s4929 + $0x271] sm:$0xff] %vm33, %v4913
  %4979 = vst.msk [vmem:[%s4929 + $0x279] sm:$0xff] %vm33, %v4914
  %4980 = vst.msk [vmem:[%s4929 + $0x289] sm:$0xff] %vm33, %v4915
  %4981 = vst.msk [vmem:[%s4929 + $0x291] sm:$0xff] %vm33, %v4916
  %4982 = vst.msk [vmem:[%s4929 + $0x2a1] sm:$0xff] %vm33, %v4917
  %4983 = vst.msk [vmem:[%s4929 + $0x2a9] sm:$0xff] %vm33, %v4918
  %4984 = vst.msk [vmem:[%s4929 + $0x2b9] sm:$0xff] %vm33, %v4919
  %4985 = vst.msk [vmem:[%s4929 + $0x2c1] sm:$0xff] %vm33, %v4920
  %4986 = vst.msk [vmem:[%s4929 + $0x2d1] sm:$0xff] %vm33, %v4921
  %4987 = vst.msk [vmem:[%s4929 + $0x2d9] sm:$0xff] %vm33, %v4922
  %4988 = vst.msk [vmem:[%s4929 + $0x2e9] sm:$0xff] %vm33, %v4923
  %4989 = vst.msk [vmem:[%s4929 + $0x2f1] sm:$0xff] %vm33, %v4924
  %4990 = vst.msk [vmem:[%s4929 + $0x301] sm:$0xff] %vm33, %v4925
  %4991 = vst.msk [vmem:[%s4929 + $0x309] sm:$0xff] %vm33, %v4926
  %4992 = vst.msk [vmem:[%s4929 + $0x319] sm:$0xff] %vm33, %v4927
  %4993 = vst.msk [vmem:[%s4929 + $0x321] sm:$0xff] %vm33, %v4928
  loop: start=0, step=1, limit=15
  $region38: #{tpu_custom_call.1} parent=0 // loop_pre_header
    _
  $region39: #{tpu_custom_call.1} parent=0 // loop_header
    %s4995 = sphi 0, %s4999
    %p4996 = scmp.ge.s32.totalorder %s4995, 15
  $region40: #{tpu_custom_call.1} parent=0 // loop_header_branch
    %4998 = sbr.rel (%p4996) target = $region44
  $region41: #{tpu_custom_call.1} parent=0 // loop_body
    %v5000 = vld [vmem:[#allocation2] sm:$0xff]
    %v5001 = vld [vmem:[#allocation2 + $0x8] sm:$0xff]
    %v5002 = vld [vmem:[#allocation2 + $0x18] sm:$0xff]
    %v5003 = vld [vmem:[#allocation2 + $0x20] sm:$0xff]
    %v5004 = vld [vmem:[#allocation2 + $0x30] sm:$0xff]
    %v5005 = vld [vmem:[#allocation2 + $0x38] sm:$0xff]
    %v5006 = vld [vmem:[#allocation2 + $0x48] sm:$0xff]
    %v5007 = vld [vmem:[#allocation2 + $0x50] sm:$0xff]
    %v5008 = vld [vmem:[#allocation2 + $0x60] sm:$0xff]
    %v5009 = vld [vmem:[#allocation2 + $0x68] sm:$0xff]
    %v5010 = vld [vmem:[#allocation2 + $0x78] sm:$0xff]
    %v5011 = vld [vmem:[#allocation2 + $0x80] sm:$0xff]
    %v5012 = vld [vmem:[#allocation2 + $0x90] sm:$0xff]
    %v5013 = vld [vmem:[#allocation2 + $0x98] sm:$0xff]
    %v5014 = vld [vmem:[#allocation2 + $0xa8] sm:$0xff]
    %v5015 = vld [vmem:[#allocation2 + $0xb0] sm:$0xff]
    %v5016 = vld [vmem:[#allocation2 + $0xc0] sm:$0xff]
    %v5017 = vld [vmem:[#allocation2 + $0xc8] sm:$0xff]
    %v5018 = vld [vmem:[#allocation2 + $0xd8] sm:$0xff]
    %v5019 = vld [vmem:[#allocation2 + $0xe0] sm:$0xff]
    %v5020 = vld [vmem:[#allocation2 + $0xf0] sm:$0xff]
    %v5021 = vld [vmem:[#allocation2 + $0xf8] sm:$0xff]
    %v5022 = vld [vmem:[#allocation2 + $0x108] sm:$0xff]
    %v5023 = vld [vmem:[#allocation2 + $0x110] sm:$0xff]
    %v5024 = vld [vmem:[#allocation2 + $0x120] sm:$0xff]
    %v5025 = vld [vmem:[#allocation2 + $0x128] sm:$0xff]
    %v5026 = vld [vmem:[#allocation2 + $0x138] sm:$0xff]
    %v5027 = vld [vmem:[#allocation2 + $0x140] sm:$0xff]
    %v5028 = vld [vmem:[#allocation2 + $0x150] sm:$0xff]
    %v5029 = vld [vmem:[#allocation2 + $0x158] sm:$0xff]
    %v5030 = vld [vmem:[#allocation2 + $0x168] sm:$0xff]
    %v5031 = vld [vmem:[#allocation2 + $0x170] sm:$0xff]
    %v5032 = vld [vmem:[#allocation2 + $0x1b0] sm:$0xff]
    %v5033 = vld [vmem:[#allocation2 + $0x1b8] sm:$0xff]
    %v5034 = vld [vmem:[#allocation2 + $0x1c8] sm:$0xff]
    %v5035 = vld [vmem:[#allocation2 + $0x1d0] sm:$0xff]
    %v5036 = vld [vmem:[#allocation2 + $0x1e0] sm:$0xff]
    %v5037 = vld [vmem:[#allocation2 + $0x1e8] sm:$0xff]
    %v5038 = vld [vmem:[#allocation2 + $0x1f8] sm:$0xff]
    %v5039 = vld [vmem:[#allocation2 + $0x200] sm:$0xff]
    %v5040 = vld [vmem:[#allocation2 + $0x210] sm:$0xff]
    %v5041 = vld [vmem:[#allocation2 + $0x218] sm:$0xff]
    %v5042 = vld [vmem:[#allocation2 + $0x228] sm:$0xff]
    %v5043 = vld [vmem:[#allocation2 + $0x230] sm:$0xff]
    %v5044 = vld [vmem:[#allocation2 + $0x240] sm:$0xff]
    %v5045 = vld [vmem:[#allocation2 + $0x248] sm:$0xff]
    %v5046 = vld [vmem:[#allocation2 + $0x258] sm:$0xff]
    %v5047 = vld [vmem:[#allocation2 + $0x260] sm:$0xff]
    %v5048 = vld [vmem:[#allocation2 + $0x270] sm:$0xff]
    %v5049 = vld [vmem:[#allocation2 + $0x278] sm:$0xff]
    %v5050 = vld [vmem:[#allocation2 + $0x288] sm:$0xff]
    %v5051 = vld [vmem:[#allocation2 + $0x290] sm:$0xff]
    %v5052 = vld [vmem:[#allocation2 + $0x2a0] sm:$0xff]
    %v5053 = vld [vmem:[#allocation2 + $0x2a8] sm:$0xff]
    %v5054 = vld [vmem:[#allocation2 + $0x2b8] sm:$0xff]
    %v5055 = vld [vmem:[#allocation2 + $0x2c0] sm:$0xff]
    %v5056 = vld [vmem:[#allocation2 + $0x2d0] sm:$0xff]
    %v5057 = vld [vmem:[#allocation2 + $0x2d8] sm:$0xff]
    %v5058 = vld [vmem:[#allocation2 + $0x2e8] sm:$0xff]
    %v5059 = vld [vmem:[#allocation2 + $0x2f0] sm:$0xff]
    %v5060 = vld [vmem:[#allocation2 + $0x300] sm:$0xff]
    %v5061 = vld [vmem:[#allocation2 + $0x308] sm:$0xff]
    %v5062 = vld [vmem:[#allocation2 + $0x318] sm:$0xff]
    %v5063 = vld [vmem:[#allocation2 + $0x320] sm:$0xff]
    %s5064 = smul.u32 %s4995, 9
    %s5065 = smul.u32 %s5064, 8
    %s5066 = smul.addr %s5065, 4
    %s5067 = scalar_lea.vmem %s3, %s5066
    %v5068 = vld [vmem:[%s5067] sm:$0xf]
    %v5069 = vld [vmem:[%s5067 + $0x4] sm:$0xf]
    %v5070 = vld [vmem:[%s5067 + $0x8] sm:$0xf]
    %v5071 = vld [vmem:[%s5067 + $0xc] sm:$0xf]
    %v5072 = vld [vmem:[%s5067 + $0x10] sm:$0xf]
    %v5073 = vld [vmem:[%s5067 + $0x14] sm:$0xf]
    %v5074 = vld [vmem:[%s5067 + $0x18] sm:$0xf]
    %v5075 = vld [vmem:[%s5067 + $0x1c] sm:$0xf]
    %v5076 = vpack.c.bf16 %v5001, %v5000
    %v5077 = vpack.c.bf16 %v5003, %v5002
    %v5078 = vpack.c.bf16 %v5005, %v5004
    %v5079 = vpack.c.bf16 %v5007, %v5006
    %v5080 = vpack.c.bf16 %v5009, %v5008
    %v5081 = vpack.c.bf16 %v5011, %v5010
    %v5082 = vpack.c.bf16 %v5013, %v5012
    %v5083 = vpack.c.bf16 %v5015, %v5014
    %v5084 = vpack.c.bf16 %v5017, %v5016
    %v5085 = vpack.c.bf16 %v5019, %v5018
    %v5086 = vpack.c.bf16 %v5021, %v5020
    %v5087 = vpack.c.bf16 %v5023, %v5022
    %v5088 = vpack.c.bf16 %v5025, %v5024
    %v5089 = vpack.c.bf16 %v5027, %v5026
    %v5090 = vpack.c.bf16 %v5029, %v5028
    %v5091 = vpack.c.bf16 %v5031, %v5030
    %v5092 = vpack.c.bf16 %v5033, %v5032
    %v5093 = vpack.c.bf16 %v5035, %v5034
    %v5094 = vpack.c.bf16 %v5037, %v5036
    %v5095 = vpack.c.bf16 %v5039, %v5038
    %v5096 = vpack.c.bf16 %v5041, %v5040
    %v5097 = vpack.c.bf16 %v5043, %v5042
    %v5098 = vpack.c.bf16 %v5045, %v5044
    %v5099 = vpack.c.bf16 %v5047, %v5046
    %v5100 = vpack.c.bf16 %v5049, %v5048
    %v5101 = vpack.c.bf16 %v5051, %v5050
    %v5102 = vpack.c.bf16 %v5053, %v5052
    %v5103 = vpack.c.bf16 %v5055, %v5054
    %v5104 = vpack.c.bf16 %v5057, %v5056
    %v5105 = vpack.c.bf16 %v5059, %v5058
    %v5106 = vpack.c.bf16 %v5061, %v5060
    %v5107 = vpack.c.bf16 %v5063, %v5062
    %v5108 = vld [vmem:[#allocation2 + $0x1] sm:$0xff]
    %v5109 = vld [vmem:[#allocation2 + $0x9] sm:$0xff]
    %v5110 = vld [vmem:[#allocation2 + $0x19] sm:$0xff]
    %v5111 = vld [vmem:[#allocation2 + $0x21] sm:$0xff]
    %v5112 = vld [vmem:[#allocation2 + $0x31] sm:$0xff]
    %v5113 = vld [vmem:[#allocation2 + $0x39] sm:$0xff]
    %v5114 = vld [vmem:[#allocation2 + $0x49] sm:$0xff]
    %v5115 = vld [vmem:[#allocation2 + $0x51] sm:$0xff]
    %v5116 = vld [vmem:[#allocation2 + $0x61] sm:$0xff]
    %v5117 = vld [vmem:[#allocation2 + $0x69] sm:$0xff]
    %v5118 = vld [vmem:[#allocation2 + $0x79] sm:$0xff]
    %v5119 = vld [vmem:[#allocation2 + $0x81] sm:$0xff]
    %v5120 = vld [vmem:[#allocation2 + $0x91] sm:$0xff]
    %v5121 = vld [vmem:[#allocation2 + $0x99] sm:$0xff]
    %v5122 = vld [vmem:[#allocation2 + $0xa9] sm:$0xff]
    %v5123 = vld [vmem:[#allocation2 + $0xb1] sm:$0xff]
    %v5124 = vld [vmem:[#allocation2 + $0xc1] sm:$0xff]
    %v5125 = vld [vmem:[#allocation2 + $0xc9] sm:$0xff]
    %v5126 = vld [vmem:[#allocation2 + $0xd9] sm:$0xff]
    %v5127 = vld [vmem:[#allocation2 + $0xe1] sm:$0xff]
    %v5128 = vld [vmem:[#allocation2 + $0xf1] sm:$0xff]
    %v5129 = vld [vmem:[#allocation2 + $0xf9] sm:$0xff]
    %v5130 = vld [vmem:[#allocation2 + $0x109] sm:$0xff]
    %v5131 = vld [vmem:[#allocation2 + $0x111] sm:$0xff]
    %v5132 = vld [vmem:[#allocation2 + $0x121] sm:$0xff]
    %v5133 = vld [vmem:[#allocation2 + $0x129] sm:$0xff]
    %v5134 = vld [vmem:[#allocation2 + $0x139] sm:$0xff]
    %v5135 = vld [vmem:[#allocation2 + $0x141] sm:$0xff]
    %v5136 = vld [vmem:[#allocation2 + $0x151] sm:$0xff]
    %v5137 = vld [vmem:[#allocation2 + $0x159] sm:$0xff]
    %v5138 = vld [vmem:[#allocation2 + $0x169] sm:$0xff]
    %v5139 = vld [vmem:[#allocation2 + $0x171] sm:$0xff]
    %v5140 = vld [vmem:[#allocation2 + $0x1b1] sm:$0xff]
    %v5141 = vld [vmem:[#allocation2 + $0x1b9] sm:$0xff]
    %v5142 = vld [vmem:[#allocation2 + $0x1c9] sm:$0xff]
    %v5143 = vld [vmem:[#allocation2 + $0x1d1] sm:$0xff]
    %v5144 = vld [vmem:[#allocation2 + $0x1e1] sm:$0xff]
    %v5145 = vld [vmem:[#allocation2 + $0x1e9] sm:$0xff]
    %v5146 = vld [vmem:[#allocation2 + $0x1f9] sm:$0xff]
    %v5147 = vld [vmem:[#allocation2 + $0x201] sm:$0xff]
    %v5148 = vld [vmem:[#allocation2 + $0x211] sm:$0xff]
    %v5149 = vld [vmem:[#allocation2 + $0x219] sm:$0xff]
    %v5150 = vld [vmem:[#allocation2 + $0x229] sm:$0xff]
    %v5151 = vld [vmem:[#allocation2 + $0x231] sm:$0xff]
    %v5152 = vld [vmem:[#allocation2 + $0x241] sm:$0xff]
    %v5153 = vld [vmem:[#allocation2 + $0x249] sm:$0xff]
    %v5154 = vld [vmem:[#allocation2 + $0x259] sm:$0xff]
    %v5155 = vld [vmem:[#allocation2 + $0x261] sm:$0xff]
    %v5156 = vld [vmem:[#allocation2 + $0x271] sm:$0xff]
    %v5157 = vld [vmem:[#allocation2 + $0x279] sm:$0xff]
    %v5158 = vld [vmem:[#allocation2 + $0x289] sm:$0xff]
    %v5159 = vld [vmem:[#allocation2 + $0x291] sm:$0xff]
    %v5160 = vld [vmem:[#allocation2 + $0x2a1] sm:$0xff]
    %v5161 = vld [vmem:[#allocation2 + $0x2a9] sm:$0xff]
    %v5162 = vld [vmem:[#allocation2 + $0x2b9] sm:$0xff]
    %v5163 = vld [vmem:[#allocation2 + $0x2c1] sm:$0xff]
    %v5164 = vld [vmem:[#allocation2 + $0x2d1] sm:$0xff]
    %v5165 = vld [vmem:[#allocation2 + $0x2d9] sm:$0xff]
    %v5166 = vld [vmem:[#allocation2 + $0x2e9] sm:$0xff]
    %v5167 = vld [vmem:[#allocation2 + $0x2f1] sm:$0xff]
    %v5168 = vld [vmem:[#allocation2 + $0x301] sm:$0xff]
    %v5169 = vld [vmem:[#allocation2 + $0x309] sm:$0xff]
    %v5170 = vld [vmem:[#allocation2 + $0x319] sm:$0xff]
    %v5171 = vld [vmem:[#allocation2 + $0x321] sm:$0xff]
    %s5172 = sadd.s32 %s5064, 1
    %s5173 = smul.u32 %s5172, 8
    %s5174 = smul.addr %s5173, 4
    %s5175 = scalar_lea.vmem %s3, %s5174
    %v5176 = vld [vmem:[%s5175] sm:$0xf]
    %v5177 = vld [vmem:[%s5175 + $0x4] sm:$0xf]
    %v5178 = vld [vmem:[%s5175 + $0x8] sm:$0xf]
    %v5179 = vld [vmem:[%s5175 + $0xc] sm:$0xf]
    %v5180 = vld [vmem:[%s5175 + $0x10] sm:$0xf]
    %v5181 = vld [vmem:[%s5175 + $0x14] sm:$0xf]
    %v5182 = vld [vmem:[%s5175 + $0x18] sm:$0xf]
    %v5183 = vld [vmem:[%s5175 + $0x1c] sm:$0xf]
    %v5184 = vpack.c.bf16 %v5109, %v5108
    %v5185 = vpack.c.bf16 %v5111, %v5110
    %v5186 = vpack.c.bf16 %v5113, %v5112
    %v5187 = vpack.c.bf16 %v5115, %v5114
    %v5188 = vpack.c.bf16 %v5117, %v5116
    %v5189 = vpack.c.bf16 %v5119, %v5118
    %v5190 = vpack.c.bf16 %v5121, %v5120
    %v5191 = vpack.c.bf16 %v5123, %v5122
    %v5192 = vpack.c.bf16 %v5125, %v5124
    %v5193 = vpack.c.bf16 %v5127, %v5126
    %v5194 = vpack.c.bf16 %v5129, %v5128
    %v5195 = vpack.c.bf16 %v5131, %v5130
    %v5196 = vpack.c.bf16 %v5133, %v5132
    %v5197 = vpack.c.bf16 %v5135, %v5134
    %v5198 = vpack.c.bf16 %v5137, %v5136
    %v5199 = vpack.c.bf16 %v5139, %v5138
    %v5200 = vpack.c.bf16 %v5141, %v5140
    %v5201 = vpack.c.bf16 %v5143, %v5142
    %v5202 = vpack.c.bf16 %v5145, %v5144
    %v5203 = vpack.c.bf16 %v5147, %v5146
    %v5204 = vpack.c.bf16 %v5149, %v5148
    %v5205 = vpack.c.bf16 %v5151, %v5150
    %v5206 = vpack.c.bf16 %v5153, %v5152
    %v5207 = vpack.c.bf16 %v5155, %v5154
    %v5208 = vpack.c.bf16 %v5157, %v5156
    %v5209 = vpack.c.bf16 %v5159, %v5158
    %v5210 = vpack.c.bf16 %v5161, %v5160
    %v5211 = vpack.c.bf16 %v5163, %v5162
    %v5212 = vpack.c.bf16 %v5165, %v5164
    %v5213 = vpack.c.bf16 %v5167, %v5166
    %v5214 = vpack.c.bf16 %v5169, %v5168
    %v5215 = vpack.c.bf16 %v5171, %v5170
    %v5224 = vunpack.c.l.b16 %v5176
    %v5225 = vunpack.c.l.b16 %v5177
    %v5226 = vunpack.c.l.b16 %v5178
    %v5227 = vunpack.c.l.b16 %v5179
    %v5228 = vunpack.c.l.b16 %v5180
    %v5229 = vunpack.c.l.b16 %v5181
    %v5230 = vunpack.c.l.b16 %v5182
    %v5231 = vunpack.c.l.b16 %v5183
    %v5232 = vpack.c.b16 %v5225, %v5224
    %v5233 = vpack.c.b16 %v5227, %v5226
    %v5234 = vpack.c.b16 %v5229, %v5228
    %v5235 = vpack.c.b16 %v5231, %v5230
    %v5241 = vsel %vm33, %v5184, 0
    %v5244 = vsel %vm33, %v5185, 0
    %v5247 = vsel %vm33, %v5186, 0
    %v5250 = vsel %vm33, %v5187, 0
    %v5253 = vsel %vm33, %v5188, 0
    %v5256 = vsel %vm33, %v5189, 0
    %v5259 = vsel %vm33, %v5190, 0
    %v5262 = vsel %vm33, %v5191, 0
    %v5265 = vsel %vm33, %v5192, 0
    %v5268 = vsel %vm33, %v5193, 0
    %v5271 = vsel %vm33, %v5194, 0
    %v5274 = vsel %vm33, %v5195, 0
    %v5277 = vsel %vm33, %v5196, 0
    %v5280 = vsel %vm33, %v5197, 0
    %v5283 = vsel %vm33, %v5198, 0
    %v5286 = vsel %vm33, %v5199, 0
    %v5289 = vsel %vm33, %v5200, 0
    %v5292 = vsel %vm33, %v5201, 0
    %v5295 = vsel %vm33, %v5202, 0
    %v5298 = vsel %vm33, %v5203, 0
    %v5301 = vsel %vm33, %v5204, 0
    %v5304 = vsel %vm33, %v5205, 0
    %v5307 = vsel %vm33, %v5206, 0
    %v5310 = vsel %vm33, %v5207, 0
    %v5313 = vsel %vm33, %v5208, 0
    %v5316 = vsel %vm33, %v5209, 0
    %v5319 = vsel %vm33, %v5210, 0
    %v5322 = vsel %vm33, %v5211, 0
    %v5325 = vsel %vm33, %v5212, 0
    %v5328 = vsel %vm33, %v5213, 0
    %v5331 = vsel %vm33, %v5214, 0
    %v5334 = vsel %vm33, %v5215, 0
    %5336 = vmatpush.bf16.msra.mxu0 0
    %5337 = vmatpush.bf16.msra.mxu0 0
    %5338 = vmatpush.bf16.msra.mxu0 0
    %5339 = vmatpush.bf16.msra.mxu0 0
    %5340 = vmatpush.bf16.msra.mxu0 %v5235
    %5341 = vmatpush.bf16.msra.mxu0 %v5234
    %5342 = vmatpush.bf16.msra.mxu0 %v5233
    %5343 = vmatpush.bf16.msra.mxu0 %v5232
    %5344 = vmatmul.bf16.gmra.mxu0 %v5241
    %v5345 = vpop.f32.mrf.mxu0
    %v5346 = vadd.f32 0.0, %v5345
    %v5347 = vpop.f32.mrf.mxu0
    %v5348 = vadd.f32 0.0, %v5347
    %5349 = vmatmul.bf16.gmra.mxu0 %v5244
    %v5350 = vpop.f32.mrf.mxu0
    %v5351 = vadd.f32 0.0, %v5350
    %v5352 = vpop.f32.mrf.mxu0
    %v5353 = vadd.f32 0.0, %v5352
    %5354 = vmatmul.bf16.gmra.mxu0 %v5247
    %v5355 = vpop.f32.mrf.mxu0
    %v5356 = vadd.f32 0.0, %v5355
    %v5357 = vpop.f32.mrf.mxu0
    %v5358 = vadd.f32 0.0, %v5357
    %5359 = vmatmul.bf16.gmra.mxu0 %v5250
    %v5360 = vpop.f32.mrf.mxu0
    %v5361 = vadd.f32 0.0, %v5360
    %v5362 = vpop.f32.mrf.mxu0
    %v5363 = vadd.f32 0.0, %v5362
    %5364 = vmatmul.bf16.gmra.mxu0 %v5253
    %v5365 = vpop.f32.mrf.mxu0
    %v5366 = vadd.f32 0.0, %v5365
    %v5367 = vpop.f32.mrf.mxu0
    %v5368 = vadd.f32 0.0, %v5367
    %5369 = vmatmul.bf16.gmra.mxu0 %v5256
    %v5370 = vpop.f32.mrf.mxu0
    %v5371 = vadd.f32 0.0, %v5370
    %v5372 = vpop.f32.mrf.mxu0
    %v5373 = vadd.f32 0.0, %v5372
    %5374 = vmatmul.bf16.gmra.mxu0 %v5259
    %v5375 = vpop.f32.mrf.mxu0
    %v5376 = vadd.f32 0.0, %v5375
    %v5377 = vpop.f32.mrf.mxu0
    %v5378 = vadd.f32 0.0, %v5377
    %5379 = vmatmul.bf16.gmra.mxu0 %v5262
    %v5380 = vpop.f32.mrf.mxu0
    %v5381 = vadd.f32 0.0, %v5380
    %v5382 = vpop.f32.mrf.mxu0
    %v5383 = vadd.f32 0.0, %v5382
    %5384 = vmatmul.bf16.gmra.mxu0 %v5265
    %v5385 = vpop.f32.mrf.mxu0
    %v5386 = vadd.f32 0.0, %v5385
    %v5387 = vpop.f32.mrf.mxu0
    %v5388 = vadd.f32 0.0, %v5387
    %5389 = vmatmul.bf16.gmra.mxu0 %v5268
    %v5390 = vpop.f32.mrf.mxu0
    %v5391 = vadd.f32 0.0, %v5390
    %v5392 = vpop.f32.mrf.mxu0
    %v5393 = vadd.f32 0.0, %v5392
    %5394 = vmatmul.bf16.gmra.mxu0 %v5271
    %v5395 = vpop.f32.mrf.mxu0
    %v5396 = vadd.f32 0.0, %v5395
    %v5397 = vpop.f32.mrf.mxu0
    %v5398 = vadd.f32 0.0, %v5397
    %5399 = vmatmul.bf16.gmra.mxu0 %v5274
    %v5400 = vpop.f32.mrf.mxu0
    %v5401 = vadd.f32 0.0, %v5400
    %v5402 = vpop.f32.mrf.mxu0
    %v5403 = vadd.f32 0.0, %v5402
    %5404 = vmatmul.bf16.gmra.mxu0 %v5277
    %v5405 = vpop.f32.mrf.mxu0
    %v5406 = vadd.f32 0.0, %v5405
    %v5407 = vpop.f32.mrf.mxu0
    %v5408 = vadd.f32 0.0, %v5407
    %5409 = vmatmul.bf16.gmra.mxu0 %v5280
    %v5410 = vpop.f32.mrf.mxu0
    %v5411 = vadd.f32 0.0, %v5410
    %v5412 = vpop.f32.mrf.mxu0
    %v5413 = vadd.f32 0.0, %v5412
    %5414 = vmatmul.bf16.gmra.mxu0 %v5283
    %v5415 = vpop.f32.mrf.mxu0
    %v5416 = vadd.f32 0.0, %v5415
    %v5417 = vpop.f32.mrf.mxu0
    %v5418 = vadd.f32 0.0, %v5417
    %5419 = vmatmul.bf16.gmra.mxu0 %v5286
    %v5420 = vpop.f32.mrf.mxu0
    %v5421 = vadd.f32 0.0, %v5420
    %v5422 = vpop.f32.mrf.mxu0
    %v5423 = vadd.f32 0.0, %v5422
    %5424 = vmatmul.bf16.gmra.mxu0 %v5289
    %v5425 = vpop.f32.mrf.mxu0
    %v5426 = vadd.f32 0.0, %v5425
    %v5427 = vpop.f32.mrf.mxu0
    %v5428 = vadd.f32 0.0, %v5427
    %5429 = vmatmul.bf16.gmra.mxu0 %v5292
    %v5430 = vpop.f32.mrf.mxu0
    %v5431 = vadd.f32 0.0, %v5430
    %v5432 = vpop.f32.mrf.mxu0
    %v5433 = vadd.f32 0.0, %v5432
    %5434 = vmatmul.bf16.gmra.mxu0 %v5295
    %v5435 = vpop.f32.mrf.mxu0
    %v5436 = vadd.f32 0.0, %v5435
    %v5437 = vpop.f32.mrf.mxu0
    %v5438 = vadd.f32 0.0, %v5437
    %5439 = vmatmul.bf16.gmra.mxu0 %v5298
    %v5440 = vpop.f32.mrf.mxu0
    %v5441 = vadd.f32 0.0, %v5440
    %v5442 = vpop.f32.mrf.mxu0
    %v5443 = vadd.f32 0.0, %v5442
    %5444 = vmatmul.bf16.gmra.mxu0 %v5301
    %v5445 = vpop.f32.mrf.mxu0
    %v5446 = vadd.f32 0.0, %v5445
    %v5447 = vpop.f32.mrf.mxu0
    %v5448 = vadd.f32 0.0, %v5447
    %5449 = vmatmul.bf16.gmra.mxu0 %v5304
    %v5450 = vpop.f32.mrf.mxu0
    %v5451 = vadd.f32 0.0, %v5450
    %v5452 = vpop.f32.mrf.mxu0
    %v5453 = vadd.f32 0.0, %v5452
    %5454 = vmatmul.bf16.gmra.mxu0 %v5307
    %v5455 = vpop.f32.mrf.mxu0
    %v5456 = vadd.f32 0.0, %v5455
    %v5457 = vpop.f32.mrf.mxu0
    %v5458 = vadd.f32 0.0, %v5457
    %5459 = vmatmul.bf16.gmra.mxu0 %v5310
    %v5460 = vpop.f32.mrf.mxu0
    %v5461 = vadd.f32 0.0, %v5460
    %v5462 = vpop.f32.mrf.mxu0
    %v5463 = vadd.f32 0.0, %v5462
    %5464 = vmatmul.bf16.gmra.mxu0 %v5313
    %v5465 = vpop.f32.mrf.mxu0
    %v5466 = vadd.f32 0.0, %v5465
    %v5467 = vpop.f32.mrf.mxu0
    %v5468 = vadd.f32 0.0, %v5467
    %5469 = vmatmul.bf16.gmra.mxu0 %v5316
    %v5470 = vpop.f32.mrf.mxu0
    %v5471 = vadd.f32 0.0, %v5470
    %v5472 = vpop.f32.mrf.mxu0
    %v5473 = vadd.f32 0.0, %v5472
    %5474 = vmatmul.bf16.gmra.mxu0 %v5319
    %v5475 = vpop.f32.mrf.mxu0
    %v5476 = vadd.f32 0.0, %v5475
    %v5477 = vpop.f32.mrf.mxu0
    %v5478 = vadd.f32 0.0, %v5477
    %5479 = vmatmul.bf16.gmra.mxu0 %v5322
    %v5480 = vpop.f32.mrf.mxu0
    %v5481 = vadd.f32 0.0, %v5480
    %v5482 = vpop.f32.mrf.mxu0
    %v5483 = vadd.f32 0.0, %v5482
    %5484 = vmatmul.bf16.gmra.mxu0 %v5325
    %v5485 = vpop.f32.mrf.mxu0
    %v5486 = vadd.f32 0.0, %v5485
    %v5487 = vpop.f32.mrf.mxu0
    %v5488 = vadd.f32 0.0, %v5487
    %5489 = vmatmul.bf16.gmra.mxu0 %v5328
    %v5490 = vpop.f32.mrf.mxu0
    %v5491 = vadd.f32 0.0, %v5490
    %v5492 = vpop.f32.mrf.mxu0
    %v5493 = vadd.f32 0.0, %v5492
    %5494 = vmatmul.bf16.gmra.mxu0 %v5331
    %v5495 = vpop.f32.mrf.mxu0
    %v5496 = vadd.f32 0.0, %v5495
    %v5497 = vpop.f32.mrf.mxu0
    %v5498 = vadd.f32 0.0, %v5497
    %5499 = vmatmul.bf16.gmra.mxu0 %v5334
    %v5500 = vpop.f32.mrf.mxu0
    %v5501 = vadd.f32 0.0, %v5500
    %v5502 = vpop.f32.mrf.mxu0
    %v5503 = vadd.f32 0.0, %v5502
    %5504 = vdwg.mxu0
    %v5513 = vunpack.c.l.b16 %v5068
    %v5514 = vunpack.c.l.b16 %v5069
    %v5515 = vunpack.c.l.b16 %v5070
    %v5516 = vunpack.c.l.b16 %v5071
    %v5517 = vunpack.c.l.b16 %v5072
    %v5518 = vunpack.c.l.b16 %v5073
    %v5519 = vunpack.c.l.b16 %v5074
    %v5520 = vunpack.c.l.b16 %v5075
    %v5521 = vpack.c.b16 %v5514, %v5513
    %v5522 = vpack.c.b16 %v5516, %v5515
    %v5523 = vpack.c.b16 %v5518, %v5517
    %v5524 = vpack.c.b16 %v5520, %v5519
    %v5530 = vsel %vm33, %v5076, 0
    %v5533 = vsel %vm33, %v5077, 0
    %v5536 = vsel %vm33, %v5078, 0
    %v5539 = vsel %vm33, %v5079, 0
    %v5542 = vsel %vm33, %v5080, 0
    %v5545 = vsel %vm33, %v5081, 0
    %v5548 = vsel %vm33, %v5082, 0
    %v5551 = vsel %vm33, %v5083, 0
    %v5554 = vsel %vm33, %v5084, 0
    %v5557 = vsel %vm33, %v5085, 0
    %v5560 = vsel %vm33, %v5086, 0
    %v5563 = vsel %vm33, %v5087, 0
    %v5566 = vsel %vm33, %v5088, 0
    %v5569 = vsel %vm33, %v5089, 0
    %v5572 = vsel %vm33, %v5090, 0
    %v5575 = vsel %vm33, %v5091, 0
    %v5578 = vsel %vm33, %v5092, 0
    %v5581 = vsel %vm33, %v5093, 0
    %v5584 = vsel %vm33, %v5094, 0
    %v5587 = vsel %vm33, %v5095, 0
    %v5590 = vsel %vm33, %v5096, 0
    %v5593 = vsel %vm33, %v5097, 0
    %v5596 = vsel %vm33, %v5098, 0
    %v5599 = vsel %vm33, %v5099, 0
    %v5602 = vsel %vm33, %v5100, 0
    %v5605 = vsel %vm33, %v5101, 0
    %v5608 = vsel %vm33, %v5102, 0
    %v5611 = vsel %vm33, %v5103, 0
    %v5614 = vsel %vm33, %v5104, 0
    %v5617 = vsel %vm33, %v5105, 0
    %v5620 = vsel %vm33, %v5106, 0
    %v5623 = vsel %vm33, %v5107, 0
    %5625 = vmatpush.bf16.msra.mxu0 0
    %5626 = vmatpush.bf16.msra.mxu0 0
    %5627 = vmatpush.bf16.msra.mxu0 0
    %5628 = vmatpush.bf16.msra.mxu0 0
    %5629 = vmatpush.bf16.msra.mxu0 %v5524
    %5630 = vmatpush.bf16.msra.mxu0 %v5523
    %5631 = vmatpush.bf16.msra.mxu0 %v5522
    %5632 = vmatpush.bf16.msra.mxu0 %v5521
    %5633 = vmatmul.bf16.gmra.mxu0 %v5530
    %v5634 = vpop.f32.mrf.mxu0
    %v5635 = vadd.f32 %v5346, %v5634
    %v5636 = vpop.f32.mrf.mxu0
    %v5637 = vadd.f32 %v5348, %v5636
    %5638 = vmatmul.bf16.gmra.mxu0 %v5533
    %v5639 = vpop.f32.mrf.mxu0
    %v5640 = vadd.f32 %v5351, %v5639
    %v5641 = vpop.f32.mrf.mxu0
    %v5642 = vadd.f32 %v5353, %v5641
    %5643 = vmatmul.bf16.gmra.mxu0 %v5536
    %v5644 = vpop.f32.mrf.mxu0
    %v5645 = vadd.f32 %v5356, %v5644
    %v5646 = vpop.f32.mrf.mxu0
    %v5647 = vadd.f32 %v5358, %v5646
    %5648 = vmatmul.bf16.gmra.mxu0 %v5539
    %v5649 = vpop.f32.mrf.mxu0
    %v5650 = vadd.f32 %v5361, %v5649
    %v5651 = vpop.f32.mrf.mxu0
    %v5652 = vadd.f32 %v5363, %v5651
    %5653 = vmatmul.bf16.gmra.mxu0 %v5542
    %v5654 = vpop.f32.mrf.mxu0
    %v5655 = vadd.f32 %v5366, %v5654
    %v5656 = vpop.f32.mrf.mxu0
    %v5657 = vadd.f32 %v5368, %v5656
    %5658 = vmatmul.bf16.gmra.mxu0 %v5545
    %v5659 = vpop.f32.mrf.mxu0
    %v5660 = vadd.f32 %v5371, %v5659
    %v5661 = vpop.f32.mrf.mxu0
    %v5662 = vadd.f32 %v5373, %v5661
    %5663 = vmatmul.bf16.gmra.mxu0 %v5548
    %v5664 = vpop.f32.mrf.mxu0
    %v5665 = vadd.f32 %v5376, %v5664
    %v5666 = vpop.f32.mrf.mxu0
    %v5667 = vadd.f32 %v5378, %v5666
    %5668 = vmatmul.bf16.gmra.mxu0 %v5551
    %v5669 = vpop.f32.mrf.mxu0
    %v5670 = vadd.f32 %v5381, %v5669
    %v5671 = vpop.f32.mrf.mxu0
    %v5672 = vadd.f32 %v5383, %v5671
    %5673 = vmatmul.bf16.gmra.mxu0 %v5554
    %v5674 = vpop.f32.mrf.mxu0
    %v5675 = vadd.f32 %v5386, %v5674
    %v5676 = vpop.f32.mrf.mxu0
    %v5677 = vadd.f32 %v5388, %v5676
    %5678 = vmatmul.bf16.gmra.mxu0 %v5557
    %v5679 = vpop.f32.mrf.mxu0
    %v5680 = vadd.f32 %v5391, %v5679
    %v5681 = vpop.f32.mrf.mxu0
    %v5682 = vadd.f32 %v5393, %v5681
    %5683 = vmatmul.bf16.gmra.mxu0 %v5560
    %v5684 = vpop.f32.mrf.mxu0
    %v5685 = vadd.f32 %v5396, %v5684
    %v5686 = vpop.f32.mrf.mxu0
    %v5687 = vadd.f32 %v5398, %v5686
    %5688 = vmatmul.bf16.gmra.mxu0 %v5563
    %v5689 = vpop.f32.mrf.mxu0
    %v5690 = vadd.f32 %v5401, %v5689
    %v5691 = vpop.f32.mrf.mxu0
    %v5692 = vadd.f32 %v5403, %v5691
    %5693 = vmatmul.bf16.gmra.mxu0 %v5566
    %v5694 = vpop.f32.mrf.mxu0
    %v5695 = vadd.f32 %v5406, %v5694
    %v5696 = vpop.f32.mrf.mxu0
    %v5697 = vadd.f32 %v5408, %v5696
    %5698 = vmatmul.bf16.gmra.mxu0 %v5569
    %v5699 = vpop.f32.mrf.mxu0
    %v5700 = vadd.f32 %v5411, %v5699
    %v5701 = vpop.f32.mrf.mxu0
    %v5702 = vadd.f32 %v5413, %v5701
    %5703 = vmatmul.bf16.gmra.mxu0 %v5572
    %v5704 = vpop.f32.mrf.mxu0
    %v5705 = vadd.f32 %v5416, %v5704
    %v5706 = vpop.f32.mrf.mxu0
    %v5707 = vadd.f32 %v5418, %v5706
    %5708 = vmatmul.bf16.gmra.mxu0 %v5575
    %v5709 = vpop.f32.mrf.mxu0
    %v5710 = vadd.f32 %v5421, %v5709
    %v5711 = vpop.f32.mrf.mxu0
    %v5712 = vadd.f32 %v5423, %v5711
    %5713 = vmatmul.bf16.gmra.mxu0 %v5578
    %v5714 = vpop.f32.mrf.mxu0
    %v5715 = vadd.f32 %v5426, %v5714
    %v5716 = vpop.f32.mrf.mxu0
    %v5717 = vadd.f32 %v5428, %v5716
    %5718 = vmatmul.bf16.gmra.mxu0 %v5581
    %v5719 = vpop.f32.mrf.mxu0
    %v5720 = vadd.f32 %v5431, %v5719
    %v5721 = vpop.f32.mrf.mxu0
    %v5722 = vadd.f32 %v5433, %v5721
    %5723 = vmatmul.bf16.gmra.mxu0 %v5584
    %v5724 = vpop.f32.mrf.mxu0
    %v5725 = vadd.f32 %v5436, %v5724
    %v5726 = vpop.f32.mrf.mxu0
    %v5727 = vadd.f32 %v5438, %v5726
    %5728 = vmatmul.bf16.gmra.mxu0 %v5587
    %v5729 = vpop.f32.mrf.mxu0
    %v5730 = vadd.f32 %v5441, %v5729
    %v5731 = vpop.f32.mrf.mxu0
    %v5732 = vadd.f32 %v5443, %v5731
    %5733 = vmatmul.bf16.gmra.mxu0 %v5590
    %v5734 = vpop.f32.mrf.mxu0
    %v5735 = vadd.f32 %v5446, %v5734
    %v5736 = vpop.f32.mrf.mxu0
    %v5737 = vadd.f32 %v5448, %v5736
    %5738 = vmatmul.bf16.gmra.mxu0 %v5593
    %v5739 = vpop.f32.mrf.mxu0
    %v5740 = vadd.f32 %v5451, %v5739
    %v5741 = vpop.f32.mrf.mxu0
    %v5742 = vadd.f32 %v5453, %v5741
    %5743 = vmatmul.bf16.gmra.mxu0 %v5596
    %v5744 = vpop.f32.mrf.mxu0
    %v5745 = vadd.f32 %v5456, %v5744
    %v5746 = vpop.f32.mrf.mxu0
    %v5747 = vadd.f32 %v5458, %v5746
    %5748 = vmatmul.bf16.gmra.mxu0 %v5599
    %v5749 = vpop.f32.mrf.mxu0
    %v5750 = vadd.f32 %v5461, %v5749
    %v5751 = vpop.f32.mrf.mxu0
    %v5752 = vadd.f32 %v5463, %v5751
    %5753 = vmatmul.bf16.gmra.mxu0 %v5602
    %v5754 = vpop.f32.mrf.mxu0
    %v5755 = vadd.f32 %v5466, %v5754
    %v5756 = vpop.f32.mrf.mxu0
    %v5757 = vadd.f32 %v5468, %v5756
    %5758 = vmatmul.bf16.gmra.mxu0 %v5605
    %v5759 = vpop.f32.mrf.mxu0
    %v5760 = vadd.f32 %v5471, %v5759
    %v5761 = vpop.f32.mrf.mxu0
    %v5762 = vadd.f32 %v5473, %v5761
    %5763 = vmatmul.bf16.gmra.mxu0 %v5608
    %v5764 = vpop.f32.mrf.mxu0
    %v5765 = vadd.f32 %v5476, %v5764
    %v5766 = vpop.f32.mrf.mxu0
    %v5767 = vadd.f32 %v5478, %v5766
    %5768 = vmatmul.bf16.gmra.mxu0 %v5611
    %v5769 = vpop.f32.mrf.mxu0
    %v5770 = vadd.f32 %v5481, %v5769
    %v5771 = vpop.f32.mrf.mxu0
    %v5772 = vadd.f32 %v5483, %v5771
    %5773 = vmatmul.bf16.gmra.mxu0 %v5614
    %v5774 = vpop.f32.mrf.mxu0
    %v5775 = vadd.f32 %v5486, %v5774
    %v5776 = vpop.f32.mrf.mxu0
    %v5777 = vadd.f32 %v5488, %v5776
    %5778 = vmatmul.bf16.gmra.mxu0 %v5617
    %v5779 = vpop.f32.mrf.mxu0
    %v5780 = vadd.f32 %v5491, %v5779
    %v5781 = vpop.f32.mrf.mxu0
    %v5782 = vadd.f32 %v5493, %v5781
    %5783 = vmatmul.bf16.gmra.mxu0 %v5620
    %v5784 = vpop.f32.mrf.mxu0
    %v5785 = vadd.f32 %v5496, %v5784
    %v5786 = vpop.f32.mrf.mxu0
    %v5787 = vadd.f32 %v5498, %v5786
    %5788 = vmatmul.bf16.gmra.mxu0 %v5623
    %v5789 = vpop.f32.mrf.mxu0
    %v5790 = vadd.f32 %v5501, %v5789
    %v5791 = vpop.f32.mrf.mxu0
    %v5792 = vadd.f32 %v5503, %v5791
    %5793 = vdwg.mxu0
    %v5794 = vld [vmem:[#allocation2 + $0x2] sm:$0xff]
    %v5795 = vld [vmem:[#allocation2 + $0xa] sm:$0xff]
    %v5796 = vld [vmem:[#allocation2 + $0x1a] sm:$0xff]
    %v5797 = vld [vmem:[#allocation2 + $0x22] sm:$0xff]
    %v5798 = vld [vmem:[#allocation2 + $0x32] sm:$0xff]
    %v5799 = vld [vmem:[#allocation2 + $0x3a] sm:$0xff]
    %v5800 = vld [vmem:[#allocation2 + $0x4a] sm:$0xff]
    %v5801 = vld [vmem:[#allocation2 + $0x52] sm:$0xff]
    %v5802 = vld [vmem:[#allocation2 + $0x62] sm:$0xff]
    %v5803 = vld [vmem:[#allocation2 + $0x6a] sm:$0xff]
    %v5804 = vld [vmem:[#allocation2 + $0x7a] sm:$0xff]
    %v5805 = vld [vmem:[#allocation2 + $0x82] sm:$0xff]
    %v5806 = vld [vmem:[#allocation2 + $0x92] sm:$0xff]
    %v5807 = vld [vmem:[#allocation2 + $0x9a] sm:$0xff]
    %v5808 = vld [vmem:[#allocation2 + $0xaa] sm:$0xff]
    %v5809 = vld [vmem:[#allocation2 + $0xb2] sm:$0xff]
    %v5810 = vld [vmem:[#allocation2 + $0xc2] sm:$0xff]
    %v5811 = vld [vmem:[#allocation2 + $0xca] sm:$0xff]
    %v5812 = vld [vmem:[#allocation2 + $0xda] sm:$0xff]
    %v5813 = vld [vmem:[#allocation2 + $0xe2] sm:$0xff]
    %v5814 = vld [vmem:[#allocation2 + $0xf2] sm:$0xff]
    %v5815 = vld [vmem:[#allocation2 + $0xfa] sm:$0xff]
    %v5816 = vld [vmem:[#allocation2 + $0x10a] sm:$0xff]
    %v5817 = vld [vmem:[#allocation2 + $0x112] sm:$0xff]
    %v5818 = vld [vmem:[#allocation2 + $0x122] sm:$0xff]
    %v5819 = vld [vmem:[#allocation2 + $0x12a] sm:$0xff]
    %v5820 = vld [vmem:[#allocation2 + $0x13a] sm:$0xff]
    %v5821 = vld [vmem:[#allocation2 + $0x142] sm:$0xff]
    %v5822 = vld [vmem:[#allocation2 + $0x152] sm:$0xff]
    %v5823 = vld [vmem:[#allocation2 + $0x15a] sm:$0xff]
    %v5824 = vld [vmem:[#allocation2 + $0x16a] sm:$0xff]
    %v5825 = vld [vmem:[#allocation2 + $0x172] sm:$0xff]
    %v5826 = vld [vmem:[#allocation2 + $0x1b2] sm:$0xff]
    %v5827 = vld [vmem:[#allocation2 + $0x1ba] sm:$0xff]
    %v5828 = vld [vmem:[#allocation2 + $0x1ca] sm:$0xff]
    %v5829 = vld [vmem:[#allocation2 + $0x1d2] sm:$0xff]
    %v5830 = vld [vmem:[#allocation2 + $0x1e2] sm:$0xff]
    %v5831 = vld [vmem:[#allocation2 + $0x1ea] sm:$0xff]
    %v5832 = vld [vmem:[#allocation2 + $0x1fa] sm:$0xff]
    %v5833 = vld [vmem:[#allocation2 + $0x202] sm:$0xff]
    %v5834 = vld [vmem:[#allocation2 + $0x212] sm:$0xff]
    %v5835 = vld [vmem:[#allocation2 + $0x21a] sm:$0xff]
    %v5836 = vld [vmem:[#allocation2 + $0x22a] sm:$0xff]
    %v5837 = vld [vmem:[#allocation2 + $0x232] sm:$0xff]
    %v5838 = vld [vmem:[#allocation2 + $0x242] sm:$0xff]
    %v5839 = vld [vmem:[#allocation2 + $0x24a] sm:$0xff]
    %v5840 = vld [vmem:[#allocation2 + $0x25a] sm:$0xff]
    %v5841 = vld [vmem:[#allocation2 + $0x262] sm:$0xff]
    %v5842 = vld [vmem:[#allocation2 + $0x272] sm:$0xff]
    %v5843 = vld [vmem:[#allocation2 + $0x27a] sm:$0xff]
    %v5844 = vld [vmem:[#allocation2 + $0x28a] sm:$0xff]
    %v5845 = vld [vmem:[#allocation2 + $0x292] sm:$0xff]
    %v5846 = vld [vmem:[#allocation2 + $0x2a2] sm:$0xff]
    %v5847 = vld [vmem:[#allocation2 + $0x2aa] sm:$0xff]
    %v5848 = vld [vmem:[#allocation2 + $0x2ba] sm:$0xff]
    %v5849 = vld [vmem:[#allocation2 + $0x2c2] sm:$0xff]
    %v5850 = vld [vmem:[#allocation2 + $0x2d2] sm:$0xff]
    %v5851 = vld [vmem:[#allocation2 + $0x2da] sm:$0xff]
    %v5852 = vld [vmem:[#allocation2 + $0x2ea] sm:$0xff]
    %v5853 = vld [vmem:[#allocation2 + $0x2f2] sm:$0xff]
    %v5854 = vld [vmem:[#allocation2 + $0x302] sm:$0xff]
    %v5855 = vld [vmem:[#allocation2 + $0x30a] sm:$0xff]
    %v5856 = vld [vmem:[#allocation2 + $0x31a] sm:$0xff]
    %v5857 = vld [vmem:[#allocation2 + $0x322] sm:$0xff]
    %s5858 = sadd.s32 %s5064, 2
    %s5859 = smul.u32 %s5858, 8
    %s5860 = smul.addr %s5859, 4
    %s5861 = scalar_lea.vmem %s3, %s5860
    %v5862 = vld [vmem:[%s5861] sm:$0xf]
    %v5863 = vld [vmem:[%s5861 + $0x4] sm:$0xf]
    %v5864 = vld [vmem:[%s5861 + $0x8] sm:$0xf]
    %v5865 = vld [vmem:[%s5861 + $0xc] sm:$0xf]
    %v5866 = vld [vmem:[%s5861 + $0x10] sm:$0xf]
    %v5867 = vld [vmem:[%s5861 + $0x14] sm:$0xf]
    %v5868 = vld [vmem:[%s5861 + $0x18] sm:$0xf]
    %v5869 = vld [vmem:[%s5861 + $0x1c] sm:$0xf]
    %v5870 = vpack.c.bf16 %v5795, %v5794
    %v5871 = vpack.c.bf16 %v5797, %v5796
    %v5872 = vpack.c.bf16 %v5799, %v5798
    %v5873 = vpack.c.bf16 %v5801, %v5800
    %v5874 = vpack.c.bf16 %v5803, %v5802
    %v5875 = vpack.c.bf16 %v5805, %v5804
    %v5876 = vpack.c.bf16 %v5807, %v5806
    %v5877 = vpack.c.bf16 %v5809, %v5808
    %v5878 = vpack.c.bf16 %v5811, %v5810
    %v5879 = vpack.c.bf16 %v5813, %v5812
    %v5880 = vpack.c.bf16 %v5815, %v5814
    %v5881 = vpack.c.bf16 %v5817, %v5816
    %v5882 = vpack.c.bf16 %v5819, %v5818
    %v5883 = vpack.c.bf16 %v5821, %v5820
    %v5884 = vpack.c.bf16 %v5823, %v5822
    %v5885 = vpack.c.bf16 %v5825, %v5824
    %v5886 = vpack.c.bf16 %v5827, %v5826
    %v5887 = vpack.c.bf16 %v5829, %v5828
    %v5888 = vpack.c.bf16 %v5831, %v5830
    %v5889 = vpack.c.bf16 %v5833, %v5832
    %v5890 = vpack.c.bf16 %v5835, %v5834
    %v5891 = vpack.c.bf16 %v5837, %v5836
    %v5892 = vpack.c.bf16 %v5839, %v5838
    %v5893 = vpack.c.bf16 %v5841, %v5840
    %v5894 = vpack.c.bf16 %v5843, %v5842
    %v5895 = vpack.c.bf16 %v5845, %v5844
    %v5896 = vpack.c.bf16 %v5847, %v5846
    %v5897 = vpack.c.bf16 %v5849, %v5848
    %v5898 = vpack.c.bf16 %v5851, %v5850
    %v5899 = vpack.c.bf16 %v5853, %v5852
    %v5900 = vpack.c.bf16 %v5855, %v5854
    %v5901 = vpack.c.bf16 %v5857, %v5856
    %v5910 = vunpack.c.l.b16 %v5862
    %v5911 = vunpack.c.l.b16 %v5863
    %v5912 = vunpack.c.l.b16 %v5864
    %v5913 = vunpack.c.l.b16 %v5865
    %v5914 = vunpack.c.l.b16 %v5866
    %v5915 = vunpack.c.l.b16 %v5867
    %v5916 = vunpack.c.l.b16 %v5868
    %v5917 = vunpack.c.l.b16 %v5869
    %v5918 = vpack.c.b16 %v5911, %v5910
    %v5919 = vpack.c.b16 %v5913, %v5912
    %v5920 = vpack.c.b16 %v5915, %v5914
    %v5921 = vpack.c.b16 %v5917, %v5916
    %v5927 = vsel %vm33, %v5870, 0
    %v5930 = vsel %vm33, %v5871, 0
    %v5933 = vsel %vm33, %v5872, 0
    %v5936 = vsel %vm33, %v5873, 0
    %v5939 = vsel %vm33, %v5874, 0
    %v5942 = vsel %vm33, %v5875, 0
    %v5945 = vsel %vm33, %v5876, 0
    %v5948 = vsel %vm33, %v5877, 0
    %v5951 = vsel %vm33, %v5878, 0
    %v5954 = vsel %vm33, %v5879, 0
    %v5957 = vsel %vm33, %v5880, 0
    %v5960 = vsel %vm33, %v5881, 0
    %v5963 = vsel %vm33, %v5882, 0
    %v5966 = vsel %vm33, %v5883, 0
    %v5969 = vsel %vm33, %v5884, 0
    %v5972 = vsel %vm33, %v5885, 0
    %v5975 = vsel %vm33, %v5886, 0
    %v5978 = vsel %vm33, %v5887, 0
    %v5981 = vsel %vm33, %v5888, 0
    %v5984 = vsel %vm33, %v5889, 0
    %v5987 = vsel %vm33, %v5890, 0
    %v5990 = vsel %vm33, %v5891, 0
    %v5993 = vsel %vm33, %v5892, 0
    %v5996 = vsel %vm33, %v5893, 0
    %v5999 = vsel %vm33, %v5894, 0
    %v6002 = vsel %vm33, %v5895, 0
    %v6005 = vsel %vm33, %v5896, 0
    %v6008 = vsel %vm33, %v5897, 0
    %v6011 = vsel %vm33, %v5898, 0
    %v6014 = vsel %vm33, %v5899, 0
    %v6017 = vsel %vm33, %v5900, 0
    %v6020 = vsel %vm33, %v5901, 0
    %6022 = vmatpush.bf16.msra.mxu0 0
    %6023 = vmatpush.bf16.msra.mxu0 0
    %6024 = vmatpush.bf16.msra.mxu0 0
    %6025 = vmatpush.bf16.msra.mxu0 0
    %6026 = vmatpush.bf16.msra.mxu0 %v5921
    %6027 = vmatpush.bf16.msra.mxu0 %v5920
    %6028 = vmatpush.bf16.msra.mxu0 %v5919
    %6029 = vmatpush.bf16.msra.mxu0 %v5918
    %6030 = vmatmul.bf16.gmra.mxu0 %v5927
    %v6031 = vpop.f32.mrf.mxu0
    %v6032 = vadd.f32 0.0, %v6031
    %v6033 = vpop.f32.mrf.mxu0
    %v6034 = vadd.f32 0.0, %v6033
    %6035 = vmatmul.bf16.gmra.mxu0 %v5930
    %v6036 = vpop.f32.mrf.mxu0
    %v6037 = vadd.f32 0.0, %v6036
    %v6038 = vpop.f32.mrf.mxu0
    %v6039 = vadd.f32 0.0, %v6038
    %6040 = vmatmul.bf16.gmra.mxu0 %v5933
    %v6041 = vpop.f32.mrf.mxu0
    %v6042 = vadd.f32 0.0, %v6041
    %v6043 = vpop.f32.mrf.mxu0
    %v6044 = vadd.f32 0.0, %v6043
    %6045 = vmatmul.bf16.gmra.mxu0 %v5936
    %v6046 = vpop.f32.mrf.mxu0
    %v6047 = vadd.f32 0.0, %v6046
    %v6048 = vpop.f32.mrf.mxu0
    %v6049 = vadd.f32 0.0, %v6048
    %6050 = vmatmul.bf16.gmra.mxu0 %v5939
    %v6051 = vpop.f32.mrf.mxu0
    %v6052 = vadd.f32 0.0, %v6051
    %v6053 = vpop.f32.mrf.mxu0
    %v6054 = vadd.f32 0.0, %v6053
    %6055 = vmatmul.bf16.gmra.mxu0 %v5942
    %v6056 = vpop.f32.mrf.mxu0
    %v6057 = vadd.f32 0.0, %v6056
    %v6058 = vpop.f32.mrf.mxu0
    %v6059 = vadd.f32 0.0, %v6058
    %6060 = vmatmul.bf16.gmra.mxu0 %v5945
    %v6061 = vpop.f32.mrf.mxu0
    %v6062 = vadd.f32 0.0, %v6061
    %v6063 = vpop.f32.mrf.mxu0
    %v6064 = vadd.f32 0.0, %v6063
    %6065 = vmatmul.bf16.gmra.mxu0 %v5948
    %v6066 = vpop.f32.mrf.mxu0
    %v6067 = vadd.f32 0.0, %v6066
    %v6068 = vpop.f32.mrf.mxu0
    %v6069 = vadd.f32 0.0, %v6068
    %6070 = vmatmul.bf16.gmra.mxu0 %v5951
    %v6071 = vpop.f32.mrf.mxu0
    %v6072 = vadd.f32 0.0, %v6071
    %v6073 = vpop.f32.mrf.mxu0
    %v6074 = vadd.f32 0.0, %v6073
    %6075 = vmatmul.bf16.gmra.mxu0 %v5954
    %v6076 = vpop.f32.mrf.mxu0
    %v6077 = vadd.f32 0.0, %v6076
    %v6078 = vpop.f32.mrf.mxu0
    %v6079 = vadd.f32 0.0, %v6078
    %6080 = vmatmul.bf16.gmra.mxu0 %v5957
    %v6081 = vpop.f32.mrf.mxu0
    %v6082 = vadd.f32 0.0, %v6081
    %v6083 = vpop.f32.mrf.mxu0
    %v6084 = vadd.f32 0.0, %v6083
    %6085 = vmatmul.bf16.gmra.mxu0 %v5960
    %v6086 = vpop.f32.mrf.mxu0
    %v6087 = vadd.f32 0.0, %v6086
    %v6088 = vpop.f32.mrf.mxu0
    %v6089 = vadd.f32 0.0, %v6088
    %6090 = vmatmul.bf16.gmra.mxu0 %v5963
    %v6091 = vpop.f32.mrf.mxu0
    %v6092 = vadd.f32 0.0, %v6091
    %v6093 = vpop.f32.mrf.mxu0
    %v6094 = vadd.f32 0.0, %v6093
    %6095 = vmatmul.bf16.gmra.mxu0 %v5966
    %v6096 = vpop.f32.mrf.mxu0
    %v6097 = vadd.f32 0.0, %v6096
    %v6098 = vpop.f32.mrf.mxu0
    %v6099 = vadd.f32 0.0, %v6098
    %6100 = vmatmul.bf16.gmra.mxu0 %v5969
    %v6101 = vpop.f32.mrf.mxu0
    %v6102 = vadd.f32 0.0, %v6101
    %v6103 = vpop.f32.mrf.mxu0
    %v6104 = vadd.f32 0.0, %v6103
    %6105 = vmatmul.bf16.gmra.mxu0 %v5972
    %v6106 = vpop.f32.mrf.mxu0
    %v6107 = vadd.f32 0.0, %v6106
    %v6108 = vpop.f32.mrf.mxu0
    %v6109 = vadd.f32 0.0, %v6108
    %6110 = vmatmul.bf16.gmra.mxu0 %v5975
    %v6111 = vpop.f32.mrf.mxu0
    %v6112 = vadd.f32 0.0, %v6111
    %v6113 = vpop.f32.mrf.mxu0
    %v6114 = vadd.f32 0.0, %v6113
    %6115 = vmatmul.bf16.gmra.mxu0 %v5978
    %v6116 = vpop.f32.mrf.mxu0
    %v6117 = vadd.f32 0.0, %v6116
    %v6118 = vpop.f32.mrf.mxu0
    %v6119 = vadd.f32 0.0, %v6118
    %6120 = vmatmul.bf16.gmra.mxu0 %v5981
    %v6121 = vpop.f32.mrf.mxu0
    %v6122 = vadd.f32 0.0, %v6121
    %v6123 = vpop.f32.mrf.mxu0
    %v6124 = vadd.f32 0.0, %v6123
    %6125 = vmatmul.bf16.gmra.mxu0 %v5984
    %v6126 = vpop.f32.mrf.mxu0
    %v6127 = vadd.f32 0.0, %v6126
    %v6128 = vpop.f32.mrf.mxu0
    %v6129 = vadd.f32 0.0, %v6128
    %6130 = vmatmul.bf16.gmra.mxu0 %v5987
    %v6131 = vpop.f32.mrf.mxu0
    %v6132 = vadd.f32 0.0, %v6131
    %v6133 = vpop.f32.mrf.mxu0
    %v6134 = vadd.f32 0.0, %v6133
    %6135 = vmatmul.bf16.gmra.mxu0 %v5990
    %v6136 = vpop.f32.mrf.mxu0
    %v6137 = vadd.f32 0.0, %v6136
    %v6138 = vpop.f32.mrf.mxu0
    %v6139 = vadd.f32 0.0, %v6138
    %6140 = vmatmul.bf16.gmra.mxu0 %v5993
    %v6141 = vpop.f32.mrf.mxu0
    %v6142 = vadd.f32 0.0, %v6141
    %v6143 = vpop.f32.mrf.mxu0
    %v6144 = vadd.f32 0.0, %v6143
    %6145 = vmatmul.bf16.gmra.mxu0 %v5996
    %v6146 = vpop.f32.mrf.mxu0
    %v6147 = vadd.f32 0.0, %v6146
    %v6148 = vpop.f32.mrf.mxu0
    %v6149 = vadd.f32 0.0, %v6148
    %6150 = vmatmul.bf16.gmra.mxu0 %v5999
    %v6151 = vpop.f32.mrf.mxu0
    %v6152 = vadd.f32 0.0, %v6151
    %v6153 = vpop.f32.mrf.mxu0
    %v6154 = vadd.f32 0.0, %v6153
    %6155 = vmatmul.bf16.gmra.mxu0 %v6002
    %v6156 = vpop.f32.mrf.mxu0
    %v6157 = vadd.f32 0.0, %v6156
    %v6158 = vpop.f32.mrf.mxu0
    %v6159 = vadd.f32 0.0, %v6158
    %6160 = vmatmul.bf16.gmra.mxu0 %v6005
    %v6161 = vpop.f32.mrf.mxu0
    %v6162 = vadd.f32 0.0, %v6161
    %v6163 = vpop.f32.mrf.mxu0
    %v6164 = vadd.f32 0.0, %v6163
    %6165 = vmatmul.bf16.gmra.mxu0 %v6008
    %v6166 = vpop.f32.mrf.mxu0
    %v6167 = vadd.f32 0.0, %v6166
    %v6168 = vpop.f32.mrf.mxu0
    %v6169 = vadd.f32 0.0, %v6168
    %6170 = vmatmul.bf16.gmra.mxu0 %v6011
    %v6171 = vpop.f32.mrf.mxu0
    %v6172 = vadd.f32 0.0, %v6171
    %v6173 = vpop.f32.mrf.mxu0
    %v6174 = vadd.f32 0.0, %v6173
    %6175 = vmatmul.bf16.gmra.mxu0 %v6014
    %v6176 = vpop.f32.mrf.mxu0
    %v6177 = vadd.f32 0.0, %v6176
    %v6178 = vpop.f32.mrf.mxu0
    %v6179 = vadd.f32 0.0, %v6178
    %6180 = vmatmul.bf16.gmra.mxu0 %v6017
    %v6181 = vpop.f32.mrf.mxu0
    %v6182 = vadd.f32 0.0, %v6181
    %v6183 = vpop.f32.mrf.mxu0
    %v6184 = vadd.f32 0.0, %v6183
    %6185 = vmatmul.bf16.gmra.mxu0 %v6020
    %v6186 = vpop.f32.mrf.mxu0
    %v6187 = vadd.f32 0.0, %v6186
    %v6188 = vpop.f32.mrf.mxu0
    %v6189 = vadd.f32 0.0, %v6188
    %6190 = vdwg.mxu0
    %v6191 = vadd.f32 %v5635, %v6032
    %v6192 = vadd.f32 %v5637, %v6034
    %v6193 = vadd.f32 %v5640, %v6037
    %v6194 = vadd.f32 %v5642, %v6039
    %v6195 = vadd.f32 %v5645, %v6042
    %v6196 = vadd.f32 %v5647, %v6044
    %v6197 = vadd.f32 %v5650, %v6047
    %v6198 = vadd.f32 %v5652, %v6049
    %v6199 = vadd.f32 %v5655, %v6052
    %v6200 = vadd.f32 %v5657, %v6054
    %v6201 = vadd.f32 %v5660, %v6057
    %v6202 = vadd.f32 %v5662, %v6059
    %v6203 = vadd.f32 %v5665, %v6062
    %v6204 = vadd.f32 %v5667, %v6064
    %v6205 = vadd.f32 %v5670, %v6067
    %v6206 = vadd.f32 %v5672, %v6069
    %v6207 = vadd.f32 %v5675, %v6072
    %v6208 = vadd.f32 %v5677, %v6074
    %v6209 = vadd.f32 %v5680, %v6077
    %v6210 = vadd.f32 %v5682, %v6079
    %v6211 = vadd.f32 %v5685, %v6082
    %v6212 = vadd.f32 %v5687, %v6084
    %v6213 = vadd.f32 %v5690, %v6087
    %v6214 = vadd.f32 %v5692, %v6089
    %v6215 = vadd.f32 %v5695, %v6092
    %v6216 = vadd.f32 %v5697, %v6094
    %v6217 = vadd.f32 %v5700, %v6097
    %v6218 = vadd.f32 %v5702, %v6099
    %v6219 = vadd.f32 %v5705, %v6102
    %v6220 = vadd.f32 %v5707, %v6104
    %v6221 = vadd.f32 %v5710, %v6107
    %v6222 = vadd.f32 %v5712, %v6109
    %v6223 = vadd.f32 %v5715, %v6112
    %v6224 = vadd.f32 %v5717, %v6114
    %v6225 = vadd.f32 %v5720, %v6117
    %v6226 = vadd.f32 %v5722, %v6119
    %v6227 = vadd.f32 %v5725, %v6122
    %v6228 = vadd.f32 %v5727, %v6124
    %v6229 = vadd.f32 %v5730, %v6127
    %v6230 = vadd.f32 %v5732, %v6129
    %v6231 = vadd.f32 %v5735, %v6132
    %v6232 = vadd.f32 %v5737, %v6134
    %v6233 = vadd.f32 %v5740, %v6137
    %v6234 = vadd.f32 %v5742, %v6139
    %v6235 = vadd.f32 %v5745, %v6142
    %v6236 = vadd.f32 %v5747, %v6144
    %v6237 = vadd.f32 %v5750, %v6147
    %v6238 = vadd.f32 %v5752, %v6149
    %v6239 = vadd.f32 %v5755, %v6152
    %v6240 = vadd.f32 %v5757, %v6154
    %v6241 = vadd.f32 %v5760, %v6157
    %v6242 = vadd.f32 %v5762, %v6159
    %v6243 = vadd.f32 %v5765, %v6162
    %v6244 = vadd.f32 %v5767, %v6164
    %v6245 = vadd.f32 %v5770, %v6167
    %v6246 = vadd.f32 %v5772, %v6169
    %v6247 = vadd.f32 %v5775, %v6172
    %v6248 = vadd.f32 %v5777, %v6174
    %v6249 = vadd.f32 %v5780, %v6177
    %v6250 = vadd.f32 %v5782, %v6179
    %v6251 = vadd.f32 %v5785, %v6182
    %v6252 = vadd.f32 %v5787, %v6184
    %v6253 = vadd.f32 %v5790, %v6187
    %v6254 = vadd.f32 %v5792, %v6189
    %v6255 = vld [vmem:[%s4929] sm:$0xff]
    %v6256 = vld [vmem:[%s4929 + $0x8] sm:$0xff]
    %v6257 = vld [vmem:[%s4929 + $0x18] sm:$0xff]
    %v6258 = vld [vmem:[%s4929 + $0x20] sm:$0xff]
    %v6259 = vld [vmem:[%s4929 + $0x30] sm:$0xff]
    %v6260 = vld [vmem:[%s4929 + $0x38] sm:$0xff]
    %v6261 = vld [vmem:[%s4929 + $0x48] sm:$0xff]
    %v6262 = vld [vmem:[%s4929 + $0x50] sm:$0xff]
    %v6263 = vld [vmem:[%s4929 + $0x60] sm:$0xff]
    %v6264 = vld [vmem:[%s4929 + $0x68] sm:$0xff]
    %v6265 = vld [vmem:[%s4929 + $0x78] sm:$0xff]
    %v6266 = vld [vmem:[%s4929 + $0x80] sm:$0xff]
    %v6267 = vld [vmem:[%s4929 + $0x90] sm:$0xff]
    %v6268 = vld [vmem:[%s4929 + $0x98] sm:$0xff]
    %v6269 = vld [vmem:[%s4929 + $0xa8] sm:$0xff]
    %v6270 = vld [vmem:[%s4929 + $0xb0] sm:$0xff]
    %v6271 = vld [vmem:[%s4929 + $0xc0] sm:$0xff]
    %v6272 = vld [vmem:[%s4929 + $0xc8] sm:$0xff]
    %v6273 = vld [vmem:[%s4929 + $0xd8] sm:$0xff]
    %v6274 = vld [vmem:[%s4929 + $0xe0] sm:$0xff]
    %v6275 = vld [vmem:[%s4929 + $0xf0] sm:$0xff]
    %v6276 = vld [vmem:[%s4929 + $0xf8] sm:$0xff]
    %v6277 = vld [vmem:[%s4929 + $0x108] sm:$0xff]
    %v6278 = vld [vmem:[%s4929 + $0x110] sm:$0xff]
    %v6279 = vld [vmem:[%s4929 + $0x120] sm:$0xff]
    %v6280 = vld [vmem:[%s4929 + $0x128] sm:$0xff]
    %v6281 = vld [vmem:[%s4929 + $0x138] sm:$0xff]
    %v6282 = vld [vmem:[%s4929 + $0x140] sm:$0xff]
    %v6283 = vld [vmem:[%s4929 + $0x150] sm:$0xff]
    %v6284 = vld [vmem:[%s4929 + $0x158] sm:$0xff]
    %v6285 = vld [vmem:[%s4929 + $0x168] sm:$0xff]
    %v6286 = vld [vmem:[%s4929 + $0x170] sm:$0xff]
    %v6287 = vld [vmem:[%s4929 + $0x1b0] sm:$0xff]
    %v6288 = vld [vmem:[%s4929 + $0x1b8] sm:$0xff]
    %v6289 = vld [vmem:[%s4929 + $0x1c8] sm:$0xff]
    %v6290 = vld [vmem:[%s4929 + $0x1d0] sm:$0xff]
    %v6291 = vld [vmem:[%s4929 + $0x1e0] sm:$0xff]
    %v6292 = vld [vmem:[%s4929 + $0x1e8] sm:$0xff]
    %v6293 = vld [vmem:[%s4929 + $0x1f8] sm:$0xff]
    %v6294 = vld [vmem:[%s4929 + $0x200] sm:$0xff]
    %v6295 = vld [vmem:[%s4929 + $0x210] sm:$0xff]
    %v6296 = vld [vmem:[%s4929 + $0x218] sm:$0xff]
    %v6297 = vld [vmem:[%s4929 + $0x228] sm:$0xff]
    %v6298 = vld [vmem:[%s4929 + $0x230] sm:$0xff]
    %v6299 = vld [vmem:[%s4929 + $0x240] sm:$0xff]
    %v6300 = vld [vmem:[%s4929 + $0x248] sm:$0xff]
    %v6301 = vld [vmem:[%s4929 + $0x258] sm:$0xff]
    %v6302 = vld [vmem:[%s4929 + $0x260] sm:$0xff]
    %v6303 = vld [vmem:[%s4929 + $0x270] sm:$0xff]
    %v6304 = vld [vmem:[%s4929 + $0x278] sm:$0xff]
    %v6305 = vld [vmem:[%s4929 + $0x288] sm:$0xff]
    %v6306 = vld [vmem:[%s4929 + $0x290] sm:$0xff]
    %v6307 = vld [vmem:[%s4929 + $0x2a0] sm:$0xff]
    %v6308 = vld [vmem:[%s4929 + $0x2a8] sm:$0xff]
    %v6309 = vld [vmem:[%s4929 + $0x2b8] sm:$0xff]
    %v6310 = vld [vmem:[%s4929 + $0x2c0] sm:$0xff]
    %v6311 = vld [vmem:[%s4929 + $0x2d0] sm:$0xff]
    %v6312 = vld [vmem:[%s4929 + $0x2d8] sm:$0xff]
    %v6313 = vld [vmem:[%s4929 + $0x2e8] sm:$0xff]
    %v6314 = vld [vmem:[%s4929 + $0x2f0] sm:$0xff]
    %v6315 = vld [vmem:[%s4929 + $0x300] sm:$0xff]
    %v6316 = vld [vmem:[%s4929 + $0x308] sm:$0xff]
    %v6317 = vld [vmem:[%s4929 + $0x318] sm:$0xff]
    %v6318 = vld [vmem:[%s4929 + $0x320] sm:$0xff]
    %s6319 = sadd.s32 %s5064, 3
    %s6320 = smul.u32 %s6319, 8
    %s6321 = smul.addr %s6320, 4
    %s6322 = scalar_lea.vmem %s3, %s6321
    %v6323 = vld [vmem:[%s6322] sm:$0xf]
    %v6324 = vld [vmem:[%s6322 + $0x4] sm:$0xf]
    %v6325 = vld [vmem:[%s6322 + $0x8] sm:$0xf]
    %v6326 = vld [vmem:[%s6322 + $0xc] sm:$0xf]
    %v6327 = vld [vmem:[%s6322 + $0x10] sm:$0xf]
    %v6328 = vld [vmem:[%s6322 + $0x14] sm:$0xf]
    %v6329 = vld [vmem:[%s6322 + $0x18] sm:$0xf]
    %v6330 = vld [vmem:[%s6322 + $0x1c] sm:$0xf]
    %v6331 = vpack.c.bf16 %v6256, %v6255
    %v6332 = vpack.c.bf16 %v6258, %v6257
    %v6333 = vpack.c.bf16 %v6260, %v6259
    %v6334 = vpack.c.bf16 %v6262, %v6261
    %v6335 = vpack.c.bf16 %v6264, %v6263
    %v6336 = vpack.c.bf16 %v6266, %v6265
    %v6337 = vpack.c.bf16 %v6268, %v6267
    %v6338 = vpack.c.bf16 %v6270, %v6269
    %v6339 = vpack.c.bf16 %v6272, %v6271
    %v6340 = vpack.c.bf16 %v6274, %v6273
    %v6341 = vpack.c.bf16 %v6276, %v6275
    %v6342 = vpack.c.bf16 %v6278, %v6277
    %v6343 = vpack.c.bf16 %v6280, %v6279
    %v6344 = vpack.c.bf16 %v6282, %v6281
    %v6345 = vpack.c.bf16 %v6284, %v6283
    %v6346 = vpack.c.bf16 %v6286, %v6285
    %v6347 = vpack.c.bf16 %v6288, %v6287
    %v6348 = vpack.c.bf16 %v6290, %v6289
    %v6349 = vpack.c.bf16 %v6292, %v6291
    %v6350 = vpack.c.bf16 %v6294, %v6293
    %v6351 = vpack.c.bf16 %v6296, %v6295
    %v6352 = vpack.c.bf16 %v6298, %v6297
    %v6353 = vpack.c.bf16 %v6300, %v6299
    %v6354 = vpack.c.bf16 %v6302, %v6301
    %v6355 = vpack.c.bf16 %v6304, %v6303
    %v6356 = vpack.c.bf16 %v6306, %v6305
    %v6357 = vpack.c.bf16 %v6308, %v6307
    %v6358 = vpack.c.bf16 %v6310, %v6309
    %v6359 = vpack.c.bf16 %v6312, %v6311
    %v6360 = vpack.c.bf16 %v6314, %v6313
    %v6361 = vpack.c.bf16 %v6316, %v6315
    %v6362 = vpack.c.bf16 %v6318, %v6317
    %v6371 = vunpack.c.l.b16 %v6323
    %v6372 = vunpack.c.l.b16 %v6324
    %v6373 = vunpack.c.l.b16 %v6325
    %v6374 = vunpack.c.l.b16 %v6326
    %v6375 = vunpack.c.l.b16 %v6327
    %v6376 = vunpack.c.l.b16 %v6328
    %v6377 = vunpack.c.l.b16 %v6329
    %v6378 = vunpack.c.l.b16 %v6330
    %v6379 = vpack.c.b16 %v6372, %v6371
    %v6380 = vpack.c.b16 %v6374, %v6373
    %v6381 = vpack.c.b16 %v6376, %v6375
    %v6382 = vpack.c.b16 %v6378, %v6377
    %v6388 = vsel %vm33, %v6331, 0
    %v6391 = vsel %vm33, %v6332, 0
    %v6394 = vsel %vm33, %v6333, 0
    %v6397 = vsel %vm33, %v6334, 0
    %v6400 = vsel %vm33, %v6335, 0
    %v6403 = vsel %vm33, %v6336, 0
    %v6406 = vsel %vm33, %v6337, 0
    %v6409 = vsel %vm33, %v6338, 0
    %v6412 = vsel %vm33, %v6339, 0
    %v6415 = vsel %vm33, %v6340, 0
    %v6418 = vsel %vm33, %v6341, 0
    %v6421 = vsel %vm33, %v6342, 0
    %v6424 = vsel %vm33, %v6343, 0
    %v6427 = vsel %vm33, %v6344, 0
    %v6430 = vsel %vm33, %v6345, 0
    %v6433 = vsel %vm33, %v6346, 0
    %v6436 = vsel %vm33, %v6347, 0
    %v6439 = vsel %vm33, %v6348, 0
    %v6442 = vsel %vm33, %v6349, 0
    %v6445 = vsel %vm33, %v6350, 0
    %v6448 = vsel %vm33, %v6351, 0
    %v6451 = vsel %vm33, %v6352, 0
    %v6454 = vsel %vm33, %v6353, 0
    %v6457 = vsel %vm33, %v6354, 0
    %v6460 = vsel %vm33, %v6355, 0
    %v6463 = vsel %vm33, %v6356, 0
    %v6466 = vsel %vm33, %v6357, 0
    %v6469 = vsel %vm33, %v6358, 0
    %v6472 = vsel %vm33, %v6359, 0
    %v6475 = vsel %vm33, %v6360, 0
    %v6478 = vsel %vm33, %v6361, 0
    %v6481 = vsel %vm33, %v6362, 0
    %6483 = vmatpush.bf16.msra.mxu0 0
    %6484 = vmatpush.bf16.msra.mxu0 0
    %6485 = vmatpush.bf16.msra.mxu0 0
    %6486 = vmatpush.bf16.msra.mxu0 0
    %6487 = vmatpush.bf16.msra.mxu0 %v6382
    %6488 = vmatpush.bf16.msra.mxu0 %v6381
    %6489 = vmatpush.bf16.msra.mxu0 %v6380
    %6490 = vmatpush.bf16.msra.mxu0 %v6379
    %6491 = vmatmul.bf16.gmra.mxu0 %v6388
    %v6492 = vpop.f32.mrf.mxu0
    %v6493 = vadd.f32 0.0, %v6492
    %v6494 = vpop.f32.mrf.mxu0
    %v6495 = vadd.f32 0.0, %v6494
    %6496 = vmatmul.bf16.gmra.mxu0 %v6391
    %v6497 = vpop.f32.mrf.mxu0
    %v6498 = vadd.f32 0.0, %v6497
    %v6499 = vpop.f32.mrf.mxu0
    %v6500 = vadd.f32 0.0, %v6499
    %6501 = vmatmul.bf16.gmra.mxu0 %v6394
    %v6502 = vpop.f32.mrf.mxu0
    %v6503 = vadd.f32 0.0, %v6502
    %v6504 = vpop.f32.mrf.mxu0
    %v6505 = vadd.f32 0.0, %v6504
    %6506 = vmatmul.bf16.gmra.mxu0 %v6397
    %v6507 = vpop.f32.mrf.mxu0
    %v6508 = vadd.f32 0.0, %v6507
    %v6509 = vpop.f32.mrf.mxu0
    %v6510 = vadd.f32 0.0, %v6509
    %6511 = vmatmul.bf16.gmra.mxu0 %v6400
    %v6512 = vpop.f32.mrf.mxu0
    %v6513 = vadd.f32 0.0, %v6512
    %v6514 = vpop.f32.mrf.mxu0
    %v6515 = vadd.f32 0.0, %v6514
    %6516 = vmatmul.bf16.gmra.mxu0 %v6403
    %v6517 = vpop.f32.mrf.mxu0
    %v6518 = vadd.f32 0.0, %v6517
    %v6519 = vpop.f32.mrf.mxu0
    %v6520 = vadd.f32 0.0, %v6519
    %6521 = vmatmul.bf16.gmra.mxu0 %v6406
    %v6522 = vpop.f32.mrf.mxu0
    %v6523 = vadd.f32 0.0, %v6522
    %v6524 = vpop.f32.mrf.mxu0
    %v6525 = vadd.f32 0.0, %v6524
    %6526 = vmatmul.bf16.gmra.mxu0 %v6409
    %v6527 = vpop.f32.mrf.mxu0
    %v6528 = vadd.f32 0.0, %v6527
    %v6529 = vpop.f32.mrf.mxu0
    %v6530 = vadd.f32 0.0, %v6529
    %6531 = vmatmul.bf16.gmra.mxu0 %v6412
    %v6532 = vpop.f32.mrf.mxu0
    %v6533 = vadd.f32 0.0, %v6532
    %v6534 = vpop.f32.mrf.mxu0
    %v6535 = vadd.f32 0.0, %v6534
    %6536 = vmatmul.bf16.gmra.mxu0 %v6415
    %v6537 = vpop.f32.mrf.mxu0
    %v6538 = vadd.f32 0.0, %v6537
    %v6539 = vpop.f32.mrf.mxu0
    %v6540 = vadd.f32 0.0, %v6539
    %6541 = vmatmul.bf16.gmra.mxu0 %v6418
    %v6542 = vpop.f32.mrf.mxu0
    %v6543 = vadd.f32 0.0, %v6542
    %v6544 = vpop.f32.mrf.mxu0
    %v6545 = vadd.f32 0.0, %v6544
    %6546 = vmatmul.bf16.gmra.mxu0 %v6421
    %v6547 = vpop.f32.mrf.mxu0
    %v6548 = vadd.f32 0.0, %v6547
    %v6549 = vpop.f32.mrf.mxu0
    %v6550 = vadd.f32 0.0, %v6549
    %6551 = vmatmul.bf16.gmra.mxu0 %v6424
    %v6552 = vpop.f32.mrf.mxu0
    %v6553 = vadd.f32 0.0, %v6552
    %v6554 = vpop.f32.mrf.mxu0
    %v6555 = vadd.f32 0.0, %v6554
    %6556 = vmatmul.bf16.gmra.mxu0 %v6427
    %v6557 = vpop.f32.mrf.mxu0
    %v6558 = vadd.f32 0.0, %v6557
    %v6559 = vpop.f32.mrf.mxu0
    %v6560 = vadd.f32 0.0, %v6559
    %6561 = vmatmul.bf16.gmra.mxu0 %v6430
    %v6562 = vpop.f32.mrf.mxu0
    %v6563 = vadd.f32 0.0, %v6562
    %v6564 = vpop.f32.mrf.mxu0
    %v6565 = vadd.f32 0.0, %v6564
    %6566 = vmatmul.bf16.gmra.mxu0 %v6433
    %v6567 = vpop.f32.mrf.mxu0
    %v6568 = vadd.f32 0.0, %v6567
    %v6569 = vpop.f32.mrf.mxu0
    %v6570 = vadd.f32 0.0, %v6569
    %6571 = vmatmul.bf16.gmra.mxu0 %v6436
    %v6572 = vpop.f32.mrf.mxu0
    %v6573 = vadd.f32 0.0, %v6572
    %v6574 = vpop.f32.mrf.mxu0
    %v6575 = vadd.f32 0.0, %v6574
    %6576 = vmatmul.bf16.gmra.mxu0 %v6439
    %v6577 = vpop.f32.mrf.mxu0
    %v6578 = vadd.f32 0.0, %v6577
    %v6579 = vpop.f32.mrf.mxu0
    %v6580 = vadd.f32 0.0, %v6579
    %6581 = vmatmul.bf16.gmra.mxu0 %v6442
    %v6582 = vpop.f32.mrf.mxu0
    %v6583 = vadd.f32 0.0, %v6582
    %v6584 = vpop.f32.mrf.mxu0
    %v6585 = vadd.f32 0.0, %v6584
    %6586 = vmatmul.bf16.gmra.mxu0 %v6445
    %v6587 = vpop.f32.mrf.mxu0
    %v6588 = vadd.f32 0.0, %v6587
    %v6589 = vpop.f32.mrf.mxu0
    %v6590 = vadd.f32 0.0, %v6589
    %6591 = vmatmul.bf16.gmra.mxu0 %v6448
    %v6592 = vpop.f32.mrf.mxu0
    %v6593 = vadd.f32 0.0, %v6592
    %v6594 = vpop.f32.mrf.mxu0
    %v6595 = vadd.f32 0.0, %v6594
    %6596 = vmatmul.bf16.gmra.mxu0 %v6451
    %v6597 = vpop.f32.mrf.mxu0
    %v6598 = vadd.f32 0.0, %v6597
    %v6599 = vpop.f32.mrf.mxu0
    %v6600 = vadd.f32 0.0, %v6599
    %6601 = vmatmul.bf16.gmra.mxu0 %v6454
    %v6602 = vpop.f32.mrf.mxu0
    %v6603 = vadd.f32 0.0, %v6602
    %v6604 = vpop.f32.mrf.mxu0
    %v6605 = vadd.f32 0.0, %v6604
    %6606 = vmatmul.bf16.gmra.mxu0 %v6457
    %v6607 = vpop.f32.mrf.mxu0
    %v6608 = vadd.f32 0.0, %v6607
    %v6609 = vpop.f32.mrf.mxu0
    %v6610 = vadd.f32 0.0, %v6609
    %6611 = vmatmul.bf16.gmra.mxu0 %v6460
    %v6612 = vpop.f32.mrf.mxu0
    %v6613 = vadd.f32 0.0, %v6612
    %v6614 = vpop.f32.mrf.mxu0
    %v6615 = vadd.f32 0.0, %v6614
    %6616 = vmatmul.bf16.gmra.mxu0 %v6463
    %v6617 = vpop.f32.mrf.mxu0
    %v6618 = vadd.f32 0.0, %v6617
    %v6619 = vpop.f32.mrf.mxu0
    %v6620 = vadd.f32 0.0, %v6619
    %6621 = vmatmul.bf16.gmra.mxu0 %v6466
    %v6622 = vpop.f32.mrf.mxu0
    %v6623 = vadd.f32 0.0, %v6622
    %v6624 = vpop.f32.mrf.mxu0
    %v6625 = vadd.f32 0.0, %v6624
    %6626 = vmatmul.bf16.gmra.mxu0 %v6469
    %v6627 = vpop.f32.mrf.mxu0
    %v6628 = vadd.f32 0.0, %v6627
    %v6629 = vpop.f32.mrf.mxu0
    %v6630 = vadd.f32 0.0, %v6629
    %6631 = vmatmul.bf16.gmra.mxu0 %v6472
    %v6632 = vpop.f32.mrf.mxu0
    %v6633 = vadd.f32 0.0, %v6632
    %v6634 = vpop.f32.mrf.mxu0
    %v6635 = vadd.f32 0.0, %v6634
    %6636 = vmatmul.bf16.gmra.mxu0 %v6475
    %v6637 = vpop.f32.mrf.mxu0
    %v6638 = vadd.f32 0.0, %v6637
    %v6639 = vpop.f32.mrf.mxu0
    %v6640 = vadd.f32 0.0, %v6639
    %6641 = vmatmul.bf16.gmra.mxu0 %v6478
    %v6642 = vpop.f32.mrf.mxu0
    %v6643 = vadd.f32 0.0, %v6642
    %v6644 = vpop.f32.mrf.mxu0
    %v6645 = vadd.f32 0.0, %v6644
    %6646 = vmatmul.bf16.gmra.mxu0 %v6481
    %v6647 = vpop.f32.mrf.mxu0
    %v6648 = vadd.f32 0.0, %v6647
    %v6649 = vpop.f32.mrf.mxu0
    %v6650 = vadd.f32 0.0, %v6649
    %6651 = vdwg.mxu0
    %v6652 = vadd.f32 %v6191, %v6493
    %v6653 = vadd.f32 %v6192, %v6495
    %v6654 = vadd.f32 %v6193, %v6498
    %v6655 = vadd.f32 %v6194, %v6500
    %v6656 = vadd.f32 %v6195, %v6503
    %v6657 = vadd.f32 %v6196, %v6505
    %v6658 = vadd.f32 %v6197, %v6508
    %v6659 = vadd.f32 %v6198, %v6510
    %v6660 = vadd.f32 %v6199, %v6513
    %v6661 = vadd.f32 %v6200, %v6515
    %v6662 = vadd.f32 %v6201, %v6518
    %v6663 = vadd.f32 %v6202, %v6520
    %v6664 = vadd.f32 %v6203, %v6523
    %v6665 = vadd.f32 %v6204, %v6525
    %v6666 = vadd.f32 %v6205, %v6528
    %v6667 = vadd.f32 %v6206, %v6530
    %v6668 = vadd.f32 %v6207, %v6533
    %v6669 = vadd.f32 %v6208, %v6535
    %v6670 = vadd.f32 %v6209, %v6538
    %v6671 = vadd.f32 %v6210, %v6540
    %v6672 = vadd.f32 %v6211, %v6543
    %v6673 = vadd.f32 %v6212, %v6545
    %v6674 = vadd.f32 %v6213, %v6548
    %v6675 = vadd.f32 %v6214, %v6550
    %v6676 = vadd.f32 %v6215, %v6553
    %v6677 = vadd.f32 %v6216, %v6555
    %v6678 = vadd.f32 %v6217, %v6558
    %v6679 = vadd.f32 %v6218, %v6560
    %v6680 = vadd.f32 %v6219, %v6563
    %v6681 = vadd.f32 %v6220, %v6565
    %v6682 = vadd.f32 %v6221, %v6568
    %v6683 = vadd.f32 %v6222, %v6570
    %v6684 = vadd.f32 %v6223, %v6573
    %v6685 = vadd.f32 %v6224, %v6575
    %v6686 = vadd.f32 %v6225, %v6578
    %v6687 = vadd.f32 %v6226, %v6580
    %v6688 = vadd.f32 %v6227, %v6583
    %v6689 = vadd.f32 %v6228, %v6585
    %v6690 = vadd.f32 %v6229, %v6588
    %v6691 = vadd.f32 %v6230, %v6590
    %v6692 = vadd.f32 %v6231, %v6593
    %v6693 = vadd.f32 %v6232, %v6595
    %v6694 = vadd.f32 %v6233, %v6598
    %v6695 = vadd.f32 %v6234, %v6600
    %v6696 = vadd.f32 %v6235, %v6603
    %v6697 = vadd.f32 %v6236, %v6605
    %v6698 = vadd.f32 %v6237, %v6608
    %v6699 = vadd.f32 %v6238, %v6610
    %v6700 = vadd.f32 %v6239, %v6613
    %v6701 = vadd.f32 %v6240, %v6615
    %v6702 = vadd.f32 %v6241, %v6618
    %v6703 = vadd.f32 %v6242, %v6620
    %v6704 = vadd.f32 %v6243, %v6623
    %v6705 = vadd.f32 %v6244, %v6625
    %v6706 = vadd.f32 %v6245, %v6628
    %v6707 = vadd.f32 %v6246, %v6630
    %v6708 = vadd.f32 %v6247, %v6633
    %v6709 = vadd.f32 %v6248, %v6635
    %v6710 = vadd.f32 %v6249, %v6638
    %v6711 = vadd.f32 %v6250, %v6640
    %v6712 = vadd.f32 %v6251, %v6643
    %v6713 = vadd.f32 %v6252, %v6645
    %v6714 = vadd.f32 %v6253, %v6648
    %v6715 = vadd.f32 %v6254, %v6650
    %v6716 = vld [vmem:[%s4929 + $0x1] sm:$0xff]
    %v6717 = vld [vmem:[%s4929 + $0x9] sm:$0xff]
    %v6718 = vld [vmem:[%s4929 + $0x19] sm:$0xff]
    %v6719 = vld [vmem:[%s4929 + $0x21] sm:$0xff]
    %v6720 = vld [vmem:[%s4929 + $0x31] sm:$0xff]
    %v6721 = vld [vmem:[%s4929 + $0x39] sm:$0xff]
    %v6722 = vld [vmem:[%s4929 + $0x49] sm:$0xff]
    %v6723 = vld [vmem:[%s4929 + $0x51] sm:$0xff]
    %v6724 = vld [vmem:[%s4929 + $0x61] sm:$0xff]
    %v6725 = vld [vmem:[%s4929 + $0x69] sm:$0xff]
    %v6726 = vld [vmem:[%s4929 + $0x79] sm:$0xff]
    %v6727 = vld [vmem:[%s4929 + $0x81] sm:$0xff]
    %v6728 = vld [vmem:[%s4929 + $0x91] sm:$0xff]
    %v6729 = vld [vmem:[%s4929 + $0x99] sm:$0xff]
    %v6730 = vld [vmem:[%s4929 + $0xa9] sm:$0xff]
    %v6731 = vld [vmem:[%s4929 + $0xb1] sm:$0xff]
    %v6732 = vld [vmem:[%s4929 + $0xc1] sm:$0xff]
    %v6733 = vld [vmem:[%s4929 + $0xc9] sm:$0xff]
    %v6734 = vld [vmem:[%s4929 + $0xd9] sm:$0xff]
    %v6735 = vld [vmem:[%s4929 + $0xe1] sm:$0xff]
    %v6736 = vld [vmem:[%s4929 + $0xf1] sm:$0xff]
    %v6737 = vld [vmem:[%s4929 + $0xf9] sm:$0xff]
    %v6738 = vld [vmem:[%s4929 + $0x109] sm:$0xff]
    %v6739 = vld [vmem:[%s4929 + $0x111] sm:$0xff]
    %v6740 = vld [vmem:[%s4929 + $0x121] sm:$0xff]
    %v6741 = vld [vmem:[%s4929 + $0x129] sm:$0xff]
    %v6742 = vld [vmem:[%s4929 + $0x139] sm:$0xff]
    %v6743 = vld [vmem:[%s4929 + $0x141] sm:$0xff]
    %v6744 = vld [vmem:[%s4929 + $0x151] sm:$0xff]
    %v6745 = vld [vmem:[%s4929 + $0x159] sm:$0xff]
    %v6746 = vld [vmem:[%s4929 + $0x169] sm:$0xff]
    %v6747 = vld [vmem:[%s4929 + $0x171] sm:$0xff]
    %v6748 = vld [vmem:[%s4929 + $0x1b1] sm:$0xff]
    %v6749 = vld [vmem:[%s4929 + $0x1b9] sm:$0xff]
    %v6750 = vld [vmem:[%s4929 + $0x1c9] sm:$0xff]
    %v6751 = vld [vmem:[%s4929 + $0x1d1] sm:$0xff]
    %v6752 = vld [vmem:[%s4929 + $0x1e1] sm:$0xff]
    %v6753 = vld [vmem:[%s4929 + $0x1e9] sm:$0xff]
    %v6754 = vld [vmem:[%s4929 + $0x1f9] sm:$0xff]
    %v6755 = vld [vmem:[%s4929 + $0x201] sm:$0xff]
    %v6756 = vld [vmem:[%s4929 + $0x211] sm:$0xff]
    %v6757 = vld [vmem:[%s4929 + $0x219] sm:$0xff]
    %v6758 = vld [vmem:[%s4929 + $0x229] sm:$0xff]
    %v6759 = vld [vmem:[%s4929 + $0x231] sm:$0xff]
    %v6760 = vld [vmem:[%s4929 + $0x241] sm:$0xff]
    %v6761 = vld [vmem:[%s4929 + $0x249] sm:$0xff]
    %v6762 = vld [vmem:[%s4929 + $0x259] sm:$0xff]
    %v6763 = vld [vmem:[%s4929 + $0x261] sm:$0xff]
    %v6764 = vld [vmem:[%s4929 + $0x271] sm:$0xff]
    %v6765 = vld [vmem:[%s4929 + $0x279] sm:$0xff]
    %v6766 = vld [vmem:[%s4929 + $0x289] sm:$0xff]
    %v6767 = vld [vmem:[%s4929 + $0x291] sm:$0xff]
    %v6768 = vld [vmem:[%s4929 + $0x2a1] sm:$0xff]
    %v6769 = vld [vmem:[%s4929 + $0x2a9] sm:$0xff]
    %v6770 = vld [vmem:[%s4929 + $0x2b9] sm:$0xff]
    %v6771 = vld [vmem:[%s4929 + $0x2c1] sm:$0xff]
    %v6772 = vld [vmem:[%s4929 + $0x2d1] sm:$0xff]
    %v6773 = vld [vmem:[%s4929 + $0x2d9] sm:$0xff]
    %v6774 = vld [vmem:[%s4929 + $0x2e9] sm:$0xff]
    %v6775 = vld [vmem:[%s4929 + $0x2f1] sm:$0xff]
    %v6776 = vld [vmem:[%s4929 + $0x301] sm:$0xff]
    %v6777 = vld [vmem:[%s4929 + $0x309] sm:$0xff]
    %v6778 = vld [vmem:[%s4929 + $0x319] sm:$0xff]
    %v6779 = vld [vmem:[%s4929 + $0x321] sm:$0xff]
    %s6780 = sadd.s32 %s5064, 4
    %s6781 = smul.u32 %s6780, 8
    %s6782 = smul.addr %s6781, 4
    %s6783 = scalar_lea.vmem %s3, %s6782
    %v6784 = vld [vmem:[%s6783] sm:$0xf]
    %v6785 = vld [vmem:[%s6783 + $0x4] sm:$0xf]
    %v6786 = vld [vmem:[%s6783 + $0x8] sm:$0xf]
    %v6787 = vld [vmem:[%s6783 + $0xc] sm:$0xf]
    %v6788 = vld [vmem:[%s6783 + $0x10] sm:$0xf]
    %v6789 = vld [vmem:[%s6783 + $0x14] sm:$0xf]
    %v6790 = vld [vmem:[%s6783 + $0x18] sm:$0xf]
    %v6791 = vld [vmem:[%s6783 + $0x1c] sm:$0xf]
    %v6792 = vpack.c.bf16 %v6717, %v6716
    %v6793 = vpack.c.bf16 %v6719, %v6718
    %v6794 = vpack.c.bf16 %v6721, %v6720
    %v6795 = vpack.c.bf16 %v6723, %v6722
    %v6796 = vpack.c.bf16 %v6725, %v6724
    %v6797 = vpack.c.bf16 %v6727, %v6726
    %v6798 = vpack.c.bf16 %v6729, %v6728
    %v6799 = vpack.c.bf16 %v6731, %v6730
    %v6800 = vpack.c.bf16 %v6733, %v6732
    %v6801 = vpack.c.bf16 %v6735, %v6734
    %v6802 = vpack.c.bf16 %v6737, %v6736
    %v6803 = vpack.c.bf16 %v6739, %v6738
    %v6804 = vpack.c.bf16 %v6741, %v6740
    %v6805 = vpack.c.bf16 %v6743, %v6742
    %v6806 = vpack.c.bf16 %v6745, %v6744
    %v6807 = vpack.c.bf16 %v6747, %v6746
    %v6808 = vpack.c.bf16 %v6749, %v6748
    %v6809 = vpack.c.bf16 %v6751, %v6750
    %v6810 = vpack.c.bf16 %v6753, %v6752
    %v6811 = vpack.c.bf16 %v6755, %v6754
    %v6812 = vpack.c.bf16 %v6757, %v6756
    %v6813 = vpack.c.bf16 %v6759, %v6758
    %v6814 = vpack.c.bf16 %v6761, %v6760
    %v6815 = vpack.c.bf16 %v6763, %v6762
    %v6816 = vpack.c.bf16 %v6765, %v6764
    %v6817 = vpack.c.bf16 %v6767, %v6766
    %v6818 = vpack.c.bf16 %v6769, %v6768
    %v6819 = vpack.c.bf16 %v6771, %v6770
    %v6820 = vpack.c.bf16 %v6773, %v6772
    %v6821 = vpack.c.bf16 %v6775, %v6774
    %v6822 = vpack.c.bf16 %v6777, %v6776
    %v6823 = vpack.c.bf16 %v6779, %v6778
    %v6832 = vunpack.c.l.b16 %v6784
    %v6833 = vunpack.c.l.b16 %v6785
    %v6834 = vunpack.c.l.b16 %v6786
    %v6835 = vunpack.c.l.b16 %v6787
    %v6836 = vunpack.c.l.b16 %v6788
    %v6837 = vunpack.c.l.b16 %v6789
    %v6838 = vunpack.c.l.b16 %v6790
    %v6839 = vunpack.c.l.b16 %v6791
    %v6840 = vpack.c.b16 %v6833, %v6832
    %v6841 = vpack.c.b16 %v6835, %v6834
    %v6842 = vpack.c.b16 %v6837, %v6836
    %v6843 = vpack.c.b16 %v6839, %v6838
    %v6849 = vsel %vm33, %v6792, 0
    %v6852 = vsel %vm33, %v6793, 0
    %v6855 = vsel %vm33, %v6794, 0
    %v6858 = vsel %vm33, %v6795, 0
    %v6861 = vsel %vm33, %v6796, 0
    %v6864 = vsel %vm33, %v6797, 0
    %v6867 = vsel %vm33, %v6798, 0
    %v6870 = vsel %vm33, %v6799, 0
    %v6873 = vsel %vm33, %v6800, 0
    %v6876 = vsel %vm33, %v6801, 0
    %v6879 = vsel %vm33, %v6802, 0
    %v6882 = vsel %vm33, %v6803, 0
    %v6885 = vsel %vm33, %v6804, 0
    %v6888 = vsel %vm33, %v6805, 0
    %v6891 = vsel %vm33, %v6806, 0
    %v6894 = vsel %vm33, %v6807, 0
    %v6897 = vsel %vm33, %v6808, 0
    %v6900 = vsel %vm33, %v6809, 0
    %v6903 = vsel %vm33, %v6810, 0
    %v6906 = vsel %vm33, %v6811, 0
    %v6909 = vsel %vm33, %v6812, 0
    %v6912 = vsel %vm33, %v6813, 0
    %v6915 = vsel %vm33, %v6814, 0
    %v6918 = vsel %vm33, %v6815, 0
    %v6921 = vsel %vm33, %v6816, 0
    %v6924 = vsel %vm33, %v6817, 0
    %v6927 = vsel %vm33, %v6818, 0
    %v6930 = vsel %vm33, %v6819, 0
    %v6933 = vsel %vm33, %v6820, 0
    %v6936 = vsel %vm33, %v6821, 0
    %v6939 = vsel %vm33, %v6822, 0
    %v6942 = vsel %vm33, %v6823, 0
    %6944 = vmatpush.bf16.msra.mxu0 0
    %6945 = vmatpush.bf16.msra.mxu0 0
    %6946 = vmatpush.bf16.msra.mxu0 0
    %6947 = vmatpush.bf16.msra.mxu0 0
    %6948 = vmatpush.bf16.msra.mxu0 %v6843
    %6949 = vmatpush.bf16.msra.mxu0 %v6842
    %6950 = vmatpush.bf16.msra.mxu0 %v6841
    %6951 = vmatpush.bf16.msra.mxu0 %v6840
    %6952 = vmatmul.bf16.gmra.mxu0 %v6849
    %v6953 = vpop.f32.mrf.mxu0
    %v6954 = vadd.f32 0.0, %v6953
    %v6955 = vpop.f32.mrf.mxu0
    %v6956 = vadd.f32 0.0, %v6955
    %6957 = vmatmul.bf16.gmra.mxu0 %v6852
    %v6958 = vpop.f32.mrf.mxu0
    %v6959 = vadd.f32 0.0, %v6958
    %v6960 = vpop.f32.mrf.mxu0
    %v6961 = vadd.f32 0.0, %v6960
    %6962 = vmatmul.bf16.gmra.mxu0 %v6855
    %v6963 = vpop.f32.mrf.mxu0
    %v6964 = vadd.f32 0.0, %v6963
    %v6965 = vpop.f32.mrf.mxu0
    %v6966 = vadd.f32 0.0, %v6965
    %6967 = vmatmul.bf16.gmra.mxu0 %v6858
    %v6968 = vpop.f32.mrf.mxu0
    %v6969 = vadd.f32 0.0, %v6968
    %v6970 = vpop.f32.mrf.mxu0
    %v6971 = vadd.f32 0.0, %v6970
    %6972 = vmatmul.bf16.gmra.mxu0 %v6861
    %v6973 = vpop.f32.mrf.mxu0
    %v6974 = vadd.f32 0.0, %v6973
    %v6975 = vpop.f32.mrf.mxu0
    %v6976 = vadd.f32 0.0, %v6975
    %6977 = vmatmul.bf16.gmra.mxu0 %v6864
    %v6978 = vpop.f32.mrf.mxu0
    %v6979 = vadd.f32 0.0, %v6978
    %v6980 = vpop.f32.mrf.mxu0
    %v6981 = vadd.f32 0.0, %v6980
    %6982 = vmatmul.bf16.gmra.mxu0 %v6867
    %v6983 = vpop.f32.mrf.mxu0
    %v6984 = vadd.f32 0.0, %v6983
    %v6985 = vpop.f32.mrf.mxu0
    %v6986 = vadd.f32 0.0, %v6985
    %6987 = vmatmul.bf16.gmra.mxu0 %v6870
    %v6988 = vpop.f32.mrf.mxu0
    %v6989 = vadd.f32 0.0, %v6988
    %v6990 = vpop.f32.mrf.mxu0
    %v6991 = vadd.f32 0.0, %v6990
    %6992 = vmatmul.bf16.gmra.mxu0 %v6873
    %v6993 = vpop.f32.mrf.mxu0
    %v6994 = vadd.f32 0.0, %v6993
    %v6995 = vpop.f32.mrf.mxu0
    %v6996 = vadd.f32 0.0, %v6995
    %6997 = vmatmul.bf16.gmra.mxu0 %v6876
    %v6998 = vpop.f32.mrf.mxu0
    %v6999 = vadd.f32 0.0, %v6998
    %v7000 = vpop.f32.mrf.mxu0
    %v7001 = vadd.f32 0.0, %v7000
    %7002 = vmatmul.bf16.gmra.mxu0 %v6879
    %v7003 = vpop.f32.mrf.mxu0
    %v7004 = vadd.f32 0.0, %v7003
    %v7005 = vpop.f32.mrf.mxu0
    %v7006 = vadd.f32 0.0, %v7005
    %7007 = vmatmul.bf16.gmra.mxu0 %v6882
    %v7008 = vpop.f32.mrf.mxu0
    %v7009 = vadd.f32 0.0, %v7008
    %v7010 = vpop.f32.mrf.mxu0
    %v7011 = vadd.f32 0.0, %v7010
    %7012 = vmatmul.bf16.gmra.mxu0 %v6885
    %v7013 = vpop.f32.mrf.mxu0
    %v7014 = vadd.f32 0.0, %v7013
    %v7015 = vpop.f32.mrf.mxu0
    %v7016 = vadd.f32 0.0, %v7015
    %7017 = vmatmul.bf16.gmra.mxu0 %v6888
    %v7018 = vpop.f32.mrf.mxu0
    %v7019 = vadd.f32 0.0, %v7018
    %v7020 = vpop.f32.mrf.mxu0
    %v7021 = vadd.f32 0.0, %v7020
    %7022 = vmatmul.bf16.gmra.mxu0 %v6891
    %v7023 = vpop.f32.mrf.mxu0
    %v7024 = vadd.f32 0.0, %v7023
    %v7025 = vpop.f32.mrf.mxu0
    %v7026 = vadd.f32 0.0, %v7025
    %7027 = vmatmul.bf16.gmra.mxu0 %v6894
    %v7028 = vpop.f32.mrf.mxu0
    %v7029 = vadd.f32 0.0, %v7028
    %v7030 = vpop.f32.mrf.mxu0
    %v7031 = vadd.f32 0.0, %v7030
    %7032 = vmatmul.bf16.gmra.mxu0 %v6897
    %v7033 = vpop.f32.mrf.mxu0
    %v7034 = vadd.f32 0.0, %v7033
    %v7035 = vpop.f32.mrf.mxu0
    %v7036 = vadd.f32 0.0, %v7035
    %7037 = vmatmul.bf16.gmra.mxu0 %v6900
    %v7038 = vpop.f32.mrf.mxu0
    %v7039 = vadd.f32 0.0, %v7038
    %v7040 = vpop.f32.mrf.mxu0
    %v7041 = vadd.f32 0.0, %v7040
    %7042 = vmatmul.bf16.gmra.mxu0 %v6903
    %v7043 = vpop.f32.mrf.mxu0
    %v7044 = vadd.f32 0.0, %v7043
    %v7045 = vpop.f32.mrf.mxu0
    %v7046 = vadd.f32 0.0, %v7045
    %7047 = vmatmul.bf16.gmra.mxu0 %v6906
    %v7048 = vpop.f32.mrf.mxu0
    %v7049 = vadd.f32 0.0, %v7048
    %v7050 = vpop.f32.mrf.mxu0
    %v7051 = vadd.f32 0.0, %v7050
    %7052 = vmatmul.bf16.gmra.mxu0 %v6909
    %v7053 = vpop.f32.mrf.mxu0
    %v7054 = vadd.f32 0.0, %v7053
    %v7055 = vpop.f32.mrf.mxu0
    %v7056 = vadd.f32 0.0, %v7055
    %7057 = vmatmul.bf16.gmra.mxu0 %v6912
    %v7058 = vpop.f32.mrf.mxu0
    %v7059 = vadd.f32 0.0, %v7058
    %v7060 = vpop.f32.mrf.mxu0
    %v7061 = vadd.f32 0.0, %v7060
    %7062 = vmatmul.bf16.gmra.mxu0 %v6915
    %v7063 = vpop.f32.mrf.mxu0
    %v7064 = vadd.f32 0.0, %v7063
    %v7065 = vpop.f32.mrf.mxu0
    %v7066 = vadd.f32 0.0, %v7065
    %7067 = vmatmul.bf16.gmra.mxu0 %v6918
    %v7068 = vpop.f32.mrf.mxu0
    %v7069 = vadd.f32 0.0, %v7068
    %v7070 = vpop.f32.mrf.mxu0
    %v7071 = vadd.f32 0.0, %v7070
    %7072 = vmatmul.bf16.gmra.mxu0 %v6921
    %v7073 = vpop.f32.mrf.mxu0
    %v7074 = vadd.f32 0.0, %v7073
    %v7075 = vpop.f32.mrf.mxu0
    %v7076 = vadd.f32 0.0, %v7075
    %7077 = vmatmul.bf16.gmra.mxu0 %v6924
    %v7078 = vpop.f32.mrf.mxu0
    %v7079 = vadd.f32 0.0, %v7078
    %v7080 = vpop.f32.mrf.mxu0
    %v7081 = vadd.f32 0.0, %v7080
    %7082 = vmatmul.bf16.gmra.mxu0 %v6927
    %v7083 = vpop.f32.mrf.mxu0
    %v7084 = vadd.f32 0.0, %v7083
    %v7085 = vpop.f32.mrf.mxu0
    %v7086 = vadd.f32 0.0, %v7085
    %7087 = vmatmul.bf16.gmra.mxu0 %v6930
    %v7088 = vpop.f32.mrf.mxu0
    %v7089 = vadd.f32 0.0, %v7088
    %v7090 = vpop.f32.mrf.mxu0
    %v7091 = vadd.f32 0.0, %v7090
    %7092 = vmatmul.bf16.gmra.mxu0 %v6933
    %v7093 = vpop.f32.mrf.mxu0
    %v7094 = vadd.f32 0.0, %v7093
    %v7095 = vpop.f32.mrf.mxu0
    %v7096 = vadd.f32 0.0, %v7095
    %7097 = vmatmul.bf16.gmra.mxu0 %v6936
    %v7098 = vpop.f32.mrf.mxu0
    %v7099 = vadd.f32 0.0, %v7098
    %v7100 = vpop.f32.mrf.mxu0
    %v7101 = vadd.f32 0.0, %v7100
    %7102 = vmatmul.bf16.gmra.mxu0 %v6939
    %v7103 = vpop.f32.mrf.mxu0
    %v7104 = vadd.f32 0.0, %v7103
    %v7105 = vpop.f32.mrf.mxu0
    %v7106 = vadd.f32 0.0, %v7105
    %7107 = vmatmul.bf16.gmra.mxu0 %v6942
    %v7108 = vpop.f32.mrf.mxu0
    %v7109 = vadd.f32 0.0, %v7108
    %v7110 = vpop.f32.mrf.mxu0
    %v7111 = vadd.f32 0.0, %v7110
    %7112 = vdwg.mxu0
    %v7113 = vadd.f32 %v6652, %v6954
    %v7114 = vadd.f32 %v6653, %v6956
    %v7115 = vadd.f32 %v6654, %v6959
    %v7116 = vadd.f32 %v6655, %v6961
    %v7117 = vadd.f32 %v6656, %v6964
    %v7118 = vadd.f32 %v6657, %v6966
    %v7119 = vadd.f32 %v6658, %v6969
    %v7120 = vadd.f32 %v6659, %v6971
    %v7121 = vadd.f32 %v6660, %v6974
    %v7122 = vadd.f32 %v6661, %v6976
    %v7123 = vadd.f32 %v6662, %v6979
    %v7124 = vadd.f32 %v6663, %v6981
    %v7125 = vadd.f32 %v6664, %v6984
    %v7126 = vadd.f32 %v6665, %v6986
    %v7127 = vadd.f32 %v6666, %v6989
    %v7128 = vadd.f32 %v6667, %v6991
    %v7129 = vadd.f32 %v6668, %v6994
    %v7130 = vadd.f32 %v6669, %v6996
    %v7131 = vadd.f32 %v6670, %v6999
    %v7132 = vadd.f32 %v6671, %v7001
    %v7133 = vadd.f32 %v6672, %v7004
    %v7134 = vadd.f32 %v6673, %v7006
    %v7135 = vadd.f32 %v6674, %v7009
    %v7136 = vadd.f32 %v6675, %v7011
    %v7137 = vadd.f32 %v6676, %v7014
    %v7138 = vadd.f32 %v6677, %v7016
    %v7139 = vadd.f32 %v6678, %v7019
    %v7140 = vadd.f32 %v6679, %v7021
    %v7141 = vadd.f32 %v6680, %v7024
    %v7142 = vadd.f32 %v6681, %v7026
    %v7143 = vadd.f32 %v6682, %v7029
    %v7144 = vadd.f32 %v6683, %v7031
    %v7145 = vadd.f32 %v6684, %v7034
    %v7146 = vadd.f32 %v6685, %v7036
    %v7147 = vadd.f32 %v6686, %v7039
    %v7148 = vadd.f32 %v6687, %v7041
    %v7149 = vadd.f32 %v6688, %v7044
    %v7150 = vadd.f32 %v6689, %v7046
    %v7151 = vadd.f32 %v6690, %v7049
    %v7152 = vadd.f32 %v6691, %v7051
    %v7153 = vadd.f32 %v6692, %v7054
    %v7154 = vadd.f32 %v6693, %v7056
    %v7155 = vadd.f32 %v6694, %v7059
    %v7156 = vadd.f32 %v6695, %v7061
    %v7157 = vadd.f32 %v6696, %v7064
    %v7158 = vadd.f32 %v6697, %v7066
    %v7159 = vadd.f32 %v6698, %v7069
    %v7160 = vadd.f32 %v6699, %v7071
    %v7161 = vadd.f32 %v6700, %v7074
    %v7162 = vadd.f32 %v6701, %v7076
    %v7163 = vadd.f32 %v6702, %v7079
    %v7164 = vadd.f32 %v6703, %v7081
    %v7165 = vadd.f32 %v6704, %v7084
    %v7166 = vadd.f32 %v6705, %v7086
    %v7167 = vadd.f32 %v6706, %v7089
    %v7168 = vadd.f32 %v6707, %v7091
    %v7169 = vadd.f32 %v6708, %v7094
    %v7170 = vadd.f32 %v6709, %v7096
    %v7171 = vadd.f32 %v6710, %v7099
    %v7172 = vadd.f32 %v6711, %v7101
    %v7173 = vadd.f32 %v6712, %v7104
    %v7174 = vadd.f32 %v6713, %v7106
    %v7175 = vadd.f32 %v6714, %v7109
    %v7176 = vadd.f32 %v6715, %v7111
    %v7177 = vld [vmem:[%s4929 + $0x2] sm:$0xff]
    %v7178 = vld [vmem:[%s4929 + $0xa] sm:$0xff]
    %v7179 = vld [vmem:[%s4929 + $0x1a] sm:$0xff]
    %v7180 = vld [vmem:[%s4929 + $0x22] sm:$0xff]
    %v7181 = vld [vmem:[%s4929 + $0x32] sm:$0xff]
    %v7182 = vld [vmem:[%s4929 + $0x3a] sm:$0xff]
    %v7183 = vld [vmem:[%s4929 + $0x4a] sm:$0xff]
    %v7184 = vld [vmem:[%s4929 + $0x52] sm:$0xff]
    %v7185 = vld [vmem:[%s4929 + $0x62] sm:$0xff]
    %v7186 = vld [vmem:[%s4929 + $0x6a] sm:$0xff]
    %v7187 = vld [vmem:[%s4929 + $0x7a] sm:$0xff]
    %v7188 = vld [vmem:[%s4929 + $0x82] sm:$0xff]
    %v7189 = vld [vmem:[%s4929 + $0x92] sm:$0xff]
    %v7190 = vld [vmem:[%s4929 + $0x9a] sm:$0xff]
    %v7191 = vld [vmem:[%s4929 + $0xaa] sm:$0xff]
    %v7192 = vld [vmem:[%s4929 + $0xb2] sm:$0xff]
    %v7193 = vld [vmem:[%s4929 + $0xc2] sm:$0xff]
    %v7194 = vld [vmem:[%s4929 + $0xca] sm:$0xff]
    %v7195 = vld [vmem:[%s4929 + $0xda] sm:$0xff]
    %v7196 = vld [vmem:[%s4929 + $0xe2] sm:$0xff]
    %v7197 = vld [vmem:[%s4929 + $0xf2] sm:$0xff]
    %v7198 = vld [vmem:[%s4929 + $0xfa] sm:$0xff]
    %v7199 = vld [vmem:[%s4929 + $0x10a] sm:$0xff]
    %v7200 = vld [vmem:[%s4929 + $0x112] sm:$0xff]
    %v7201 = vld [vmem:[%s4929 + $0x122] sm:$0xff]
    %v7202 = vld [vmem:[%s4929 + $0x12a] sm:$0xff]
    %v7203 = vld [vmem:[%s4929 + $0x13a] sm:$0xff]
    %v7204 = vld [vmem:[%s4929 + $0x142] sm:$0xff]
    %v7205 = vld [vmem:[%s4929 + $0x152] sm:$0xff]
    %v7206 = vld [vmem:[%s4929 + $0x15a] sm:$0xff]
    %v7207 = vld [vmem:[%s4929 + $0x16a] sm:$0xff]
    %v7208 = vld [vmem:[%s4929 + $0x172] sm:$0xff]
    %v7209 = vld [vmem:[%s4929 + $0x1b2] sm:$0xff]
    %v7210 = vld [vmem:[%s4929 + $0x1ba] sm:$0xff]
    %v7211 = vld [vmem:[%s4929 + $0x1ca] sm:$0xff]
    %v7212 = vld [vmem:[%s4929 + $0x1d2] sm:$0xff]
    %v7213 = vld [vmem:[%s4929 + $0x1e2] sm:$0xff]
    %v7214 = vld [vmem:[%s4929 + $0x1ea] sm:$0xff]
    %v7215 = vld [vmem:[%s4929 + $0x1fa] sm:$0xff]
    %v7216 = vld [vmem:[%s4929 + $0x202] sm:$0xff]
    %v7217 = vld [vmem:[%s4929 + $0x212] sm:$0xff]
    %v7218 = vld [vmem:[%s4929 + $0x21a] sm:$0xff]
    %v7219 = vld [vmem:[%s4929 + $0x22a] sm:$0xff]
    %v7220 = vld [vmem:[%s4929 + $0x232] sm:$0xff]
    %v7221 = vld [vmem:[%s4929 + $0x242] sm:$0xff]
    %v7222 = vld [vmem:[%s4929 + $0x24a] sm:$0xff]
    %v7223 = vld [vmem:[%s4929 + $0x25a] sm:$0xff]
    %v7224 = vld [vmem:[%s4929 + $0x262] sm:$0xff]
    %v7225 = vld [vmem:[%s4929 + $0x272] sm:$0xff]
    %v7226 = vld [vmem:[%s4929 + $0x27a] sm:$0xff]
    %v7227 = vld [vmem:[%s4929 + $0x28a] sm:$0xff]
    %v7228 = vld [vmem:[%s4929 + $0x292] sm:$0xff]
    %v7229 = vld [vmem:[%s4929 + $0x2a2] sm:$0xff]
    %v7230 = vld [vmem:[%s4929 + $0x2aa] sm:$0xff]
    %v7231 = vld [vmem:[%s4929 + $0x2ba] sm:$0xff]
    %v7232 = vld [vmem:[%s4929 + $0x2c2] sm:$0xff]
    %v7233 = vld [vmem:[%s4929 + $0x2d2] sm:$0xff]
    %v7234 = vld [vmem:[%s4929 + $0x2da] sm:$0xff]
    %v7235 = vld [vmem:[%s4929 + $0x2ea] sm:$0xff]
    %v7236 = vld [vmem:[%s4929 + $0x2f2] sm:$0xff]
    %v7237 = vld [vmem:[%s4929 + $0x302] sm:$0xff]
    %v7238 = vld [vmem:[%s4929 + $0x30a] sm:$0xff]
    %v7239 = vld [vmem:[%s4929 + $0x31a] sm:$0xff]
    %v7240 = vld [vmem:[%s4929 + $0x322] sm:$0xff]
    %s7241 = sadd.s32 %s5064, 5
    %s7242 = smul.u32 %s7241, 8
    %s7243 = smul.addr %s7242, 4
    %s7244 = scalar_lea.vmem %s3, %s7243
    %v7245 = vld [vmem:[%s7244] sm:$0xf]
    %v7246 = vld [vmem:[%s7244 + $0x4] sm:$0xf]
    %v7247 = vld [vmem:[%s7244 + $0x8] sm:$0xf]
    %v7248 = vld [vmem:[%s7244 + $0xc] sm:$0xf]
    %v7249 = vld [vmem:[%s7244 + $0x10] sm:$0xf]
    %v7250 = vld [vmem:[%s7244 + $0x14] sm:$0xf]
    %v7251 = vld [vmem:[%s7244 + $0x18] sm:$0xf]
    %v7252 = vld [vmem:[%s7244 + $0x1c] sm:$0xf]
    %v7253 = vpack.c.bf16 %v7178, %v7177
    %v7254 = vpack.c.bf16 %v7180, %v7179
    %v7255 = vpack.c.bf16 %v7182, %v7181
    %v7256 = vpack.c.bf16 %v7184, %v7183
    %v7257 = vpack.c.bf16 %v7186, %v7185
    %v7258 = vpack.c.bf16 %v7188, %v7187
    %v7259 = vpack.c.bf16 %v7190, %v7189
    %v7260 = vpack.c.bf16 %v7192, %v7191
    %v7261 = vpack.c.bf16 %v7194, %v7193
    %v7262 = vpack.c.bf16 %v7196, %v7195
    %v7263 = vpack.c.bf16 %v7198, %v7197
    %v7264 = vpack.c.bf16 %v7200, %v7199
    %v7265 = vpack.c.bf16 %v7202, %v7201
    %v7266 = vpack.c.bf16 %v7204, %v7203
    %v7267 = vpack.c.bf16 %v7206, %v7205
    %v7268 = vpack.c.bf16 %v7208, %v7207
    %v7269 = vpack.c.bf16 %v7210, %v7209
    %v7270 = vpack.c.bf16 %v7212, %v7211
    %v7271 = vpack.c.bf16 %v7214, %v7213
    %v7272 = vpack.c.bf16 %v7216, %v7215
    %v7273 = vpack.c.bf16 %v7218, %v7217
    %v7274 = vpack.c.bf16 %v7220, %v7219
    %v7275 = vpack.c.bf16 %v7222, %v7221
    %v7276 = vpack.c.bf16 %v7224, %v7223
    %v7277 = vpack.c.bf16 %v7226, %v7225
    %v7278 = vpack.c.bf16 %v7228, %v7227
    %v7279 = vpack.c.bf16 %v7230, %v7229
    %v7280 = vpack.c.bf16 %v7232, %v7231
    %v7281 = vpack.c.bf16 %v7234, %v7233
    %v7282 = vpack.c.bf16 %v7236, %v7235
    %v7283 = vpack.c.bf16 %v7238, %v7237
    %v7284 = vpack.c.bf16 %v7240, %v7239
    %v7293 = vunpack.c.l.b16 %v7245
    %v7294 = vunpack.c.l.b16 %v7246
    %v7295 = vunpack.c.l.b16 %v7247
    %v7296 = vunpack.c.l.b16 %v7248
    %v7297 = vunpack.c.l.b16 %v7249
    %v7298 = vunpack.c.l.b16 %v7250
    %v7299 = vunpack.c.l.b16 %v7251
    %v7300 = vunpack.c.l.b16 %v7252
    %v7301 = vpack.c.b16 %v7294, %v7293
    %v7302 = vpack.c.b16 %v7296, %v7295
    %v7303 = vpack.c.b16 %v7298, %v7297
    %v7304 = vpack.c.b16 %v7300, %v7299
    %v7310 = vsel %vm33, %v7253, 0
    %v7313 = vsel %vm33, %v7254, 0
    %v7316 = vsel %vm33, %v7255, 0
    %v7319 = vsel %vm33, %v7256, 0
    %v7322 = vsel %vm33, %v7257, 0
    %v7325 = vsel %vm33, %v7258, 0
    %v7328 = vsel %vm33, %v7259, 0
    %v7331 = vsel %vm33, %v7260, 0
    %v7334 = vsel %vm33, %v7261, 0
    %v7337 = vsel %vm33, %v7262, 0
    %v7340 = vsel %vm33, %v7263, 0
    %v7343 = vsel %vm33, %v7264, 0
    %v7346 = vsel %vm33, %v7265, 0
    %v7349 = vsel %vm33, %v7266, 0
    %v7352 = vsel %vm33, %v7267, 0
    %v7355 = vsel %vm33, %v7268, 0
    %v7358 = vsel %vm33, %v7269, 0
    %v7361 = vsel %vm33, %v7270, 0
    %v7364 = vsel %vm33, %v7271, 0
    %v7367 = vsel %vm33, %v7272, 0
    %v7370 = vsel %vm33, %v7273, 0
    %v7373 = vsel %vm33, %v7274, 0
    %v7376 = vsel %vm33, %v7275, 0
    %v7379 = vsel %vm33, %v7276, 0
    %v7382 = vsel %vm33, %v7277, 0
    %v7385 = vsel %vm33, %v7278, 0
    %v7388 = vsel %vm33, %v7279, 0
    %v7391 = vsel %vm33, %v7280, 0
    %v7394 = vsel %vm33, %v7281, 0
    %v7397 = vsel %vm33, %v7282, 0
    %v7400 = vsel %vm33, %v7283, 0
    %v7403 = vsel %vm33, %v7284, 0
    %7405 = vmatpush.bf16.msra.mxu0 0
    %7406 = vmatpush.bf16.msra.mxu0 0
    %7407 = vmatpush.bf16.msra.mxu0 0
    %7408 = vmatpush.bf16.msra.mxu0 0
    %7409 = vmatpush.bf16.msra.mxu0 %v7304
    %7410 = vmatpush.bf16.msra.mxu0 %v7303
    %7411 = vmatpush.bf16.msra.mxu0 %v7302
    %7412 = vmatpush.bf16.msra.mxu0 %v7301
    %7413 = vmatmul.bf16.gmra.mxu0 %v7310
    %v7414 = vpop.f32.mrf.mxu0
    %v7415 = vadd.f32 0.0, %v7414
    %v7416 = vpop.f32.mrf.mxu0
    %v7417 = vadd.f32 0.0, %v7416
    %7418 = vmatmul.bf16.gmra.mxu0 %v7313
    %v7419 = vpop.f32.mrf.mxu0
    %v7420 = vadd.f32 0.0, %v7419
    %v7421 = vpop.f32.mrf.mxu0
    %v7422 = vadd.f32 0.0, %v7421
    %7423 = vmatmul.bf16.gmra.mxu0 %v7316
    %v7424 = vpop.f32.mrf.mxu0
    %v7425 = vadd.f32 0.0, %v7424
    %v7426 = vpop.f32.mrf.mxu0
    %v7427 = vadd.f32 0.0, %v7426
    %7428 = vmatmul.bf16.gmra.mxu0 %v7319
    %v7429 = vpop.f32.mrf.mxu0
    %v7430 = vadd.f32 0.0, %v7429
    %v7431 = vpop.f32.mrf.mxu0
    %v7432 = vadd.f32 0.0, %v7431
    %7433 = vmatmul.bf16.gmra.mxu0 %v7322
    %v7434 = vpop.f32.mrf.mxu0
    %v7435 = vadd.f32 0.0, %v7434
    %v7436 = vpop.f32.mrf.mxu0
    %v7437 = vadd.f32 0.0, %v7436
    %7438 = vmatmul.bf16.gmra.mxu0 %v7325
    %v7439 = vpop.f32.mrf.mxu0
    %v7440 = vadd.f32 0.0, %v7439
    %v7441 = vpop.f32.mrf.mxu0
    %v7442 = vadd.f32 0.0, %v7441
    %7443 = vmatmul.bf16.gmra.mxu0 %v7328
    %v7444 = vpop.f32.mrf.mxu0
    %v7445 = vadd.f32 0.0, %v7444
    %v7446 = vpop.f32.mrf.mxu0
    %v7447 = vadd.f32 0.0, %v7446
    %7448 = vmatmul.bf16.gmra.mxu0 %v7331
    %v7449 = vpop.f32.mrf.mxu0
    %v7450 = vadd.f32 0.0, %v7449
    %v7451 = vpop.f32.mrf.mxu0
    %v7452 = vadd.f32 0.0, %v7451
    %7453 = vmatmul.bf16.gmra.mxu0 %v7334
    %v7454 = vpop.f32.mrf.mxu0
    %v7455 = vadd.f32 0.0, %v7454
    %v7456 = vpop.f32.mrf.mxu0
    %v7457 = vadd.f32 0.0, %v7456
    %7458 = vmatmul.bf16.gmra.mxu0 %v7337
    %v7459 = vpop.f32.mrf.mxu0
    %v7460 = vadd.f32 0.0, %v7459
    %v7461 = vpop.f32.mrf.mxu0
    %v7462 = vadd.f32 0.0, %v7461
    %7463 = vmatmul.bf16.gmra.mxu0 %v7340
    %v7464 = vpop.f32.mrf.mxu0
    %v7465 = vadd.f32 0.0, %v7464
    %v7466 = vpop.f32.mrf.mxu0
    %v7467 = vadd.f32 0.0, %v7466
    %7468 = vmatmul.bf16.gmra.mxu0 %v7343
    %v7469 = vpop.f32.mrf.mxu0
    %v7470 = vadd.f32 0.0, %v7469
    %v7471 = vpop.f32.mrf.mxu0
    %v7472 = vadd.f32 0.0, %v7471
    %7473 = vmatmul.bf16.gmra.mxu0 %v7346
    %v7474 = vpop.f32.mrf.mxu0
    %v7475 = vadd.f32 0.0, %v7474
    %v7476 = vpop.f32.mrf.mxu0
    %v7477 = vadd.f32 0.0, %v7476
    %7478 = vmatmul.bf16.gmra.mxu0 %v7349
    %v7479 = vpop.f32.mrf.mxu0
    %v7480 = vadd.f32 0.0, %v7479
    %v7481 = vpop.f32.mrf.mxu0
    %v7482 = vadd.f32 0.0, %v7481
    %7483 = vmatmul.bf16.gmra.mxu0 %v7352
    %v7484 = vpop.f32.mrf.mxu0
    %v7485 = vadd.f32 0.0, %v7484
    %v7486 = vpop.f32.mrf.mxu0
    %v7487 = vadd.f32 0.0, %v7486
    %7488 = vmatmul.bf16.gmra.mxu0 %v7355
    %v7489 = vpop.f32.mrf.mxu0
    %v7490 = vadd.f32 0.0, %v7489
    %v7491 = vpop.f32.mrf.mxu0
    %v7492 = vadd.f32 0.0, %v7491
    %7493 = vmatmul.bf16.gmra.mxu0 %v7358
    %v7494 = vpop.f32.mrf.mxu0
    %v7495 = vadd.f32 0.0, %v7494
    %v7496 = vpop.f32.mrf.mxu0
    %v7497 = vadd.f32 0.0, %v7496
    %7498 = vmatmul.bf16.gmra.mxu0 %v7361
    %v7499 = vpop.f32.mrf.mxu0
    %v7500 = vadd.f32 0.0, %v7499
    %v7501 = vpop.f32.mrf.mxu0
    %v7502 = vadd.f32 0.0, %v7501
    %7503 = vmatmul.bf16.gmra.mxu0 %v7364
    %v7504 = vpop.f32.mrf.mxu0
    %v7505 = vadd.f32 0.0, %v7504
    %v7506 = vpop.f32.mrf.mxu0
    %v7507 = vadd.f32 0.0, %v7506
    %7508 = vmatmul.bf16.gmra.mxu0 %v7367
    %v7509 = vpop.f32.mrf.mxu0
    %v7510 = vadd.f32 0.0, %v7509
    %v7511 = vpop.f32.mrf.mxu0
    %v7512 = vadd.f32 0.0, %v7511
    %7513 = vmatmul.bf16.gmra.mxu0 %v7370
    %v7514 = vpop.f32.mrf.mxu0
    %v7515 = vadd.f32 0.0, %v7514
    %v7516 = vpop.f32.mrf.mxu0
    %v7517 = vadd.f32 0.0, %v7516
    %7518 = vmatmul.bf16.gmra.mxu0 %v7373
    %v7519 = vpop.f32.mrf.mxu0
    %v7520 = vadd.f32 0.0, %v7519
    %v7521 = vpop.f32.mrf.mxu0
    %v7522 = vadd.f32 0.0, %v7521
    %7523 = vmatmul.bf16.gmra.mxu0 %v7376
    %v7524 = vpop.f32.mrf.mxu0
    %v7525 = vadd.f32 0.0, %v7524
    %v7526 = vpop.f32.mrf.mxu0
    %v7527 = vadd.f32 0.0, %v7526
    %7528 = vmatmul.bf16.gmra.mxu0 %v7379
    %v7529 = vpop.f32.mrf.mxu0
    %v7530 = vadd.f32 0.0, %v7529
    %v7531 = vpop.f32.mrf.mxu0
    %v7532 = vadd.f32 0.0, %v7531
    %7533 = vmatmul.bf16.gmra.mxu0 %v7382
    %v7534 = vpop.f32.mrf.mxu0
    %v7535 = vadd.f32 0.0, %v7534
    %v7536 = vpop.f32.mrf.mxu0
    %v7537 = vadd.f32 0.0, %v7536
    %7538 = vmatmul.bf16.gmra.mxu0 %v7385
    %v7539 = vpop.f32.mrf.mxu0
    %v7540 = vadd.f32 0.0, %v7539
    %v7541 = vpop.f32.mrf.mxu0
    %v7542 = vadd.f32 0.0, %v7541
    %7543 = vmatmul.bf16.gmra.mxu0 %v7388
    %v7544 = vpop.f32.mrf.mxu0
    %v7545 = vadd.f32 0.0, %v7544
    %v7546 = vpop.f32.mrf.mxu0
    %v7547 = vadd.f32 0.0, %v7546
    %7548 = vmatmul.bf16.gmra.mxu0 %v7391
    %v7549 = vpop.f32.mrf.mxu0
    %v7550 = vadd.f32 0.0, %v7549
    %v7551 = vpop.f32.mrf.mxu0
    %v7552 = vadd.f32 0.0, %v7551
    %7553 = vmatmul.bf16.gmra.mxu0 %v7394
    %v7554 = vpop.f32.mrf.mxu0
    %v7555 = vadd.f32 0.0, %v7554
    %v7556 = vpop.f32.mrf.mxu0
    %v7557 = vadd.f32 0.0, %v7556
    %7558 = vmatmul.bf16.gmra.mxu0 %v7397
    %v7559 = vpop.f32.mrf.mxu0
    %v7560 = vadd.f32 0.0, %v7559
    %v7561 = vpop.f32.mrf.mxu0
    %v7562 = vadd.f32 0.0, %v7561
    %7563 = vmatmul.bf16.gmra.mxu0 %v7400
    %v7564 = vpop.f32.mrf.mxu0
    %v7565 = vadd.f32 0.0, %v7564
    %v7566 = vpop.f32.mrf.mxu0
    %v7567 = vadd.f32 0.0, %v7566
    %7568 = vmatmul.bf16.gmra.mxu0 %v7403
    %v7569 = vpop.f32.mrf.mxu0
    %v7570 = vadd.f32 0.0, %v7569
    %v7571 = vpop.f32.mrf.mxu0
    %v7572 = vadd.f32 0.0, %v7571
    %7573 = vdwg.mxu0
    %v7574 = vadd.f32 %v7113, %v7415
    %v7575 = vadd.f32 %v7114, %v7417
    %v7576 = vadd.f32 %v7115, %v7420
    %v7577 = vadd.f32 %v7116, %v7422
    %v7578 = vadd.f32 %v7117, %v7425
    %v7579 = vadd.f32 %v7118, %v7427
    %v7580 = vadd.f32 %v7119, %v7430
    %v7581 = vadd.f32 %v7120, %v7432
    %v7582 = vadd.f32 %v7121, %v7435
    %v7583 = vadd.f32 %v7122, %v7437
    %v7584 = vadd.f32 %v7123, %v7440
    %v7585 = vadd.f32 %v7124, %v7442
    %v7586 = vadd.f32 %v7125, %v7445
    %v7587 = vadd.f32 %v7126, %v7447
    %v7588 = vadd.f32 %v7127, %v7450
    %v7589 = vadd.f32 %v7128, %v7452
    %v7590 = vadd.f32 %v7129, %v7455
    %v7591 = vadd.f32 %v7130, %v7457
    %v7592 = vadd.f32 %v7131, %v7460
    %v7593 = vadd.f32 %v7132, %v7462
    %v7594 = vadd.f32 %v7133, %v7465
    %v7595 = vadd.f32 %v7134, %v7467
    %v7596 = vadd.f32 %v7135, %v7470
    %v7597 = vadd.f32 %v7136, %v7472
    %v7598 = vadd.f32 %v7137, %v7475
    %v7599 = vadd.f32 %v7138, %v7477
    %v7600 = vadd.f32 %v7139, %v7480
    %v7601 = vadd.f32 %v7140, %v7482
    %v7602 = vadd.f32 %v7141, %v7485
    %v7603 = vadd.f32 %v7142, %v7487
    %v7604 = vadd.f32 %v7143, %v7490
    %v7605 = vadd.f32 %v7144, %v7492
    %v7606 = vadd.f32 %v7145, %v7495
    %v7607 = vadd.f32 %v7146, %v7497
    %v7608 = vadd.f32 %v7147, %v7500
    %v7609 = vadd.f32 %v7148, %v7502
    %v7610 = vadd.f32 %v7149, %v7505
    %v7611 = vadd.f32 %v7150, %v7507
    %v7612 = vadd.f32 %v7151, %v7510
    %v7613 = vadd.f32 %v7152, %v7512
    %v7614 = vadd.f32 %v7153, %v7515
    %v7615 = vadd.f32 %v7154, %v7517
    %v7616 = vadd.f32 %v7155, %v7520
    %v7617 = vadd.f32 %v7156, %v7522
    %v7618 = vadd.f32 %v7157, %v7525
    %v7619 = vadd.f32 %v7158, %v7527
    %v7620 = vadd.f32 %v7159, %v7530
    %v7621 = vadd.f32 %v7160, %v7532
    %v7622 = vadd.f32 %v7161, %v7535
    %v7623 = vadd.f32 %v7162, %v7537
    %v7624 = vadd.f32 %v7163, %v7540
    %v7625 = vadd.f32 %v7164, %v7542
    %v7626 = vadd.f32 %v7165, %v7545
    %v7627 = vadd.f32 %v7166, %v7547
    %v7628 = vadd.f32 %v7167, %v7550
    %v7629 = vadd.f32 %v7168, %v7552
    %v7630 = vadd.f32 %v7169, %v7555
    %v7631 = vadd.f32 %v7170, %v7557
    %v7632 = vadd.f32 %v7171, %v7560
    %v7633 = vadd.f32 %v7172, %v7562
    %v7634 = vadd.f32 %v7173, %v7565
    %v7635 = vadd.f32 %v7174, %v7567
    %v7636 = vadd.f32 %v7175, %v7570
    %v7637 = vadd.f32 %v7176, %v7572
    %s7638 = scalar_lea.vmem [#allocation2], 48
    %v7639 = vld [vmem:[%s7638] sm:$0xff]
    %v7640 = vld [vmem:[%s7638 + $0x8] sm:$0xff]
    %v7641 = vld [vmem:[%s7638 + $0x18] sm:$0xff]
    %v7642 = vld [vmem:[%s7638 + $0x20] sm:$0xff]
    %v7643 = vld [vmem:[%s7638 + $0x30] sm:$0xff]
    %v7644 = vld [vmem:[%s7638 + $0x38] sm:$0xff]
    %v7645 = vld [vmem:[%s7638 + $0x48] sm:$0xff]
    %v7646 = vld [vmem:[%s7638 + $0x50] sm:$0xff]
    %v7647 = vld [vmem:[%s7638 + $0x60] sm:$0xff]
    %v7648 = vld [vmem:[%s7638 + $0x68] sm:$0xff]
    %v7649 = vld [vmem:[%s7638 + $0x78] sm:$0xff]
    %v7650 = vld [vmem:[%s7638 + $0x80] sm:$0xff]
    %v7651 = vld [vmem:[%s7638 + $0x90] sm:$0xff]
    %v7652 = vld [vmem:[%s7638 + $0x98] sm:$0xff]
    %v7653 = vld [vmem:[%s7638 + $0xa8] sm:$0xff]
    %v7654 = vld [vmem:[%s7638 + $0xb0] sm:$0xff]
    %v7655 = vld [vmem:[%s7638 + $0xc0] sm:$0xff]
    %v7656 = vld [vmem:[%s7638 + $0xc8] sm:$0xff]
    %v7657 = vld [vmem:[%s7638 + $0xd8] sm:$0xff]
    %v7658 = vld [vmem:[%s7638 + $0xe0] sm:$0xff]
    %v7659 = vld [vmem:[%s7638 + $0xf0] sm:$0xff]
    %v7660 = vld [vmem:[%s7638 + $0xf8] sm:$0xff]
    %v7661 = vld [vmem:[%s7638 + $0x108] sm:$0xff]
    %v7662 = vld [vmem:[%s7638 + $0x110] sm:$0xff]
    %v7663 = vld [vmem:[%s7638 + $0x120] sm:$0xff]
    %v7664 = vld [vmem:[%s7638 + $0x128] sm:$0xff]
    %v7665 = vld [vmem:[%s7638 + $0x138] sm:$0xff]
    %v7666 = vld [vmem:[%s7638 + $0x140] sm:$0xff]
    %v7667 = vld [vmem:[%s7638 + $0x150] sm:$0xff]
    %v7668 = vld [vmem:[%s7638 + $0x158] sm:$0xff]
    %v7669 = vld [vmem:[%s7638 + $0x168] sm:$0xff]
    %v7670 = vld [vmem:[%s7638 + $0x170] sm:$0xff]
    %v7671 = vld [vmem:[%s7638 + $0x1b0] sm:$0xff]
    %v7672 = vld [vmem:[%s7638 + $0x1b8] sm:$0xff]
    %v7673 = vld [vmem:[%s7638 + $0x1c8] sm:$0xff]
    %v7674 = vld [vmem:[%s7638 + $0x1d0] sm:$0xff]
    %v7675 = vld [vmem:[%s7638 + $0x1e0] sm:$0xff]
    %v7676 = vld [vmem:[%s7638 + $0x1e8] sm:$0xff]
    %v7677 = vld [vmem:[%s7638 + $0x1f8] sm:$0xff]
    %v7678 = vld [vmem:[%s7638 + $0x200] sm:$0xff]
    %v7679 = vld [vmem:[%s7638 + $0x210] sm:$0xff]
    %v7680 = vld [vmem:[%s7638 + $0x218] sm:$0xff]
    %v7681 = vld [vmem:[%s7638 + $0x228] sm:$0xff]
    %v7682 = vld [vmem:[%s7638 + $0x230] sm:$0xff]
    %v7683 = vld [vmem:[%s7638 + $0x240] sm:$0xff]
    %v7684 = vld [vmem:[%s7638 + $0x248] sm:$0xff]
    %v7685 = vld [vmem:[%s7638 + $0x258] sm:$0xff]
    %v7686 = vld [vmem:[%s7638 + $0x260] sm:$0xff]
    %v7687 = vld [vmem:[%s7638 + $0x270] sm:$0xff]
    %v7688 = vld [vmem:[%s7638 + $0x278] sm:$0xff]
    %v7689 = vld [vmem:[%s7638 + $0x288] sm:$0xff]
    %v7690 = vld [vmem:[%s7638 + $0x290] sm:$0xff]
    %v7691 = vld [vmem:[%s7638 + $0x2a0] sm:$0xff]
    %v7692 = vld [vmem:[%s7638 + $0x2a8] sm:$0xff]
    %v7693 = vld [vmem:[%s7638 + $0x2b8] sm:$0xff]
    %v7694 = vld [vmem:[%s7638 + $0x2c0] sm:$0xff]
    %v7695 = vld [vmem:[%s7638 + $0x2d0] sm:$0xff]
    %v7696 = vld [vmem:[%s7638 + $0x2d8] sm:$0xff]
    %v7697 = vld [vmem:[%s7638 + $0x2e8] sm:$0xff]
    %v7698 = vld [vmem:[%s7638 + $0x2f0] sm:$0xff]
    %v7699 = vld [vmem:[%s7638 + $0x300] sm:$0xff]
    %v7700 = vld [vmem:[%s7638 + $0x308] sm:$0xff]
    %v7701 = vld [vmem:[%s7638 + $0x318] sm:$0xff]
    %v7702 = vld [vmem:[%s7638 + $0x320] sm:$0xff]
    %s7703 = sadd.s32 %s5064, 6
    %s7704 = smul.u32 %s7703, 8
    %s7705 = smul.addr %s7704, 4
    %s7706 = scalar_lea.vmem %s3, %s7705
    %v7707 = vld [vmem:[%s7706] sm:$0xf]
    %v7708 = vld [vmem:[%s7706 + $0x4] sm:$0xf]
    %v7709 = vld [vmem:[%s7706 + $0x8] sm:$0xf]
    %v7710 = vld [vmem:[%s7706 + $0xc] sm:$0xf]
    %v7711 = vld [vmem:[%s7706 + $0x10] sm:$0xf]
    %v7712 = vld [vmem:[%s7706 + $0x14] sm:$0xf]
    %v7713 = vld [vmem:[%s7706 + $0x18] sm:$0xf]
    %v7714 = vld [vmem:[%s7706 + $0x1c] sm:$0xf]
    %v7715 = vpack.c.bf16 %v7640, %v7639
    %v7716 = vpack.c.bf16 %v7642, %v7641
    %v7717 = vpack.c.bf16 %v7644, %v7643
    %v7718 = vpack.c.bf16 %v7646, %v7645
    %v7719 = vpack.c.bf16 %v7648, %v7647
    %v7720 = vpack.c.bf16 %v7650, %v7649
    %v7721 = vpack.c.bf16 %v7652, %v7651
    %v7722 = vpack.c.bf16 %v7654, %v7653
    %v7723 = vpack.c.bf16 %v7656, %v7655
    %v7724 = vpack.c.bf16 %v7658, %v7657
    %v7725 = vpack.c.bf16 %v7660, %v7659
    %v7726 = vpack.c.bf16 %v7662, %v7661
    %v7727 = vpack.c.bf16 %v7664, %v7663
    %v7728 = vpack.c.bf16 %v7666, %v7665
    %v7729 = vpack.c.bf16 %v7668, %v7667
    %v7730 = vpack.c.bf16 %v7670, %v7669
    %v7731 = vpack.c.bf16 %v7672, %v7671
    %v7732 = vpack.c.bf16 %v7674, %v7673
    %v7733 = vpack.c.bf16 %v7676, %v7675
    %v7734 = vpack.c.bf16 %v7678, %v7677
    %v7735 = vpack.c.bf16 %v7680, %v7679
    %v7736 = vpack.c.bf16 %v7682, %v7681
    %v7737 = vpack.c.bf16 %v7684, %v7683
    %v7738 = vpack.c.bf16 %v7686, %v7685
    %v7739 = vpack.c.bf16 %v7688, %v7687
    %v7740 = vpack.c.bf16 %v7690, %v7689
    %v7741 = vpack.c.bf16 %v7692, %v7691
    %v7742 = vpack.c.bf16 %v7694, %v7693
    %v7743 = vpack.c.bf16 %v7696, %v7695
    %v7744 = vpack.c.bf16 %v7698, %v7697
    %v7745 = vpack.c.bf16 %v7700, %v7699
    %v7746 = vpack.c.bf16 %v7702, %v7701
    %v7755 = vunpack.c.l.b16 %v7707
    %v7756 = vunpack.c.l.b16 %v7708
    %v7757 = vunpack.c.l.b16 %v7709
    %v7758 = vunpack.c.l.b16 %v7710
    %v7759 = vunpack.c.l.b16 %v7711
    %v7760 = vunpack.c.l.b16 %v7712
    %v7761 = vunpack.c.l.b16 %v7713
    %v7762 = vunpack.c.l.b16 %v7714
    %v7763 = vpack.c.b16 %v7756, %v7755
    %v7764 = vpack.c.b16 %v7758, %v7757
    %v7765 = vpack.c.b16 %v7760, %v7759
    %v7766 = vpack.c.b16 %v7762, %v7761
    %v7772 = vsel %vm33, %v7715, 0
    %v7775 = vsel %vm33, %v7716, 0
    %v7778 = vsel %vm33, %v7717, 0
    %v7781 = vsel %vm33, %v7718, 0
    %v7784 = vsel %vm33, %v7719, 0
    %v7787 = vsel %vm33, %v7720, 0
    %v7790 = vsel %vm33, %v7721, 0
    %v7793 = vsel %vm33, %v7722, 0
    %v7796 = vsel %vm33, %v7723, 0
    %v7799 = vsel %vm33, %v7724, 0
    %v7802 = vsel %vm33, %v7725, 0
    %v7805 = vsel %vm33, %v7726, 0
    %v7808 = vsel %vm33, %v7727, 0
    %v7811 = vsel %vm33, %v7728, 0
    %v7814 = vsel %vm33, %v7729, 0
    %v7817 = vsel %vm33, %v7730, 0
    %v7820 = vsel %vm33, %v7731, 0
    %v7823 = vsel %vm33, %v7732, 0
    %v7826 = vsel %vm33, %v7733, 0
    %v7829 = vsel %vm33, %v7734, 0
    %v7832 = vsel %vm33, %v7735, 0
    %v7835 = vsel %vm33, %v7736, 0
    %v7838 = vsel %vm33, %v7737, 0
    %v7841 = vsel %vm33, %v7738, 0
    %v7844 = vsel %vm33, %v7739, 0
    %v7847 = vsel %vm33, %v7740, 0
    %v7850 = vsel %vm33, %v7741, 0
    %v7853 = vsel %vm33, %v7742, 0
    %v7856 = vsel %vm33, %v7743, 0
    %v7859 = vsel %vm33, %v7744, 0
    %v7862 = vsel %vm33, %v7745, 0
    %v7865 = vsel %vm33, %v7746, 0
    %7867 = vmatpush.bf16.msra.mxu0 0
    %7868 = vmatpush.bf16.msra.mxu0 0
    %7869 = vmatpush.bf16.msra.mxu0 0
    %7870 = vmatpush.bf16.msra.mxu0 0
    %7871 = vmatpush.bf16.msra.mxu0 %v7766
    %7872 = vmatpush.bf16.msra.mxu0 %v7765
    %7873 = vmatpush.bf16.msra.mxu0 %v7764
    %7874 = vmatpush.bf16.msra.mxu0 %v7763
    %7875 = vmatmul.bf16.gmra.mxu0 %v7772
    %v7876 = vpop.f32.mrf.mxu0
    %v7877 = vadd.f32 0.0, %v7876
    %v7878 = vpop.f32.mrf.mxu0
    %v7879 = vadd.f32 0.0, %v7878
    %7880 = vmatmul.bf16.gmra.mxu0 %v7775
    %v7881 = vpop.f32.mrf.mxu0
    %v7882 = vadd.f32 0.0, %v7881
    %v7883 = vpop.f32.mrf.mxu0
    %v7884 = vadd.f32 0.0, %v7883
    %7885 = vmatmul.bf16.gmra.mxu0 %v7778
    %v7886 = vpop.f32.mrf.mxu0
    %v7887 = vadd.f32 0.0, %v7886
    %v7888 = vpop.f32.mrf.mxu0
    %v7889 = vadd.f32 0.0, %v7888
    %7890 = vmatmul.bf16.gmra.mxu0 %v7781
    %v7891 = vpop.f32.mrf.mxu0
    %v7892 = vadd.f32 0.0, %v7891
    %v7893 = vpop.f32.mrf.mxu0
    %v7894 = vadd.f32 0.0, %v7893
    %7895 = vmatmul.bf16.gmra.mxu0 %v7784
    %v7896 = vpop.f32.mrf.mxu0
    %v7897 = vadd.f32 0.0, %v7896
    %v7898 = vpop.f32.mrf.mxu0
    %v7899 = vadd.f32 0.0, %v7898
    %7900 = vmatmul.bf16.gmra.mxu0 %v7787
    %v7901 = vpop.f32.mrf.mxu0
    %v7902 = vadd.f32 0.0, %v7901
    %v7903 = vpop.f32.mrf.mxu0
    %v7904 = vadd.f32 0.0, %v7903
    %7905 = vmatmul.bf16.gmra.mxu0 %v7790
    %v7906 = vpop.f32.mrf.mxu0
    %v7907 = vadd.f32 0.0, %v7906
    %v7908 = vpop.f32.mrf.mxu0
    %v7909 = vadd.f32 0.0, %v7908
    %7910 = vmatmul.bf16.gmra.mxu0 %v7793
    %v7911 = vpop.f32.mrf.mxu0
    %v7912 = vadd.f32 0.0, %v7911
    %v7913 = vpop.f32.mrf.mxu0
    %v7914 = vadd.f32 0.0, %v7913
    %7915 = vmatmul.bf16.gmra.mxu0 %v7796
    %v7916 = vpop.f32.mrf.mxu0
    %v7917 = vadd.f32 0.0, %v7916
    %v7918 = vpop.f32.mrf.mxu0
    %v7919 = vadd.f32 0.0, %v7918
    %7920 = vmatmul.bf16.gmra.mxu0 %v7799
    %v7921 = vpop.f32.mrf.mxu0
    %v7922 = vadd.f32 0.0, %v7921
    %v7923 = vpop.f32.mrf.mxu0
    %v7924 = vadd.f32 0.0, %v7923
    %7925 = vmatmul.bf16.gmra.mxu0 %v7802
    %v7926 = vpop.f32.mrf.mxu0
    %v7927 = vadd.f32 0.0, %v7926
    %v7928 = vpop.f32.mrf.mxu0
    %v7929 = vadd.f32 0.0, %v7928
    %7930 = vmatmul.bf16.gmra.mxu0 %v7805
    %v7931 = vpop.f32.mrf.mxu0
    %v7932 = vadd.f32 0.0, %v7931
    %v7933 = vpop.f32.mrf.mxu0
    %v7934 = vadd.f32 0.0, %v7933
    %7935 = vmatmul.bf16.gmra.mxu0 %v7808
    %v7936 = vpop.f32.mrf.mxu0
    %v7937 = vadd.f32 0.0, %v7936
    %v7938 = vpop.f32.mrf.mxu0
    %v7939 = vadd.f32 0.0, %v7938
    %7940 = vmatmul.bf16.gmra.mxu0 %v7811
    %v7941 = vpop.f32.mrf.mxu0
    %v7942 = vadd.f32 0.0, %v7941
    %v7943 = vpop.f32.mrf.mxu0
    %v7944 = vadd.f32 0.0, %v7943
    %7945 = vmatmul.bf16.gmra.mxu0 %v7814
    %v7946 = vpop.f32.mrf.mxu0
    %v7947 = vadd.f32 0.0, %v7946
    %v7948 = vpop.f32.mrf.mxu0
    %v7949 = vadd.f32 0.0, %v7948
    %7950 = vmatmul.bf16.gmra.mxu0 %v7817
    %v7951 = vpop.f32.mrf.mxu0
    %v7952 = vadd.f32 0.0, %v7951
    %v7953 = vpop.f32.mrf.mxu0
    %v7954 = vadd.f32 0.0, %v7953
    %7955 = vmatmul.bf16.gmra.mxu0 %v7820
    %v7956 = vpop.f32.mrf.mxu0
    %v7957 = vadd.f32 0.0, %v7956
    %v7958 = vpop.f32.mrf.mxu0
    %v7959 = vadd.f32 0.0, %v7958
    %7960 = vmatmul.bf16.gmra.mxu0 %v7823
    %v7961 = vpop.f32.mrf.mxu0
    %v7962 = vadd.f32 0.0, %v7961
    %v7963 = vpop.f32.mrf.mxu0
    %v7964 = vadd.f32 0.0, %v7963
    %7965 = vmatmul.bf16.gmra.mxu0 %v7826
    %v7966 = vpop.f32.mrf.mxu0
    %v7967 = vadd.f32 0.0, %v7966
    %v7968 = vpop.f32.mrf.mxu0
    %v7969 = vadd.f32 0.0, %v7968
    %7970 = vmatmul.bf16.gmra.mxu0 %v7829
    %v7971 = vpop.f32.mrf.mxu0
    %v7972 = vadd.f32 0.0, %v7971
    %v7973 = vpop.f32.mrf.mxu0
    %v7974 = vadd.f32 0.0, %v7973
    %7975 = vmatmul.bf16.gmra.mxu0 %v7832
    %v7976 = vpop.f32.mrf.mxu0
    %v7977 = vadd.f32 0.0, %v7976
    %v7978 = vpop.f32.mrf.mxu0
    %v7979 = vadd.f32 0.0, %v7978
    %7980 = vmatmul.bf16.gmra.mxu0 %v7835
    %v7981 = vpop.f32.mrf.mxu0
    %v7982 = vadd.f32 0.0, %v7981
    %v7983 = vpop.f32.mrf.mxu0
    %v7984 = vadd.f32 0.0, %v7983
    %7985 = vmatmul.bf16.gmra.mxu0 %v7838
    %v7986 = vpop.f32.mrf.mxu0
    %v7987 = vadd.f32 0.0, %v7986
    %v7988 = vpop.f32.mrf.mxu0
    %v7989 = vadd.f32 0.0, %v7988
    %7990 = vmatmul.bf16.gmra.mxu0 %v7841
    %v7991 = vpop.f32.mrf.mxu0
    %v7992 = vadd.f32 0.0, %v7991
    %v7993 = vpop.f32.mrf.mxu0
    %v7994 = vadd.f32 0.0, %v7993
    %7995 = vmatmul.bf16.gmra.mxu0 %v7844
    %v7996 = vpop.f32.mrf.mxu0
    %v7997 = vadd.f32 0.0, %v7996
    %v7998 = vpop.f32.mrf.mxu0
    %v7999 = vadd.f32 0.0, %v7998
    %8000 = vmatmul.bf16.gmra.mxu0 %v7847
    %v8001 = vpop.f32.mrf.mxu0
    %v8002 = vadd.f32 0.0, %v8001
    %v8003 = vpop.f32.mrf.mxu0
    %v8004 = vadd.f32 0.0, %v8003
    %8005 = vmatmul.bf16.gmra.mxu0 %v7850
    %v8006 = vpop.f32.mrf.mxu0
    %v8007 = vadd.f32 0.0, %v8006
    %v8008 = vpop.f32.mrf.mxu0
    %v8009 = vadd.f32 0.0, %v8008
    %8010 = vmatmul.bf16.gmra.mxu0 %v7853
    %v8011 = vpop.f32.mrf.mxu0
    %v8012 = vadd.f32 0.0, %v8011
    %v8013 = vpop.f32.mrf.mxu0
    %v8014 = vadd.f32 0.0, %v8013
    %8015 = vmatmul.bf16.gmra.mxu0 %v7856
    %v8016 = vpop.f32.mrf.mxu0
    %v8017 = vadd.f32 0.0, %v8016
    %v8018 = vpop.f32.mrf.mxu0
    %v8019 = vadd.f32 0.0, %v8018
    %8020 = vmatmul.bf16.gmra.mxu0 %v7859
    %v8021 = vpop.f32.mrf.mxu0
    %v8022 = vadd.f32 0.0, %v8021
    %v8023 = vpop.f32.mrf.mxu0
    %v8024 = vadd.f32 0.0, %v8023
    %8025 = vmatmul.bf16.gmra.mxu0 %v7862
    %v8026 = vpop.f32.mrf.mxu0
    %v8027 = vadd.f32 0.0, %v8026
    %v8028 = vpop.f32.mrf.mxu0
    %v8029 = vadd.f32 0.0, %v8028
    %8030 = vmatmul.bf16.gmra.mxu0 %v7865
    %v8031 = vpop.f32.mrf.mxu0
    %v8032 = vadd.f32 0.0, %v8031
    %v8033 = vpop.f32.mrf.mxu0
    %v8034 = vadd.f32 0.0, %v8033
    %8035 = vdwg.mxu0
    %v8036 = vadd.f32 %v7574, %v7877
    %v8037 = vadd.f32 %v7575, %v7879
    %v8038 = vadd.f32 %v7576, %v7882
    %v8039 = vadd.f32 %v7577, %v7884
    %v8040 = vadd.f32 %v7578, %v7887
    %v8041 = vadd.f32 %v7579, %v7889
    %v8042 = vadd.f32 %v7580, %v7892
    %v8043 = vadd.f32 %v7581, %v7894
    %v8044 = vadd.f32 %v7582, %v7897
    %v8045 = vadd.f32 %v7583, %v7899
    %v8046 = vadd.f32 %v7584, %v7902
    %v8047 = vadd.f32 %v7585, %v7904
    %v8048 = vadd.f32 %v7586, %v7907
    %v8049 = vadd.f32 %v7587, %v7909
    %v8050 = vadd.f32 %v7588, %v7912
    %v8051 = vadd.f32 %v7589, %v7914
    %v8052 = vadd.f32 %v7590, %v7917
    %v8053 = vadd.f32 %v7591, %v7919
    %v8054 = vadd.f32 %v7592, %v7922
    %v8055 = vadd.f32 %v7593, %v7924
    %v8056 = vadd.f32 %v7594, %v7927
    %v8057 = vadd.f32 %v7595, %v7929
    %v8058 = vadd.f32 %v7596, %v7932
    %v8059 = vadd.f32 %v7597, %v7934
    %v8060 = vadd.f32 %v7598, %v7937
    %v8061 = vadd.f32 %v7599, %v7939
    %v8062 = vadd.f32 %v7600, %v7942
    %v8063 = vadd.f32 %v7601, %v7944
    %v8064 = vadd.f32 %v7602, %v7947
    %v8065 = vadd.f32 %v7603, %v7949
    %v8066 = vadd.f32 %v7604, %v7952
    %v8067 = vadd.f32 %v7605, %v7954
    %v8068 = vadd.f32 %v7606, %v7957
    %v8069 = vadd.f32 %v7607, %v7959
    %v8070 = vadd.f32 %v7608, %v7962
    %v8071 = vadd.f32 %v7609, %v7964
    %v8072 = vadd.f32 %v7610, %v7967
    %v8073 = vadd.f32 %v7611, %v7969
    %v8074 = vadd.f32 %v7612, %v7972
    %v8075 = vadd.f32 %v7613, %v7974
    %v8076 = vadd.f32 %v7614, %v7977
    %v8077 = vadd.f32 %v7615, %v7979
    %v8078 = vadd.f32 %v7616, %v7982
    %v8079 = vadd.f32 %v7617, %v7984
    %v8080 = vadd.f32 %v7618, %v7987
    %v8081 = vadd.f32 %v7619, %v7989
    %v8082 = vadd.f32 %v7620, %v7992
    %v8083 = vadd.f32 %v7621, %v7994
    %v8084 = vadd.f32 %v7622, %v7997
    %v8085 = vadd.f32 %v7623, %v7999
    %v8086 = vadd.f32 %v7624, %v8002
    %v8087 = vadd.f32 %v7625, %v8004
    %v8088 = vadd.f32 %v7626, %v8007
    %v8089 = vadd.f32 %v7627, %v8009
    %v8090 = vadd.f32 %v7628, %v8012
    %v8091 = vadd.f32 %v7629, %v8014
    %v8092 = vadd.f32 %v7630, %v8017
    %v8093 = vadd.f32 %v7631, %v8019
    %v8094 = vadd.f32 %v7632, %v8022
    %v8095 = vadd.f32 %v7633, %v8024
    %v8096 = vadd.f32 %v7634, %v8027
    %v8097 = vadd.f32 %v7635, %v8029
    %v8098 = vadd.f32 %v7636, %v8032
    %v8099 = vadd.f32 %v7637, %v8034
    %v8100 = vld [vmem:[%s7638 + $0x1] sm:$0xff]
    %v8101 = vld [vmem:[%s7638 + $0x9] sm:$0xff]
    %v8102 = vld [vmem:[%s7638 + $0x19] sm:$0xff]
    %v8103 = vld [vmem:[%s7638 + $0x21] sm:$0xff]
    %v8104 = vld [vmem:[%s7638 + $0x31] sm:$0xff]
    %v8105 = vld [vmem:[%s7638 + $0x39] sm:$0xff]
    %v8106 = vld [vmem:[%s7638 + $0x49] sm:$0xff]
    %v8107 = vld [vmem:[%s7638 + $0x51] sm:$0xff]
    %v8108 = vld [vmem:[%s7638 + $0x61] sm:$0xff]
    %v8109 = vld [vmem:[%s7638 + $0x69] sm:$0xff]
    %v8110 = vld [vmem:[%s7638 + $0x79] sm:$0xff]
    %v8111 = vld [vmem:[%s7638 + $0x81] sm:$0xff]
    %v8112 = vld [vmem:[%s7638 + $0x91] sm:$0xff]
    %v8113 = vld [vmem:[%s7638 + $0x99] sm:$0xff]
    %v8114 = vld [vmem:[%s7638 + $0xa9] sm:$0xff]
    %v8115 = vld [vmem:[%s7638 + $0xb1] sm:$0xff]
    %v8116 = vld [vmem:[%s7638 + $0xc1] sm:$0xff]
    %v8117 = vld [vmem:[%s7638 + $0xc9] sm:$0xff]
    %v8118 = vld [vmem:[%s7638 + $0xd9] sm:$0xff]
    %v8119 = vld [vmem:[%s7638 + $0xe1] sm:$0xff]
    %v8120 = vld [vmem:[%s7638 + $0xf1] sm:$0xff]
    %v8121 = vld [vmem:[%s7638 + $0xf9] sm:$0xff]
    %v8122 = vld [vmem:[%s7638 + $0x109] sm:$0xff]
    %v8123 = vld [vmem:[%s7638 + $0x111] sm:$0xff]
    %v8124 = vld [vmem:[%s7638 + $0x121] sm:$0xff]
    %v8125 = vld [vmem:[%s7638 + $0x129] sm:$0xff]
    %v8126 = vld [vmem:[%s7638 + $0x139] sm:$0xff]
    %v8127 = vld [vmem:[%s7638 + $0x141] sm:$0xff]
    %v8128 = vld [vmem:[%s7638 + $0x151] sm:$0xff]
    %v8129 = vld [vmem:[%s7638 + $0x159] sm:$0xff]
    %v8130 = vld [vmem:[%s7638 + $0x169] sm:$0xff]
    %v8131 = vld [vmem:[%s7638 + $0x171] sm:$0xff]
    %v8132 = vld [vmem:[%s7638 + $0x1b1] sm:$0xff]
    %v8133 = vld [vmem:[%s7638 + $0x1b9] sm:$0xff]
    %v8134 = vld [vmem:[%s7638 + $0x1c9] sm:$0xff]
    %v8135 = vld [vmem:[%s7638 + $0x1d1] sm:$0xff]
    %v8136 = vld [vmem:[%s7638 + $0x1e1] sm:$0xff]
    %v8137 = vld [vmem:[%s7638 + $0x1e9] sm:$0xff]
    %v8138 = vld [vmem:[%s7638 + $0x1f9] sm:$0xff]
    %v8139 = vld [vmem:[%s7638 + $0x201] sm:$0xff]
    %v8140 = vld [vmem:[%s7638 + $0x211] sm:$0xff]
    %v8141 = vld [vmem:[%s7638 + $0x219] sm:$0xff]
    %v8142 = vld [vmem:[%s7638 + $0x229] sm:$0xff]
    %v8143 = vld [vmem:[%s7638 + $0x231] sm:$0xff]
    %v8144 = vld [vmem:[%s7638 + $0x241] sm:$0xff]
    %v8145 = vld [vmem:[%s7638 + $0x249] sm:$0xff]
    %v8146 = vld [vmem:[%s7638 + $0x259] sm:$0xff]
    %v8147 = vld [vmem:[%s7638 + $0x261] sm:$0xff]
    %v8148 = vld [vmem:[%s7638 + $0x271] sm:$0xff]
    %v8149 = vld [vmem:[%s7638 + $0x279] sm:$0xff]
    %v8150 = vld [vmem:[%s7638 + $0x289] sm:$0xff]
    %v8151 = vld [vmem:[%s7638 + $0x291] sm:$0xff]
    %v8152 = vld [vmem:[%s7638 + $0x2a1] sm:$0xff]
    %v8153 = vld [vmem:[%s7638 + $0x2a9] sm:$0xff]
    %v8154 = vld [vmem:[%s7638 + $0x2b9] sm:$0xff]
    %v8155 = vld [vmem:[%s7638 + $0x2c1] sm:$0xff]
    %v8156 = vld [vmem:[%s7638 + $0x2d1] sm:$0xff]
    %v8157 = vld [vmem:[%s7638 + $0x2d9] sm:$0xff]
    %v8158 = vld [vmem:[%s7638 + $0x2e9] sm:$0xff]
    %v8159 = vld [vmem:[%s7638 + $0x2f1] sm:$0xff]
    %v8160 = vld [vmem:[%s7638 + $0x301] sm:$0xff]
    %v8161 = vld [vmem:[%s7638 + $0x309] sm:$0xff]
    %v8162 = vld [vmem:[%s7638 + $0x319] sm:$0xff]
    %v8163 = vld [vmem:[%s7638 + $0x321] sm:$0xff]
    %s8164 = sadd.s32 %s5064, 7
    %s8165 = smul.u32 %s8164, 8
    %s8166 = smul.addr %s8165, 4
    %s8167 = scalar_lea.vmem %s3, %s8166
    %v8168 = vld [vmem:[%s8167] sm:$0xf]
    %v8169 = vld [vmem:[%s8167 + $0x4] sm:$0xf]
    %v8170 = vld [vmem:[%s8167 + $0x8] sm:$0xf]
    %v8171 = vld [vmem:[%s8167 + $0xc] sm:$0xf]
    %v8172 = vld [vmem:[%s8167 + $0x10] sm:$0xf]
    %v8173 = vld [vmem:[%s8167 + $0x14] sm:$0xf]
    %v8174 = vld [vmem:[%s8167 + $0x18] sm:$0xf]
    %v8175 = vld [vmem:[%s8167 + $0x1c] sm:$0xf]
    %v8176 = vpack.c.bf16 %v8101, %v8100
    %v8177 = vpack.c.bf16 %v8103, %v8102
    %v8178 = vpack.c.bf16 %v8105, %v8104
    %v8179 = vpack.c.bf16 %v8107, %v8106
    %v8180 = vpack.c.bf16 %v8109, %v8108
    %v8181 = vpack.c.bf16 %v8111, %v8110
    %v8182 = vpack.c.bf16 %v8113, %v8112
    %v8183 = vpack.c.bf16 %v8115, %v8114
    %v8184 = vpack.c.bf16 %v8117, %v8116
    %v8185 = vpack.c.bf16 %v8119, %v8118
    %v8186 = vpack.c.bf16 %v8121, %v8120
    %v8187 = vpack.c.bf16 %v8123, %v8122
    %v8188 = vpack.c.bf16 %v8125, %v8124
    %v8189 = vpack.c.bf16 %v8127, %v8126
    %v8190 = vpack.c.bf16 %v8129, %v8128
    %v8191 = vpack.c.bf16 %v8131, %v8130
    %v8192 = vpack.c.bf16 %v8133, %v8132
    %v8193 = vpack.c.bf16 %v8135, %v8134
    %v8194 = vpack.c.bf16 %v8137, %v8136
    %v8195 = vpack.c.bf16 %v8139, %v8138
    %v8196 = vpack.c.bf16 %v8141, %v8140
    %v8197 = vpack.c.bf16 %v8143, %v8142
    %v8198 = vpack.c.bf16 %v8145, %v8144
    %v8199 = vpack.c.bf16 %v8147, %v8146
    %v8200 = vpack.c.bf16 %v8149, %v8148
    %v8201 = vpack.c.bf16 %v8151, %v8150
    %v8202 = vpack.c.bf16 %v8153, %v8152
    %v8203 = vpack.c.bf16 %v8155, %v8154
    %v8204 = vpack.c.bf16 %v8157, %v8156
    %v8205 = vpack.c.bf16 %v8159, %v8158
    %v8206 = vpack.c.bf16 %v8161, %v8160
    %v8207 = vpack.c.bf16 %v8163, %v8162
    %v8216 = vunpack.c.l.b16 %v8168
    %v8217 = vunpack.c.l.b16 %v8169
    %v8218 = vunpack.c.l.b16 %v8170
    %v8219 = vunpack.c.l.b16 %v8171
    %v8220 = vunpack.c.l.b16 %v8172
    %v8221 = vunpack.c.l.b16 %v8173
    %v8222 = vunpack.c.l.b16 %v8174
    %v8223 = vunpack.c.l.b16 %v8175
    %v8224 = vpack.c.b16 %v8217, %v8216
    %v8225 = vpack.c.b16 %v8219, %v8218
    %v8226 = vpack.c.b16 %v8221, %v8220
    %v8227 = vpack.c.b16 %v8223, %v8222
    %v8233 = vsel %vm33, %v8176, 0
    %v8236 = vsel %vm33, %v8177, 0
    %v8239 = vsel %vm33, %v8178, 0
    %v8242 = vsel %vm33, %v8179, 0
    %v8245 = vsel %vm33, %v8180, 0
    %v8248 = vsel %vm33, %v8181, 0
    %v8251 = vsel %vm33, %v8182, 0
    %v8254 = vsel %vm33, %v8183, 0
    %v8257 = vsel %vm33, %v8184, 0
    %v8260 = vsel %vm33, %v8185, 0
    %v8263 = vsel %vm33, %v8186, 0
    %v8266 = vsel %vm33, %v8187, 0
    %v8269 = vsel %vm33, %v8188, 0
    %v8272 = vsel %vm33, %v8189, 0
    %v8275 = vsel %vm33, %v8190, 0
    %v8278 = vsel %vm33, %v8191, 0
    %v8281 = vsel %vm33, %v8192, 0
    %v8284 = vsel %vm33, %v8193, 0
    %v8287 = vsel %vm33, %v8194, 0
    %v8290 = vsel %vm33, %v8195, 0
    %v8293 = vsel %vm33, %v8196, 0
    %v8296 = vsel %vm33, %v8197, 0
    %v8299 = vsel %vm33, %v8198, 0
    %v8302 = vsel %vm33, %v8199, 0
    %v8305 = vsel %vm33, %v8200, 0
    %v8308 = vsel %vm33, %v8201, 0
    %v8311 = vsel %vm33, %v8202, 0
    %v8314 = vsel %vm33, %v8203, 0
    %v8317 = vsel %vm33, %v8204, 0
    %v8320 = vsel %vm33, %v8205, 0
    %v8323 = vsel %vm33, %v8206, 0
    %v8326 = vsel %vm33, %v8207, 0
    %8328 = vmatpush.bf16.msra.mxu0 0
    %8329 = vmatpush.bf16.msra.mxu0 0
    %8330 = vmatpush.bf16.msra.mxu0 0
    %8331 = vmatpush.bf16.msra.mxu0 0
    %8332 = vmatpush.bf16.msra.mxu0 %v8227
    %8333 = vmatpush.bf16.msra.mxu0 %v8226
    %8334 = vmatpush.bf16.msra.mxu0 %v8225
    %8335 = vmatpush.bf16.msra.mxu0 %v8224
    %8336 = vmatmul.bf16.gmra.mxu0 %v8233
    %v8337 = vpop.f32.mrf.mxu0
    %v8338 = vadd.f32 0.0, %v8337
    %v8339 = vpop.f32.mrf.mxu0
    %v8340 = vadd.f32 0.0, %v8339
    %8341 = vmatmul.bf16.gmra.mxu0 %v8236
    %v8342 = vpop.f32.mrf.mxu0
    %v8343 = vadd.f32 0.0, %v8342
    %v8344 = vpop.f32.mrf.mxu0
    %v8345 = vadd.f32 0.0, %v8344
    %8346 = vmatmul.bf16.gmra.mxu0 %v8239
    %v8347 = vpop.f32.mrf.mxu0
    %v8348 = vadd.f32 0.0, %v8347
    %v8349 = vpop.f32.mrf.mxu0
    %v8350 = vadd.f32 0.0, %v8349
    %8351 = vmatmul.bf16.gmra.mxu0 %v8242
    %v8352 = vpop.f32.mrf.mxu0
    %v8353 = vadd.f32 0.0, %v8352
    %v8354 = vpop.f32.mrf.mxu0
    %v8355 = vadd.f32 0.0, %v8354
    %8356 = vmatmul.bf16.gmra.mxu0 %v8245
    %v8357 = vpop.f32.mrf.mxu0
    %v8358 = vadd.f32 0.0, %v8357
    %v8359 = vpop.f32.mrf.mxu0
    %v8360 = vadd.f32 0.0, %v8359
    %8361 = vmatmul.bf16.gmra.mxu0 %v8248
    %v8362 = vpop.f32.mrf.mxu0
    %v8363 = vadd.f32 0.0, %v8362
    %v8364 = vpop.f32.mrf.mxu0
    %v8365 = vadd.f32 0.0, %v8364
    %8366 = vmatmul.bf16.gmra.mxu0 %v8251
    %v8367 = vpop.f32.mrf.mxu0
    %v8368 = vadd.f32 0.0, %v8367
    %v8369 = vpop.f32.mrf.mxu0
    %v8370 = vadd.f32 0.0, %v8369
    %8371 = vmatmul.bf16.gmra.mxu0 %v8254
    %v8372 = vpop.f32.mrf.mxu0
    %v8373 = vadd.f32 0.0, %v8372
    %v8374 = vpop.f32.mrf.mxu0
    %v8375 = vadd.f32 0.0, %v8374
    %8376 = vmatmul.bf16.gmra.mxu0 %v8257
    %v8377 = vpop.f32.mrf.mxu0
    %v8378 = vadd.f32 0.0, %v8377
    %v8379 = vpop.f32.mrf.mxu0
    %v8380 = vadd.f32 0.0, %v8379
    %8381 = vmatmul.bf16.gmra.mxu0 %v8260
    %v8382 = vpop.f32.mrf.mxu0
    %v8383 = vadd.f32 0.0, %v8382
    %v8384 = vpop.f32.mrf.mxu0
    %v8385 = vadd.f32 0.0, %v8384
    %8386 = vmatmul.bf16.gmra.mxu0 %v8263
    %v8387 = vpop.f32.mrf.mxu0
    %v8388 = vadd.f32 0.0, %v8387
    %v8389 = vpop.f32.mrf.mxu0
    %v8390 = vadd.f32 0.0, %v8389
    %8391 = vmatmul.bf16.gmra.mxu0 %v8266
    %v8392 = vpop.f32.mrf.mxu0
    %v8393 = vadd.f32 0.0, %v8392
    %v8394 = vpop.f32.mrf.mxu0
    %v8395 = vadd.f32 0.0, %v8394
    %8396 = vmatmul.bf16.gmra.mxu0 %v8269
    %v8397 = vpop.f32.mrf.mxu0
    %v8398 = vadd.f32 0.0, %v8397
    %v8399 = vpop.f32.mrf.mxu0
    %v8400 = vadd.f32 0.0, %v8399
    %8401 = vmatmul.bf16.gmra.mxu0 %v8272
    %v8402 = vpop.f32.mrf.mxu0
    %v8403 = vadd.f32 0.0, %v8402
    %v8404 = vpop.f32.mrf.mxu0
    %v8405 = vadd.f32 0.0, %v8404
    %8406 = vmatmul.bf16.gmra.mxu0 %v8275
    %v8407 = vpop.f32.mrf.mxu0
    %v8408 = vadd.f32 0.0, %v8407
    %v8409 = vpop.f32.mrf.mxu0
    %v8410 = vadd.f32 0.0, %v8409
    %8411 = vmatmul.bf16.gmra.mxu0 %v8278
    %v8412 = vpop.f32.mrf.mxu0
    %v8413 = vadd.f32 0.0, %v8412
    %v8414 = vpop.f32.mrf.mxu0
    %v8415 = vadd.f32 0.0, %v8414
    %8416 = vmatmul.bf16.gmra.mxu0 %v8281
    %v8417 = vpop.f32.mrf.mxu0
    %v8418 = vadd.f32 0.0, %v8417
    %v8419 = vpop.f32.mrf.mxu0
    %v8420 = vadd.f32 0.0, %v8419
    %8421 = vmatmul.bf16.gmra.mxu0 %v8284
    %v8422 = vpop.f32.mrf.mxu0
    %v8423 = vadd.f32 0.0, %v8422
    %v8424 = vpop.f32.mrf.mxu0
    %v8425 = vadd.f32 0.0, %v8424
    %8426 = vmatmul.bf16.gmra.mxu0 %v8287
    %v8427 = vpop.f32.mrf.mxu0
    %v8428 = vadd.f32 0.0, %v8427
    %v8429 = vpop.f32.mrf.mxu0
    %v8430 = vadd.f32 0.0, %v8429
    %8431 = vmatmul.bf16.gmra.mxu0 %v8290
    %v8432 = vpop.f32.mrf.mxu0
    %v8433 = vadd.f32 0.0, %v8432
    %v8434 = vpop.f32.mrf.mxu0
    %v8435 = vadd.f32 0.0, %v8434
    %8436 = vmatmul.bf16.gmra.mxu0 %v8293
    %v8437 = vpop.f32.mrf.mxu0
    %v8438 = vadd.f32 0.0, %v8437
    %v8439 = vpop.f32.mrf.mxu0
    %v8440 = vadd.f32 0.0, %v8439
    %8441 = vmatmul.bf16.gmra.mxu0 %v8296
    %v8442 = vpop.f32.mrf.mxu0
    %v8443 = vadd.f32 0.0, %v8442
    %v8444 = vpop.f32.mrf.mxu0
    %v8445 = vadd.f32 0.0, %v8444
    %8446 = vmatmul.bf16.gmra.mxu0 %v8299
    %v8447 = vpop.f32.mrf.mxu0
    %v8448 = vadd.f32 0.0, %v8447
    %v8449 = vpop.f32.mrf.mxu0
    %v8450 = vadd.f32 0.0, %v8449
    %8451 = vmatmul.bf16.gmra.mxu0 %v8302
    %v8452 = vpop.f32.mrf.mxu0
    %v8453 = vadd.f32 0.0, %v8452
    %v8454 = vpop.f32.mrf.mxu0
    %v8455 = vadd.f32 0.0, %v8454
    %8456 = vmatmul.bf16.gmra.mxu0 %v8305
    %v8457 = vpop.f32.mrf.mxu0
    %v8458 = vadd.f32 0.0, %v8457
    %v8459 = vpop.f32.mrf.mxu0
    %v8460 = vadd.f32 0.0, %v8459
    %8461 = vmatmul.bf16.gmra.mxu0 %v8308
    %v8462 = vpop.f32.mrf.mxu0
    %v8463 = vadd.f32 0.0, %v8462
    %v8464 = vpop.f32.mrf.mxu0
    %v8465 = vadd.f32 0.0, %v8464
    %8466 = vmatmul.bf16.gmra.mxu0 %v8311
    %v8467 = vpop.f32.mrf.mxu0
    %v8468 = vadd.f32 0.0, %v8467
    %v8469 = vpop.f32.mrf.mxu0
    %v8470 = vadd.f32 0.0, %v8469
    %8471 = vmatmul.bf16.gmra.mxu0 %v8314
    %v8472 = vpop.f32.mrf.mxu0
    %v8473 = vadd.f32 0.0, %v8472
    %v8474 = vpop.f32.mrf.mxu0
    %v8475 = vadd.f32 0.0, %v8474
    %8476 = vmatmul.bf16.gmra.mxu0 %v8317
    %v8477 = vpop.f32.mrf.mxu0
    %v8478 = vadd.f32 0.0, %v8477
    %v8479 = vpop.f32.mrf.mxu0
    %v8480 = vadd.f32 0.0, %v8479
    %8481 = vmatmul.bf16.gmra.mxu0 %v8320
    %v8482 = vpop.f32.mrf.mxu0
    %v8483 = vadd.f32 0.0, %v8482
    %v8484 = vpop.f32.mrf.mxu0
    %v8485 = vadd.f32 0.0, %v8484
    %8486 = vmatmul.bf16.gmra.mxu0 %v8323
    %v8487 = vpop.f32.mrf.mxu0
    %v8488 = vadd.f32 0.0, %v8487
    %v8489 = vpop.f32.mrf.mxu0
    %v8490 = vadd.f32 0.0, %v8489
    %8491 = vmatmul.bf16.gmra.mxu0 %v8326
    %v8492 = vpop.f32.mrf.mxu0
    %v8493 = vadd.f32 0.0, %v8492
    %v8494 = vpop.f32.mrf.mxu0
    %v8495 = vadd.f32 0.0, %v8494
    %8496 = vdwg.mxu0
    %v8497 = vadd.f32 %v8036, %v8338
    %v8498 = vadd.f32 %v8037, %v8340
    %v8499 = vadd.f32 %v8038, %v8343
    %v8500 = vadd.f32 %v8039, %v8345
    %v8501 = vadd.f32 %v8040, %v8348
    %v8502 = vadd.f32 %v8041, %v8350
    %v8503 = vadd.f32 %v8042, %v8353
    %v8504 = vadd.f32 %v8043, %v8355
    %v8505 = vadd.f32 %v8044, %v8358
    %v8506 = vadd.f32 %v8045, %v8360
    %v8507 = vadd.f32 %v8046, %v8363
    %v8508 = vadd.f32 %v8047, %v8365
    %v8509 = vadd.f32 %v8048, %v8368
    %v8510 = vadd.f32 %v8049, %v8370
    %v8511 = vadd.f32 %v8050, %v8373
    %v8512 = vadd.f32 %v8051, %v8375
    %v8513 = vadd.f32 %v8052, %v8378
    %v8514 = vadd.f32 %v8053, %v8380
    %v8515 = vadd.f32 %v8054, %v8383
    %v8516 = vadd.f32 %v8055, %v8385
    %v8517 = vadd.f32 %v8056, %v8388
    %v8518 = vadd.f32 %v8057, %v8390
    %v8519 = vadd.f32 %v8058, %v8393
    %v8520 = vadd.f32 %v8059, %v8395
    %v8521 = vadd.f32 %v8060, %v8398
    %v8522 = vadd.f32 %v8061, %v8400
    %v8523 = vadd.f32 %v8062, %v8403
    %v8524 = vadd.f32 %v8063, %v8405
    %v8525 = vadd.f32 %v8064, %v8408
    %v8526 = vadd.f32 %v8065, %v8410
    %v8527 = vadd.f32 %v8066, %v8413
    %v8528 = vadd.f32 %v8067, %v8415
    %v8529 = vadd.f32 %v8068, %v8418
    %v8530 = vadd.f32 %v8069, %v8420
    %v8531 = vadd.f32 %v8070, %v8423
    %v8532 = vadd.f32 %v8071, %v8425
    %v8533 = vadd.f32 %v8072, %v8428
    %v8534 = vadd.f32 %v8073, %v8430
    %v8535 = vadd.f32 %v8074, %v8433
    %v8536 = vadd.f32 %v8075, %v8435
    %v8537 = vadd.f32 %v8076, %v8438
    %v8538 = vadd.f32 %v8077, %v8440
    %v8539 = vadd.f32 %v8078, %v8443
    %v8540 = vadd.f32 %v8079, %v8445
    %v8541 = vadd.f32 %v8080, %v8448
    %v8542 = vadd.f32 %v8081, %v8450
    %v8543 = vadd.f32 %v8082, %v8453
    %v8544 = vadd.f32 %v8083, %v8455
    %v8545 = vadd.f32 %v8084, %v8458
    %v8546 = vadd.f32 %v8085, %v8460
    %v8547 = vadd.f32 %v8086, %v8463
    %v8548 = vadd.f32 %v8087, %v8465
    %v8549 = vadd.f32 %v8088, %v8468
    %v8550 = vadd.f32 %v8089, %v8470
    %v8551 = vadd.f32 %v8090, %v8473
    %v8552 = vadd.f32 %v8091, %v8475
    %v8553 = vadd.f32 %v8092, %v8478
    %v8554 = vadd.f32 %v8093, %v8480
    %v8555 = vadd.f32 %v8094, %v8483
    %v8556 = vadd.f32 %v8095, %v8485
    %v8557 = vadd.f32 %v8096, %v8488
    %v8558 = vadd.f32 %v8097, %v8490
    %v8559 = vadd.f32 %v8098, %v8493
    %v8560 = vadd.f32 %v8099, %v8495
    %v8561 = vld [vmem:[%s7638 + $0x2] sm:$0xff]
    %v8562 = vld [vmem:[%s7638 + $0xa] sm:$0xff]
    %v8563 = vld [vmem:[%s7638 + $0x1a] sm:$0xff]
    %v8564 = vld [vmem:[%s7638 + $0x22] sm:$0xff]
    %v8565 = vld [vmem:[%s7638 + $0x32] sm:$0xff]
    %v8566 = vld [vmem:[%s7638 + $0x3a] sm:$0xff]
    %v8567 = vld [vmem:[%s7638 + $0x4a] sm:$0xff]
    %v8568 = vld [vmem:[%s7638 + $0x52] sm:$0xff]
    %v8569 = vld [vmem:[%s7638 + $0x62] sm:$0xff]
    %v8570 = vld [vmem:[%s7638 + $0x6a] sm:$0xff]
    %v8571 = vld [vmem:[%s7638 + $0x7a] sm:$0xff]
    %v8572 = vld [vmem:[%s7638 + $0x82] sm:$0xff]
    %v8573 = vld [vmem:[%s7638 + $0x92] sm:$0xff]
    %v8574 = vld [vmem:[%s7638 + $0x9a] sm:$0xff]
    %v8575 = vld [vmem:[%s7638 + $0xaa] sm:$0xff]
    %v8576 = vld [vmem:[%s7638 + $0xb2] sm:$0xff]
    %v8577 = vld [vmem:[%s7638 + $0xc2] sm:$0xff]
    %v8578 = vld [vmem:[%s7638 + $0xca] sm:$0xff]
    %v8579 = vld [vmem:[%s7638 + $0xda] sm:$0xff]
    %v8580 = vld [vmem:[%s7638 + $0xe2] sm:$0xff]
    %v8581 = vld [vmem:[%s7638 + $0xf2] sm:$0xff]
    %v8582 = vld [vmem:[%s7638 + $0xfa] sm:$0xff]
    %v8583 = vld [vmem:[%s7638 + $0x10a] sm:$0xff]
    %v8584 = vld [vmem:[%s7638 + $0x112] sm:$0xff]
    %v8585 = vld [vmem:[%s7638 + $0x122] sm:$0xff]
    %v8586 = vld [vmem:[%s7638 + $0x12a] sm:$0xff]
    %v8587 = vld [vmem:[%s7638 + $0x13a] sm:$0xff]
    %v8588 = vld [vmem:[%s7638 + $0x142] sm:$0xff]
    %v8589 = vld [vmem:[%s7638 + $0x152] sm:$0xff]
    %v8590 = vld [vmem:[%s7638 + $0x15a] sm:$0xff]
    %v8591 = vld [vmem:[%s7638 + $0x16a] sm:$0xff]
    %v8592 = vld [vmem:[%s7638 + $0x172] sm:$0xff]
    %v8593 = vld [vmem:[%s7638 + $0x1b2] sm:$0xff]
    %v8594 = vld [vmem:[%s7638 + $0x1ba] sm:$0xff]
    %v8595 = vld [vmem:[%s7638 + $0x1ca] sm:$0xff]
    %v8596 = vld [vmem:[%s7638 + $0x1d2] sm:$0xff]
    %v8597 = vld [vmem:[%s7638 + $0x1e2] sm:$0xff]
    %v8598 = vld [vmem:[%s7638 + $0x1ea] sm:$0xff]
    %v8599 = vld [vmem:[%s7638 + $0x1fa] sm:$0xff]
    %v8600 = vld [vmem:[%s7638 + $0x202] sm:$0xff]
    %v8601 = vld [vmem:[%s7638 + $0x212] sm:$0xff]
    %v8602 = vld [vmem:[%s7638 + $0x21a] sm:$0xff]
    %v8603 = vld [vmem:[%s7638 + $0x22a] sm:$0xff]
    %v8604 = vld [vmem:[%s7638 + $0x232] sm:$0xff]
    %v8605 = vld [vmem:[%s7638 + $0x242] sm:$0xff]
    %v8606 = vld [vmem:[%s7638 + $0x24a] sm:$0xff]
    %v8607 = vld [vmem:[%s7638 + $0x25a] sm:$0xff]
    %v8608 = vld [vmem:[%s7638 + $0x262] sm:$0xff]
    %v8609 = vld [vmem:[%s7638 + $0x272] sm:$0xff]
    %v8610 = vld [vmem:[%s7638 + $0x27a] sm:$0xff]
    %v8611 = vld [vmem:[%s7638 + $0x28a] sm:$0xff]
    %v8612 = vld [vmem:[%s7638 + $0x292] sm:$0xff]
    %v8613 = vld [vmem:[%s7638 + $0x2a2] sm:$0xff]
    %v8614 = vld [vmem:[%s7638 + $0x2aa] sm:$0xff]
    %v8615 = vld [vmem:[%s7638 + $0x2ba] sm:$0xff]
    %v8616 = vld [vmem:[%s7638 + $0x2c2] sm:$0xff]
    %v8617 = vld [vmem:[%s7638 + $0x2d2] sm:$0xff]
    %v8618 = vld [vmem:[%s7638 + $0x2da] sm:$0xff]
    %v8619 = vld [vmem:[%s7638 + $0x2ea] sm:$0xff]
    %v8620 = vld [vmem:[%s7638 + $0x2f2] sm:$0xff]
    %v8621 = vld [vmem:[%s7638 + $0x302] sm:$0xff]
    %v8622 = vld [vmem:[%s7638 + $0x30a] sm:$0xff]
    %v8623 = vld [vmem:[%s7638 + $0x31a] sm:$0xff]
    %v8624 = vld [vmem:[%s7638 + $0x322] sm:$0xff]
    %s8625 = sadd.s32 %s5064, 8
    %s8626 = smul.u32 %s8625, 8
    %s8627 = smul.addr %s8626, 4
    %s8628 = scalar_lea.vmem %s3, %s8627
    %v8629 = vld [vmem:[%s8628] sm:$0xf]
    %v8630 = vld [vmem:[%s8628 + $0x4] sm:$0xf]
    %v8631 = vld [vmem:[%s8628 + $0x8] sm:$0xf]
    %v8632 = vld [vmem:[%s8628 + $0xc] sm:$0xf]
    %v8633 = vld [vmem:[%s8628 + $0x10] sm:$0xf]
    %v8634 = vld [vmem:[%s8628 + $0x14] sm:$0xf]
    %v8635 = vld [vmem:[%s8628 + $0x18] sm:$0xf]
    %v8636 = vld [vmem:[%s8628 + $0x1c] sm:$0xf]
    %v8637 = vpack.c.bf16 %v8562, %v8561
    %v8638 = vpack.c.bf16 %v8564, %v8563
    %v8639 = vpack.c.bf16 %v8566, %v8565
    %v8640 = vpack.c.bf16 %v8568, %v8567
    %v8641 = vpack.c.bf16 %v8570, %v8569
    %v8642 = vpack.c.bf16 %v8572, %v8571
    %v8643 = vpack.c.bf16 %v8574, %v8573
    %v8644 = vpack.c.bf16 %v8576, %v8575
    %v8645 = vpack.c.bf16 %v8578, %v8577
    %v8646 = vpack.c.bf16 %v8580, %v8579
    %v8647 = vpack.c.bf16 %v8582, %v8581
    %v8648 = vpack.c.bf16 %v8584, %v8583
    %v8649 = vpack.c.bf16 %v8586, %v8585
    %v8650 = vpack.c.bf16 %v8588, %v8587
    %v8651 = vpack.c.bf16 %v8590, %v8589
    %v8652 = vpack.c.bf16 %v8592, %v8591
    %v8653 = vpack.c.bf16 %v8594, %v8593
    %v8654 = vpack.c.bf16 %v8596, %v8595
    %v8655 = vpack.c.bf16 %v8598, %v8597
    %v8656 = vpack.c.bf16 %v8600, %v8599
    %v8657 = vpack.c.bf16 %v8602, %v8601
    %v8658 = vpack.c.bf16 %v8604, %v8603
    %v8659 = vpack.c.bf16 %v8606, %v8605
    %v8660 = vpack.c.bf16 %v8608, %v8607
    %v8661 = vpack.c.bf16 %v8610, %v8609
    %v8662 = vpack.c.bf16 %v8612, %v8611
    %v8663 = vpack.c.bf16 %v8614, %v8613
    %v8664 = vpack.c.bf16 %v8616, %v8615
    %v8665 = vpack.c.bf16 %v8618, %v8617
    %v8666 = vpack.c.bf16 %v8620, %v8619
    %v8667 = vpack.c.bf16 %v8622, %v8621
    %v8668 = vpack.c.bf16 %v8624, %v8623
    %v8677 = vunpack.c.l.b16 %v8629
    %v8678 = vunpack.c.l.b16 %v8630
    %v8679 = vunpack.c.l.b16 %v8631
    %v8680 = vunpack.c.l.b16 %v8632
    %v8681 = vunpack.c.l.b16 %v8633
    %v8682 = vunpack.c.l.b16 %v8634
    %v8683 = vunpack.c.l.b16 %v8635
    %v8684 = vunpack.c.l.b16 %v8636
    %v8685 = vpack.c.b16 %v8678, %v8677
    %v8686 = vpack.c.b16 %v8680, %v8679
    %v8687 = vpack.c.b16 %v8682, %v8681
    %v8688 = vpack.c.b16 %v8684, %v8683
    %v8694 = vsel %vm33, %v8637, 0
    %v8697 = vsel %vm33, %v8638, 0
    %v8700 = vsel %vm33, %v8639, 0
    %v8703 = vsel %vm33, %v8640, 0
    %v8706 = vsel %vm33, %v8641, 0
    %v8709 = vsel %vm33, %v8642, 0
    %v8712 = vsel %vm33, %v8643, 0
    %v8715 = vsel %vm33, %v8644, 0
    %v8718 = vsel %vm33, %v8645, 0
    %v8721 = vsel %vm33, %v8646, 0
    %v8724 = vsel %vm33, %v8647, 0
    %v8727 = vsel %vm33, %v8648, 0
    %v8730 = vsel %vm33, %v8649, 0
    %v8733 = vsel %vm33, %v8650, 0
    %v8736 = vsel %vm33, %v8651, 0
    %v8739 = vsel %vm33, %v8652, 0
    %v8742 = vsel %vm33, %v8653, 0
    %v8745 = vsel %vm33, %v8654, 0
    %v8748 = vsel %vm33, %v8655, 0
    %v8751 = vsel %vm33, %v8656, 0
    %v8754 = vsel %vm33, %v8657, 0
    %v8757 = vsel %vm33, %v8658, 0
    %v8760 = vsel %vm33, %v8659, 0
    %v8763 = vsel %vm33, %v8660, 0
    %v8766 = vsel %vm33, %v8661, 0
    %v8769 = vsel %vm33, %v8662, 0
    %v8772 = vsel %vm33, %v8663, 0
    %v8775 = vsel %vm33, %v8664, 0
    %v8778 = vsel %vm33, %v8665, 0
    %v8781 = vsel %vm33, %v8666, 0
    %v8784 = vsel %vm33, %v8667, 0
    %v8787 = vsel %vm33, %v8668, 0
    %8789 = vmatpush.bf16.msra.mxu0 0
    %8790 = vmatpush.bf16.msra.mxu0 0
    %8791 = vmatpush.bf16.msra.mxu0 0
    %8792 = vmatpush.bf16.msra.mxu0 0
    %8793 = vmatpush.bf16.msra.mxu0 %v8688
    %8794 = vmatpush.bf16.msra.mxu0 %v8687
    %8795 = vmatpush.bf16.msra.mxu0 %v8686
    %8796 = vmatpush.bf16.msra.mxu0 %v8685
    %8797 = vmatmul.bf16.gmra.mxu0 %v8694
    %v8798 = vpop.f32.mrf.mxu0
    %v8799 = vadd.f32 0.0, %v8798
    %v8800 = vpop.f32.mrf.mxu0
    %v8801 = vadd.f32 0.0, %v8800
    %8802 = vmatmul.bf16.gmra.mxu0 %v8697
    %v8803 = vpop.f32.mrf.mxu0
    %v8804 = vadd.f32 0.0, %v8803
    %v8805 = vpop.f32.mrf.mxu0
    %v8806 = vadd.f32 0.0, %v8805
    %8807 = vmatmul.bf16.gmra.mxu0 %v8700
    %v8808 = vpop.f32.mrf.mxu0
    %v8809 = vadd.f32 0.0, %v8808
    %v8810 = vpop.f32.mrf.mxu0
    %v8811 = vadd.f32 0.0, %v8810
    %8812 = vmatmul.bf16.gmra.mxu0 %v8703
    %v8813 = vpop.f32.mrf.mxu0
    %v8814 = vadd.f32 0.0, %v8813
    %v8815 = vpop.f32.mrf.mxu0
    %v8816 = vadd.f32 0.0, %v8815
    %8817 = vmatmul.bf16.gmra.mxu0 %v8706
    %v8818 = vpop.f32.mrf.mxu0
    %v8819 = vadd.f32 0.0, %v8818
    %v8820 = vpop.f32.mrf.mxu0
    %v8821 = vadd.f32 0.0, %v8820
    %8822 = vmatmul.bf16.gmra.mxu0 %v8709
    %v8823 = vpop.f32.mrf.mxu0
    %v8824 = vadd.f32 0.0, %v8823
    %v8825 = vpop.f32.mrf.mxu0
    %v8826 = vadd.f32 0.0, %v8825
    %8827 = vmatmul.bf16.gmra.mxu0 %v8712
    %v8828 = vpop.f32.mrf.mxu0
    %v8829 = vadd.f32 0.0, %v8828
    %v8830 = vpop.f32.mrf.mxu0
    %v8831 = vadd.f32 0.0, %v8830
    %8832 = vmatmul.bf16.gmra.mxu0 %v8715
    %v8833 = vpop.f32.mrf.mxu0
    %v8834 = vadd.f32 0.0, %v8833
    %v8835 = vpop.f32.mrf.mxu0
    %v8836 = vadd.f32 0.0, %v8835
    %8837 = vmatmul.bf16.gmra.mxu0 %v8718
    %v8838 = vpop.f32.mrf.mxu0
    %v8839 = vadd.f32 0.0, %v8838
    %v8840 = vpop.f32.mrf.mxu0
    %v8841 = vadd.f32 0.0, %v8840
    %8842 = vmatmul.bf16.gmra.mxu0 %v8721
    %v8843 = vpop.f32.mrf.mxu0
    %v8844 = vadd.f32 0.0, %v8843
    %v8845 = vpop.f32.mrf.mxu0
    %v8846 = vadd.f32 0.0, %v8845
    %8847 = vmatmul.bf16.gmra.mxu0 %v8724
    %v8848 = vpop.f32.mrf.mxu0
    %v8849 = vadd.f32 0.0, %v8848
    %v8850 = vpop.f32.mrf.mxu0
    %v8851 = vadd.f32 0.0, %v8850
    %8852 = vmatmul.bf16.gmra.mxu0 %v8727
    %v8853 = vpop.f32.mrf.mxu0
    %v8854 = vadd.f32 0.0, %v8853
    %v8855 = vpop.f32.mrf.mxu0
    %v8856 = vadd.f32 0.0, %v8855
    %8857 = vmatmul.bf16.gmra.mxu0 %v8730
    %v8858 = vpop.f32.mrf.mxu0
    %v8859 = vadd.f32 0.0, %v8858
    %v8860 = vpop.f32.mrf.mxu0
    %v8861 = vadd.f32 0.0, %v8860
    %8862 = vmatmul.bf16.gmra.mxu0 %v8733
    %v8863 = vpop.f32.mrf.mxu0
    %v8864 = vadd.f32 0.0, %v8863
    %v8865 = vpop.f32.mrf.mxu0
    %v8866 = vadd.f32 0.0, %v8865
    %8867 = vmatmul.bf16.gmra.mxu0 %v8736
    %v8868 = vpop.f32.mrf.mxu0
    %v8869 = vadd.f32 0.0, %v8868
    %v8870 = vpop.f32.mrf.mxu0
    %v8871 = vadd.f32 0.0, %v8870
    %8872 = vmatmul.bf16.gmra.mxu0 %v8739
    %v8873 = vpop.f32.mrf.mxu0
    %v8874 = vadd.f32 0.0, %v8873
    %v8875 = vpop.f32.mrf.mxu0
    %v8876 = vadd.f32 0.0, %v8875
    %8877 = vmatmul.bf16.gmra.mxu0 %v8742
    %v8878 = vpop.f32.mrf.mxu0
    %v8879 = vadd.f32 0.0, %v8878
    %v8880 = vpop.f32.mrf.mxu0
    %v8881 = vadd.f32 0.0, %v8880
    %8882 = vmatmul.bf16.gmra.mxu0 %v8745
    %v8883 = vpop.f32.mrf.mxu0
    %v8884 = vadd.f32 0.0, %v8883
    %v8885 = vpop.f32.mrf.mxu0
    %v8886 = vadd.f32 0.0, %v8885
    %8887 = vmatmul.bf16.gmra.mxu0 %v8748
    %v8888 = vpop.f32.mrf.mxu0
    %v8889 = vadd.f32 0.0, %v8888
    %v8890 = vpop.f32.mrf.mxu0
    %v8891 = vadd.f32 0.0, %v8890
    %8892 = vmatmul.bf16.gmra.mxu0 %v8751
    %v8893 = vpop.f32.mrf.mxu0
    %v8894 = vadd.f32 0.0, %v8893
    %v8895 = vpop.f32.mrf.mxu0
    %v8896 = vadd.f32 0.0, %v8895
    %8897 = vmatmul.bf16.gmra.mxu0 %v8754
    %v8898 = vpop.f32.mrf.mxu0
    %v8899 = vadd.f32 0.0, %v8898
    %v8900 = vpop.f32.mrf.mxu0
    %v8901 = vadd.f32 0.0, %v8900
    %8902 = vmatmul.bf16.gmra.mxu0 %v8757
    %v8903 = vpop.f32.mrf.mxu0
    %v8904 = vadd.f32 0.0, %v8903
    %v8905 = vpop.f32.mrf.mxu0
    %v8906 = vadd.f32 0.0, %v8905
    %8907 = vmatmul.bf16.gmra.mxu0 %v8760
    %v8908 = vpop.f32.mrf.mxu0
    %v8909 = vadd.f32 0.0, %v8908
    %v8910 = vpop.f32.mrf.mxu0
    %v8911 = vadd.f32 0.0, %v8910
    %8912 = vmatmul.bf16.gmra.mxu0 %v8763
    %v8913 = vpop.f32.mrf.mxu0
    %v8914 = vadd.f32 0.0, %v8913
    %v8915 = vpop.f32.mrf.mxu0
    %v8916 = vadd.f32 0.0, %v8915
    %8917 = vmatmul.bf16.gmra.mxu0 %v8766
    %v8918 = vpop.f32.mrf.mxu0
    %v8919 = vadd.f32 0.0, %v8918
    %v8920 = vpop.f32.mrf.mxu0
    %v8921 = vadd.f32 0.0, %v8920
    %8922 = vmatmul.bf16.gmra.mxu0 %v8769
    %v8923 = vpop.f32.mrf.mxu0
    %v8924 = vadd.f32 0.0, %v8923
    %v8925 = vpop.f32.mrf.mxu0
    %v8926 = vadd.f32 0.0, %v8925
    %8927 = vmatmul.bf16.gmra.mxu0 %v8772
    %v8928 = vpop.f32.mrf.mxu0
    %v8929 = vadd.f32 0.0, %v8928
    %v8930 = vpop.f32.mrf.mxu0
    %v8931 = vadd.f32 0.0, %v8930
    %8932 = vmatmul.bf16.gmra.mxu0 %v8775
    %v8933 = vpop.f32.mrf.mxu0
    %v8934 = vadd.f32 0.0, %v8933
    %v8935 = vpop.f32.mrf.mxu0
    %v8936 = vadd.f32 0.0, %v8935
    %8937 = vmatmul.bf16.gmra.mxu0 %v8778
    %v8938 = vpop.f32.mrf.mxu0
    %v8939 = vadd.f32 0.0, %v8938
    %v8940 = vpop.f32.mrf.mxu0
    %v8941 = vadd.f32 0.0, %v8940
    %8942 = vmatmul.bf16.gmra.mxu0 %v8781
    %v8943 = vpop.f32.mrf.mxu0
    %v8944 = vadd.f32 0.0, %v8943
    %v8945 = vpop.f32.mrf.mxu0
    %v8946 = vadd.f32 0.0, %v8945
    %8947 = vmatmul.bf16.gmra.mxu0 %v8784
    %v8948 = vpop.f32.mrf.mxu0
    %v8949 = vadd.f32 0.0, %v8948
    %v8950 = vpop.f32.mrf.mxu0
    %v8951 = vadd.f32 0.0, %v8950
    %8952 = vmatmul.bf16.gmra.mxu0 %v8787
    %v8953 = vpop.f32.mrf.mxu0
    %v8954 = vadd.f32 0.0, %v8953
    %v8955 = vpop.f32.mrf.mxu0
    %v8956 = vadd.f32 0.0, %v8955
    %8957 = vdwg.mxu0
    %v8958 = vadd.f32 %v8497, %v8799
    %v8959 = vadd.f32 %v8498, %v8801
    %v8960 = vadd.f32 %v8499, %v8804
    %v8961 = vadd.f32 %v8500, %v8806
    %v8962 = vadd.f32 %v8501, %v8809
    %v8963 = vadd.f32 %v8502, %v8811
    %v8964 = vadd.f32 %v8503, %v8814
    %v8965 = vadd.f32 %v8504, %v8816
    %v8966 = vadd.f32 %v8505, %v8819
    %v8967 = vadd.f32 %v8506, %v8821
    %v8968 = vadd.f32 %v8507, %v8824
    %v8969 = vadd.f32 %v8508, %v8826
    %v8970 = vadd.f32 %v8509, %v8829
    %v8971 = vadd.f32 %v8510, %v8831
    %v8972 = vadd.f32 %v8511, %v8834
    %v8973 = vadd.f32 %v8512, %v8836
    %v8974 = vadd.f32 %v8513, %v8839
    %v8975 = vadd.f32 %v8514, %v8841
    %v8976 = vadd.f32 %v8515, %v8844
    %v8977 = vadd.f32 %v8516, %v8846
    %v8978 = vadd.f32 %v8517, %v8849
    %v8979 = vadd.f32 %v8518, %v8851
    %v8980 = vadd.f32 %v8519, %v8854
    %v8981 = vadd.f32 %v8520, %v8856
    %v8982 = vadd.f32 %v8521, %v8859
    %v8983 = vadd.f32 %v8522, %v8861
    %v8984 = vadd.f32 %v8523, %v8864
    %v8985 = vadd.f32 %v8524, %v8866
    %v8986 = vadd.f32 %v8525, %v8869
    %v8987 = vadd.f32 %v8526, %v8871
    %v8988 = vadd.f32 %v8527, %v8874
    %v8989 = vadd.f32 %v8528, %v8876
    %v8990 = vadd.f32 %v8529, %v8879
    %v8991 = vadd.f32 %v8530, %v8881
    %v8992 = vadd.f32 %v8531, %v8884
    %v8993 = vadd.f32 %v8532, %v8886
    %v8994 = vadd.f32 %v8533, %v8889
    %v8995 = vadd.f32 %v8534, %v8891
    %v8996 = vadd.f32 %v8535, %v8894
    %v8997 = vadd.f32 %v8536, %v8896
    %v8998 = vadd.f32 %v8537, %v8899
    %v8999 = vadd.f32 %v8538, %v8901
    %v9000 = vadd.f32 %v8539, %v8904
    %v9001 = vadd.f32 %v8540, %v8906
    %v9002 = vadd.f32 %v8541, %v8909
    %v9003 = vadd.f32 %v8542, %v8911
    %v9004 = vadd.f32 %v8543, %v8914
    %v9005 = vadd.f32 %v8544, %v8916
    %v9006 = vadd.f32 %v8545, %v8919
    %v9007 = vadd.f32 %v8546, %v8921
    %v9008 = vadd.f32 %v8547, %v8924
    %v9009 = vadd.f32 %v8548, %v8926
    %v9010 = vadd.f32 %v8549, %v8929
    %v9011 = vadd.f32 %v8550, %v8931
    %v9012 = vadd.f32 %v8551, %v8934
    %v9013 = vadd.f32 %v8552, %v8936
    %v9014 = vadd.f32 %v8553, %v8939
    %v9015 = vadd.f32 %v8554, %v8941
    %v9016 = vadd.f32 %v8555, %v8944
    %v9017 = vadd.f32 %v8556, %v8946
    %v9018 = vadd.f32 %v8557, %v8949
    %v9019 = vadd.f32 %v8558, %v8951
    %v9020 = vadd.f32 %v8559, %v8954
    %v9021 = vadd.f32 %v8560, %v8956
    %s9022 = scalar_lea.vmem %s4, %s4995
    %v9023 = vld [vmem:[%s9022] sm:$0x1]
    %v9025 = vperm.slane %v9023, 0
    %v9027 = vadd.f32 %v8958, %v9025
    %v9028 = vadd.f32 %v8959, %v9025
    %v9029 = vadd.f32 %v8960, %v9025
    %v9030 = vadd.f32 %v8961, %v9025
    %v9031 = vadd.f32 %v8962, %v9025
    %v9032 = vadd.f32 %v8963, %v9025
    %v9033 = vadd.f32 %v8964, %v9025
    %v9034 = vadd.f32 %v8965, %v9025
    %v9035 = vadd.f32 %v8966, %v9025
    %v9036 = vadd.f32 %v8967, %v9025
    %v9037 = vadd.f32 %v8968, %v9025
    %v9038 = vadd.f32 %v8969, %v9025
    %v9039 = vadd.f32 %v8970, %v9025
    %v9040 = vadd.f32 %v8971, %v9025
    %v9041 = vadd.f32 %v8972, %v9025
    %v9042 = vadd.f32 %v8973, %v9025
    %v9043 = vadd.f32 %v8974, %v9025
    %v9044 = vadd.f32 %v8975, %v9025
    %v9045 = vadd.f32 %v8976, %v9025
    %v9046 = vadd.f32 %v8977, %v9025
    %v9047 = vadd.f32 %v8978, %v9025
    %v9048 = vadd.f32 %v8979, %v9025
    %v9049 = vadd.f32 %v8980, %v9025
    %v9050 = vadd.f32 %v8981, %v9025
    %v9051 = vadd.f32 %v8982, %v9025
    %v9052 = vadd.f32 %v8983, %v9025
    %v9053 = vadd.f32 %v8984, %v9025
    %v9054 = vadd.f32 %v8985, %v9025
    %v9055 = vadd.f32 %v8986, %v9025
    %v9056 = vadd.f32 %v8987, %v9025
    %v9057 = vadd.f32 %v8988, %v9025
    %v9058 = vadd.f32 %v8989, %v9025
    %v9059 = vadd.f32 %v8990, %v9025
    %v9060 = vadd.f32 %v8991, %v9025
    %v9061 = vadd.f32 %v8992, %v9025
    %v9062 = vadd.f32 %v8993, %v9025
    %v9063 = vadd.f32 %v8994, %v9025
    %v9064 = vadd.f32 %v8995, %v9025
    %v9065 = vadd.f32 %v8996, %v9025
    %v9066 = vadd.f32 %v8997, %v9025
    %v9067 = vadd.f32 %v8998, %v9025
    %v9068 = vadd.f32 %v8999, %v9025
    %v9069 = vadd.f32 %v9000, %v9025
    %v9070 = vadd.f32 %v9001, %v9025
    %v9071 = vadd.f32 %v9002, %v9025
    %v9072 = vadd.f32 %v9003, %v9025
    %v9073 = vadd.f32 %v9004, %v9025
    %v9074 = vadd.f32 %v9005, %v9025
    %v9075 = vadd.f32 %v9006, %v9025
    %v9076 = vadd.f32 %v9007, %v9025
    %v9077 = vadd.f32 %v9008, %v9025
    %v9078 = vadd.f32 %v9009, %v9025
    %v9079 = vadd.f32 %v9010, %v9025
    %v9080 = vadd.f32 %v9011, %v9025
    %v9081 = vadd.f32 %v9012, %v9025
    %v9082 = vadd.f32 %v9013, %v9025
    %v9083 = vadd.f32 %v9014, %v9025
    %v9084 = vadd.f32 %v9015, %v9025
    %v9085 = vadd.f32 %v9016, %v9025
    %v9086 = vadd.f32 %v9017, %v9025
    %v9087 = vadd.f32 %v9018, %v9025
    %v9088 = vadd.f32 %v9019, %v9025
    %v9089 = vadd.f32 %v9020, %v9025
    %v9090 = vadd.f32 %v9021, %v9025
    %v9091 = vsel %vm33, %v9027, 0.0
    %v9092 = vsel %vm33, %v9028, 0.0
    %v9093 = vadd.f32 %v9091, %v9092
    %v9094 = vsel %vm33, %v9029, 0.0
    %v9095 = vadd.f32 %v9093, %v9094
    %v9096 = vsel %vm33, %v9030, 0.0
    %v9097 = vadd.f32 %v9095, %v9096
    %v9098 = vsel %vm33, %v9031, 0.0
    %v9099 = vadd.f32 %v9097, %v9098
    %v9100 = vsel %vm33, %v9032, 0.0
    %v9101 = vadd.f32 %v9099, %v9100
    %v9102 = vsel %vm33, %v9033, 0.0
    %v9103 = vadd.f32 %v9101, %v9102
    %v9104 = vsel %vm33, %v9034, 0.0
    %v9105 = vadd.f32 %v9103, %v9104
    %v9106 = vsel %vm33, %v9035, 0.0
    %v9107 = vadd.f32 %v9105, %v9106
    %v9108 = vsel %vm33, %v9036, 0.0
    %v9109 = vadd.f32 %v9107, %v9108
    %v9110 = vsel %vm33, %v9037, 0.0
    %v9111 = vadd.f32 %v9109, %v9110
    %v9112 = vsel %vm33, %v9038, 0.0
    %v9113 = vadd.f32 %v9111, %v9112
    %v9114 = vsel %vm33, %v9039, 0.0
    %v9115 = vadd.f32 %v9113, %v9114
    %v9116 = vsel %vm33, %v9040, 0.0
    %v9117 = vadd.f32 %v9115, %v9116
    %v9118 = vsel %vm33, %v9041, 0.0
    %v9119 = vadd.f32 %v9117, %v9118
    %v9120 = vsel %vm33, %v9042, 0.0
    %v9121 = vadd.f32 %v9119, %v9120
    %v9122 = vsel %vm33, %v9043, 0.0
    %v9123 = vadd.f32 %v9121, %v9122
    %v9124 = vsel %vm33, %v9044, 0.0
    %v9125 = vadd.f32 %v9123, %v9124
    %v9126 = vsel %vm33, %v9045, 0.0
    %v9127 = vadd.f32 %v9125, %v9126
    %v9128 = vsel %vm33, %v9046, 0.0
    %v9129 = vadd.f32 %v9127, %v9128
    %v9130 = vsel %vm33, %v9047, 0.0
    %v9131 = vadd.f32 %v9129, %v9130
    %v9132 = vsel %vm33, %v9048, 0.0
    %v9133 = vadd.f32 %v9131, %v9132
    %v9134 = vsel %vm33, %v9049, 0.0
    %v9135 = vadd.f32 %v9133, %v9134
    %v9136 = vsel %vm33, %v9050, 0.0
    %v9137 = vadd.f32 %v9135, %v9136
    %v9138 = vsel %vm33, %v9051, 0.0
    %v9139 = vadd.f32 %v9137, %v9138
    %v9140 = vsel %vm33, %v9052, 0.0
    %v9141 = vadd.f32 %v9139, %v9140
    %v9142 = vsel %vm33, %v9053, 0.0
    %v9143 = vadd.f32 %v9141, %v9142
    %v9144 = vsel %vm33, %v9054, 0.0
    %v9145 = vadd.f32 %v9143, %v9144
    %v9146 = vsel %vm33, %v9055, 0.0
    %v9147 = vadd.f32 %v9145, %v9146
    %v9148 = vsel %vm33, %v9056, 0.0
    %v9149 = vadd.f32 %v9147, %v9148
    %v9150 = vsel %vm33, %v9057, 0.0
    %v9151 = vadd.f32 %v9149, %v9150
    %v9152 = vsel %vm33, %v9058, 0.0
    %v9153 = vadd.f32 %v9151, %v9152
    %v9154 = vsel %vm33, %v9059, 0.0
    %v9155 = vadd.f32 %v9153, %v9154
    %v9156 = vsel %vm33, %v9060, 0.0
    %v9157 = vadd.f32 %v9155, %v9156
    %v9158 = vsel %vm33, %v9061, 0.0
    %v9159 = vadd.f32 %v9157, %v9158
    %v9160 = vsel %vm33, %v9062, 0.0
    %v9161 = vadd.f32 %v9159, %v9160
    %v9162 = vsel %vm33, %v9063, 0.0
    %v9163 = vadd.f32 %v9161, %v9162
    %v9164 = vsel %vm33, %v9064, 0.0
    %v9165 = vadd.f32 %v9163, %v9164
    %v9166 = vsel %vm33, %v9065, 0.0
    %v9167 = vadd.f32 %v9165, %v9166
    %v9168 = vsel %vm33, %v9066, 0.0
    %v9169 = vadd.f32 %v9167, %v9168
    %v9170 = vsel %vm33, %v9067, 0.0
    %v9171 = vadd.f32 %v9169, %v9170
    %v9172 = vsel %vm33, %v9068, 0.0
    %v9173 = vadd.f32 %v9171, %v9172
    %v9174 = vsel %vm33, %v9069, 0.0
    %v9175 = vadd.f32 %v9173, %v9174
    %v9176 = vsel %vm33, %v9070, 0.0
    %v9177 = vadd.f32 %v9175, %v9176
    %v9178 = vsel %vm33, %v9071, 0.0
    %v9179 = vadd.f32 %v9177, %v9178
    %v9180 = vsel %vm33, %v9072, 0.0
    %v9181 = vadd.f32 %v9179, %v9180
    %v9182 = vsel %vm33, %v9073, 0.0
    %v9183 = vadd.f32 %v9181, %v9182
    %v9184 = vsel %vm33, %v9074, 0.0
    %v9185 = vadd.f32 %v9183, %v9184
    %v9186 = vsel %vm33, %v9075, 0.0
    %v9187 = vadd.f32 %v9185, %v9186
    %v9188 = vsel %vm33, %v9076, 0.0
    %v9189 = vadd.f32 %v9187, %v9188
    %v9190 = vsel %vm33, %v9077, 0.0
    %v9191 = vadd.f32 %v9189, %v9190
    %v9192 = vsel %vm33, %v9078, 0.0
    %v9193 = vadd.f32 %v9191, %v9192
    %v9194 = vsel %vm33, %v9079, 0.0
    %v9195 = vadd.f32 %v9193, %v9194
    %v9196 = vsel %vm33, %v9080, 0.0
    %v9197 = vadd.f32 %v9195, %v9196
    %v9198 = vsel %vm33, %v9081, 0.0
    %v9199 = vadd.f32 %v9197, %v9198
    %v9200 = vsel %vm33, %v9082, 0.0
    %v9201 = vadd.f32 %v9199, %v9200
    %v9202 = vsel %vm33, %v9083, 0.0
    %v9203 = vadd.f32 %v9201, %v9202
    %v9204 = vsel %vm33, %v9084, 0.0
    %v9205 = vadd.f32 %v9203, %v9204
    %v9206 = vsel %vm33, %v9085, 0.0
    %v9207 = vadd.f32 %v9205, %v9206
    %v9208 = vsel %vm33, %v9086, 0.0
    %v9209 = vadd.f32 %v9207, %v9208
    %v9210 = vsel %vm33, %v9087, 0.0
    %v9211 = vadd.f32 %v9209, %v9210
    %v9212 = vsel %vm33, %v9088, 0.0
    %v9213 = vadd.f32 %v9211, %v9212
    %v9214 = vsel %vm33, %v9089, 0.0
    %v9215 = vadd.f32 %v9213, %v9214
    %v9216 = vsel %vm33, %v9090, 0.0
    %v9217 = vadd.f32 %v9215, %v9216
    %v9218 = vrot.slane %v9217, 4
    %v9219 = vadd.f32 %v9217, %v9218
    %v9220 = vrot.slane %v9219, 2
    %v9221 = vadd.f32 %v9219, %v9220
    %v9222 = vrot.slane %v9221, 1
    %v9223 = vadd.f32 %v9221, %v9222
    %v9224 = vmul.f32 %v9223, 0.001953125
    %v9225 = vsub.f32 %v9027, %v9224
    %v9226 = vsub.f32 %v9028, %v9224
    %v9227 = vsub.f32 %v9029, %v9224
    %v9228 = vsub.f32 %v9030, %v9224
    %v9229 = vsub.f32 %v9031, %v9224
    %v9230 = vsub.f32 %v9032, %v9224
    %v9231 = vsub.f32 %v9033, %v9224
    %v9232 = vsub.f32 %v9034, %v9224
    %v9233 = vsub.f32 %v9035, %v9224
    %v9234 = vsub.f32 %v9036, %v9224
    %v9235 = vsub.f32 %v9037, %v9224
    %v9236 = vsub.f32 %v9038, %v9224
    %v9237 = vsub.f32 %v9039, %v9224
    %v9238 = vsub.f32 %v9040, %v9224
    %v9239 = vsub.f32 %v9041, %v9224
    %v9240 = vsub.f32 %v9042, %v9224
    %v9241 = vsub.f32 %v9043, %v9224
    %v9242 = vsub.f32 %v9044, %v9224
    %v9243 = vsub.f32 %v9045, %v9224
    %v9244 = vsub.f32 %v9046, %v9224
    %v9245 = vsub.f32 %v9047, %v9224
    %v9246 = vsub.f32 %v9048, %v9224
    %v9247 = vsub.f32 %v9049, %v9224
    %v9248 = vsub.f32 %v9050, %v9224
    %v9249 = vsub.f32 %v9051, %v9224
    %v9250 = vsub.f32 %v9052, %v9224
    %v9251 = vsub.f32 %v9053, %v9224
    %v9252 = vsub.f32 %v9054, %v9224
    %v9253 = vsub.f32 %v9055, %v9224
    %v9254 = vsub.f32 %v9056, %v9224
    %v9255 = vsub.f32 %v9057, %v9224
    %v9256 = vsub.f32 %v9058, %v9224
    %v9257 = vsub.f32 %v9059, %v9224
    %v9258 = vsub.f32 %v9060, %v9224
    %v9259 = vsub.f32 %v9061, %v9224
    %v9260 = vsub.f32 %v9062, %v9224
    %v9261 = vsub.f32 %v9063, %v9224
    %v9262 = vsub.f32 %v9064, %v9224
    %v9263 = vsub.f32 %v9065, %v9224
    %v9264 = vsub.f32 %v9066, %v9224
    %v9265 = vsub.f32 %v9067, %v9224
    %v9266 = vsub.f32 %v9068, %v9224
    %v9267 = vsub.f32 %v9069, %v9224
    %v9268 = vsub.f32 %v9070, %v9224
    %v9269 = vsub.f32 %v9071, %v9224
    %v9270 = vsub.f32 %v9072, %v9224
    %v9271 = vsub.f32 %v9073, %v9224
    %v9272 = vsub.f32 %v9074, %v9224
    %v9273 = vsub.f32 %v9075, %v9224
    %v9274 = vsub.f32 %v9076, %v9224
    %v9275 = vsub.f32 %v9077, %v9224
    %v9276 = vsub.f32 %v9078, %v9224
    %v9277 = vsub.f32 %v9079, %v9224
    %v9278 = vsub.f32 %v9080, %v9224
    %v9279 = vsub.f32 %v9081, %v9224
    %v9280 = vsub.f32 %v9082, %v9224
    %v9281 = vsub.f32 %v9083, %v9224
    %v9282 = vsub.f32 %v9084, %v9224
    %v9283 = vsub.f32 %v9085, %v9224
    %v9284 = vsub.f32 %v9086, %v9224
    %v9285 = vsub.f32 %v9087, %v9224
    %v9286 = vsub.f32 %v9088, %v9224
    %v9287 = vsub.f32 %v9089, %v9224
    %v9288 = vsub.f32 %v9090, %v9224
    %v9289 = vmul.f32 %v9225, %v9225
    %v9290 = vmul.f32 %v9226, %v9226
    %v9291 = vmul.f32 %v9227, %v9227
    %v9292 = vmul.f32 %v9228, %v9228
    %v9293 = vmul.f32 %v9229, %v9229
    %v9294 = vmul.f32 %v9230, %v9230
    %v9295 = vmul.f32 %v9231, %v9231
    %v9296 = vmul.f32 %v9232, %v9232
    %v9297 = vmul.f32 %v9233, %v9233
    %v9298 = vmul.f32 %v9234, %v9234
    %v9299 = vmul.f32 %v9235, %v9235
    %v9300 = vmul.f32 %v9236, %v9236
    %v9301 = vmul.f32 %v9237, %v9237
    %v9302 = vmul.f32 %v9238, %v9238
    %v9303 = vmul.f32 %v9239, %v9239
    %v9304 = vmul.f32 %v9240, %v9240
    %v9305 = vmul.f32 %v9241, %v9241
    %v9306 = vmul.f32 %v9242, %v9242
    %v9307 = vmul.f32 %v9243, %v9243
    %v9308 = vmul.f32 %v9244, %v9244
    %v9309 = vmul.f32 %v9245, %v9245
    %v9310 = vmul.f32 %v9246, %v9246
    %v9311 = vmul.f32 %v9247, %v9247
    %v9312 = vmul.f32 %v9248, %v9248
    %v9313 = vmul.f32 %v9249, %v9249
    %v9314 = vmul.f32 %v9250, %v9250
    %v9315 = vmul.f32 %v9251, %v9251
    %v9316 = vmul.f32 %v9252, %v9252
    %v9317 = vmul.f32 %v9253, %v9253
    %v9318 = vmul.f32 %v9254, %v9254
    %v9319 = vmul.f32 %v9255, %v9255
    %v9320 = vmul.f32 %v9256, %v9256
    %v9321 = vmul.f32 %v9257, %v9257
    %v9322 = vmul.f32 %v9258, %v9258
    %v9323 = vmul.f32 %v9259, %v9259
    %v9324 = vmul.f32 %v9260, %v9260
    %v9325 = vmul.f32 %v9261, %v9261
    %v9326 = vmul.f32 %v9262, %v9262
    %v9327 = vmul.f32 %v9263, %v9263
    %v9328 = vmul.f32 %v9264, %v9264
    %v9329 = vmul.f32 %v9265, %v9265
    %v9330 = vmul.f32 %v9266, %v9266
    %v9331 = vmul.f32 %v9267, %v9267
    %v9332 = vmul.f32 %v9268, %v9268
    %v9333 = vmul.f32 %v9269, %v9269
    %v9334 = vmul.f32 %v9270, %v9270
    %v9335 = vmul.f32 %v9271, %v9271
    %v9336 = vmul.f32 %v9272, %v9272
    %v9337 = vmul.f32 %v9273, %v9273
    %v9338 = vmul.f32 %v9274, %v9274
    %v9339 = vmul.f32 %v9275, %v9275
    %v9340 = vmul.f32 %v9276, %v9276
    %v9341 = vmul.f32 %v9277, %v9277
    %v9342 = vmul.f32 %v9278, %v9278
    %v9343 = vmul.f32 %v9279, %v9279
    %v9344 = vmul.f32 %v9280, %v9280
    %v9345 = vmul.f32 %v9281, %v9281
    %v9346 = vmul.f32 %v9282, %v9282
    %v9347 = vmul.f32 %v9283, %v9283
    %v9348 = vmul.f32 %v9284, %v9284
    %v9349 = vmul.f32 %v9285, %v9285
    %v9350 = vmul.f32 %v9286, %v9286
    %v9351 = vmul.f32 %v9287, %v9287
    %v9352 = vmul.f32 %v9288, %v9288
    %v9353 = vsel %vm33, %v9289, 0.0
    %v9354 = vsel %vm33, %v9290, 0.0
    %v9355 = vadd.f32 %v9353, %v9354
    %v9356 = vsel %vm33, %v9291, 0.0
    %v9357 = vadd.f32 %v9355, %v9356
    %v9358 = vsel %vm33, %v9292, 0.0
    %v9359 = vadd.f32 %v9357, %v9358
    %v9360 = vsel %vm33, %v9293, 0.0
    %v9361 = vadd.f32 %v9359, %v9360
    %v9362 = vsel %vm33, %v9294, 0.0
    %v9363 = vadd.f32 %v9361, %v9362
    %v9364 = vsel %vm33, %v9295, 0.0
    %v9365 = vadd.f32 %v9363, %v9364
    %v9366 = vsel %vm33, %v9296, 0.0
    %v9367 = vadd.f32 %v9365, %v9366
    %v9368 = vsel %vm33, %v9297, 0.0
    %v9369 = vadd.f32 %v9367, %v9368
    %v9370 = vsel %vm33, %v9298, 0.0
    %v9371 = vadd.f32 %v9369, %v9370
    %v9372 = vsel %vm33, %v9299, 0.0
    %v9373 = vadd.f32 %v9371, %v9372
    %v9374 = vsel %vm33, %v9300, 0.0
    %v9375 = vadd.f32 %v9373, %v9374
    %v9376 = vsel %vm33, %v9301, 0.0
    %v9377 = vadd.f32 %v9375, %v9376
    %v9378 = vsel %vm33, %v9302, 0.0
    %v9379 = vadd.f32 %v9377, %v9378
    %v9380 = vsel %vm33, %v9303, 0.0
    %v9381 = vadd.f32 %v9379, %v9380
    %v9382 = vsel %vm33, %v9304, 0.0
    %v9383 = vadd.f32 %v9381, %v9382
    %v9384 = vsel %vm33, %v9305, 0.0
    %v9385 = vadd.f32 %v9383, %v9384
    %v9386 = vsel %vm33, %v9306, 0.0
    %v9387 = vadd.f32 %v9385, %v9386
    %v9388 = vsel %vm33, %v9307, 0.0
    %v9389 = vadd.f32 %v9387, %v9388
    %v9390 = vsel %vm33, %v9308, 0.0
    %v9391 = vadd.f32 %v9389, %v9390
    %v9392 = vsel %vm33, %v9309, 0.0
    %v9393 = vadd.f32 %v9391, %v9392
    %v9394 = vsel %vm33, %v9310, 0.0
    %v9395 = vadd.f32 %v9393, %v9394
    %v9396 = vsel %vm33, %v9311, 0.0
    %v9397 = vadd.f32 %v9395, %v9396
    %v9398 = vsel %vm33, %v9312, 0.0
    %v9399 = vadd.f32 %v9397, %v9398
    %v9400 = vsel %vm33, %v9313, 0.0
    %v9401 = vadd.f32 %v9399, %v9400
    %v9402 = vsel %vm33, %v9314, 0.0
    %v9403 = vadd.f32 %v9401, %v9402
    %v9404 = vsel %vm33, %v9315, 0.0
    %v9405 = vadd.f32 %v9403, %v9404
    %v9406 = vsel %vm33, %v9316, 0.0
    %v9407 = vadd.f32 %v9405, %v9406
    %v9408 = vsel %vm33, %v9317, 0.0
    %v9409 = vadd.f32 %v9407, %v9408
    %v9410 = vsel %vm33, %v9318, 0.0
    %v9411 = vadd.f32 %v9409, %v9410
    %v9412 = vsel %vm33, %v9319, 0.0
    %v9413 = vadd.f32 %v9411, %v9412
    %v9414 = vsel %vm33, %v9320, 0.0
    %v9415 = vadd.f32 %v9413, %v9414
    %v9416 = vsel %vm33, %v9321, 0.0
    %v9417 = vadd.f32 %v9415, %v9416
    %v9418 = vsel %vm33, %v9322, 0.0
    %v9419 = vadd.f32 %v9417, %v9418
    %v9420 = vsel %vm33, %v9323, 0.0
    %v9421 = vadd.f32 %v9419, %v9420
    %v9422 = vsel %vm33, %v9324, 0.0
    %v9423 = vadd.f32 %v9421, %v9422
    %v9424 = vsel %vm33, %v9325, 0.0
    %v9425 = vadd.f32 %v9423, %v9424
    %v9426 = vsel %vm33, %v9326, 0.0
    %v9427 = vadd.f32 %v9425, %v9426
    %v9428 = vsel %vm33, %v9327, 0.0
    %v9429 = vadd.f32 %v9427, %v9428
    %v9430 = vsel %vm33, %v9328, 0.0
    %v9431 = vadd.f32 %v9429, %v9430
    %v9432 = vsel %vm33, %v9329, 0.0
    %v9433 = vadd.f32 %v9431, %v9432
    %v9434 = vsel %vm33, %v9330, 0.0
    %v9435 = vadd.f32 %v9433, %v9434
    %v9436 = vsel %vm33, %v9331, 0.0
    %v9437 = vadd.f32 %v9435, %v9436
    %v9438 = vsel %vm33, %v9332, 0.0
    %v9439 = vadd.f32 %v9437, %v9438
    %v9440 = vsel %vm33, %v9333, 0.0
    %v9441 = vadd.f32 %v9439, %v9440
    %v9442 = vsel %vm33, %v9334, 0.0
    %v9443 = vadd.f32 %v9441, %v9442
    %v9444 = vsel %vm33, %v9335, 0.0
    %v9445 = vadd.f32 %v9443, %v9444
    %v9446 = vsel %vm33, %v9336, 0.0
    %v9447 = vadd.f32 %v9445, %v9446
    %v9448 = vsel %vm33, %v9337, 0.0
    %v9449 = vadd.f32 %v9447, %v9448
    %v9450 = vsel %vm33, %v9338, 0.0
    %v9451 = vadd.f32 %v9449, %v9450
    %v9452 = vsel %vm33, %v9339, 0.0
    %v9453 = vadd.f32 %v9451, %v9452
    %v9454 = vsel %vm33, %v9340, 0.0
    %v9455 = vadd.f32 %v9453, %v9454
    %v9456 = vsel %vm33, %v9341, 0.0
    %v9457 = vadd.f32 %v9455, %v9456
    %v9458 = vsel %vm33, %v9342, 0.0
    %v9459 = vadd.f32 %v9457, %v9458
    %v9460 = vsel %vm33, %v9343, 0.0
    %v9461 = vadd.f32 %v9459, %v9460
    %v9462 = vsel %vm33, %v9344, 0.0
    %v9463 = vadd.f32 %v9461, %v9462
    %v9464 = vsel %vm33, %v9345, 0.0
    %v9465 = vadd.f32 %v9463, %v9464
    %v9466 = vsel %vm33, %v9346, 0.0
    %v9467 = vadd.f32 %v9465, %v9466
    %v9468 = vsel %vm33, %v9347, 0.0
    %v9469 = vadd.f32 %v9467, %v9468
    %v9470 = vsel %vm33, %v9348, 0.0
    %v9471 = vadd.f32 %v9469, %v9470
    %v9472 = vsel %vm33, %v9349, 0.0
    %v9473 = vadd.f32 %v9471, %v9472
    %v9474 = vsel %vm33, %v9350, 0.0
    %v9475 = vadd.f32 %v9473, %v9474
    %v9476 = vsel %vm33, %v9351, 0.0
    %v9477 = vadd.f32 %v9475, %v9476
    %v9478 = vsel %vm33, %v9352, 0.0
    %v9479 = vadd.f32 %v9477, %v9478
    %v9480 = vrot.slane %v9479, 4
    %v9481 = vadd.f32 %v9479, %v9480
    %v9482 = vrot.slane %v9481, 2
    %v9483 = vadd.f32 %v9481, %v9482
    %v9484 = vrot.slane %v9483, 1
    %v9485 = vadd.f32 %v9483, %v9484
    %v9486 = vmul.f32 %v9485, 0.001953125
    %s9487 = scalar_lea.vmem %s5, %s4995
    %v9488 = vld [vmem:[%s9487] sm:$0x1]
    %v9489 = vadd.f32 %v9486, 1e-05
    %v9490 = vrsqrt.pop %v9489
    %v9491 = vmul.f32 %v9490, %v9489
    %v9492 = vmul.f32 %v9491, %v9490
    %v9493 = vmul.f32 0.5, %v9492
    %v9494 = vsub.f32 1.5, %v9493
    %v9495 = vmul.f32 %v9490, %v9494
    %vm9496 = vweird.f32 %v9489
    %vm9497 = vweird.f32 %v9490
    %vm9498 = vmor %vm9496, %vm9497
    %v9499 = vsel %vm9498, %v9490, %v9495
    %v9500 = vmul.f32 %v9488, %v9499
    %v9502 = vperm.slane %v9500, 0
    %v9504 = vmul.f32 %v9225, %v9502
    %v9505 = vmul.f32 %v9226, %v9502
    %v9506 = vmul.f32 %v9227, %v9502
    %v9507 = vmul.f32 %v9228, %v9502
    %v9508 = vmul.f32 %v9229, %v9502
    %v9509 = vmul.f32 %v9230, %v9502
    %v9510 = vmul.f32 %v9231, %v9502
    %v9511 = vmul.f32 %v9232, %v9502
    %v9512 = vmul.f32 %v9233, %v9502
    %v9513 = vmul.f32 %v9234, %v9502
    %v9514 = vmul.f32 %v9235, %v9502
    %v9515 = vmul.f32 %v9236, %v9502
    %v9516 = vmul.f32 %v9237, %v9502
    %v9517 = vmul.f32 %v9238, %v9502
    %v9518 = vmul.f32 %v9239, %v9502
    %v9519 = vmul.f32 %v9240, %v9502
    %v9520 = vmul.f32 %v9241, %v9502
    %v9521 = vmul.f32 %v9242, %v9502
    %v9522 = vmul.f32 %v9243, %v9502
    %v9523 = vmul.f32 %v9244, %v9502
    %v9524 = vmul.f32 %v9245, %v9502
    %v9525 = vmul.f32 %v9246, %v9502
    %v9526 = vmul.f32 %v9247, %v9502
    %v9527 = vmul.f32 %v9248, %v9502
    %v9528 = vmul.f32 %v9249, %v9502
    %v9529 = vmul.f32 %v9250, %v9502
    %v9530 = vmul.f32 %v9251, %v9502
    %v9531 = vmul.f32 %v9252, %v9502
    %v9532 = vmul.f32 %v9253, %v9502
    %v9533 = vmul.f32 %v9254, %v9502
    %v9534 = vmul.f32 %v9255, %v9502
    %v9535 = vmul.f32 %v9256, %v9502
    %v9536 = vmul.f32 %v9257, %v9502
    %v9537 = vmul.f32 %v9258, %v9502
    %v9538 = vmul.f32 %v9259, %v9502
    %v9539 = vmul.f32 %v9260, %v9502
    %v9540 = vmul.f32 %v9261, %v9502
    %v9541 = vmul.f32 %v9262, %v9502
    %v9542 = vmul.f32 %v9263, %v9502
    %v9543 = vmul.f32 %v9264, %v9502
    %v9544 = vmul.f32 %v9265, %v9502
    %v9545 = vmul.f32 %v9266, %v9502
    %v9546 = vmul.f32 %v9267, %v9502
    %v9547 = vmul.f32 %v9268, %v9502
    %v9548 = vmul.f32 %v9269, %v9502
    %v9549 = vmul.f32 %v9270, %v9502
    %v9550 = vmul.f32 %v9271, %v9502
    %v9551 = vmul.f32 %v9272, %v9502
    %v9552 = vmul.f32 %v9273, %v9502
    %v9553 = vmul.f32 %v9274, %v9502
    %v9554 = vmul.f32 %v9275, %v9502
    %v9555 = vmul.f32 %v9276, %v9502
    %v9556 = vmul.f32 %v9277, %v9502
    %v9557 = vmul.f32 %v9278, %v9502
    %v9558 = vmul.f32 %v9279, %v9502
    %v9559 = vmul.f32 %v9280, %v9502
    %v9560 = vmul.f32 %v9281, %v9502
    %v9561 = vmul.f32 %v9282, %v9502
    %v9562 = vmul.f32 %v9283, %v9502
    %v9563 = vmul.f32 %v9284, %v9502
    %v9564 = vmul.f32 %v9285, %v9502
    %v9565 = vmul.f32 %v9286, %v9502
    %v9566 = vmul.f32 %v9287, %v9502
    %v9567 = vmul.f32 %v9288, %v9502
    %s9568 = scalar_lea.vmem %s6, %s4995
    %v9569 = vld [vmem:[%s9568] sm:$0x1]
    %v9571 = vperm.slane %v9569, 0
    %v9573 = vadd.f32 %v9504, %v9571
    %v9574 = vadd.f32 %v9505, %v9571
    %v9575 = vadd.f32 %v9506, %v9571
    %v9576 = vadd.f32 %v9507, %v9571
    %v9577 = vadd.f32 %v9508, %v9571
    %v9578 = vadd.f32 %v9509, %v9571
    %v9579 = vadd.f32 %v9510, %v9571
    %v9580 = vadd.f32 %v9511, %v9571
    %v9581 = vadd.f32 %v9512, %v9571
    %v9582 = vadd.f32 %v9513, %v9571
    %v9583 = vadd.f32 %v9514, %v9571
    %v9584 = vadd.f32 %v9515, %v9571
    %v9585 = vadd.f32 %v9516, %v9571
    %v9586 = vadd.f32 %v9517, %v9571
    %v9587 = vadd.f32 %v9518, %v9571
    %v9588 = vadd.f32 %v9519, %v9571
    %v9589 = vadd.f32 %v9520, %v9571
    %v9590 = vadd.f32 %v9521, %v9571
    %v9591 = vadd.f32 %v9522, %v9571
    %v9592 = vadd.f32 %v9523, %v9571
    %v9593 = vadd.f32 %v9524, %v9571
    %v9594 = vadd.f32 %v9525, %v9571
    %v9595 = vadd.f32 %v9526, %v9571
    %v9596 = vadd.f32 %v9527, %v9571
    %v9597 = vadd.f32 %v9528, %v9571
    %v9598 = vadd.f32 %v9529, %v9571
    %v9599 = vadd.f32 %v9530, %v9571
    %v9600 = vadd.f32 %v9531, %v9571
    %v9601 = vadd.f32 %v9532, %v9571
    %v9602 = vadd.f32 %v9533, %v9571
    %v9603 = vadd.f32 %v9534, %v9571
    %v9604 = vadd.f32 %v9535, %v9571
    %v9605 = vadd.f32 %v9536, %v9571
    %v9606 = vadd.f32 %v9537, %v9571
    %v9607 = vadd.f32 %v9538, %v9571
    %v9608 = vadd.f32 %v9539, %v9571
    %v9609 = vadd.f32 %v9540, %v9571
    %v9610 = vadd.f32 %v9541, %v9571
    %v9611 = vadd.f32 %v9542, %v9571
    %v9612 = vadd.f32 %v9543, %v9571
    %v9613 = vadd.f32 %v9544, %v9571
    %v9614 = vadd.f32 %v9545, %v9571
    %v9615 = vadd.f32 %v9546, %v9571
    %v9616 = vadd.f32 %v9547, %v9571
    %v9617 = vadd.f32 %v9548, %v9571
    %v9618 = vadd.f32 %v9549, %v9571
    %v9619 = vadd.f32 %v9550, %v9571
    %v9620 = vadd.f32 %v9551, %v9571
    %v9621 = vadd.f32 %v9552, %v9571
    %v9622 = vadd.f32 %v9553, %v9571
    %v9623 = vadd.f32 %v9554, %v9571
    %v9624 = vadd.f32 %v9555, %v9571
    %v9625 = vadd.f32 %v9556, %v9571
    %v9626 = vadd.f32 %v9557, %v9571
    %v9627 = vadd.f32 %v9558, %v9571
    %v9628 = vadd.f32 %v9559, %v9571
    %v9629 = vadd.f32 %v9560, %v9571
    %v9630 = vadd.f32 %v9561, %v9571
    %v9631 = vadd.f32 %v9562, %v9571
    %v9632 = vadd.f32 %v9563, %v9571
    %v9633 = vadd.f32 %v9564, %v9571
    %v9634 = vadd.f32 %v9565, %v9571
    %v9635 = vadd.f32 %v9566, %v9571
    %v9636 = vadd.f32 %v9567, %v9571
    %v9637 = vmax.f32 %v9573, 0.0
    %v9638 = vmax.f32 %v9574, 0.0
    %v9639 = vmax.f32 %v9575, 0.0
    %v9640 = vmax.f32 %v9576, 0.0
    %v9641 = vmax.f32 %v9577, 0.0
    %v9642 = vmax.f32 %v9578, 0.0
    %v9643 = vmax.f32 %v9579, 0.0
    %v9644 = vmax.f32 %v9580, 0.0
    %v9645 = vmax.f32 %v9581, 0.0
    %v9646 = vmax.f32 %v9582, 0.0
    %v9647 = vmax.f32 %v9583, 0.0
    %v9648 = vmax.f32 %v9584, 0.0
    %v9649 = vmax.f32 %v9585, 0.0
    %v9650 = vmax.f32 %v9586, 0.0
    %v9651 = vmax.f32 %v9587, 0.0
    %v9652 = vmax.f32 %v9588, 0.0
    %v9653 = vmax.f32 %v9589, 0.0
    %v9654 = vmax.f32 %v9590, 0.0
    %v9655 = vmax.f32 %v9591, 0.0
    %v9656 = vmax.f32 %v9592, 0.0
    %v9657 = vmax.f32 %v9593, 0.0
    %v9658 = vmax.f32 %v9594, 0.0
    %v9659 = vmax.f32 %v9595, 0.0
    %v9660 = vmax.f32 %v9596, 0.0
    %v9661 = vmax.f32 %v9597, 0.0
    %v9662 = vmax.f32 %v9598, 0.0
    %v9663 = vmax.f32 %v9599, 0.0
    %v9664 = vmax.f32 %v9600, 0.0
    %v9665 = vmax.f32 %v9601, 0.0
    %v9666 = vmax.f32 %v9602, 0.0
    %v9667 = vmax.f32 %v9603, 0.0
    %v9668 = vmax.f32 %v9604, 0.0
    %v9669 = vmax.f32 %v9605, 0.0
    %v9670 = vmax.f32 %v9606, 0.0
    %v9671 = vmax.f32 %v9607, 0.0
    %v9672 = vmax.f32 %v9608, 0.0
    %v9673 = vmax.f32 %v9609, 0.0
    %v9674 = vmax.f32 %v9610, 0.0
    %v9675 = vmax.f32 %v9611, 0.0
    %v9676 = vmax.f32 %v9612, 0.0
    %v9677 = vmax.f32 %v9613, 0.0
    %v9678 = vmax.f32 %v9614, 0.0
    %v9679 = vmax.f32 %v9615, 0.0
    %v9680 = vmax.f32 %v9616, 0.0
    %v9681 = vmax.f32 %v9617, 0.0
    %v9682 = vmax.f32 %v9618, 0.0
    %v9683 = vmax.f32 %v9619, 0.0
    %v9684 = vmax.f32 %v9620, 0.0
    %v9685 = vmax.f32 %v9621, 0.0
    %v9686 = vmax.f32 %v9622, 0.0
    %v9687 = vmax.f32 %v9623, 0.0
    %v9688 = vmax.f32 %v9624, 0.0
    %v9689 = vmax.f32 %v9625, 0.0
    %v9690 = vmax.f32 %v9626, 0.0
    %v9691 = vmax.f32 %v9627, 0.0
    %v9692 = vmax.f32 %v9628, 0.0
    %v9693 = vmax.f32 %v9629, 0.0
    %v9694 = vmax.f32 %v9630, 0.0
    %v9695 = vmax.f32 %v9631, 0.0
    %v9696 = vmax.f32 %v9632, 0.0
    %v9697 = vmax.f32 %v9633, 0.0
    %v9698 = vmax.f32 %v9634, 0.0
    %v9699 = vmax.f32 %v9635, 0.0
    %v9700 = vmax.f32 %v9636, 0.0
    %9701 = vst.msk [vmem:[%s4929 + $0x1] sm:$0xff] %vm33, %v9637
    %9702 = vst.msk [vmem:[%s4929 + $0x9] sm:$0xff] %vm33, %v9638
    %9703 = vst.msk [vmem:[%s4929 + $0x19] sm:$0xff] %vm33, %v9639
    %9704 = vst.msk [vmem:[%s4929 + $0x21] sm:$0xff] %vm33, %v9640
    %9705 = vst.msk [vmem:[%s4929 + $0x31] sm:$0xff] %vm33, %v9641
    %9706 = vst.msk [vmem:[%s4929 + $0x39] sm:$0xff] %vm33, %v9642
    %9707 = vst.msk [vmem:[%s4929 + $0x49] sm:$0xff] %vm33, %v9643
    %9708 = vst.msk [vmem:[%s4929 + $0x51] sm:$0xff] %vm33, %v9644
    %9709 = vst.msk [vmem:[%s4929 + $0x61] sm:$0xff] %vm33, %v9645
    %9710 = vst.msk [vmem:[%s4929 + $0x69] sm:$0xff] %vm33, %v9646
    %9711 = vst.msk [vmem:[%s4929 + $0x79] sm:$0xff] %vm33, %v9647
    %9712 = vst.msk [vmem:[%s4929 + $0x81] sm:$0xff] %vm33, %v9648
    %9713 = vst.msk [vmem:[%s4929 + $0x91] sm:$0xff] %vm33, %v9649
    %9714 = vst.msk [vmem:[%s4929 + $0x99] sm:$0xff] %vm33, %v9650
    %9715 = vst.msk [vmem:[%s4929 + $0xa9] sm:$0xff] %vm33, %v9651
    %9716 = vst.msk [vmem:[%s4929 + $0xb1] sm:$0xff] %vm33, %v9652
    %9717 = vst.msk [vmem:[%s4929 + $0xc1] sm:$0xff] %vm33, %v9653
    %9718 = vst.msk [vmem:[%s4929 + $0xc9] sm:$0xff] %vm33, %v9654
    %9719 = vst.msk [vmem:[%s4929 + $0xd9] sm:$0xff] %vm33, %v9655
    %9720 = vst.msk [vmem:[%s4929 + $0xe1] sm:$0xff] %vm33, %v9656
    %9721 = vst.msk [vmem:[%s4929 + $0xf1] sm:$0xff] %vm33, %v9657
    %9722 = vst.msk [vmem:[%s4929 + $0xf9] sm:$0xff] %vm33, %v9658
    %9723 = vst.msk [vmem:[%s4929 + $0x109] sm:$0xff] %vm33, %v9659
    %9724 = vst.msk [vmem:[%s4929 + $0x111] sm:$0xff] %vm33, %v9660
    %9725 = vst.msk [vmem:[%s4929 + $0x121] sm:$0xff] %vm33, %v9661
    %9726 = vst.msk [vmem:[%s4929 + $0x129] sm:$0xff] %vm33, %v9662
    %9727 = vst.msk [vmem:[%s4929 + $0x139] sm:$0xff] %vm33, %v9663
    %9728 = vst.msk [vmem:[%s4929 + $0x141] sm:$0xff] %vm33, %v9664
    %9729 = vst.msk [vmem:[%s4929 + $0x151] sm:$0xff] %vm33, %v9665
    %9730 = vst.msk [vmem:[%s4929 + $0x159] sm:$0xff] %vm33, %v9666
    %9731 = vst.msk [vmem:[%s4929 + $0x169] sm:$0xff] %vm33, %v9667
    %9732 = vst.msk [vmem:[%s4929 + $0x171] sm:$0xff] %vm33, %v9668
    %9733 = vst.msk [vmem:[%s4929 + $0x1b1] sm:$0xff] %vm33, %v9669
    %9734 = vst.msk [vmem:[%s4929 + $0x1b9] sm:$0xff] %vm33, %v9670
    %9735 = vst.msk [vmem:[%s4929 + $0x1c9] sm:$0xff] %vm33, %v9671
    %9736 = vst.msk [vmem:[%s4929 + $0x1d1] sm:$0xff] %vm33, %v9672
    %9737 = vst.msk [vmem:[%s4929 + $0x1e1] sm:$0xff] %vm33, %v9673
    %9738 = vst.msk [vmem:[%s4929 + $0x1e9] sm:$0xff] %vm33, %v9674
    %9739 = vst.msk [vmem:[%s4929 + $0x1f9] sm:$0xff] %vm33, %v9675
    %9740 = vst.msk [vmem:[%s4929 + $0x201] sm:$0xff] %vm33, %v9676
    %9741 = vst.msk [vmem:[%s4929 + $0x211] sm:$0xff] %vm33, %v9677
    %9742 = vst.msk [vmem:[%s4929 + $0x219] sm:$0xff] %vm33, %v9678
    %9743 = vst.msk [vmem:[%s4929 + $0x229] sm:$0xff] %vm33, %v9679
    %9744 = vst.msk [vmem:[%s4929 + $0x231] sm:$0xff] %vm33, %v9680
    %9745 = vst.msk [vmem:[%s4929 + $0x241] sm:$0xff] %vm33, %v9681
    %9746 = vst.msk [vmem:[%s4929 + $0x249] sm:$0xff] %vm33, %v9682
    %9747 = vst.msk [vmem:[%s4929 + $0x259] sm:$0xff] %vm33, %v9683
    %9748 = vst.msk [vmem:[%s4929 + $0x261] sm:$0xff] %vm33, %v9684
    %9749 = vst.msk [vmem:[%s4929 + $0x271] sm:$0xff] %vm33, %v9685
    %9750 = vst.msk [vmem:[%s4929 + $0x279] sm:$0xff] %vm33, %v9686
    %9751 = vst.msk [vmem:[%s4929 + $0x289] sm:$0xff] %vm33, %v9687
    %9752 = vst.msk [vmem:[%s4929 + $0x291] sm:$0xff] %vm33, %v9688
    %9753 = vst.msk [vmem:[%s4929 + $0x2a1] sm:$0xff] %vm33, %v9689
    %9754 = vst.msk [vmem:[%s4929 + $0x2a9] sm:$0xff] %vm33, %v9690
    %9755 = vst.msk [vmem:[%s4929 + $0x2b9] sm:$0xff] %vm33, %v9691
    %9756 = vst.msk [vmem:[%s4929 + $0x2c1] sm:$0xff] %vm33, %v9692
    %9757 = vst.msk [vmem:[%s4929 + $0x2d1] sm:$0xff] %vm33, %v9693
    %9758 = vst.msk [vmem:[%s4929 + $0x2d9] sm:$0xff] %vm33, %v9694
    %9759 = vst.msk [vmem:[%s4929 + $0x2e9] sm:$0xff] %vm33, %v9695
    %9760 = vst.msk [vmem:[%s4929 + $0x2f1] sm:$0xff] %vm33, %v9696
    %9761 = vst.msk [vmem:[%s4929 + $0x301] sm:$0xff] %vm33, %v9697
    %9762 = vst.msk [vmem:[%s4929 + $0x309] sm:$0xff] %vm33, %v9698
    %9763 = vst.msk [vmem:[%s4929 + $0x319] sm:$0xff] %vm33, %v9699
    %9764 = vst.msk [vmem:[%s4929 + $0x321] sm:$0xff] %vm33, %v9700
  $region42: #{tpu_custom_call.1} parent=0 // loop_footer
    %s4999 = sadd.s32 1, %s4995
  $region43: #{tpu_custom_call.1} parent=0 // loop_footer_branch
    %4994 = sbr.rel target = $region39
  $region44: #{tpu_custom_call.1} parent=0 // loop_exit
    _
  %v9765 = vld [vmem:[#allocation2] sm:$0xff]
  %v9766 = vld [vmem:[#allocation2 + $0x8] sm:$0xff]
  %v9767 = vld [vmem:[#allocation2 + $0x18] sm:$0xff]
  %v9768 = vld [vmem:[#allocation2 + $0x20] sm:$0xff]
  %v9769 = vld [vmem:[#allocation2 + $0x30] sm:$0xff]
  %v9770 = vld [vmem:[#allocation2 + $0x38] sm:$0xff]
  %v9771 = vld [vmem:[#allocation2 + $0x48] sm:$0xff]
  %v9772 = vld [vmem:[#allocation2 + $0x50] sm:$0xff]
  %v9773 = vld [vmem:[#allocation2 + $0x60] sm:$0xff]
  %v9774 = vld [vmem:[#allocation2 + $0x68] sm:$0xff]
  %v9775 = vld [vmem:[#allocation2 + $0x78] sm:$0xff]
  %v9776 = vld [vmem:[#allocation2 + $0x80] sm:$0xff]
  %v9777 = vld [vmem:[#allocation2 + $0x90] sm:$0xff]
  %v9778 = vld [vmem:[#allocation2 + $0x98] sm:$0xff]
  %v9779 = vld [vmem:[#allocation2 + $0xa8] sm:$0xff]
  %v9780 = vld [vmem:[#allocation2 + $0xb0] sm:$0xff]
  %v9781 = vld [vmem:[#allocation2 + $0xc0] sm:$0xff]
  %v9782 = vld [vmem:[#allocation2 + $0xc8] sm:$0xff]
  %v9783 = vld [vmem:[#allocation2 + $0xd8] sm:$0xff]
  %v9784 = vld [vmem:[#allocation2 + $0xe0] sm:$0xff]
  %v9785 = vld [vmem:[#allocation2 + $0xf0] sm:$0xff]
  %v9786 = vld [vmem:[#allocation2 + $0xf8] sm:$0xff]
  %v9787 = vld [vmem:[#allocation2 + $0x108] sm:$0xff]
  %v9788 = vld [vmem:[#allocation2 + $0x110] sm:$0xff]
  %v9789 = vld [vmem:[#allocation2 + $0x120] sm:$0xff]
  %v9790 = vld [vmem:[#allocation2 + $0x128] sm:$0xff]
  %v9791 = vld [vmem:[#allocation2 + $0x138] sm:$0xff]
  %v9792 = vld [vmem:[#allocation2 + $0x140] sm:$0xff]
  %v9793 = vld [vmem:[#allocation2 + $0x150] sm:$0xff]
  %v9794 = vld [vmem:[#allocation2 + $0x158] sm:$0xff]
  %v9795 = vld [vmem:[#allocation2 + $0x168] sm:$0xff]
  %v9796 = vld [vmem:[#allocation2 + $0x170] sm:$0xff]
  %v9797 = vld [vmem:[#allocation2 + $0x1b0] sm:$0xff]
  %v9798 = vld [vmem:[#allocation2 + $0x1b8] sm:$0xff]
  %v9799 = vld [vmem:[#allocation2 + $0x1c8] sm:$0xff]
  %v9800 = vld [vmem:[#allocation2 + $0x1d0] sm:$0xff]
  %v9801 = vld [vmem:[#allocation2 + $0x1e0] sm:$0xff]
  %v9802 = vld [vmem:[#allocation2 + $0x1e8] sm:$0xff]
  %v9803 = vld [vmem:[#allocation2 + $0x1f8] sm:$0xff]
  %v9804 = vld [vmem:[#allocation2 + $0x200] sm:$0xff]
  %v9805 = vld [vmem:[#allocation2 + $0x210] sm:$0xff]
  %v9806 = vld [vmem:[#allocation2 + $0x218] sm:$0xff]
  %v9807 = vld [vmem:[#allocation2 + $0x228] sm:$0xff]
  %v9808 = vld [vmem:[#allocation2 + $0x230] sm:$0xff]
  %v9809 = vld [vmem:[#allocation2 + $0x240] sm:$0xff]
  %v9810 = vld [vmem:[#allocation2 + $0x248] sm:$0xff]
  %v9811 = vld [vmem:[#allocation2 + $0x258] sm:$0xff]
  %v9812 = vld [vmem:[#allocation2 + $0x260] sm:$0xff]
  %v9813 = vld [vmem:[#allocation2 + $0x270] sm:$0xff]
  %v9814 = vld [vmem:[#allocation2 + $0x278] sm:$0xff]
  %v9815 = vld [vmem:[#allocation2 + $0x288] sm:$0xff]
  %v9816 = vld [vmem:[#allocation2 + $0x290] sm:$0xff]
  %v9817 = vld [vmem:[#allocation2 + $0x2a0] sm:$0xff]
  %v9818 = vld [vmem:[#allocation2 + $0x2a8] sm:$0xff]
  %v9819 = vld [vmem:[#allocation2 + $0x2b8] sm:$0xff]
  %v9820 = vld [vmem:[#allocation2 + $0x2c0] sm:$0xff]
  %v9821 = vld [vmem:[#allocation2 + $0x2d0] sm:$0xff]
  %v9822 = vld [vmem:[#allocation2 + $0x2d8] sm:$0xff]
  %v9823 = vld [vmem:[#allocation2 + $0x2e8] sm:$0xff]
  %v9824 = vld [vmem:[#allocation2 + $0x2f0] sm:$0xff]
  %v9825 = vld [vmem:[#allocation2 + $0x300] sm:$0xff]
  %v9826 = vld [vmem:[#allocation2 + $0x308] sm:$0xff]
  %v9827 = vld [vmem:[#allocation2 + $0x318] sm:$0xff]
  %v9828 = vld [vmem:[#allocation2 + $0x320] sm:$0xff]
  %v9829 = vpack.c.bf16 %v9766, %v9765
  %v9830 = vpack.c.bf16 %v9768, %v9767
  %v9831 = vpack.c.bf16 %v9770, %v9769
  %v9832 = vpack.c.bf16 %v9772, %v9771
  %v9833 = vpack.c.bf16 %v9774, %v9773
  %v9834 = vpack.c.bf16 %v9776, %v9775
  %v9835 = vpack.c.bf16 %v9778, %v9777
  %v9836 = vpack.c.bf16 %v9780, %v9779
  %v9837 = vpack.c.bf16 %v9782, %v9781
  %v9838 = vpack.c.bf16 %v9784, %v9783
  %v9839 = vpack.c.bf16 %v9786, %v9785
  %v9840 = vpack.c.bf16 %v9788, %v9787
  %v9841 = vpack.c.bf16 %v9790, %v9789
  %v9842 = vpack.c.bf16 %v9792, %v9791
  %v9843 = vpack.c.bf16 %v9794, %v9793
  %v9844 = vpack.c.bf16 %v9796, %v9795
  %v9845 = vpack.c.bf16 %v9798, %v9797
  %v9846 = vpack.c.bf16 %v9800, %v9799
  %v9847 = vpack.c.bf16 %v9802, %v9801
  %v9848 = vpack.c.bf16 %v9804, %v9803
  %v9849 = vpack.c.bf16 %v9806, %v9805
  %v9850 = vpack.c.bf16 %v9808, %v9807
  %v9851 = vpack.c.bf16 %v9810, %v9809
  %v9852 = vpack.c.bf16 %v9812, %v9811
  %v9853 = vpack.c.bf16 %v9814, %v9813
  %v9854 = vpack.c.bf16 %v9816, %v9815
  %v9855 = vpack.c.bf16 %v9818, %v9817
  %v9856 = vpack.c.bf16 %v9820, %v9819
  %v9857 = vpack.c.bf16 %v9822, %v9821
  %v9858 = vpack.c.bf16 %v9824, %v9823
  %v9859 = vpack.c.bf16 %v9826, %v9825
  %v9860 = vpack.c.bf16 %v9828, %v9827
  %v9861 = vld [vmem:[%s7] sm:$0xf]
  %v9862 = vld [vmem:[%s7 + $0x4] sm:$0xf]
  %v9863 = vld [vmem:[%s7 + $0x8] sm:$0xf]
  %v9864 = vld [vmem:[%s7 + $0xc] sm:$0xf]
  %v9865 = vld [vmem:[%s7 + $0x10] sm:$0xf]
  %v9866 = vld [vmem:[%s7 + $0x14] sm:$0xf]
  %v9867 = vld [vmem:[%s7 + $0x18] sm:$0xf]
  %v9868 = vld [vmem:[%s7 + $0x1c] sm:$0xf]
  %v9869 = vld [vmem:[#allocation2 + $0x1] sm:$0xff]
  %v9870 = vld [vmem:[#allocation2 + $0x9] sm:$0xff]
  %v9871 = vld [vmem:[#allocation2 + $0x19] sm:$0xff]
  %v9872 = vld [vmem:[#allocation2 + $0x21] sm:$0xff]
  %v9873 = vld [vmem:[#allocation2 + $0x31] sm:$0xff]
  %v9874 = vld [vmem:[#allocation2 + $0x39] sm:$0xff]
  %v9875 = vld [vmem:[#allocation2 + $0x49] sm:$0xff]
  %v9876 = vld [vmem:[#allocation2 + $0x51] sm:$0xff]
  %v9877 = vld [vmem:[#allocation2 + $0x61] sm:$0xff]
  %v9878 = vld [vmem:[#allocation2 + $0x69] sm:$0xff]
  %v9879 = vld [vmem:[#allocation2 + $0x79] sm:$0xff]
  %v9880 = vld [vmem:[#allocation2 + $0x81] sm:$0xff]
  %v9881 = vld [vmem:[#allocation2 + $0x91] sm:$0xff]
  %v9882 = vld [vmem:[#allocation2 + $0x99] sm:$0xff]
  %v9883 = vld [vmem:[#allocation2 + $0xa9] sm:$0xff]
  %v9884 = vld [vmem:[#allocation2 + $0xb1] sm:$0xff]
  %v9885 = vld [vmem:[#allocation2 + $0xc1] sm:$0xff]
  %v9886 = vld [vmem:[#allocation2 + $0xc9] sm:$0xff]
  %v9887 = vld [vmem:[#allocation2 + $0xd9] sm:$0xff]
  %v9888 = vld [vmem:[#allocation2 + $0xe1] sm:$0xff]
  %v9889 = vld [vmem:[#allocation2 + $0xf1] sm:$0xff]
  %v9890 = vld [vmem:[#allocation2 + $0xf9] sm:$0xff]
  %v9891 = vld [vmem:[#allocation2 + $0x109] sm:$0xff]
  %v9892 = vld [vmem:[#allocation2 + $0x111] sm:$0xff]
  %v9893 = vld [vmem:[#allocation2 + $0x121] sm:$0xff]
  %v9894 = vld [vmem:[#allocation2 + $0x129] sm:$0xff]
  %v9895 = vld [vmem:[#allocation2 + $0x139] sm:$0xff]
  %v9896 = vld [vmem:[#allocation2 + $0x141] sm:$0xff]
  %v9897 = vld [vmem:[#allocation2 + $0x151] sm:$0xff]
  %v9898 = vld [vmem:[#allocation2 + $0x159] sm:$0xff]
  %v9899 = vld [vmem:[#allocation2 + $0x169] sm:$0xff]
  %v9900 = vld [vmem:[#allocation2 + $0x171] sm:$0xff]
  %v9901 = vld [vmem:[#allocation2 + $0x1b1] sm:$0xff]
  %v9902 = vld [vmem:[#allocation2 + $0x1b9] sm:$0xff]
  %v9903 = vld [vmem:[#allocation2 + $0x1c9] sm:$0xff]
  %v9904 = vld [vmem:[#allocation2 + $0x1d1] sm:$0xff]
  %v9905 = vld [vmem:[#allocation2 + $0x1e1] sm:$0xff]
  %v9906 = vld [vmem:[#allocation2 + $0x1e9] sm:$0xff]
  %v9907 = vld [vmem:[#allocation2 + $0x1f9] sm:$0xff]
  %v9908 = vld [vmem:[#allocation2 + $0x201] sm:$0xff]
  %v9909 = vld [vmem:[#allocation2 + $0x211] sm:$0xff]
  %v9910 = vld [vmem:[#allocation2 + $0x219] sm:$0xff]
  %v9911 = vld [vmem:[#allocation2 + $0x229] sm:$0xff]
  %v9912 = vld [vmem:[#allocation2 + $0x231] sm:$0xff]
  %v9913 = vld [vmem:[#allocation2 + $0x241] sm:$0xff]
  %v9914 = vld [vmem:[#allocation2 + $0x249] sm:$0xff]
  %v9915 = vld [vmem:[#allocation2 + $0x259] sm:$0xff]
  %v9916 = vld [vmem:[#allocation2 + $0x261] sm:$0xff]
  %v9917 = vld [vmem:[#allocation2 + $0x271] sm:$0xff]
  %v9918 = vld [vmem:[#allocation2 + $0x279] sm:$0xff]
  %v9919 = vld [vmem:[#allocation2 + $0x289] sm:$0xff]
  %v9920 = vld [vmem:[#allocation2 + $0x291] sm:$0xff]
  %v9921 = vld [vmem:[#allocation2 + $0x2a1] sm:$0xff]
  %v9922 = vld [vmem:[#allocation2 + $0x2a9] sm:$0xff]
  %v9923 = vld [vmem:[#allocation2 + $0x2b9] sm:$0xff]
  %v9924 = vld [vmem:[#allocation2 + $0x2c1] sm:$0xff]
  %v9925 = vld [vmem:[#allocation2 + $0x2d1] sm:$0xff]
  %v9926 = vld [vmem:[#allocation2 + $0x2d9] sm:$0xff]
  %v9927 = vld [vmem:[#allocation2 + $0x2e9] sm:$0xff]
  %v9928 = vld [vmem:[#allocation2 + $0x2f1] sm:$0xff]
  %v9929 = vld [vmem:[#allocation2 + $0x301] sm:$0xff]
  %v9930 = vld [vmem:[#allocation2 + $0x309] sm:$0xff]
  %v9931 = vld [vmem:[#allocation2 + $0x319] sm:$0xff]
  %v9932 = vld [vmem:[#allocation2 + $0x321] sm:$0xff]
  %v9933 = vpack.c.bf16 %v9870, %v9869
  %v9934 = vpack.c.bf16 %v9872, %v9871
  %v9935 = vpack.c.bf16 %v9874, %v9873
  %v9936 = vpack.c.bf16 %v9876, %v9875
  %v9937 = vpack.c.bf16 %v9878, %v9877
  %v9938 = vpack.c.bf16 %v9880, %v9879
  %v9939 = vpack.c.bf16 %v9882, %v9881
  %v9940 = vpack.c.bf16 %v9884, %v9883
  %v9941 = vpack.c.bf16 %v9886, %v9885
  %v9942 = vpack.c.bf16 %v9888, %v9887
  %v9943 = vpack.c.bf16 %v9890, %v9889
  %v9944 = vpack.c.bf16 %v9892, %v9891
  %v9945 = vpack.c.bf16 %v9894, %v9893
  %v9946 = vpack.c.bf16 %v9896, %v9895
  %v9947 = vpack.c.bf16 %v9898, %v9897
  %v9948 = vpack.c.bf16 %v9900, %v9899
  %v9949 = vpack.c.bf16 %v9902, %v9901
  %v9950 = vpack.c.bf16 %v9904, %v9903
  %v9951 = vpack.c.bf16 %v9906, %v9905
  %v9952 = vpack.c.bf16 %v9908, %v9907
  %v9953 = vpack.c.bf16 %v9910, %v9909
  %v9954 = vpack.c.bf16 %v9912, %v9911
  %v9955 = vpack.c.bf16 %v9914, %v9913
  %v9956 = vpack.c.bf16 %v9916, %v9915
  %v9957 = vpack.c.bf16 %v9918, %v9917
  %v9958 = vpack.c.bf16 %v9920, %v9919
  %v9959 = vpack.c.bf16 %v9922, %v9921
  %v9960 = vpack.c.bf16 %v9924, %v9923
  %v9961 = vpack.c.bf16 %v9926, %v9925
  %v9962 = vpack.c.bf16 %v9928, %v9927
  %v9963 = vpack.c.bf16 %v9930, %v9929
  %v9964 = vpack.c.bf16 %v9932, %v9931
  %s9965 = scalar_lea.vmem %s7, 32
  %v9966 = vld [vmem:[%s9965] sm:$0xf]
  %v9967 = vld [vmem:[%s9965 + $0x4] sm:$0xf]
  %v9968 = vld [vmem:[%s9965 + $0x8] sm:$0xf]
  %v9969 = vld [vmem:[%s9965 + $0xc] sm:$0xf]
  %v9970 = vld [vmem:[%s9965 + $0x10] sm:$0xf]
  %v9971 = vld [vmem:[%s9965 + $0x14] sm:$0xf]
  %v9972 = vld [vmem:[%s9965 + $0x18] sm:$0xf]
  %v9973 = vld [vmem:[%s9965 + $0x1c] sm:$0xf]
  %v9982 = vunpack.c.l.b16 %v9966
  %v9983 = vunpack.c.l.b16 %v9967
  %v9984 = vunpack.c.l.b16 %v9968
  %v9985 = vunpack.c.l.b16 %v9969
  %v9986 = vunpack.c.l.b16 %v9970
  %v9987 = vunpack.c.l.b16 %v9971
  %v9988 = vunpack.c.l.b16 %v9972
  %v9989 = vunpack.c.l.b16 %v9973
  %v9990 = vpack.c.b16 %v9983, %v9982
  %v9991 = vpack.c.b16 %v9985, %v9984
  %v9992 = vpack.c.b16 %v9987, %v9986
  %v9993 = vpack.c.b16 %v9989, %v9988
  %v9999 = vsel %vm33, %v9933, 0
  %v10002 = vsel %vm33, %v9934, 0
  %v10005 = vsel %vm33, %v9935, 0
  %v10008 = vsel %vm33, %v9936, 0
  %v10011 = vsel %vm33, %v9937, 0
  %v10014 = vsel %vm33, %v9938, 0
  %v10017 = vsel %vm33, %v9939, 0
  %v10020 = vsel %vm33, %v9940, 0
  %v10023 = vsel %vm33, %v9941, 0
  %v10026 = vsel %vm33, %v9942, 0
  %v10029 = vsel %vm33, %v9943, 0
  %v10032 = vsel %vm33, %v9944, 0
  %v10035 = vsel %vm33, %v9945, 0
  %v10038 = vsel %vm33, %v9946, 0
  %v10041 = vsel %vm33, %v9947, 0
  %v10044 = vsel %vm33, %v9948, 0
  %v10047 = vsel %vm33, %v9949, 0
  %v10050 = vsel %vm33, %v9950, 0
  %v10053 = vsel %vm33, %v9951, 0
  %v10056 = vsel %vm33, %v9952, 0
  %v10059 = vsel %vm33, %v9953, 0
  %v10062 = vsel %vm33, %v9954, 0
  %v10065 = vsel %vm33, %v9955, 0
  %v10068 = vsel %vm33, %v9956, 0
  %v10071 = vsel %vm33, %v9957, 0
  %v10074 = vsel %vm33, %v9958, 0
  %v10077 = vsel %vm33, %v9959, 0
  %v10080 = vsel %vm33, %v9960, 0
  %v10083 = vsel %vm33, %v9961, 0
  %v10086 = vsel %vm33, %v9962, 0
  %v10089 = vsel %vm33, %v9963, 0
  %v10092 = vsel %vm33, %v9964, 0
  %10094 = vmatpush.bf16.msra.mxu0 0
  %10095 = vmatpush.bf16.msra.mxu0 0
  %10096 = vmatpush.bf16.msra.mxu0 0
  %10097 = vmatpush.bf16.msra.mxu0 0
  %10098 = vmatpush.bf16.msra.mxu0 %v9993
  %10099 = vmatpush.bf16.msra.mxu0 %v9992
  %10100 = vmatpush.bf16.msra.mxu0 %v9991
  %10101 = vmatpush.bf16.msra.mxu0 %v9990
  %10102 = vmatmul.bf16.gmra.mxu0 %v9999
  %v10103 = vpop.f32.mrf.mxu0
  %v10104 = vadd.f32 0.0, %v10103
  %v10105 = vpop.f32.mrf.mxu0
  %v10106 = vadd.f32 0.0, %v10105
  %10107 = vmatmul.bf16.gmra.mxu0 %v10002
  %v10108 = vpop.f32.mrf.mxu0
  %v10109 = vadd.f32 0.0, %v10108
  %v10110 = vpop.f32.mrf.mxu0
  %v10111 = vadd.f32 0.0, %v10110
  %10112 = vmatmul.bf16.gmra.mxu0 %v10005
  %v10113 = vpop.f32.mrf.mxu0
  %v10114 = vadd.f32 0.0, %v10113
  %v10115 = vpop.f32.mrf.mxu0
  %v10116 = vadd.f32 0.0, %v10115
  %10117 = vmatmul.bf16.gmra.mxu0 %v10008
  %v10118 = vpop.f32.mrf.mxu0
  %v10119 = vadd.f32 0.0, %v10118
  %v10120 = vpop.f32.mrf.mxu0
  %v10121 = vadd.f32 0.0, %v10120
  %10122 = vmatmul.bf16.gmra.mxu0 %v10011
  %v10123 = vpop.f32.mrf.mxu0
  %v10124 = vadd.f32 0.0, %v10123
  %v10125 = vpop.f32.mrf.mxu0
  %v10126 = vadd.f32 0.0, %v10125
  %10127 = vmatmul.bf16.gmra.mxu0 %v10014
  %v10128 = vpop.f32.mrf.mxu0
  %v10129 = vadd.f32 0.0, %v10128
  %v10130 = vpop.f32.mrf.mxu0
  %v10131 = vadd.f32 0.0, %v10130
  %10132 = vmatmul.bf16.gmra.mxu0 %v10017
  %v10133 = vpop.f32.mrf.mxu0
  %v10134 = vadd.f32 0.0, %v10133
  %v10135 = vpop.f32.mrf.mxu0
  %v10136 = vadd.f32 0.0, %v10135
  %10137 = vmatmul.bf16.gmra.mxu0 %v10020
  %v10138 = vpop.f32.mrf.mxu0
  %v10139 = vadd.f32 0.0, %v10138
  %v10140 = vpop.f32.mrf.mxu0
  %v10141 = vadd.f32 0.0, %v10140
  %10142 = vmatmul.bf16.gmra.mxu0 %v10023
  %v10143 = vpop.f32.mrf.mxu0
  %v10144 = vadd.f32 0.0, %v10143
  %v10145 = vpop.f32.mrf.mxu0
  %v10146 = vadd.f32 0.0, %v10145
  %10147 = vmatmul.bf16.gmra.mxu0 %v10026
  %v10148 = vpop.f32.mrf.mxu0
  %v10149 = vadd.f32 0.0, %v10148
  %v10150 = vpop.f32.mrf.mxu0
  %v10151 = vadd.f32 0.0, %v10150
  %10152 = vmatmul.bf16.gmra.mxu0 %v10029
  %v10153 = vpop.f32.mrf.mxu0
  %v10154 = vadd.f32 0.0, %v10153
  %v10155 = vpop.f32.mrf.mxu0
  %v10156 = vadd.f32 0.0, %v10155
  %10157 = vmatmul.bf16.gmra.mxu0 %v10032
  %v10158 = vpop.f32.mrf.mxu0
  %v10159 = vadd.f32 0.0, %v10158
  %v10160 = vpop.f32.mrf.mxu0
  %v10161 = vadd.f32 0.0, %v10160
  %10162 = vmatmul.bf16.gmra.mxu0 %v10035
  %v10163 = vpop.f32.mrf.mxu0
  %v10164 = vadd.f32 0.0, %v10163
  %v10165 = vpop.f32.mrf.mxu0
  %v10166 = vadd.f32 0.0, %v10165
  %10167 = vmatmul.bf16.gmra.mxu0 %v10038
  %v10168 = vpop.f32.mrf.mxu0
  %v10169 = vadd.f32 0.0, %v10168
  %v10170 = vpop.f32.mrf.mxu0
  %v10171 = vadd.f32 0.0, %v10170
  %10172 = vmatmul.bf16.gmra.mxu0 %v10041
  %v10173 = vpop.f32.mrf.mxu0
  %v10174 = vadd.f32 0.0, %v10173
  %v10175 = vpop.f32.mrf.mxu0
  %v10176 = vadd.f32 0.0, %v10175
  %10177 = vmatmul.bf16.gmra.mxu0 %v10044
  %v10178 = vpop.f32.mrf.mxu0
  %v10179 = vadd.f32 0.0, %v10178
  %v10180 = vpop.f32.mrf.mxu0
  %v10181 = vadd.f32 0.0, %v10180
  %10182 = vmatmul.bf16.gmra.mxu0 %v10047
  %v10183 = vpop.f32.mrf.mxu0
  %v10184 = vadd.f32 0.0, %v10183
  %v10185 = vpop.f32.mrf.mxu0
  %v10186 = vadd.f32 0.0, %v10185
  %10187 = vmatmul.bf16.gmra.mxu0 %v10050
  %v10188 = vpop.f32.mrf.mxu0
  %v10189 = vadd.f32 0.0, %v10188
  %v10190 = vpop.f32.mrf.mxu0
  %v10191 = vadd.f32 0.0, %v10190
  %10192 = vmatmul.bf16.gmra.mxu0 %v10053
  %v10193 = vpop.f32.mrf.mxu0
  %v10194 = vadd.f32 0.0, %v10193
  %v10195 = vpop.f32.mrf.mxu0
  %v10196 = vadd.f32 0.0, %v10195
  %10197 = vmatmul.bf16.gmra.mxu0 %v10056
  %v10198 = vpop.f32.mrf.mxu0
  %v10199 = vadd.f32 0.0, %v10198
  %v10200 = vpop.f32.mrf.mxu0
  %v10201 = vadd.f32 0.0, %v10200
  %10202 = vmatmul.bf16.gmra.mxu0 %v10059
  %v10203 = vpop.f32.mrf.mxu0
  %v10204 = vadd.f32 0.0, %v10203
  %v10205 = vpop.f32.mrf.mxu0
  %v10206 = vadd.f32 0.0, %v10205
  %10207 = vmatmul.bf16.gmra.mxu0 %v10062
  %v10208 = vpop.f32.mrf.mxu0
  %v10209 = vadd.f32 0.0, %v10208
  %v10210 = vpop.f32.mrf.mxu0
  %v10211 = vadd.f32 0.0, %v10210
  %10212 = vmatmul.bf16.gmra.mxu0 %v10065
  %v10213 = vpop.f32.mrf.mxu0
  %v10214 = vadd.f32 0.0, %v10213
  %v10215 = vpop.f32.mrf.mxu0
  %v10216 = vadd.f32 0.0, %v10215
  %10217 = vmatmul.bf16.gmra.mxu0 %v10068
  %v10218 = vpop.f32.mrf.mxu0
  %v10219 = vadd.f32 0.0, %v10218
  %v10220 = vpop.f32.mrf.mxu0
  %v10221 = vadd.f32 0.0, %v10220
  %10222 = vmatmul.bf16.gmra.mxu0 %v10071
  %v10223 = vpop.f32.mrf.mxu0
  %v10224 = vadd.f32 0.0, %v10223
  %v10225 = vpop.f32.mrf.mxu0
  %v10226 = vadd.f32 0.0, %v10225
  %10227 = vmatmul.bf16.gmra.mxu0 %v10074
  %v10228 = vpop.f32.mrf.mxu0
  %v10229 = vadd.f32 0.0, %v10228
  %v10230 = vpop.f32.mrf.mxu0
  %v10231 = vadd.f32 0.0, %v10230
  %10232 = vmatmul.bf16.gmra.mxu0 %v10077
  %v10233 = vpop.f32.mrf.mxu0
  %v10234 = vadd.f32 0.0, %v10233
  %v10235 = vpop.f32.mrf.mxu0
  %v10236 = vadd.f32 0.0, %v10235
  %10237 = vmatmul.bf16.gmra.mxu0 %v10080
  %v10238 = vpop.f32.mrf.mxu0
  %v10239 = vadd.f32 0.0, %v10238
  %v10240 = vpop.f32.mrf.mxu0
  %v10241 = vadd.f32 0.0, %v10240
  %10242 = vmatmul.bf16.gmra.mxu0 %v10083
  %v10243 = vpop.f32.mrf.mxu0
  %v10244 = vadd.f32 0.0, %v10243
  %v10245 = vpop.f32.mrf.mxu0
  %v10246 = vadd.f32 0.0, %v10245
  %10247 = vmatmul.bf16.gmra.mxu0 %v10086
  %v10248 = vpop.f32.mrf.mxu0
  %v10249 = vadd.f32 0.0, %v10248
  %v10250 = vpop.f32.mrf.mxu0
  %v10251 = vadd.f32 0.0, %v10250
  %10252 = vmatmul.bf16.gmra.mxu0 %v10089
  %v10253 = vpop.f32.mrf.mxu0
  %v10254 = vadd.f32 0.0, %v10253
  %v10255 = vpop.f32.mrf.mxu0
  %v10256 = vadd.f32 0.0, %v10255
  %10257 = vmatmul.bf16.gmra.mxu0 %v10092
  %v10258 = vpop.f32.mrf.mxu0
  %v10259 = vadd.f32 0.0, %v10258
  %v10260 = vpop.f32.mrf.mxu0
  %v10261 = vadd.f32 0.0, %v10260
  %10262 = vdwg.mxu0
  %v10271 = vunpack.c.l.b16 %v9861
  %v10272 = vunpack.c.l.b16 %v9862
  %v10273 = vunpack.c.l.b16 %v9863
  %v10274 = vunpack.c.l.b16 %v9864
  %v10275 = vunpack.c.l.b16 %v9865
  %v10276 = vunpack.c.l.b16 %v9866
  %v10277 = vunpack.c.l.b16 %v9867
  %v10278 = vunpack.c.l.b16 %v9868
  %v10279 = vpack.c.b16 %v10272, %v10271
  %v10280 = vpack.c.b16 %v10274, %v10273
  %v10281 = vpack.c.b16 %v10276, %v10275
  %v10282 = vpack.c.b16 %v10278, %v10277
  %v10288 = vsel %vm33, %v9829, 0
  %v10291 = vsel %vm33, %v9830, 0
  %v10294 = vsel %vm33, %v9831, 0
  %v10297 = vsel %vm33, %v9832, 0
  %v10300 = vsel %vm33, %v9833, 0
  %v10303 = vsel %vm33, %v9834, 0
  %v10306 = vsel %vm33, %v9835, 0
  %v10309 = vsel %vm33, %v9836, 0
  %v10312 = vsel %vm33, %v9837, 0
  %v10315 = vsel %vm33, %v9838, 0
  %v10318 = vsel %vm33, %v9839, 0
  %v10321 = vsel %vm33, %v9840, 0
  %v10324 = vsel %vm33, %v9841, 0
  %v10327 = vsel %vm33, %v9842, 0
  %v10330 = vsel %vm33, %v9843, 0
  %v10333 = vsel %vm33, %v9844, 0
  %v10336 = vsel %vm33, %v9845, 0
  %v10339 = vsel %vm33, %v9846, 0
  %v10342 = vsel %vm33, %v9847, 0
  %v10345 = vsel %vm33, %v9848, 0
  %v10348 = vsel %vm33, %v9849, 0
  %v10351 = vsel %vm33, %v9850, 0
  %v10354 = vsel %vm33, %v9851, 0
  %v10357 = vsel %vm33, %v9852, 0
  %v10360 = vsel %vm33, %v9853, 0
  %v10363 = vsel %vm33, %v9854, 0
  %v10366 = vsel %vm33, %v9855, 0
  %v10369 = vsel %vm33, %v9856, 0
  %v10372 = vsel %vm33, %v9857, 0
  %v10375 = vsel %vm33, %v9858, 0
  %v10378 = vsel %vm33, %v9859, 0
  %v10381 = vsel %vm33, %v9860, 0
  %10383 = vmatpush.bf16.msra.mxu0 0
  %10384 = vmatpush.bf16.msra.mxu0 0
  %10385 = vmatpush.bf16.msra.mxu0 0
  %10386 = vmatpush.bf16.msra.mxu0 0
  %10387 = vmatpush.bf16.msra.mxu0 %v10282
  %10388 = vmatpush.bf16.msra.mxu0 %v10281
  %10389 = vmatpush.bf16.msra.mxu0 %v10280
  %10390 = vmatpush.bf16.msra.mxu0 %v10279
  %10391 = vmatmul.bf16.gmra.mxu0 %v10288
  %v10392 = vpop.f32.mrf.mxu0
  %v10393 = vadd.f32 %v10104, %v10392
  %v10394 = vpop.f32.mrf.mxu0
  %v10395 = vadd.f32 %v10106, %v10394
  %10396 = vmatmul.bf16.gmra.mxu0 %v10291
  %v10397 = vpop.f32.mrf.mxu0
  %v10398 = vadd.f32 %v10109, %v10397
  %v10399 = vpop.f32.mrf.mxu0
  %v10400 = vadd.f32 %v10111, %v10399
  %10401 = vmatmul.bf16.gmra.mxu0 %v10294
  %v10402 = vpop.f32.mrf.mxu0
  %v10403 = vadd.f32 %v10114, %v10402
  %v10404 = vpop.f32.mrf.mxu0
  %v10405 = vadd.f32 %v10116, %v10404
  %10406 = vmatmul.bf16.gmra.mxu0 %v10297
  %v10407 = vpop.f32.mrf.mxu0
  %v10408 = vadd.f32 %v10119, %v10407
  %v10409 = vpop.f32.mrf.mxu0
  %v10410 = vadd.f32 %v10121, %v10409
  %10411 = vmatmul.bf16.gmra.mxu0 %v10300
  %v10412 = vpop.f32.mrf.mxu0
  %v10413 = vadd.f32 %v10124, %v10412
  %v10414 = vpop.f32.mrf.mxu0
  %v10415 = vadd.f32 %v10126, %v10414
  %10416 = vmatmul.bf16.gmra.mxu0 %v10303
  %v10417 = vpop.f32.mrf.mxu0
  %v10418 = vadd.f32 %v10129, %v10417
  %v10419 = vpop.f32.mrf.mxu0
  %v10420 = vadd.f32 %v10131, %v10419
  %10421 = vmatmul.bf16.gmra.mxu0 %v10306
  %v10422 = vpop.f32.mrf.mxu0
  %v10423 = vadd.f32 %v10134, %v10422
  %v10424 = vpop.f32.mrf.mxu0
  %v10425 = vadd.f32 %v10136, %v10424
  %10426 = vmatmul.bf16.gmra.mxu0 %v10309
  %v10427 = vpop.f32.mrf.mxu0
  %v10428 = vadd.f32 %v10139, %v10427
  %v10429 = vpop.f32.mrf.mxu0
  %v10430 = vadd.f32 %v10141, %v10429
  %10431 = vmatmul.bf16.gmra.mxu0 %v10312
  %v10432 = vpop.f32.mrf.mxu0
  %v10433 = vadd.f32 %v10144, %v10432
  %v10434 = vpop.f32.mrf.mxu0
  %v10435 = vadd.f32 %v10146, %v10434
  %10436 = vmatmul.bf16.gmra.mxu0 %v10315
  %v10437 = vpop.f32.mrf.mxu0
  %v10438 = vadd.f32 %v10149, %v10437
  %v10439 = vpop.f32.mrf.mxu0
  %v10440 = vadd.f32 %v10151, %v10439
  %10441 = vmatmul.bf16.gmra.mxu0 %v10318
  %v10442 = vpop.f32.mrf.mxu0
  %v10443 = vadd.f32 %v10154, %v10442
  %v10444 = vpop.f32.mrf.mxu0
  %v10445 = vadd.f32 %v10156, %v10444
  %10446 = vmatmul.bf16.gmra.mxu0 %v10321
  %v10447 = vpop.f32.mrf.mxu0
  %v10448 = vadd.f32 %v10159, %v10447
  %v10449 = vpop.f32.mrf.mxu0
  %v10450 = vadd.f32 %v10161, %v10449
  %10451 = vmatmul.bf16.gmra.mxu0 %v10324
  %v10452 = vpop.f32.mrf.mxu0
  %v10453 = vadd.f32 %v10164, %v10452
  %v10454 = vpop.f32.mrf.mxu0
  %v10455 = vadd.f32 %v10166, %v10454
  %10456 = vmatmul.bf16.gmra.mxu0 %v10327
  %v10457 = vpop.f32.mrf.mxu0
  %v10458 = vadd.f32 %v10169, %v10457
  %v10459 = vpop.f32.mrf.mxu0
  %v10460 = vadd.f32 %v10171, %v10459
  %10461 = vmatmul.bf16.gmra.mxu0 %v10330
  %v10462 = vpop.f32.mrf.mxu0
  %v10463 = vadd.f32 %v10174, %v10462
  %v10464 = vpop.f32.mrf.mxu0
  %v10465 = vadd.f32 %v10176, %v10464
  %10466 = vmatmul.bf16.gmra.mxu0 %v10333
  %v10467 = vpop.f32.mrf.mxu0
  %v10468 = vadd.f32 %v10179, %v10467
  %v10469 = vpop.f32.mrf.mxu0
  %v10470 = vadd.f32 %v10181, %v10469
  %10471 = vmatmul.bf16.gmra.mxu0 %v10336
  %v10472 = vpop.f32.mrf.mxu0
  %v10473 = vadd.f32 %v10184, %v10472
  %v10474 = vpop.f32.mrf.mxu0
  %v10475 = vadd.f32 %v10186, %v10474
  %10476 = vmatmul.bf16.gmra.mxu0 %v10339
  %v10477 = vpop.f32.mrf.mxu0
  %v10478 = vadd.f32 %v10189, %v10477
  %v10479 = vpop.f32.mrf.mxu0
  %v10480 = vadd.f32 %v10191, %v10479
  %10481 = vmatmul.bf16.gmra.mxu0 %v10342
  %v10482 = vpop.f32.mrf.mxu0
  %v10483 = vadd.f32 %v10194, %v10482
  %v10484 = vpop.f32.mrf.mxu0
  %v10485 = vadd.f32 %v10196, %v10484
  %10486 = vmatmul.bf16.gmra.mxu0 %v10345
  %v10487 = vpop.f32.mrf.mxu0
  %v10488 = vadd.f32 %v10199, %v10487
  %v10489 = vpop.f32.mrf.mxu0
  %v10490 = vadd.f32 %v10201, %v10489
  %10491 = vmatmul.bf16.gmra.mxu0 %v10348
  %v10492 = vpop.f32.mrf.mxu0
  %v10493 = vadd.f32 %v10204, %v10492
  %v10494 = vpop.f32.mrf.mxu0
  %v10495 = vadd.f32 %v10206, %v10494
  %10496 = vmatmul.bf16.gmra.mxu0 %v10351
  %v10497 = vpop.f32.mrf.mxu0
  %v10498 = vadd.f32 %v10209, %v10497
  %v10499 = vpop.f32.mrf.mxu0
  %v10500 = vadd.f32 %v10211, %v10499
  %10501 = vmatmul.bf16.gmra.mxu0 %v10354
  %v10502 = vpop.f32.mrf.mxu0
  %v10503 = vadd.f32 %v10214, %v10502
  %v10504 = vpop.f32.mrf.mxu0
  %v10505 = vadd.f32 %v10216, %v10504
  %10506 = vmatmul.bf16.gmra.mxu0 %v10357
  %v10507 = vpop.f32.mrf.mxu0
  %v10508 = vadd.f32 %v10219, %v10507
  %v10509 = vpop.f32.mrf.mxu0
  %v10510 = vadd.f32 %v10221, %v10509
  %10511 = vmatmul.bf16.gmra.mxu0 %v10360
  %v10512 = vpop.f32.mrf.mxu0
  %v10513 = vadd.f32 %v10224, %v10512
  %v10514 = vpop.f32.mrf.mxu0
  %v10515 = vadd.f32 %v10226, %v10514
  %10516 = vmatmul.bf16.gmra.mxu0 %v10363
  %v10517 = vpop.f32.mrf.mxu0
  %v10518 = vadd.f32 %v10229, %v10517
  %v10519 = vpop.f32.mrf.mxu0
  %v10520 = vadd.f32 %v10231, %v10519
  %10521 = vmatmul.bf16.gmra.mxu0 %v10366
  %v10522 = vpop.f32.mrf.mxu0
  %v10523 = vadd.f32 %v10234, %v10522
  %v10524 = vpop.f32.mrf.mxu0
  %v10525 = vadd.f32 %v10236, %v10524
  %10526 = vmatmul.bf16.gmra.mxu0 %v10369
  %v10527 = vpop.f32.mrf.mxu0
  %v10528 = vadd.f32 %v10239, %v10527
  %v10529 = vpop.f32.mrf.mxu0
  %v10530 = vadd.f32 %v10241, %v10529
  %10531 = vmatmul.bf16.gmra.mxu0 %v10372
  %v10532 = vpop.f32.mrf.mxu0
  %v10533 = vadd.f32 %v10244, %v10532
  %v10534 = vpop.f32.mrf.mxu0
  %v10535 = vadd.f32 %v10246, %v10534
  %10536 = vmatmul.bf16.gmra.mxu0 %v10375
  %v10537 = vpop.f32.mrf.mxu0
  %v10538 = vadd.f32 %v10249, %v10537
  %v10539 = vpop.f32.mrf.mxu0
  %v10540 = vadd.f32 %v10251, %v10539
  %10541 = vmatmul.bf16.gmra.mxu0 %v10378
  %v10542 = vpop.f32.mrf.mxu0
  %v10543 = vadd.f32 %v10254, %v10542
  %v10544 = vpop.f32.mrf.mxu0
  %v10545 = vadd.f32 %v10256, %v10544
  %10546 = vmatmul.bf16.gmra.mxu0 %v10381
  %v10547 = vpop.f32.mrf.mxu0
  %v10548 = vadd.f32 %v10259, %v10547
  %v10549 = vpop.f32.mrf.mxu0
  %v10550 = vadd.f32 %v10261, %v10549
  %10551 = vdwg.mxu0
  %v10552 = vld [vmem:[#allocation2 + $0x2] sm:$0xff]
  %v10553 = vld [vmem:[#allocation2 + $0xa] sm:$0xff]
  %v10554 = vld [vmem:[#allocation2 + $0x1a] sm:$0xff]
  %v10555 = vld [vmem:[#allocation2 + $0x22] sm:$0xff]
  %v10556 = vld [vmem:[#allocation2 + $0x32] sm:$0xff]
  %v10557 = vld [vmem:[#allocation2 + $0x3a] sm:$0xff]
  %v10558 = vld [vmem:[#allocation2 + $0x4a] sm:$0xff]
  %v10559 = vld [vmem:[#allocation2 + $0x52] sm:$0xff]
  %v10560 = vld [vmem:[#allocation2 + $0x62] sm:$0xff]
  %v10561 = vld [vmem:[#allocation2 + $0x6a] sm:$0xff]
  %v10562 = vld [vmem:[#allocation2 + $0x7a] sm:$0xff]
  %v10563 = vld [vmem:[#allocation2 + $0x82] sm:$0xff]
  %v10564 = vld [vmem:[#allocation2 + $0x92] sm:$0xff]
  %v10565 = vld [vmem:[#allocation2 + $0x9a] sm:$0xff]
  %v10566 = vld [vmem:[#allocation2 + $0xaa] sm:$0xff]
  %v10567 = vld [vmem:[#allocation2 + $0xb2] sm:$0xff]
  %v10568 = vld [vmem:[#allocation2 + $0xc2] sm:$0xff]
  %v10569 = vld [vmem:[#allocation2 + $0xca] sm:$0xff]
  %v10570 = vld [vmem:[#allocation2 + $0xda] sm:$0xff]
  %v10571 = vld [vmem:[#allocation2 + $0xe2] sm:$0xff]
  %v10572 = vld [vmem:[#allocation2 + $0xf2] sm:$0xff]
  %v10573 = vld [vmem:[#allocation2 + $0xfa] sm:$0xff]
  %v10574 = vld [vmem:[#allocation2 + $0x10a] sm:$0xff]
  %v10575 = vld [vmem:[#allocation2 + $0x112] sm:$0xff]
  %v10576 = vld [vmem:[#allocation2 + $0x122] sm:$0xff]
  %v10577 = vld [vmem:[#allocation2 + $0x12a] sm:$0xff]
  %v10578 = vld [vmem:[#allocation2 + $0x13a] sm:$0xff]
  %v10579 = vld [vmem:[#allocation2 + $0x142] sm:$0xff]
  %v10580 = vld [vmem:[#allocation2 + $0x152] sm:$0xff]
  %v10581 = vld [vmem:[#allocation2 + $0x15a] sm:$0xff]
  %v10582 = vld [vmem:[#allocation2 + $0x16a] sm:$0xff]
  %v10583 = vld [vmem:[#allocation2 + $0x172] sm:$0xff]
  %v10584 = vld [vmem:[#allocation2 + $0x1b2] sm:$0xff]
  %v10585 = vld [vmem:[#allocation2 + $0x1ba] sm:$0xff]
  %v10586 = vld [vmem:[#allocation2 + $0x1ca] sm:$0xff]
  %v10587 = vld [vmem:[#allocation2 + $0x1d2] sm:$0xff]
  %v10588 = vld [vmem:[#allocation2 + $0x1e2] sm:$0xff]
  %v10589 = vld [vmem:[#allocation2 + $0x1ea] sm:$0xff]
  %v10590 = vld [vmem:[#allocation2 + $0x1fa] sm:$0xff]
  %v10591 = vld [vmem:[#allocation2 + $0x202] sm:$0xff]
  %v10592 = vld [vmem:[#allocation2 + $0x212] sm:$0xff]
  %v10593 = vld [vmem:[#allocation2 + $0x21a] sm:$0xff]
  %v10594 = vld [vmem:[#allocation2 + $0x22a] sm:$0xff]
  %v10595 = vld [vmem:[#allocation2 + $0x232] sm:$0xff]
  %v10596 = vld [vmem:[#allocation2 + $0x242] sm:$0xff]
  %v10597 = vld [vmem:[#allocation2 + $0x24a] sm:$0xff]
  %v10598 = vld [vmem:[#allocation2 + $0x25a] sm:$0xff]
  %v10599 = vld [vmem:[#allocation2 + $0x262] sm:$0xff]
  %v10600 = vld [vmem:[#allocation2 + $0x272] sm:$0xff]
  %v10601 = vld [vmem:[#allocation2 + $0x27a] sm:$0xff]
  %v10602 = vld [vmem:[#allocation2 + $0x28a] sm:$0xff]
  %v10603 = vld [vmem:[#allocation2 + $0x292] sm:$0xff]
  %v10604 = vld [vmem:[#allocation2 + $0x2a2] sm:$0xff]
  %v10605 = vld [vmem:[#allocation2 + $0x2aa] sm:$0xff]
  %v10606 = vld [vmem:[#allocation2 + $0x2ba] sm:$0xff]
  %v10607 = vld [vmem:[#allocation2 + $0x2c2] sm:$0xff]
  %v10608 = vld [vmem:[#allocation2 + $0x2d2] sm:$0xff]
  %v10609 = vld [vmem:[#allocation2 + $0x2da] sm:$0xff]
  %v10610 = vld [vmem:[#allocation2 + $0x2ea] sm:$0xff]
  %v10611 = vld [vmem:[#allocation2 + $0x2f2] sm:$0xff]
  %v10612 = vld [vmem:[#allocation2 + $0x302] sm:$0xff]
  %v10613 = vld [vmem:[#allocation2 + $0x30a] sm:$0xff]
  %v10614 = vld [vmem:[#allocation2 + $0x31a] sm:$0xff]
  %v10615 = vld [vmem:[#allocation2 + $0x322] sm:$0xff]
  %v10616 = vpack.c.bf16 %v10553, %v10552
  %v10617 = vpack.c.bf16 %v10555, %v10554
  %v10618 = vpack.c.bf16 %v10557, %v10556
  %v10619 = vpack.c.bf16 %v10559, %v10558
  %v10620 = vpack.c.bf16 %v10561, %v10560
  %v10621 = vpack.c.bf16 %v10563, %v10562
  %v10622 = vpack.c.bf16 %v10565, %v10564
  %v10623 = vpack.c.bf16 %v10567, %v10566
  %v10624 = vpack.c.bf16 %v10569, %v10568
  %v10625 = vpack.c.bf16 %v10571, %v10570
  %v10626 = vpack.c.bf16 %v10573, %v10572
  %v10627 = vpack.c.bf16 %v10575, %v10574
  %v10628 = vpack.c.bf16 %v10577, %v10576
  %v10629 = vpack.c.bf16 %v10579, %v10578
  %v10630 = vpack.c.bf16 %v10581, %v10580
  %v10631 = vpack.c.bf16 %v10583, %v10582
  %v10632 = vpack.c.bf16 %v10585, %v10584
  %v10633 = vpack.c.bf16 %v10587, %v10586
  %v10634 = vpack.c.bf16 %v10589, %v10588
  %v10635 = vpack.c.bf16 %v10591, %v10590
  %v10636 = vpack.c.bf16 %v10593, %v10592
  %v10637 = vpack.c.bf16 %v10595, %v10594
  %v10638 = vpack.c.bf16 %v10597, %v10596
  %v10639 = vpack.c.bf16 %v10599, %v10598
  %v10640 = vpack.c.bf16 %v10601, %v10600
  %v10641 = vpack.c.bf16 %v10603, %v10602
  %v10642 = vpack.c.bf16 %v10605, %v10604
  %v10643 = vpack.c.bf16 %v10607, %v10606
  %v10644 = vpack.c.bf16 %v10609, %v10608
  %v10645 = vpack.c.bf16 %v10611, %v10610
  %v10646 = vpack.c.bf16 %v10613, %v10612
  %v10647 = vpack.c.bf16 %v10615, %v10614
  %s10648 = scalar_lea.vmem %s7, 64
  %v10649 = vld [vmem:[%s10648] sm:$0xf]
  %v10650 = vld [vmem:[%s10648 + $0x4] sm:$0xf]
  %v10651 = vld [vmem:[%s10648 + $0x8] sm:$0xf]
  %v10652 = vld [vmem:[%s10648 + $0xc] sm:$0xf]
  %v10653 = vld [vmem:[%s10648 + $0x10] sm:$0xf]
  %v10654 = vld [vmem:[%s10648 + $0x14] sm:$0xf]
  %v10655 = vld [vmem:[%s10648 + $0x18] sm:$0xf]
  %v10656 = vld [vmem:[%s10648 + $0x1c] sm:$0xf]
  %v10665 = vunpack.c.l.b16 %v10649
  %v10666 = vunpack.c.l.b16 %v10650
  %v10667 = vunpack.c.l.b16 %v10651
  %v10668 = vunpack.c.l.b16 %v10652
  %v10669 = vunpack.c.l.b16 %v10653
  %v10670 = vunpack.c.l.b16 %v10654
  %v10671 = vunpack.c.l.b16 %v10655
  %v10672 = vunpack.c.l.b16 %v10656
  %v10673 = vpack.c.b16 %v10666, %v10665
  %v10674 = vpack.c.b16 %v10668, %v10667
  %v10675 = vpack.c.b16 %v10670, %v10669
  %v10676 = vpack.c.b16 %v10672, %v10671
  %v10682 = vsel %vm33, %v10616, 0
  %v10685 = vsel %vm33, %v10617, 0
  %v10688 = vsel %vm33, %v10618, 0
  %v10691 = vsel %vm33, %v10619, 0
  %v10694 = vsel %vm33, %v10620, 0
  %v10697 = vsel %vm33, %v10621, 0
  %v10700 = vsel %vm33, %v10622, 0
  %v10703 = vsel %vm33, %v10623, 0
  %v10706 = vsel %vm33, %v10624, 0
  %v10709 = vsel %vm33, %v10625, 0
  %v10712 = vsel %vm33, %v10626, 0
  %v10715 = vsel %vm33, %v10627, 0
  %v10718 = vsel %vm33, %v10628, 0
  %v10721 = vsel %vm33, %v10629, 0
  %v10724 = vsel %vm33, %v10630, 0
  %v10727 = vsel %vm33, %v10631, 0
  %v10730 = vsel %vm33, %v10632, 0
  %v10733 = vsel %vm33, %v10633, 0
  %v10736 = vsel %vm33, %v10634, 0
  %v10739 = vsel %vm33, %v10635, 0
  %v10742 = vsel %vm33, %v10636, 0
  %v10745 = vsel %vm33, %v10637, 0
  %v10748 = vsel %vm33, %v10638, 0
  %v10751 = vsel %vm33, %v10639, 0
  %v10754 = vsel %vm33, %v10640, 0
  %v10757 = vsel %vm33, %v10641, 0
  %v10760 = vsel %vm33, %v10642, 0
  %v10763 = vsel %vm33, %v10643, 0
  %v10766 = vsel %vm33, %v10644, 0
  %v10769 = vsel %vm33, %v10645, 0
  %v10772 = vsel %vm33, %v10646, 0
  %v10775 = vsel %vm33, %v10647, 0
  %10777 = vmatpush.bf16.msra.mxu0 0
  %10778 = vmatpush.bf16.msra.mxu0 0
  %10779 = vmatpush.bf16.msra.mxu0 0
  %10780 = vmatpush.bf16.msra.mxu0 0
  %10781 = vmatpush.bf16.msra.mxu0 %v10676
  %10782 = vmatpush.bf16.msra.mxu0 %v10675
  %10783 = vmatpush.bf16.msra.mxu0 %v10674
  %10784 = vmatpush.bf16.msra.mxu0 %v10673
  %10785 = vmatmul.bf16.gmra.mxu0 %v10682
  %v10786 = vpop.f32.mrf.mxu0
  %v10787 = vadd.f32 0.0, %v10786
  %v10788 = vpop.f32.mrf.mxu0
  %v10789 = vadd.f32 0.0, %v10788
  %10790 = vmatmul.bf16.gmra.mxu0 %v10685
  %v10791 = vpop.f32.mrf.mxu0
  %v10792 = vadd.f32 0.0, %v10791
  %v10793 = vpop.f32.mrf.mxu0
  %v10794 = vadd.f32 0.0, %v10793
  %10795 = vmatmul.bf16.gmra.mxu0 %v10688
  %v10796 = vpop.f32.mrf.mxu0
  %v10797 = vadd.f32 0.0, %v10796
  %v10798 = vpop.f32.mrf.mxu0
  %v10799 = vadd.f32 0.0, %v10798
  %10800 = vmatmul.bf16.gmra.mxu0 %v10691
  %v10801 = vpop.f32.mrf.mxu0
  %v10802 = vadd.f32 0.0, %v10801
  %v10803 = vpop.f32.mrf.mxu0
  %v10804 = vadd.f32 0.0, %v10803
  %10805 = vmatmul.bf16.gmra.mxu0 %v10694
  %v10806 = vpop.f32.mrf.mxu0
  %v10807 = vadd.f32 0.0, %v10806
  %v10808 = vpop.f32.mrf.mxu0
  %v10809 = vadd.f32 0.0, %v10808
  %10810 = vmatmul.bf16.gmra.mxu0 %v10697
  %v10811 = vpop.f32.mrf.mxu0
  %v10812 = vadd.f32 0.0, %v10811
  %v10813 = vpop.f32.mrf.mxu0
  %v10814 = vadd.f32 0.0, %v10813
  %10815 = vmatmul.bf16.gmra.mxu0 %v10700
  %v10816 = vpop.f32.mrf.mxu0
  %v10817 = vadd.f32 0.0, %v10816
  %v10818 = vpop.f32.mrf.mxu0
  %v10819 = vadd.f32 0.0, %v10818
  %10820 = vmatmul.bf16.gmra.mxu0 %v10703
  %v10821 = vpop.f32.mrf.mxu0
  %v10822 = vadd.f32 0.0, %v10821
  %v10823 = vpop.f32.mrf.mxu0
  %v10824 = vadd.f32 0.0, %v10823
  %10825 = vmatmul.bf16.gmra.mxu0 %v10706
  %v10826 = vpop.f32.mrf.mxu0
  %v10827 = vadd.f32 0.0, %v10826
  %v10828 = vpop.f32.mrf.mxu0
  %v10829 = vadd.f32 0.0, %v10828
  %10830 = vmatmul.bf16.gmra.mxu0 %v10709
  %v10831 = vpop.f32.mrf.mxu0
  %v10832 = vadd.f32 0.0, %v10831
  %v10833 = vpop.f32.mrf.mxu0
  %v10834 = vadd.f32 0.0, %v10833
  %10835 = vmatmul.bf16.gmra.mxu0 %v10712
  %v10836 = vpop.f32.mrf.mxu0
  %v10837 = vadd.f32 0.0, %v10836
  %v10838 = vpop.f32.mrf.mxu0
  %v10839 = vadd.f32 0.0, %v10838
  %10840 = vmatmul.bf16.gmra.mxu0 %v10715
  %v10841 = vpop.f32.mrf.mxu0
  %v10842 = vadd.f32 0.0, %v10841
  %v10843 = vpop.f32.mrf.mxu0
  %v10844 = vadd.f32 0.0, %v10843
  %10845 = vmatmul.bf16.gmra.mxu0 %v10718
  %v10846 = vpop.f32.mrf.mxu0
  %v10847 = vadd.f32 0.0, %v10846
  %v10848 = vpop.f32.mrf.mxu0
  %v10849 = vadd.f32 0.0, %v10848
  %10850 = vmatmul.bf16.gmra.mxu0 %v10721
  %v10851 = vpop.f32.mrf.mxu0
  %v10852 = vadd.f32 0.0, %v10851
  %v10853 = vpop.f32.mrf.mxu0
  %v10854 = vadd.f32 0.0, %v10853
  %10855 = vmatmul.bf16.gmra.mxu0 %v10724
  %v10856 = vpop.f32.mrf.mxu0
  %v10857 = vadd.f32 0.0, %v10856
  %v10858 = vpop.f32.mrf.mxu0
  %v10859 = vadd.f32 0.0, %v10858
  %10860 = vmatmul.bf16.gmra.mxu0 %v10727
  %v10861 = vpop.f32.mrf.mxu0
  %v10862 = vadd.f32 0.0, %v10861
  %v10863 = vpop.f32.mrf.mxu0
  %v10864 = vadd.f32 0.0, %v10863
  %10865 = vmatmul.bf16.gmra.mxu0 %v10730
  %v10866 = vpop.f32.mrf.mxu0
  %v10867 = vadd.f32 0.0, %v10866
  %v10868 = vpop.f32.mrf.mxu0
  %v10869 = vadd.f32 0.0, %v10868
  %10870 = vmatmul.bf16.gmra.mxu0 %v10733
  %v10871 = vpop.f32.mrf.mxu0
  %v10872 = vadd.f32 0.0, %v10871
  %v10873 = vpop.f32.mrf.mxu0
  %v10874 = vadd.f32 0.0, %v10873
  %10875 = vmatmul.bf16.gmra.mxu0 %v10736
  %v10876 = vpop.f32.mrf.mxu0
  %v10877 = vadd.f32 0.0, %v10876
  %v10878 = vpop.f32.mrf.mxu0
  %v10879 = vadd.f32 0.0, %v10878
  %10880 = vmatmul.bf16.gmra.mxu0 %v10739
  %v10881 = vpop.f32.mrf.mxu0
  %v10882 = vadd.f32 0.0, %v10881
  %v10883 = vpop.f32.mrf.mxu0
  %v10884 = vadd.f32 0.0, %v10883
  %10885 = vmatmul.bf16.gmra.mxu0 %v10742
  %v10886 = vpop.f32.mrf.mxu0
  %v10887 = vadd.f32 0.0, %v10886
  %v10888 = vpop.f32.mrf.mxu0
  %v10889 = vadd.f32 0.0, %v10888
  %10890 = vmatmul.bf16.gmra.mxu0 %v10745
  %v10891 = vpop.f32.mrf.mxu0
  %v10892 = vadd.f32 0.0, %v10891
  %v10893 = vpop.f32.mrf.mxu0
  %v10894 = vadd.f32 0.0, %v10893
  %10895 = vmatmul.bf16.gmra.mxu0 %v10748
  %v10896 = vpop.f32.mrf.mxu0
  %v10897 = vadd.f32 0.0, %v10896
  %v10898 = vpop.f32.mrf.mxu0
  %v10899 = vadd.f32 0.0, %v10898
  %10900 = vmatmul.bf16.gmra.mxu0 %v10751
  %v10901 = vpop.f32.mrf.mxu0
  %v10902 = vadd.f32 0.0, %v10901
  %v10903 = vpop.f32.mrf.mxu0
  %v10904 = vadd.f32 0.0, %v10903
  %10905 = vmatmul.bf16.gmra.mxu0 %v10754
  %v10906 = vpop.f32.mrf.mxu0
  %v10907 = vadd.f32 0.0, %v10906
  %v10908 = vpop.f32.mrf.mxu0
  %v10909 = vadd.f32 0.0, %v10908
  %10910 = vmatmul.bf16.gmra.mxu0 %v10757
  %v10911 = vpop.f32.mrf.mxu0
  %v10912 = vadd.f32 0.0, %v10911
  %v10913 = vpop.f32.mrf.mxu0
  %v10914 = vadd.f32 0.0, %v10913
  %10915 = vmatmul.bf16.gmra.mxu0 %v10760
  %v10916 = vpop.f32.mrf.mxu0
  %v10917 = vadd.f32 0.0, %v10916
  %v10918 = vpop.f32.mrf.mxu0
  %v10919 = vadd.f32 0.0, %v10918
  %10920 = vmatmul.bf16.gmra.mxu0 %v10763
  %v10921 = vpop.f32.mrf.mxu0
  %v10922 = vadd.f32 0.0, %v10921
  %v10923 = vpop.f32.mrf.mxu0
  %v10924 = vadd.f32 0.0, %v10923
  %10925 = vmatmul.bf16.gmra.mxu0 %v10766
  %v10926 = vpop.f32.mrf.mxu0
  %v10927 = vadd.f32 0.0, %v10926
  %v10928 = vpop.f32.mrf.mxu0
  %v10929 = vadd.f32 0.0, %v10928
  %10930 = vmatmul.bf16.gmra.mxu0 %v10769
  %v10931 = vpop.f32.mrf.mxu0
  %v10932 = vadd.f32 0.0, %v10931
  %v10933 = vpop.f32.mrf.mxu0
  %v10934 = vadd.f32 0.0, %v10933
  %10935 = vmatmul.bf16.gmra.mxu0 %v10772
  %v10936 = vpop.f32.mrf.mxu0
  %v10937 = vadd.f32 0.0, %v10936
  %v10938 = vpop.f32.mrf.mxu0
  %v10939 = vadd.f32 0.0, %v10938
  %10940 = vmatmul.bf16.gmra.mxu0 %v10775
  %v10941 = vpop.f32.mrf.mxu0
  %v10942 = vadd.f32 0.0, %v10941
  %v10943 = vpop.f32.mrf.mxu0
  %v10944 = vadd.f32 0.0, %v10943
  %10945 = vdwg.mxu0
  %v10946 = vadd.f32 %v10393, %v10787
  %v10947 = vadd.f32 %v10395, %v10789
  %v10948 = vadd.f32 %v10398, %v10792
  %v10949 = vadd.f32 %v10400, %v10794
  %v10950 = vadd.f32 %v10403, %v10797
  %v10951 = vadd.f32 %v10405, %v10799
  %v10952 = vadd.f32 %v10408, %v10802
  %v10953 = vadd.f32 %v10410, %v10804
  %v10954 = vadd.f32 %v10413, %v10807
  %v10955 = vadd.f32 %v10415, %v10809
  %v10956 = vadd.f32 %v10418, %v10812
  %v10957 = vadd.f32 %v10420, %v10814
  %v10958 = vadd.f32 %v10423, %v10817
  %v10959 = vadd.f32 %v10425, %v10819
  %v10960 = vadd.f32 %v10428, %v10822
  %v10961 = vadd.f32 %v10430, %v10824
  %v10962 = vadd.f32 %v10433, %v10827
  %v10963 = vadd.f32 %v10435, %v10829
  %v10964 = vadd.f32 %v10438, %v10832
  %v10965 = vadd.f32 %v10440, %v10834
  %v10966 = vadd.f32 %v10443, %v10837
  %v10967 = vadd.f32 %v10445, %v10839
  %v10968 = vadd.f32 %v10448, %v10842
  %v10969 = vadd.f32 %v10450, %v10844
  %v10970 = vadd.f32 %v10453, %v10847
  %v10971 = vadd.f32 %v10455, %v10849
  %v10972 = vadd.f32 %v10458, %v10852
  %v10973 = vadd.f32 %v10460, %v10854
  %v10974 = vadd.f32 %v10463, %v10857
  %v10975 = vadd.f32 %v10465, %v10859
  %v10976 = vadd.f32 %v10468, %v10862
  %v10977 = vadd.f32 %v10470, %v10864
  %v10978 = vadd.f32 %v10473, %v10867
  %v10979 = vadd.f32 %v10475, %v10869
  %v10980 = vadd.f32 %v10478, %v10872
  %v10981 = vadd.f32 %v10480, %v10874
  %v10982 = vadd.f32 %v10483, %v10877
  %v10983 = vadd.f32 %v10485, %v10879
  %v10984 = vadd.f32 %v10488, %v10882
  %v10985 = vadd.f32 %v10490, %v10884
  %v10986 = vadd.f32 %v10493, %v10887
  %v10987 = vadd.f32 %v10495, %v10889
  %v10988 = vadd.f32 %v10498, %v10892
  %v10989 = vadd.f32 %v10500, %v10894
  %v10990 = vadd.f32 %v10503, %v10897
  %v10991 = vadd.f32 %v10505, %v10899
  %v10992 = vadd.f32 %v10508, %v10902
  %v10993 = vadd.f32 %v10510, %v10904
  %v10994 = vadd.f32 %v10513, %v10907
  %v10995 = vadd.f32 %v10515, %v10909
  %v10996 = vadd.f32 %v10518, %v10912
  %v10997 = vadd.f32 %v10520, %v10914
  %v10998 = vadd.f32 %v10523, %v10917
  %v10999 = vadd.f32 %v10525, %v10919
  %v11000 = vadd.f32 %v10528, %v10922
  %v11001 = vadd.f32 %v10530, %v10924
  %v11002 = vadd.f32 %v10533, %v10927
  %v11003 = vadd.f32 %v10535, %v10929
  %v11004 = vadd.f32 %v10538, %v10932
  %v11005 = vadd.f32 %v10540, %v10934
  %v11006 = vadd.f32 %v10543, %v10937
  %v11007 = vadd.f32 %v10545, %v10939
  %v11008 = vadd.f32 %v10548, %v10942
  %v11009 = vadd.f32 %v10550, %v10944
  %v11010 = vld [vmem:[%s4929] sm:$0xff]
  %v11011 = vld [vmem:[%s4929 + $0x8] sm:$0xff]
  %v11012 = vld [vmem:[%s4929 + $0x18] sm:$0xff]
  %v11013 = vld [vmem:[%s4929 + $0x20] sm:$0xff]
  %v11014 = vld [vmem:[%s4929 + $0x30] sm:$0xff]
  %v11015 = vld [vmem:[%s4929 + $0x38] sm:$0xff]
  %v11016 = vld [vmem:[%s4929 + $0x48] sm:$0xff]
  %v11017 = vld [vmem:[%s4929 + $0x50] sm:$0xff]
  %v11018 = vld [vmem:[%s4929 + $0x60] sm:$0xff]
  %v11019 = vld [vmem:[%s4929 + $0x68] sm:$0xff]
  %v11020 = vld [vmem:[%s4929 + $0x78] sm:$0xff]
  %v11021 = vld [vmem:[%s4929 + $0x80] sm:$0xff]
  %v11022 = vld [vmem:[%s4929 + $0x90] sm:$0xff]
  %v11023 = vld [vmem:[%s4929 + $0x98] sm:$0xff]
  %v11024 = vld [vmem:[%s4929 + $0xa8] sm:$0xff]
  %v11025 = vld [vmem:[%s4929 + $0xb0] sm:$0xff]
  %v11026 = vld [vmem:[%s4929 + $0xc0] sm:$0xff]
  %v11027 = vld [vmem:[%s4929 + $0xc8] sm:$0xff]
  %v11028 = vld [vmem:[%s4929 + $0xd8] sm:$0xff]
  %v11029 = vld [vmem:[%s4929 + $0xe0] sm:$0xff]
  %v11030 = vld [vmem:[%s4929 + $0xf0] sm:$0xff]
  %v11031 = vld [vmem:[%s4929 + $0xf8] sm:$0xff]
  %v11032 = vld [vmem:[%s4929 + $0x108] sm:$0xff]
  %v11033 = vld [vmem:[%s4929 + $0x110] sm:$0xff]
  %v11034 = vld [vmem:[%s4929 + $0x120] sm:$0xff]
  %v11035 = vld [vmem:[%s4929 + $0x128] sm:$0xff]
  %v11036 = vld [vmem:[%s4929 + $0x138] sm:$0xff]
  %v11037 = vld [vmem:[%s4929 + $0x140] sm:$0xff]
  %v11038 = vld [vmem:[%s4929 + $0x150] sm:$0xff]
  %v11039 = vld [vmem:[%s4929 + $0x158] sm:$0xff]
  %v11040 = vld [vmem:[%s4929 + $0x168] sm:$0xff]
  %v11041 = vld [vmem:[%s4929 + $0x170] sm:$0xff]
  %v11042 = vld [vmem:[%s4929 + $0x1b0] sm:$0xff]
  %v11043 = vld [vmem:[%s4929 + $0x1b8] sm:$0xff]
  %v11044 = vld [vmem:[%s4929 + $0x1c8] sm:$0xff]
  %v11045 = vld [vmem:[%s4929 + $0x1d0] sm:$0xff]
  %v11046 = vld [vmem:[%s4929 + $0x1e0] sm:$0xff]
  %v11047 = vld [vmem:[%s4929 + $0x1e8] sm:$0xff]
  %v11048 = vld [vmem:[%s4929 + $0x1f8] sm:$0xff]
  %v11049 = vld [vmem:[%s4929 + $0x200] sm:$0xff]
  %v11050 = vld [vmem:[%s4929 + $0x210] sm:$0xff]
  %v11051 = vld [vmem:[%s4929 + $0x218] sm:$0xff]
  %v11052 = vld [vmem:[%s4929 + $0x228] sm:$0xff]
  %v11053 = vld [vmem:[%s4929 + $0x230] sm:$0xff]
  %v11054 = vld [vmem:[%s4929 + $0x240] sm:$0xff]
  %v11055 = vld [vmem:[%s4929 + $0x248] sm:$0xff]
  %v11056 = vld [vmem:[%s4929 + $0x258] sm:$0xff]
  %v11057 = vld [vmem:[%s4929 + $0x260] sm:$0xff]
  %v11058 = vld [vmem:[%s4929 + $0x270] sm:$0xff]
  %v11059 = vld [vmem:[%s4929 + $0x278] sm:$0xff]
  %v11060 = vld [vmem:[%s4929 + $0x288] sm:$0xff]
  %v11061 = vld [vmem:[%s4929 + $0x290] sm:$0xff]
  %v11062 = vld [vmem:[%s4929 + $0x2a0] sm:$0xff]
  %v11063 = vld [vmem:[%s4929 + $0x2a8] sm:$0xff]
  %v11064 = vld [vmem:[%s4929 + $0x2b8] sm:$0xff]
  %v11065 = vld [vmem:[%s4929 + $0x2c0] sm:$0xff]
  %v11066 = vld [vmem:[%s4929 + $0x2d0] sm:$0xff]
  %v11067 = vld [vmem:[%s4929 + $0x2d8] sm:$0xff]
  %v11068 = vld [vmem:[%s4929 + $0x2e8] sm:$0xff]
  %v11069 = vld [vmem:[%s4929 + $0x2f0] sm:$0xff]
  %v11070 = vld [vmem:[%s4929 + $0x300] sm:$0xff]
  %v11071 = vld [vmem:[%s4929 + $0x308] sm:$0xff]
  %v11072 = vld [vmem:[%s4929 + $0x318] sm:$0xff]
  %v11073 = vld [vmem:[%s4929 + $0x320] sm:$0xff]
  %v11074 = vpack.c.bf16 %v11011, %v11010
  %v11075 = vpack.c.bf16 %v11013, %v11012
  %v11076 = vpack.c.bf16 %v11015, %v11014
  %v11077 = vpack.c.bf16 %v11017, %v11016
  %v11078 = vpack.c.bf16 %v11019, %v11018
  %v11079 = vpack.c.bf16 %v11021, %v11020
  %v11080 = vpack.c.bf16 %v11023, %v11022
  %v11081 = vpack.c.bf16 %v11025, %v11024
  %v11082 = vpack.c.bf16 %v11027, %v11026
  %v11083 = vpack.c.bf16 %v11029, %v11028
  %v11084 = vpack.c.bf16 %v11031, %v11030
  %v11085 = vpack.c.bf16 %v11033, %v11032
  %v11086 = vpack.c.bf16 %v11035, %v11034
  %v11087 = vpack.c.bf16 %v11037, %v11036
  %v11088 = vpack.c.bf16 %v11039, %v11038
  %v11089 = vpack.c.bf16 %v11041, %v11040
  %v11090 = vpack.c.bf16 %v11043, %v11042
  %v11091 = vpack.c.bf16 %v11045, %v11044
  %v11092 = vpack.c.bf16 %v11047, %v11046
  %v11093 = vpack.c.bf16 %v11049, %v11048
  %v11094 = vpack.c.bf16 %v11051, %v11050
  %v11095 = vpack.c.bf16 %v11053, %v11052
  %v11096 = vpack.c.bf16 %v11055, %v11054
  %v11097 = vpack.c.bf16 %v11057, %v11056
  %v11098 = vpack.c.bf16 %v11059, %v11058
  %v11099 = vpack.c.bf16 %v11061, %v11060
  %v11100 = vpack.c.bf16 %v11063, %v11062
  %v11101 = vpack.c.bf16 %v11065, %v11064
  %v11102 = vpack.c.bf16 %v11067, %v11066
  %v11103 = vpack.c.bf16 %v11069, %v11068
  %v11104 = vpack.c.bf16 %v11071, %v11070
  %v11105 = vpack.c.bf16 %v11073, %v11072
  %s11106 = scalar_lea.vmem %s7, 96
  %v11107 = vld [vmem:[%s11106] sm:$0xf]
  %v11108 = vld [vmem:[%s11106 + $0x4] sm:$0xf]
  %v11109 = vld [vmem:[%s11106 + $0x8] sm:$0xf]
  %v11110 = vld [vmem:[%s11106 + $0xc] sm:$0xf]
  %v11111 = vld [vmem:[%s11106 + $0x10] sm:$0xf]
  %v11112 = vld [vmem:[%s11106 + $0x14] sm:$0xf]
  %v11113 = vld [vmem:[%s11106 + $0x18] sm:$0xf]
  %v11114 = vld [vmem:[%s11106 + $0x1c] sm:$0xf]
  %v11123 = vunpack.c.l.b16 %v11107
  %v11124 = vunpack.c.l.b16 %v11108
  %v11125 = vunpack.c.l.b16 %v11109
  %v11126 = vunpack.c.l.b16 %v11110
  %v11127 = vunpack.c.l.b16 %v11111
  %v11128 = vunpack.c.l.b16 %v11112
  %v11129 = vunpack.c.l.b16 %v11113
  %v11130 = vunpack.c.l.b16 %v11114
  %v11131 = vpack.c.b16 %v11124, %v11123
  %v11132 = vpack.c.b16 %v11126, %v11125
  %v11133 = vpack.c.b16 %v11128, %v11127
  %v11134 = vpack.c.b16 %v11130, %v11129
  %v11140 = vsel %vm33, %v11074, 0
  %v11143 = vsel %vm33, %v11075, 0
  %v11146 = vsel %vm33, %v11076, 0
  %v11149 = vsel %vm33, %v11077, 0
  %v11152 = vsel %vm33, %v11078, 0
  %v11155 = vsel %vm33, %v11079, 0
  %v11158 = vsel %vm33, %v11080, 0
  %v11161 = vsel %vm33, %v11081, 0
  %v11164 = vsel %vm33, %v11082, 0
  %v11167 = vsel %vm33, %v11083, 0
  %v11170 = vsel %vm33, %v11084, 0
  %v11173 = vsel %vm33, %v11085, 0
  %v11176 = vsel %vm33, %v11086, 0
  %v11179 = vsel %vm33, %v11087, 0
  %v11182 = vsel %vm33, %v11088, 0
  %v11185 = vsel %vm33, %v11089, 0
  %v11188 = vsel %vm33, %v11090, 0
  %v11191 = vsel %vm33, %v11091, 0
  %v11194 = vsel %vm33, %v11092, 0
  %v11197 = vsel %vm33, %v11093, 0
  %v11200 = vsel %vm33, %v11094, 0
  %v11203 = vsel %vm33, %v11095, 0
  %v11206 = vsel %vm33, %v11096, 0
  %v11209 = vsel %vm33, %v11097, 0
  %v11212 = vsel %vm33, %v11098, 0
  %v11215 = vsel %vm33, %v11099, 0
  %v11218 = vsel %vm33, %v11100, 0
  %v11221 = vsel %vm33, %v11101, 0
  %v11224 = vsel %vm33, %v11102, 0
  %v11227 = vsel %vm33, %v11103, 0
  %v11230 = vsel %vm33, %v11104, 0
  %v11233 = vsel %vm33, %v11105, 0
  %11235 = vmatpush.bf16.msra.mxu0 0
  %11236 = vmatpush.bf16.msra.mxu0 0
  %11237 = vmatpush.bf16.msra.mxu0 0
  %11238 = vmatpush.bf16.msra.mxu0 0
  %11239 = vmatpush.bf16.msra.mxu0 %v11134
  %11240 = vmatpush.bf16.msra.mxu0 %v11133
  %11241 = vmatpush.bf16.msra.mxu0 %v11132
  %11242 = vmatpush.bf16.msra.mxu0 %v11131
  %11243 = vmatmul.bf16.gmra.mxu0 %v11140
  %v11244 = vpop.f32.mrf.mxu0
  %v11245 = vadd.f32 0.0, %v11244
  %v11246 = vpop.f32.mrf.mxu0
  %v11247 = vadd.f32 0.0, %v11246
  %11248 = vmatmul.bf16.gmra.mxu0 %v11143
  %v11249 = vpop.f32.mrf.mxu0
  %v11250 = vadd.f32 0.0, %v11249
  %v11251 = vpop.f32.mrf.mxu0
  %v11252 = vadd.f32 0.0, %v11251
  %11253 = vmatmul.bf16.gmra.mxu0 %v11146
  %v11254 = vpop.f32.mrf.mxu0
  %v11255 = vadd.f32 0.0, %v11254
  %v11256 = vpop.f32.mrf.mxu0
  %v11257 = vadd.f32 0.0, %v11256
  %11258 = vmatmul.bf16.gmra.mxu0 %v11149
  %v11259 = vpop.f32.mrf.mxu0
  %v11260 = vadd.f32 0.0, %v11259
  %v11261 = vpop.f32.mrf.mxu0
  %v11262 = vadd.f32 0.0, %v11261
  %11263 = vmatmul.bf16.gmra.mxu0 %v11152
  %v11264 = vpop.f32.mrf.mxu0
  %v11265 = vadd.f32 0.0, %v11264
  %v11266 = vpop.f32.mrf.mxu0
  %v11267 = vadd.f32 0.0, %v11266
  %11268 = vmatmul.bf16.gmra.mxu0 %v11155
  %v11269 = vpop.f32.mrf.mxu0
  %v11270 = vadd.f32 0.0, %v11269
  %v11271 = vpop.f32.mrf.mxu0
  %v11272 = vadd.f32 0.0, %v11271
  %11273 = vmatmul.bf16.gmra.mxu0 %v11158
  %v11274 = vpop.f32.mrf.mxu0
  %v11275 = vadd.f32 0.0, %v11274
  %v11276 = vpop.f32.mrf.mxu0
  %v11277 = vadd.f32 0.0, %v11276
  %11278 = vmatmul.bf16.gmra.mxu0 %v11161
  %v11279 = vpop.f32.mrf.mxu0
  %v11280 = vadd.f32 0.0, %v11279
  %v11281 = vpop.f32.mrf.mxu0
  %v11282 = vadd.f32 0.0, %v11281
  %11283 = vmatmul.bf16.gmra.mxu0 %v11164
  %v11284 = vpop.f32.mrf.mxu0
  %v11285 = vadd.f32 0.0, %v11284
  %v11286 = vpop.f32.mrf.mxu0
  %v11287 = vadd.f32 0.0, %v11286
  %11288 = vmatmul.bf16.gmra.mxu0 %v11167
  %v11289 = vpop.f32.mrf.mxu0
  %v11290 = vadd.f32 0.0, %v11289
  %v11291 = vpop.f32.mrf.mxu0
  %v11292 = vadd.f32 0.0, %v11291
  %11293 = vmatmul.bf16.gmra.mxu0 %v11170
  %v11294 = vpop.f32.mrf.mxu0
  %v11295 = vadd.f32 0.0, %v11294
  %v11296 = vpop.f32.mrf.mxu0
  %v11297 = vadd.f32 0.0, %v11296
  %11298 = vmatmul.bf16.gmra.mxu0 %v11173
  %v11299 = vpop.f32.mrf.mxu0
  %v11300 = vadd.f32 0.0, %v11299
  %v11301 = vpop.f32.mrf.mxu0
  %v11302 = vadd.f32 0.0, %v11301
  %11303 = vmatmul.bf16.gmra.mxu0 %v11176
  %v11304 = vpop.f32.mrf.mxu0
  %v11305 = vadd.f32 0.0, %v11304
  %v11306 = vpop.f32.mrf.mxu0
  %v11307 = vadd.f32 0.0, %v11306
  %11308 = vmatmul.bf16.gmra.mxu0 %v11179
  %v11309 = vpop.f32.mrf.mxu0
  %v11310 = vadd.f32 0.0, %v11309
  %v11311 = vpop.f32.mrf.mxu0
  %v11312 = vadd.f32 0.0, %v11311
  %11313 = vmatmul.bf16.gmra.mxu0 %v11182
  %v11314 = vpop.f32.mrf.mxu0
  %v11315 = vadd.f32 0.0, %v11314
  %v11316 = vpop.f32.mrf.mxu0
  %v11317 = vadd.f32 0.0, %v11316
  %11318 = vmatmul.bf16.gmra.mxu0 %v11185
  %v11319 = vpop.f32.mrf.mxu0
  %v11320 = vadd.f32 0.0, %v11319
  %v11321 = vpop.f32.mrf.mxu0
  %v11322 = vadd.f32 0.0, %v11321
  %11323 = vmatmul.bf16.gmra.mxu0 %v11188
  %v11324 = vpop.f32.mrf.mxu0
  %v11325 = vadd.f32 0.0, %v11324
  %v11326 = vpop.f32.mrf.mxu0
  %v11327 = vadd.f32 0.0, %v11326
  %11328 = vmatmul.bf16.gmra.mxu0 %v11191
  %v11329 = vpop.f32.mrf.mxu0
  %v11330 = vadd.f32 0.0, %v11329
  %v11331 = vpop.f32.mrf.mxu0
  %v11332 = vadd.f32 0.0, %v11331
  %11333 = vmatmul.bf16.gmra.mxu0 %v11194
  %v11334 = vpop.f32.mrf.mxu0
  %v11335 = vadd.f32 0.0, %v11334
  %v11336 = vpop.f32.mrf.mxu0
  %v11337 = vadd.f32 0.0, %v11336
  %11338 = vmatmul.bf16.gmra.mxu0 %v11197
  %v11339 = vpop.f32.mrf.mxu0
  %v11340 = vadd.f32 0.0, %v11339
  %v11341 = vpop.f32.mrf.mxu0
  %v11342 = vadd.f32 0.0, %v11341
  %11343 = vmatmul.bf16.gmra.mxu0 %v11200
  %v11344 = vpop.f32.mrf.mxu0
  %v11345 = vadd.f32 0.0, %v11344
  %v11346 = vpop.f32.mrf.mxu0
  %v11347 = vadd.f32 0.0, %v11346
  %11348 = vmatmul.bf16.gmra.mxu0 %v11203
  %v11349 = vpop.f32.mrf.mxu0
  %v11350 = vadd.f32 0.0, %v11349
  %v11351 = vpop.f32.mrf.mxu0
  %v11352 = vadd.f32 0.0, %v11351
  %11353 = vmatmul.bf16.gmra.mxu0 %v11206
  %v11354 = vpop.f32.mrf.mxu0
  %v11355 = vadd.f32 0.0, %v11354
  %v11356 = vpop.f32.mrf.mxu0
  %v11357 = vadd.f32 0.0, %v11356
  %11358 = vmatmul.bf16.gmra.mxu0 %v11209
  %v11359 = vpop.f32.mrf.mxu0
  %v11360 = vadd.f32 0.0, %v11359
  %v11361 = vpop.f32.mrf.mxu0
  %v11362 = vadd.f32 0.0, %v11361
  %11363 = vmatmul.bf16.gmra.mxu0 %v11212
  %v11364 = vpop.f32.mrf.mxu0
  %v11365 = vadd.f32 0.0, %v11364
  %v11366 = vpop.f32.mrf.mxu0
  %v11367 = vadd.f32 0.0, %v11366
  %11368 = vmatmul.bf16.gmra.mxu0 %v11215
  %v11369 = vpop.f32.mrf.mxu0
  %v11370 = vadd.f32 0.0, %v11369
  %v11371 = vpop.f32.mrf.mxu0
  %v11372 = vadd.f32 0.0, %v11371
  %11373 = vmatmul.bf16.gmra.mxu0 %v11218
  %v11374 = vpop.f32.mrf.mxu0
  %v11375 = vadd.f32 0.0, %v11374
  %v11376 = vpop.f32.mrf.mxu0
  %v11377 = vadd.f32 0.0, %v11376
  %11378 = vmatmul.bf16.gmra.mxu0 %v11221
  %v11379 = vpop.f32.mrf.mxu0
  %v11380 = vadd.f32 0.0, %v11379
  %v11381 = vpop.f32.mrf.mxu0
  %v11382 = vadd.f32 0.0, %v11381
  %11383 = vmatmul.bf16.gmra.mxu0 %v11224
  %v11384 = vpop.f32.mrf.mxu0
  %v11385 = vadd.f32 0.0, %v11384
  %v11386 = vpop.f32.mrf.mxu0
  %v11387 = vadd.f32 0.0, %v11386
  %11388 = vmatmul.bf16.gmra.mxu0 %v11227
  %v11389 = vpop.f32.mrf.mxu0
  %v11390 = vadd.f32 0.0, %v11389
  %v11391 = vpop.f32.mrf.mxu0
  %v11392 = vadd.f32 0.0, %v11391
  %11393 = vmatmul.bf16.gmra.mxu0 %v11230
  %v11394 = vpop.f32.mrf.mxu0
  %v11395 = vadd.f32 0.0, %v11394
  %v11396 = vpop.f32.mrf.mxu0
  %v11397 = vadd.f32 0.0, %v11396
  %11398 = vmatmul.bf16.gmra.mxu0 %v11233
  %v11399 = vpop.f32.mrf.mxu0
  %v11400 = vadd.f32 0.0, %v11399
  %v11401 = vpop.f32.mrf.mxu0
  %v11402 = vadd.f32 0.0, %v11401
  %11403 = vdwg.mxu0
  %v11404 = vadd.f32 %v10946, %v11245
  %v11405 = vadd.f32 %v10947, %v11247
  %v11406 = vadd.f32 %v10948, %v11250
  %v11407 = vadd.f32 %v10949, %v11252
  %v11408 = vadd.f32 %v10950, %v11255
  %v11409 = vadd.f32 %v10951, %v11257
  %v11410 = vadd.f32 %v10952, %v11260
  %v11411 = vadd.f32 %v10953, %v11262
  %v11412 = vadd.f32 %v10954, %v11265
  %v11413 = vadd.f32 %v10955, %v11267
  %v11414 = vadd.f32 %v10956, %v11270
  %v11415 = vadd.f32 %v10957, %v11272
  %v11416 = vadd.f32 %v10958, %v11275
  %v11417 = vadd.f32 %v10959, %v11277
  %v11418 = vadd.f32 %v10960, %v11280
  %v11419 = vadd.f32 %v10961, %v11282
  %v11420 = vadd.f32 %v10962, %v11285
  %v11421 = vadd.f32 %v10963, %v11287
  %v11422 = vadd.f32 %v10964, %v11290
  %v11423 = vadd.f32 %v10965, %v11292
  %v11424 = vadd.f32 %v10966, %v11295
  %v11425 = vadd.f32 %v10967, %v11297
  %v11426 = vadd.f32 %v10968, %v11300
  %v11427 = vadd.f32 %v10969, %v11302
  %v11428 = vadd.f32 %v10970, %v11305
  %v11429 = vadd.f32 %v10971, %v11307
  %v11430 = vadd.f32 %v10972, %v11310
  %v11431 = vadd.f32 %v10973, %v11312
  %v11432 = vadd.f32 %v10974, %v11315
  %v11433 = vadd.f32 %v10975, %v11317
  %v11434 = vadd.f32 %v10976, %v11320
  %v11435 = vadd.f32 %v10977, %v11322
  %v11436 = vadd.f32 %v10978, %v11325
  %v11437 = vadd.f32 %v10979, %v11327
  %v11438 = vadd.f32 %v10980, %v11330
  %v11439 = vadd.f32 %v10981, %v11332
  %v11440 = vadd.f32 %v10982, %v11335
  %v11441 = vadd.f32 %v10983, %v11337
  %v11442 = vadd.f32 %v10984, %v11340
  %v11443 = vadd.f32 %v10985, %v11342
  %v11444 = vadd.f32 %v10986, %v11345
  %v11445 = vadd.f32 %v10987, %v11347
  %v11446 = vadd.f32 %v10988, %v11350
  %v11447 = vadd.f32 %v10989, %v11352
  %v11448 = vadd.f32 %v10990, %v11355
  %v11449 = vadd.f32 %v10991, %v11357
  %v11450 = vadd.f32 %v10992, %v11360
  %v11451 = vadd.f32 %v10993, %v11362
  %v11452 = vadd.f32 %v10994, %v11365
  %v11453 = vadd.f32 %v10995, %v11367
  %v11454 = vadd.f32 %v10996, %v11370
  %v11455 = vadd.f32 %v10997, %v11372
  %v11456 = vadd.f32 %v10998, %v11375
  %v11457 = vadd.f32 %v10999, %v11377
  %v11458 = vadd.f32 %v11000, %v11380
  %v11459 = vadd.f32 %v11001, %v11382
  %v11460 = vadd.f32 %v11002, %v11385
  %v11461 = vadd.f32 %v11003, %v11387
  %v11462 = vadd.f32 %v11004, %v11390
  %v11463 = vadd.f32 %v11005, %v11392
  %v11464 = vadd.f32 %v11006, %v11395
  %v11465 = vadd.f32 %v11007, %v11397
  %v11466 = vadd.f32 %v11008, %v11400
  %v11467 = vadd.f32 %v11009, %v11402
  %v11468 = vld [vmem:[%s4929 + $0x1] sm:$0xff]
  %v11469 = vld [vmem:[%s4929 + $0x9] sm:$0xff]
  %v11470 = vld [vmem:[%s4929 + $0x19] sm:$0xff]
  %v11471 = vld [vmem:[%s4929 + $0x21] sm:$0xff]
  %v11472 = vld [vmem:[%s4929 + $0x31] sm:$0xff]
  %v11473 = vld [vmem:[%s4929 + $0x39] sm:$0xff]
  %v11474 = vld [vmem:[%s4929 + $0x49] sm:$0xff]
  %v11475 = vld [vmem:[%s4929 + $0x51] sm:$0xff]
  %v11476 = vld [vmem:[%s4929 + $0x61] sm:$0xff]
  %v11477 = vld [vmem:[%s4929 + $0x69] sm:$0xff]
  %v11478 = vld [vmem:[%s4929 + $0x79] sm:$0xff]
  %v11479 = vld [vmem:[%s4929 + $0x81] sm:$0xff]
  %v11480 = vld [vmem:[%s4929 + $0x91] sm:$0xff]
  %v11481 = vld [vmem:[%s4929 + $0x99] sm:$0xff]
  %v11482 = vld [vmem:[%s4929 + $0xa9] sm:$0xff]
  %v11483 = vld [vmem:[%s4929 + $0xb1] sm:$0xff]
  %v11484 = vld [vmem:[%s4929 + $0xc1] sm:$0xff]
  %v11485 = vld [vmem:[%s4929 + $0xc9] sm:$0xff]
  %v11486 = vld [vmem:[%s4929 + $0xd9] sm:$0xff]
  %v11487 = vld [vmem:[%s4929 + $0xe1] sm:$0xff]
  %v11488 = vld [vmem:[%s4929 + $0xf1] sm:$0xff]
  %v11489 = vld [vmem:[%s4929 + $0xf9] sm:$0xff]
  %v11490 = vld [vmem:[%s4929 + $0x109] sm:$0xff]
  %v11491 = vld [vmem:[%s4929 + $0x111] sm:$0xff]
  %v11492 = vld [vmem:[%s4929 + $0x121] sm:$0xff]
  %v11493 = vld [vmem:[%s4929 + $0x129] sm:$0xff]
  %v11494 = vld [vmem:[%s4929 + $0x139] sm:$0xff]
  %v11495 = vld [vmem:[%s4929 + $0x141] sm:$0xff]
  %v11496 = vld [vmem:[%s4929 + $0x151] sm:$0xff]
  %v11497 = vld [vmem:[%s4929 + $0x159] sm:$0xff]
  %v11498 = vld [vmem:[%s4929 + $0x169] sm:$0xff]
  %v11499 = vld [vmem:[%s4929 + $0x171] sm:$0xff]
  %v11500 = vld [vmem:[%s4929 + $0x1b1] sm:$0xff]
  %v11501 = vld [vmem:[%s4929 + $0x1b9] sm:$0xff]
  %v11502 = vld [vmem:[%s4929 + $0x1c9] sm:$0xff]
  %v11503 = vld [vmem:[%s4929 + $0x1d1] sm:$0xff]
  %v11504 = vld [vmem:[%s4929 + $0x1e1] sm:$0xff]
  %v11505 = vld [vmem:[%s4929 + $0x1e9] sm:$0xff]
  %v11506 = vld [vmem:[%s4929 + $0x1f9] sm:$0xff]
  %v11507 = vld [vmem:[%s4929 + $0x201] sm:$0xff]
  %v11508 = vld [vmem:[%s4929 + $0x211] sm:$0xff]
  %v11509 = vld [vmem:[%s4929 + $0x219] sm:$0xff]
  %v11510 = vld [vmem:[%s4929 + $0x229] sm:$0xff]
  %v11511 = vld [vmem:[%s4929 + $0x231] sm:$0xff]
  %v11512 = vld [vmem:[%s4929 + $0x241] sm:$0xff]
  %v11513 = vld [vmem:[%s4929 + $0x249] sm:$0xff]
  %v11514 = vld [vmem:[%s4929 + $0x259] sm:$0xff]
  %v11515 = vld [vmem:[%s4929 + $0x261] sm:$0xff]
  %v11516 = vld [vmem:[%s4929 + $0x271] sm:$0xff]
  %v11517 = vld [vmem:[%s4929 + $0x279] sm:$0xff]
  %v11518 = vld [vmem:[%s4929 + $0x289] sm:$0xff]
  %v11519 = vld [vmem:[%s4929 + $0x291] sm:$0xff]
  %v11520 = vld [vmem:[%s4929 + $0x2a1] sm:$0xff]
  %v11521 = vld [vmem:[%s4929 + $0x2a9] sm:$0xff]
  %v11522 = vld [vmem:[%s4929 + $0x2b9] sm:$0xff]
  %v11523 = vld [vmem:[%s4929 + $0x2c1] sm:$0xff]
  %v11524 = vld [vmem:[%s4929 + $0x2d1] sm:$0xff]
  %v11525 = vld [vmem:[%s4929 + $0x2d9] sm:$0xff]
  %v11526 = vld [vmem:[%s4929 + $0x2e9] sm:$0xff]
  %v11527 = vld [vmem:[%s4929 + $0x2f1] sm:$0xff]
  %v11528 = vld [vmem:[%s4929 + $0x301] sm:$0xff]
  %v11529 = vld [vmem:[%s4929 + $0x309] sm:$0xff]
  %v11530 = vld [vmem:[%s4929 + $0x319] sm:$0xff]
  %v11531 = vld [vmem:[%s4929 + $0x321] sm:$0xff]
  %v11532 = vpack.c.bf16 %v11469, %v11468
  %v11533 = vpack.c.bf16 %v11471, %v11470
  %v11534 = vpack.c.bf16 %v11473, %v11472
  %v11535 = vpack.c.bf16 %v11475, %v11474
  %v11536 = vpack.c.bf16 %v11477, %v11476
  %v11537 = vpack.c.bf16 %v11479, %v11478
  %v11538 = vpack.c.bf16 %v11481, %v11480
  %v11539 = vpack.c.bf16 %v11483, %v11482
  %v11540 = vpack.c.bf16 %v11485, %v11484
  %v11541 = vpack.c.bf16 %v11487, %v11486
  %v11542 = vpack.c.bf16 %v11489, %v11488
  %v11543 = vpack.c.bf16 %v11491, %v11490
  %v11544 = vpack.c.bf16 %v11493, %v11492
  %v11545 = vpack.c.bf16 %v11495, %v11494
  %v11546 = vpack.c.bf16 %v11497, %v11496
  %v11547 = vpack.c.bf16 %v11499, %v11498
  %v11548 = vpack.c.bf16 %v11501, %v11500
  %v11549 = vpack.c.bf16 %v11503, %v11502
  %v11550 = vpack.c.bf16 %v11505, %v11504
  %v11551 = vpack.c.bf16 %v11507, %v11506
  %v11552 = vpack.c.bf16 %v11509, %v11508
  %v11553 = vpack.c.bf16 %v11511, %v11510
  %v11554 = vpack.c.bf16 %v11513, %v11512
  %v11555 = vpack.c.bf16 %v11515, %v11514
  %v11556 = vpack.c.bf16 %v11517, %v11516
  %v11557 = vpack.c.bf16 %v11519, %v11518
  %v11558 = vpack.c.bf16 %v11521, %v11520
  %v11559 = vpack.c.bf16 %v11523, %v11522
  %v11560 = vpack.c.bf16 %v11525, %v11524
  %v11561 = vpack.c.bf16 %v11527, %v11526
  %v11562 = vpack.c.bf16 %v11529, %v11528
  %v11563 = vpack.c.bf16 %v11531, %v11530
  %s11564 = scalar_lea.vmem %s7, 128
  %v11565 = vld [vmem:[%s11564] sm:$0xf]
  %v11566 = vld [vmem:[%s11564 + $0x4] sm:$0xf]
  %v11567 = vld [vmem:[%s11564 + $0x8] sm:$0xf]
  %v11568 = vld [vmem:[%s11564 + $0xc] sm:$0xf]
  %v11569 = vld [vmem:[%s11564 + $0x10] sm:$0xf]
  %v11570 = vld [vmem:[%s11564 + $0x14] sm:$0xf]
  %v11571 = vld [vmem:[%s11564 + $0x18] sm:$0xf]
  %v11572 = vld [vmem:[%s11564 + $0x1c] sm:$0xf]
  %v11581 = vunpack.c.l.b16 %v11565
  %v11582 = vunpack.c.l.b16 %v11566
  %v11583 = vunpack.c.l.b16 %v11567
  %v11584 = vunpack.c.l.b16 %v11568
  %v11585 = vunpack.c.l.b16 %v11569
  %v11586 = vunpack.c.l.b16 %v11570
  %v11587 = vunpack.c.l.b16 %v11571
  %v11588 = vunpack.c.l.b16 %v11572
  %v11589 = vpack.c.b16 %v11582, %v11581
  %v11590 = vpack.c.b16 %v11584, %v11583
  %v11591 = vpack.c.b16 %v11586, %v11585
  %v11592 = vpack.c.b16 %v11588, %v11587
  %v11598 = vsel %vm33, %v11532, 0
  %v11601 = vsel %vm33, %v11533, 0
  %v11604 = vsel %vm33, %v11534, 0
  %v11607 = vsel %vm33, %v11535, 0
  %v11610 = vsel %vm33, %v11536, 0
  %v11613 = vsel %vm33, %v11537, 0
  %v11616 = vsel %vm33, %v11538, 0
  %v11619 = vsel %vm33, %v11539, 0
  %v11622 = vsel %vm33, %v11540, 0
  %v11625 = vsel %vm33, %v11541, 0
  %v11628 = vsel %vm33, %v11542, 0
  %v11631 = vsel %vm33, %v11543, 0
  %v11634 = vsel %vm33, %v11544, 0
  %v11637 = vsel %vm33, %v11545, 0
  %v11640 = vsel %vm33, %v11546, 0
  %v11643 = vsel %vm33, %v11547, 0
  %v11646 = vsel %vm33, %v11548, 0
  %v11649 = vsel %vm33, %v11549, 0
  %v11652 = vsel %vm33, %v11550, 0
  %v11655 = vsel %vm33, %v11551, 0
  %v11658 = vsel %vm33, %v11552, 0
  %v11661 = vsel %vm33, %v11553, 0
  %v11664 = vsel %vm33, %v11554, 0
  %v11667 = vsel %vm33, %v11555, 0
  %v11670 = vsel %vm33, %v11556, 0
  %v11673 = vsel %vm33, %v11557, 0
  %v11676 = vsel %vm33, %v11558, 0
  %v11679 = vsel %vm33, %v11559, 0
  %v11682 = vsel %vm33, %v11560, 0
  %v11685 = vsel %vm33, %v11561, 0
  %v11688 = vsel %vm33, %v11562, 0
  %v11691 = vsel %vm33, %v11563, 0
  %11693 = vmatpush.bf16.msra.mxu0 0
  %11694 = vmatpush.bf16.msra.mxu0 0
  %11695 = vmatpush.bf16.msra.mxu0 0
  %11696 = vmatpush.bf16.msra.mxu0 0
  %11697 = vmatpush.bf16.msra.mxu0 %v11592
  %11698 = vmatpush.bf16.msra.mxu0 %v11591
  %11699 = vmatpush.bf16.msra.mxu0 %v11590
  %11700 = vmatpush.bf16.msra.mxu0 %v11589
  %11701 = vmatmul.bf16.gmra.mxu0 %v11598
  %v11702 = vpop.f32.mrf.mxu0
  %v11703 = vadd.f32 0.0, %v11702
  %v11704 = vpop.f32.mrf.mxu0
  %v11705 = vadd.f32 0.0, %v11704
  %11706 = vmatmul.bf16.gmra.mxu0 %v11601
  %v11707 = vpop.f32.mrf.mxu0
  %v11708 = vadd.f32 0.0, %v11707
  %v11709 = vpop.f32.mrf.mxu0
  %v11710 = vadd.f32 0.0, %v11709
  %11711 = vmatmul.bf16.gmra.mxu0 %v11604
  %v11712 = vpop.f32.mrf.mxu0
  %v11713 = vadd.f32 0.0, %v11712
  %v11714 = vpop.f32.mrf.mxu0
  %v11715 = vadd.f32 0.0, %v11714
  %11716 = vmatmul.bf16.gmra.mxu0 %v11607
  %v11717 = vpop.f32.mrf.mxu0
  %v11718 = vadd.f32 0.0, %v11717
  %v11719 = vpop.f32.mrf.mxu0
  %v11720 = vadd.f32 0.0, %v11719
  %11721 = vmatmul.bf16.gmra.mxu0 %v11610
  %v11722 = vpop.f32.mrf.mxu0
  %v11723 = vadd.f32 0.0, %v11722
  %v11724 = vpop.f32.mrf.mxu0
  %v11725 = vadd.f32 0.0, %v11724
  %11726 = vmatmul.bf16.gmra.mxu0 %v11613
  %v11727 = vpop.f32.mrf.mxu0
  %v11728 = vadd.f32 0.0, %v11727
  %v11729 = vpop.f32.mrf.mxu0
  %v11730 = vadd.f32 0.0, %v11729
  %11731 = vmatmul.bf16.gmra.mxu0 %v11616
  %v11732 = vpop.f32.mrf.mxu0
  %v11733 = vadd.f32 0.0, %v11732
  %v11734 = vpop.f32.mrf.mxu0
  %v11735 = vadd.f32 0.0, %v11734
  %11736 = vmatmul.bf16.gmra.mxu0 %v11619
  %v11737 = vpop.f32.mrf.mxu0
  %v11738 = vadd.f32 0.0, %v11737
  %v11739 = vpop.f32.mrf.mxu0
  %v11740 = vadd.f32 0.0, %v11739
  %11741 = vmatmul.bf16.gmra.mxu0 %v11622
  %v11742 = vpop.f32.mrf.mxu0
  %v11743 = vadd.f32 0.0, %v11742
  %v11744 = vpop.f32.mrf.mxu0
  %v11745 = vadd.f32 0.0, %v11744
  %11746 = vmatmul.bf16.gmra.mxu0 %v11625
  %v11747 = vpop.f32.mrf.mxu0
  %v11748 = vadd.f32 0.0, %v11747
  %v11749 = vpop.f32.mrf.mxu0
  %v11750 = vadd.f32 0.0, %v11749
  %11751 = vmatmul.bf16.gmra.mxu0 %v11628
  %v11752 = vpop.f32.mrf.mxu0
  %v11753 = vadd.f32 0.0, %v11752
  %v11754 = vpop.f32.mrf.mxu0
  %v11755 = vadd.f32 0.0, %v11754
  %11756 = vmatmul.bf16.gmra.mxu0 %v11631
  %v11757 = vpop.f32.mrf.mxu0
  %v11758 = vadd.f32 0.0, %v11757
  %v11759 = vpop.f32.mrf.mxu0
  %v11760 = vadd.f32 0.0, %v11759
  %11761 = vmatmul.bf16.gmra.mxu0 %v11634
  %v11762 = vpop.f32.mrf.mxu0
  %v11763 = vadd.f32 0.0, %v11762
  %v11764 = vpop.f32.mrf.mxu0
  %v11765 = vadd.f32 0.0, %v11764
  %11766 = vmatmul.bf16.gmra.mxu0 %v11637
  %v11767 = vpop.f32.mrf.mxu0
  %v11768 = vadd.f32 0.0, %v11767
  %v11769 = vpop.f32.mrf.mxu0
  %v11770 = vadd.f32 0.0, %v11769
  %11771 = vmatmul.bf16.gmra.mxu0 %v11640
  %v11772 = vpop.f32.mrf.mxu0
  %v11773 = vadd.f32 0.0, %v11772
  %v11774 = vpop.f32.mrf.mxu0
  %v11775 = vadd.f32 0.0, %v11774
  %11776 = vmatmul.bf16.gmra.mxu0 %v11643
  %v11777 = vpop.f32.mrf.mxu0
  %v11778 = vadd.f32 0.0, %v11777
  %v11779 = vpop.f32.mrf.mxu0
  %v11780 = vadd.f32 0.0, %v11779
  %11781 = vmatmul.bf16.gmra.mxu0 %v11646
  %v11782 = vpop.f32.mrf.mxu0
  %v11783 = vadd.f32 0.0, %v11782
  %v11784 = vpop.f32.mrf.mxu0
  %v11785 = vadd.f32 0.0, %v11784
  %11786 = vmatmul.bf16.gmra.mxu0 %v11649
  %v11787 = vpop.f32.mrf.mxu0
  %v11788 = vadd.f32 0.0, %v11787
  %v11789 = vpop.f32.mrf.mxu0
  %v11790 = vadd.f32 0.0, %v11789
  %11791 = vmatmul.bf16.gmra.mxu0 %v11652
  %v11792 = vpop.f32.mrf.mxu0
  %v11793 = vadd.f32 0.0, %v11792
  %v11794 = vpop.f32.mrf.mxu0
  %v11795 = vadd.f32 0.0, %v11794
  %11796 = vmatmul.bf16.gmra.mxu0 %v11655
  %v11797 = vpop.f32.mrf.mxu0
  %v11798 = vadd.f32 0.0, %v11797
  %v11799 = vpop.f32.mrf.mxu0
  %v11800 = vadd.f32 0.0, %v11799
  %11801 = vmatmul.bf16.gmra.mxu0 %v11658
  %v11802 = vpop.f32.mrf.mxu0
  %v11803 = vadd.f32 0.0, %v11802
  %v11804 = vpop.f32.mrf.mxu0
  %v11805 = vadd.f32 0.0, %v11804
  %11806 = vmatmul.bf16.gmra.mxu0 %v11661
  %v11807 = vpop.f32.mrf.mxu0
  %v11808 = vadd.f32 0.0, %v11807
  %v11809 = vpop.f32.mrf.mxu0
  %v11810 = vadd.f32 0.0, %v11809
  %11811 = vmatmul.bf16.gmra.mxu0 %v11664
  %v11812 = vpop.f32.mrf.mxu0
  %v11813 = vadd.f32 0.0, %v11812
  %v11814 = vpop.f32.mrf.mxu0
  %v11815 = vadd.f32 0.0, %v11814
  %11816 = vmatmul.bf16.gmra.mxu0 %v11667
  %v11817 = vpop.f32.mrf.mxu0
  %v11818 = vadd.f32 0.0, %v11817
  %v11819 = vpop.f32.mrf.mxu0
  %v11820 = vadd.f32 0.0, %v11819
  %11821 = vmatmul.bf16.gmra.mxu0 %v11670
  %v11822 = vpop.f32.mrf.mxu0
  %v11823 = vadd.f32 0.0, %v11822
  %v11824 = vpop.f32.mrf.mxu0
  %v11825 = vadd.f32 0.0, %v11824
  %11826 = vmatmul.bf16.gmra.mxu0 %v11673
  %v11827 = vpop.f32.mrf.mxu0
  %v11828 = vadd.f32 0.0, %v11827
  %v11829 = vpop.f32.mrf.mxu0
  %v11830 = vadd.f32 0.0, %v11829
  %11831 = vmatmul.bf16.gmra.mxu0 %v11676
  %v11832 = vpop.f32.mrf.mxu0
  %v11833 = vadd.f32 0.0, %v11832
  %v11834 = vpop.f32.mrf.mxu0
  %v11835 = vadd.f32 0.0, %v11834
  %11836 = vmatmul.bf16.gmra.mxu0 %v11679
  %v11837 = vpop.f32.mrf.mxu0
  %v11838 = vadd.f32 0.0, %v11837
  %v11839 = vpop.f32.mrf.mxu0
  %v11840 = vadd.f32 0.0, %v11839
  %11841 = vmatmul.bf16.gmra.mxu0 %v11682
  %v11842 = vpop.f32.mrf.mxu0
  %v11843 = vadd.f32 0.0, %v11842
  %v11844 = vpop.f32.mrf.mxu0
  %v11845 = vadd.f32 0.0, %v11844
  %11846 = vmatmul.bf16.gmra.mxu0 %v11685
  %v11847 = vpop.f32.mrf.mxu0
  %v11848 = vadd.f32 0.0, %v11847
  %v11849 = vpop.f32.mrf.mxu0
  %v11850 = vadd.f32 0.0, %v11849
  %11851 = vmatmul.bf16.gmra.mxu0 %v11688
  %v11852 = vpop.f32.mrf.mxu0
  %v11853 = vadd.f32 0.0, %v11852
  %v11854 = vpop.f32.mrf.mxu0
  %v11855 = vadd.f32 0.0, %v11854
  %11856 = vmatmul.bf16.gmra.mxu0 %v11691
  %v11857 = vpop.f32.mrf.mxu0
  %v11858 = vadd.f32 0.0, %v11857
  %v11859 = vpop.f32.mrf.mxu0
  %v11860 = vadd.f32 0.0, %v11859
  %11861 = vdwg.mxu0
  %v11862 = vadd.f32 %v11404, %v11703
  %v11863 = vadd.f32 %v11405, %v11705
  %v11864 = vadd.f32 %v11406, %v11708
  %v11865 = vadd.f32 %v11407, %v11710
  %v11866 = vadd.f32 %v11408, %v11713
  %v11867 = vadd.f32 %v11409, %v11715
  %v11868 = vadd.f32 %v11410, %v11718
  %v11869 = vadd.f32 %v11411, %v11720
  %v11870 = vadd.f32 %v11412, %v11723
  %v11871 = vadd.f32 %v11413, %v11725
  %v11872 = vadd.f32 %v11414, %v11728
  %v11873 = vadd.f32 %v11415, %v11730
  %v11874 = vadd.f32 %v11416, %v11733
  %v11875 = vadd.f32 %v11417, %v11735
  %v11876 = vadd.f32 %v11418, %v11738
  %v11877 = vadd.f32 %v11419, %v11740
  %v11878 = vadd.f32 %v11420, %v11743
  %v11879 = vadd.f32 %v11421, %v11745
  %v11880 = vadd.f32 %v11422, %v11748
  %v11881 = vadd.f32 %v11423, %v11750
  %v11882 = vadd.f32 %v11424, %v11753
  %v11883 = vadd.f32 %v11425, %v11755
  %v11884 = vadd.f32 %v11426, %v11758
  %v11885 = vadd.f32 %v11427, %v11760
  %v11886 = vadd.f32 %v11428, %v11763
  %v11887 = vadd.f32 %v11429, %v11765
  %v11888 = vadd.f32 %v11430, %v11768
  %v11889 = vadd.f32 %v11431, %v11770
  %v11890 = vadd.f32 %v11432, %v11773
  %v11891 = vadd.f32 %v11433, %v11775
  %v11892 = vadd.f32 %v11434, %v11778
  %v11893 = vadd.f32 %v11435, %v11780
  %v11894 = vadd.f32 %v11436, %v11783
  %v11895 = vadd.f32 %v11437, %v11785
  %v11896 = vadd.f32 %v11438, %v11788
  %v11897 = vadd.f32 %v11439, %v11790
  %v11898 = vadd.f32 %v11440, %v11793
  %v11899 = vadd.f32 %v11441, %v11795
  %v11900 = vadd.f32 %v11442, %v11798
  %v11901 = vadd.f32 %v11443, %v11800
  %v11902 = vadd.f32 %v11444, %v11803
  %v11903 = vadd.f32 %v11445, %v11805
  %v11904 = vadd.f32 %v11446, %v11808
  %v11905 = vadd.f32 %v11447, %v11810
  %v11906 = vadd.f32 %v11448, %v11813
  %v11907 = vadd.f32 %v11449, %v11815
  %v11908 = vadd.f32 %v11450, %v11818
  %v11909 = vadd.f32 %v11451, %v11820
  %v11910 = vadd.f32 %v11452, %v11823
  %v11911 = vadd.f32 %v11453, %v11825
  %v11912 = vadd.f32 %v11454, %v11828
  %v11913 = vadd.f32 %v11455, %v11830
  %v11914 = vadd.f32 %v11456, %v11833
  %v11915 = vadd.f32 %v11457, %v11835
  %v11916 = vadd.f32 %v11458, %v11838
  %v11917 = vadd.f32 %v11459, %v11840
  %v11918 = vadd.f32 %v11460, %v11843
  %v11919 = vadd.f32 %v11461, %v11845
  %v11920 = vadd.f32 %v11462, %v11848
  %v11921 = vadd.f32 %v11463, %v11850
  %v11922 = vadd.f32 %v11464, %v11853
  %v11923 = vadd.f32 %v11465, %v11855
  %v11924 = vadd.f32 %v11466, %v11858
  %v11925 = vadd.f32 %v11467, %v11860
  %v11926 = vld [vmem:[%s4929 + $0x2] sm:$0xff]
  %v11927 = vld [vmem:[%s4929 + $0xa] sm:$0xff]
  %v11928 = vld [vmem:[%s4929 + $0x1a] sm:$0xff]
  %v11929 = vld [vmem:[%s4929 + $0x22] sm:$0xff]
  %v11930 = vld [vmem:[%s4929 + $0x32] sm:$0xff]
  %v11931 = vld [vmem:[%s4929 + $0x3a] sm:$0xff]
  %v11932 = vld [vmem:[%s4929 + $0x4a] sm:$0xff]
  %v11933 = vld [vmem:[%s4929 + $0x52] sm:$0xff]
  %v11934 = vld [vmem:[%s4929 + $0x62] sm:$0xff]
  %v11935 = vld [vmem:[%s4929 + $0x6a] sm:$0xff]
  %v11936 = vld [vmem:[%s4929 + $0x7a] sm:$0xff]
  %v11937 = vld [vmem:[%s4929 + $0x82] sm:$0xff]
  %v11938 = vld [vmem:[%s4929 + $0x92] sm:$0xff]
  %v11939 = vld [vmem:[%s4929 + $0x9a] sm:$0xff]
  %v11940 = vld [vmem:[%s4929 + $0xaa] sm:$0xff]
  %v11941 = vld [vmem:[%s4929 + $0xb2] sm:$0xff]
  %v11942 = vld [vmem:[%s4929 + $0xc2] sm:$0xff]
  %v11943 = vld [vmem:[%s4929 + $0xca] sm:$0xff]
  %v11944 = vld [vmem:[%s4929 + $0xda] sm:$0xff]
  %v11945 = vld [vmem:[%s4929 + $0xe2] sm:$0xff]
  %v11946 = vld [vmem:[%s4929 + $0xf2] sm:$0xff]
  %v11947 = vld [vmem:[%s4929 + $0xfa] sm:$0xff]
  %v11948 = vld [vmem:[%s4929 + $0x10a] sm:$0xff]
  %v11949 = vld [vmem:[%s4929 + $0x112] sm:$0xff]
  %v11950 = vld [vmem:[%s4929 + $0x122] sm:$0xff]
  %v11951 = vld [vmem:[%s4929 + $0x12a] sm:$0xff]
  %v11952 = vld [vmem:[%s4929 + $0x13a] sm:$0xff]
  %v11953 = vld [vmem:[%s4929 + $0x142] sm:$0xff]
  %v11954 = vld [vmem:[%s4929 + $0x152] sm:$0xff]
  %v11955 = vld [vmem:[%s4929 + $0x15a] sm:$0xff]
  %v11956 = vld [vmem:[%s4929 + $0x16a] sm:$0xff]
  %v11957 = vld [vmem:[%s4929 + $0x172] sm:$0xff]
  %v11958 = vld [vmem:[%s4929 + $0x1b2] sm:$0xff]
  %v11959 = vld [vmem:[%s4929 + $0x1ba] sm:$0xff]
  %v11960 = vld [vmem:[%s4929 + $0x1ca] sm:$0xff]
  %v11961 = vld [vmem:[%s4929 + $0x1d2] sm:$0xff]
  %v11962 = vld [vmem:[%s4929 + $0x1e2] sm:$0xff]
  %v11963 = vld [vmem:[%s4929 + $0x1ea] sm:$0xff]
  %v11964 = vld [vmem:[%s4929 + $0x1fa] sm:$0xff]
  %v11965 = vld [vmem:[%s4929 + $0x202] sm:$0xff]
  %v11966 = vld [vmem:[%s4929 + $0x212] sm:$0xff]
  %v11967 = vld [vmem:[%s4929 + $0x21a] sm:$0xff]
  %v11968 = vld [vmem:[%s4929 + $0x22a] sm:$0xff]
  %v11969 = vld [vmem:[%s4929 + $0x232] sm:$0xff]
  %v11970 = vld [vmem:[%s4929 + $0x242] sm:$0xff]
  %v11971 = vld [vmem:[%s4929 + $0x24a] sm:$0xff]
  %v11972 = vld [vmem:[%s4929 + $0x25a] sm:$0xff]
  %v11973 = vld [vmem:[%s4929 + $0x262] sm:$0xff]
  %v11974 = vld [vmem:[%s4929 + $0x272] sm:$0xff]
  %v11975 = vld [vmem:[%s4929 + $0x27a] sm:$0xff]
  %v11976 = vld [vmem:[%s4929 + $0x28a] sm:$0xff]
  %v11977 = vld [vmem:[%s4929 + $0x292] sm:$0xff]
  %v11978 = vld [vmem:[%s4929 + $0x2a2] sm:$0xff]
  %v11979 = vld [vmem:[%s4929 + $0x2aa] sm:$0xff]
  %v11980 = vld [vmem:[%s4929 + $0x2ba] sm:$0xff]
  %v11981 = vld [vmem:[%s4929 + $0x2c2] sm:$0xff]
  %v11982 = vld [vmem:[%s4929 + $0x2d2] sm:$0xff]
  %v11983 = vld [vmem:[%s4929 + $0x2da] sm:$0xff]
  %v11984 = vld [vmem:[%s4929 + $0x2ea] sm:$0xff]
  %v11985 = vld [vmem:[%s4929 + $0x2f2] sm:$0xff]
  %v11986 = vld [vmem:[%s4929 + $0x302] sm:$0xff]
  %v11987 = vld [vmem:[%s4929 + $0x30a] sm:$0xff]
  %v11988 = vld [vmem:[%s4929 + $0x31a] sm:$0xff]
  %v11989 = vld [vmem:[%s4929 + $0x322] sm:$0xff]
  %v11990 = vpack.c.bf16 %v11927, %v11926
  %v11991 = vpack.c.bf16 %v11929, %v11928
  %v11992 = vpack.c.bf16 %v11931, %v11930
  %v11993 = vpack.c.bf16 %v11933, %v11932
  %v11994 = vpack.c.bf16 %v11935, %v11934
  %v11995 = vpack.c.bf16 %v11937, %v11936
  %v11996 = vpack.c.bf16 %v11939, %v11938
  %v11997 = vpack.c.bf16 %v11941, %v11940
  %v11998 = vpack.c.bf16 %v11943, %v11942
  %v11999 = vpack.c.bf16 %v11945, %v11944
  %v12000 = vpack.c.bf16 %v11947, %v11946
  %v12001 = vpack.c.bf16 %v11949, %v11948
  %v12002 = vpack.c.bf16 %v11951, %v11950
  %v12003 = vpack.c.bf16 %v11953, %v11952
  %v12004 = vpack.c.bf16 %v11955, %v11954
  %v12005 = vpack.c.bf16 %v11957, %v11956
  %v12006 = vpack.c.bf16 %v11959, %v11958
  %v12007 = vpack.c.bf16 %v11961, %v11960
  %v12008 = vpack.c.bf16 %v11963, %v11962
  %v12009 = vpack.c.bf16 %v11965, %v11964
  %v12010 = vpack.c.bf16 %v11967, %v11966
  %v12011 = vpack.c.bf16 %v11969, %v11968
  %v12012 = vpack.c.bf16 %v11971, %v11970
  %v12013 = vpack.c.bf16 %v11973, %v11972
  %v12014 = vpack.c.bf16 %v11975, %v11974
  %v12015 = vpack.c.bf16 %v11977, %v11976
  %v12016 = vpack.c.bf16 %v11979, %v11978
  %v12017 = vpack.c.bf16 %v11981, %v11980
  %v12018 = vpack.c.bf16 %v11983, %v11982
  %v12019 = vpack.c.bf16 %v11985, %v11984
  %v12020 = vpack.c.bf16 %v11987, %v11986
  %v12021 = vpack.c.bf16 %v11989, %v11988
  %s12022 = scalar_lea.vmem %s7, 160
  %v12023 = vld [vmem:[%s12022] sm:$0xf]
  %v12024 = vld [vmem:[%s12022 + $0x4] sm:$0xf]
  %v12025 = vld [vmem:[%s12022 + $0x8] sm:$0xf]
  %v12026 = vld [vmem:[%s12022 + $0xc] sm:$0xf]
  %v12027 = vld [vmem:[%s12022 + $0x10] sm:$0xf]
  %v12028 = vld [vmem:[%s12022 + $0x14] sm:$0xf]
  %v12029 = vld [vmem:[%s12022 + $0x18] sm:$0xf]
  %v12030 = vld [vmem:[%s12022 + $0x1c] sm:$0xf]
  %v12039 = vunpack.c.l.b16 %v12023
  %v12040 = vunpack.c.l.b16 %v12024
  %v12041 = vunpack.c.l.b16 %v12025
  %v12042 = vunpack.c.l.b16 %v12026
  %v12043 = vunpack.c.l.b16 %v12027
  %v12044 = vunpack.c.l.b16 %v12028
  %v12045 = vunpack.c.l.b16 %v12029
  %v12046 = vunpack.c.l.b16 %v12030
  %v12047 = vpack.c.b16 %v12040, %v12039
  %v12048 = vpack.c.b16 %v12042, %v12041
  %v12049 = vpack.c.b16 %v12044, %v12043
  %v12050 = vpack.c.b16 %v12046, %v12045
  %v12056 = vsel %vm33, %v11990, 0
  %v12059 = vsel %vm33, %v11991, 0
  %v12062 = vsel %vm33, %v11992, 0
  %v12065 = vsel %vm33, %v11993, 0
  %v12068 = vsel %vm33, %v11994, 0
  %v12071 = vsel %vm33, %v11995, 0
  %v12074 = vsel %vm33, %v11996, 0
  %v12077 = vsel %vm33, %v11997, 0
  %v12080 = vsel %vm33, %v11998, 0
  %v12083 = vsel %vm33, %v11999, 0
  %v12086 = vsel %vm33, %v12000, 0
  %v12089 = vsel %vm33, %v12001, 0
  %v12092 = vsel %vm33, %v12002, 0
  %v12095 = vsel %vm33, %v12003, 0
  %v12098 = vsel %vm33, %v12004, 0
  %v12101 = vsel %vm33, %v12005, 0
  %v12104 = vsel %vm33, %v12006, 0
  %v12107 = vsel %vm33, %v12007, 0
  %v12110 = vsel %vm33, %v12008, 0
  %v12113 = vsel %vm33, %v12009, 0
  %v12116 = vsel %vm33, %v12010, 0
  %v12119 = vsel %vm33, %v12011, 0
  %v12122 = vsel %vm33, %v12012, 0
  %v12125 = vsel %vm33, %v12013, 0
  %v12128 = vsel %vm33, %v12014, 0
  %v12131 = vsel %vm33, %v12015, 0
  %v12134 = vsel %vm33, %v12016, 0
  %v12137 = vsel %vm33, %v12017, 0
  %v12140 = vsel %vm33, %v12018, 0
  %v12143 = vsel %vm33, %v12019, 0
  %v12146 = vsel %vm33, %v12020, 0
  %v12149 = vsel %vm33, %v12021, 0
  %12151 = vmatpush.bf16.msra.mxu0 0
  %12152 = vmatpush.bf16.msra.mxu0 0
  %12153 = vmatpush.bf16.msra.mxu0 0
  %12154 = vmatpush.bf16.msra.mxu0 0
  %12155 = vmatpush.bf16.msra.mxu0 %v12050
  %12156 = vmatpush.bf16.msra.mxu0 %v12049
  %12157 = vmatpush.bf16.msra.mxu0 %v12048
  %12158 = vmatpush.bf16.msra.mxu0 %v12047
  %12159 = vmatmul.bf16.gmra.mxu0 %v12056
  %v12160 = vpop.f32.mrf.mxu0
  %v12161 = vadd.f32 0.0, %v12160
  %v12162 = vpop.f32.mrf.mxu0
  %v12163 = vadd.f32 0.0, %v12162
  %12164 = vmatmul.bf16.gmra.mxu0 %v12059
  %v12165 = vpop.f32.mrf.mxu0
  %v12166 = vadd.f32 0.0, %v12165
  %v12167 = vpop.f32.mrf.mxu0
  %v12168 = vadd.f32 0.0, %v12167
  %12169 = vmatmul.bf16.gmra.mxu0 %v12062
  %v12170 = vpop.f32.mrf.mxu0
  %v12171 = vadd.f32 0.0, %v12170
  %v12172 = vpop.f32.mrf.mxu0
  %v12173 = vadd.f32 0.0, %v12172
  %12174 = vmatmul.bf16.gmra.mxu0 %v12065
  %v12175 = vpop.f32.mrf.mxu0
  %v12176 = vadd.f32 0.0, %v12175
  %v12177 = vpop.f32.mrf.mxu0
  %v12178 = vadd.f32 0.0, %v12177
  %12179 = vmatmul.bf16.gmra.mxu0 %v12068
  %v12180 = vpop.f32.mrf.mxu0
  %v12181 = vadd.f32 0.0, %v12180
  %v12182 = vpop.f32.mrf.mxu0
  %v12183 = vadd.f32 0.0, %v12182
  %12184 = vmatmul.bf16.gmra.mxu0 %v12071
  %v12185 = vpop.f32.mrf.mxu0
  %v12186 = vadd.f32 0.0, %v12185
  %v12187 = vpop.f32.mrf.mxu0
  %v12188 = vadd.f32 0.0, %v12187
  %12189 = vmatmul.bf16.gmra.mxu0 %v12074
  %v12190 = vpop.f32.mrf.mxu0
  %v12191 = vadd.f32 0.0, %v12190
  %v12192 = vpop.f32.mrf.mxu0
  %v12193 = vadd.f32 0.0, %v12192
  %12194 = vmatmul.bf16.gmra.mxu0 %v12077
  %v12195 = vpop.f32.mrf.mxu0
  %v12196 = vadd.f32 0.0, %v12195
  %v12197 = vpop.f32.mrf.mxu0
  %v12198 = vadd.f32 0.0, %v12197
  %12199 = vmatmul.bf16.gmra.mxu0 %v12080
  %v12200 = vpop.f32.mrf.mxu0
  %v12201 = vadd.f32 0.0, %v12200
  %v12202 = vpop.f32.mrf.mxu0
  %v12203 = vadd.f32 0.0, %v12202
  %12204 = vmatmul.bf16.gmra.mxu0 %v12083
  %v12205 = vpop.f32.mrf.mxu0
  %v12206 = vadd.f32 0.0, %v12205
  %v12207 = vpop.f32.mrf.mxu0
  %v12208 = vadd.f32 0.0, %v12207
  %12209 = vmatmul.bf16.gmra.mxu0 %v12086
  %v12210 = vpop.f32.mrf.mxu0
  %v12211 = vadd.f32 0.0, %v12210
  %v12212 = vpop.f32.mrf.mxu0
  %v12213 = vadd.f32 0.0, %v12212
  %12214 = vmatmul.bf16.gmra.mxu0 %v12089
  %v12215 = vpop.f32.mrf.mxu0
  %v12216 = vadd.f32 0.0, %v12215
  %v12217 = vpop.f32.mrf.mxu0
  %v12218 = vadd.f32 0.0, %v12217
  %12219 = vmatmul.bf16.gmra.mxu0 %v12092
  %v12220 = vpop.f32.mrf.mxu0
  %v12221 = vadd.f32 0.0, %v12220
  %v12222 = vpop.f32.mrf.mxu0
  %v12223 = vadd.f32 0.0, %v12222
  %12224 = vmatmul.bf16.gmra.mxu0 %v12095
  %v12225 = vpop.f32.mrf.mxu0
  %v12226 = vadd.f32 0.0, %v12225
  %v12227 = vpop.f32.mrf.mxu0
  %v12228 = vadd.f32 0.0, %v12227
  %12229 = vmatmul.bf16.gmra.mxu0 %v12098
  %v12230 = vpop.f32.mrf.mxu0
  %v12231 = vadd.f32 0.0, %v12230
  %v12232 = vpop.f32.mrf.mxu0
  %v12233 = vadd.f32 0.0, %v12232
  %12234 = vmatmul.bf16.gmra.mxu0 %v12101
  %v12235 = vpop.f32.mrf.mxu0
  %v12236 = vadd.f32 0.0, %v12235
  %v12237 = vpop.f32.mrf.mxu0
  %v12238 = vadd.f32 0.0, %v12237
  %12239 = vmatmul.bf16.gmra.mxu0 %v12104
  %v12240 = vpop.f32.mrf.mxu0
  %v12241 = vadd.f32 0.0, %v12240
  %v12242 = vpop.f32.mrf.mxu0
  %v12243 = vadd.f32 0.0, %v12242
  %12244 = vmatmul.bf16.gmra.mxu0 %v12107
  %v12245 = vpop.f32.mrf.mxu0
  %v12246 = vadd.f32 0.0, %v12245
  %v12247 = vpop.f32.mrf.mxu0
  %v12248 = vadd.f32 0.0, %v12247
  %12249 = vmatmul.bf16.gmra.mxu0 %v12110
  %v12250 = vpop.f32.mrf.mxu0
  %v12251 = vadd.f32 0.0, %v12250
  %v12252 = vpop.f32.mrf.mxu0
  %v12253 = vadd.f32 0.0, %v12252
  %12254 = vmatmul.bf16.gmra.mxu0 %v12113
  %v12255 = vpop.f32.mrf.mxu0
  %v12256 = vadd.f32 0.0, %v12255
  %v12257 = vpop.f32.mrf.mxu0
  %v12258 = vadd.f32 0.0, %v12257
  %12259 = vmatmul.bf16.gmra.mxu0 %v12116
  %v12260 = vpop.f32.mrf.mxu0
  %v12261 = vadd.f32 0.0, %v12260
  %v12262 = vpop.f32.mrf.mxu0
  %v12263 = vadd.f32 0.0, %v12262
  %12264 = vmatmul.bf16.gmra.mxu0 %v12119
  %v12265 = vpop.f32.mrf.mxu0
  %v12266 = vadd.f32 0.0, %v12265
  %v12267 = vpop.f32.mrf.mxu0
  %v12268 = vadd.f32 0.0, %v12267
  %12269 = vmatmul.bf16.gmra.mxu0 %v12122
  %v12270 = vpop.f32.mrf.mxu0
  %v12271 = vadd.f32 0.0, %v12270
  %v12272 = vpop.f32.mrf.mxu0
  %v12273 = vadd.f32 0.0, %v12272
  %12274 = vmatmul.bf16.gmra.mxu0 %v12125
  %v12275 = vpop.f32.mrf.mxu0
  %v12276 = vadd.f32 0.0, %v12275
  %v12277 = vpop.f32.mrf.mxu0
  %v12278 = vadd.f32 0.0, %v12277
  %12279 = vmatmul.bf16.gmra.mxu0 %v12128
  %v12280 = vpop.f32.mrf.mxu0
  %v12281 = vadd.f32 0.0, %v12280
  %v12282 = vpop.f32.mrf.mxu0
  %v12283 = vadd.f32 0.0, %v12282
  %12284 = vmatmul.bf16.gmra.mxu0 %v12131
  %v12285 = vpop.f32.mrf.mxu0
  %v12286 = vadd.f32 0.0, %v12285
  %v12287 = vpop.f32.mrf.mxu0
  %v12288 = vadd.f32 0.0, %v12287
  %12289 = vmatmul.bf16.gmra.mxu0 %v12134
  %v12290 = vpop.f32.mrf.mxu0
  %v12291 = vadd.f32 0.0, %v12290
  %v12292 = vpop.f32.mrf.mxu0
  %v12293 = vadd.f32 0.0, %v12292
  %12294 = vmatmul.bf16.gmra.mxu0 %v12137
  %v12295 = vpop.f32.mrf.mxu0
  %v12296 = vadd.f32 0.0, %v12295
  %v12297 = vpop.f32.mrf.mxu0
  %v12298 = vadd.f32 0.0, %v12297
  %12299 = vmatmul.bf16.gmra.mxu0 %v12140
  %v12300 = vpop.f32.mrf.mxu0
  %v12301 = vadd.f32 0.0, %v12300
  %v12302 = vpop.f32.mrf.mxu0
  %v12303 = vadd.f32 0.0, %v12302
  %12304 = vmatmul.bf16.gmra.mxu0 %v12143
  %v12305 = vpop.f32.mrf.mxu0
  %v12306 = vadd.f32 0.0, %v12305
  %v12307 = vpop.f32.mrf.mxu0
  %v12308 = vadd.f32 0.0, %v12307
  %12309 = vmatmul.bf16.gmra.mxu0 %v12146
  %v12310 = vpop.f32.mrf.mxu0
  %v12311 = vadd.f32 0.0, %v12310
  %v12312 = vpop.f32.mrf.mxu0
  %v12313 = vadd.f32 0.0, %v12312
  %12314 = vmatmul.bf16.gmra.mxu0 %v12149
  %v12315 = vpop.f32.mrf.mxu0
  %v12316 = vadd.f32 0.0, %v12315
  %v12317 = vpop.f32.mrf.mxu0
  %v12318 = vadd.f32 0.0, %v12317
  %12319 = vdwg.mxu0
  %v12320 = vadd.f32 %v11862, %v12161
  %v12321 = vadd.f32 %v11863, %v12163
  %v12322 = vadd.f32 %v11864, %v12166
  %v12323 = vadd.f32 %v11865, %v12168
  %v12324 = vadd.f32 %v11866, %v12171
  %v12325 = vadd.f32 %v11867, %v12173
  %v12326 = vadd.f32 %v11868, %v12176
  %v12327 = vadd.f32 %v11869, %v12178
  %v12328 = vadd.f32 %v11870, %v12181
  %v12329 = vadd.f32 %v11871, %v12183
  %v12330 = vadd.f32 %v11872, %v12186
  %v12331 = vadd.f32 %v11873, %v12188
  %v12332 = vadd.f32 %v11874, %v12191
  %v12333 = vadd.f32 %v11875, %v12193
  %v12334 = vadd.f32 %v11876, %v12196
  %v12335 = vadd.f32 %v11877, %v12198
  %v12336 = vadd.f32 %v11878, %v12201
  %v12337 = vadd.f32 %v11879, %v12203
  %v12338 = vadd.f32 %v11880, %v12206
  %v12339 = vadd.f32 %v11881, %v12208
  %v12340 = vadd.f32 %v11882, %v12211
  %v12341 = vadd.f32 %v11883, %v12213
  %v12342 = vadd.f32 %v11884, %v12216
  %v12343 = vadd.f32 %v11885, %v12218
  %v12344 = vadd.f32 %v11886, %v12221
  %v12345 = vadd.f32 %v11887, %v12223
  %v12346 = vadd.f32 %v11888, %v12226
  %v12347 = vadd.f32 %v11889, %v12228
  %v12348 = vadd.f32 %v11890, %v12231
  %v12349 = vadd.f32 %v11891, %v12233
  %v12350 = vadd.f32 %v11892, %v12236
  %v12351 = vadd.f32 %v11893, %v12238
  %v12352 = vadd.f32 %v11894, %v12241
  %v12353 = vadd.f32 %v11895, %v12243
  %v12354 = vadd.f32 %v11896, %v12246
  %v12355 = vadd.f32 %v11897, %v12248
  %v12356 = vadd.f32 %v11898, %v12251
  %v12357 = vadd.f32 %v11899, %v12253
  %v12358 = vadd.f32 %v11900, %v12256
  %v12359 = vadd.f32 %v11901, %v12258
  %v12360 = vadd.f32 %v11902, %v12261
  %v12361 = vadd.f32 %v11903, %v12263
  %v12362 = vadd.f32 %v11904, %v12266
  %v12363 = vadd.f32 %v11905, %v12268
  %v12364 = vadd.f32 %v11906, %v12271
  %v12365 = vadd.f32 %v11907, %v12273
  %v12366 = vadd.f32 %v11908, %v12276
  %v12367 = vadd.f32 %v11909, %v12278
  %v12368 = vadd.f32 %v11910, %v12281
  %v12369 = vadd.f32 %v11911, %v12283
  %v12370 = vadd.f32 %v11912, %v12286
  %v12371 = vadd.f32 %v11913, %v12288
  %v12372 = vadd.f32 %v11914, %v12291
  %v12373 = vadd.f32 %v11915, %v12293
  %v12374 = vadd.f32 %v11916, %v12296
  %v12375 = vadd.f32 %v11917, %v12298
  %v12376 = vadd.f32 %v11918, %v12301
  %v12377 = vadd.f32 %v11919, %v12303
  %v12378 = vadd.f32 %v11920, %v12306
  %v12379 = vadd.f32 %v11921, %v12308
  %v12380 = vadd.f32 %v11922, %v12311
  %v12381 = vadd.f32 %v11923, %v12313
  %v12382 = vadd.f32 %v11924, %v12316
  %v12383 = vadd.f32 %v11925, %v12318
  %s12384 = scalar_lea.vmem [#allocation2], 48
  %v12385 = vld [vmem:[%s12384] sm:$0xff]
  %v12386 = vld [vmem:[%s12384 + $0x8] sm:$0xff]
  %v12387 = vld [vmem:[%s12384 + $0x18] sm:$0xff]
  %v12388 = vld [vmem:[%s12384 + $0x20] sm:$0xff]
  %v12389 = vld [vmem:[%s12384 + $0x30] sm:$0xff]
  %v12390 = vld [vmem:[%s12384 + $0x38] sm:$0xff]
  %v12391 = vld [vmem:[%s12384 + $0x48] sm:$0xff]
  %v12392 = vld [vmem:[%s12384 + $0x50] sm:$0xff]
  %v12393 = vld [vmem:[%s12384 + $0x60] sm:$0xff]
  %v12394 = vld [vmem:[%s12384 + $0x68] sm:$0xff]
  %v12395 = vld [vmem:[%s12384 + $0x78] sm:$0xff]
  %v12396 = vld [vmem:[%s12384 + $0x80] sm:$0xff]
  %v12397 = vld [vmem:[%s12384 + $0x90] sm:$0xff]
  %v12398 = vld [vmem:[%s12384 + $0x98] sm:$0xff]
  %v12399 = vld [vmem:[%s12384 + $0xa8] sm:$0xff]
  %v12400 = vld [vmem:[%s12384 + $0xb0] sm:$0xff]
  %v12401 = vld [vmem:[%s12384 + $0xc0] sm:$0xff]
  %v12402 = vld [vmem:[%s12384 + $0xc8] sm:$0xff]
  %v12403 = vld [vmem:[%s12384 + $0xd8] sm:$0xff]
  %v12404 = vld [vmem:[%s12384 + $0xe0] sm:$0xff]
  %v12405 = vld [vmem:[%s12384 + $0xf0] sm:$0xff]
  %v12406 = vld [vmem:[%s12384 + $0xf8] sm:$0xff]
  %v12407 = vld [vmem:[%s12384 + $0x108] sm:$0xff]
  %v12408 = vld [vmem:[%s12384 + $0x110] sm:$0xff]
  %v12409 = vld [vmem:[%s12384 + $0x120] sm:$0xff]
  %v12410 = vld [vmem:[%s12384 + $0x128] sm:$0xff]
  %v12411 = vld [vmem:[%s12384 + $0x138] sm:$0xff]
  %v12412 = vld [vmem:[%s12384 + $0x140] sm:$0xff]
  %v12413 = vld [vmem:[%s12384 + $0x150] sm:$0xff]
  %v12414 = vld [vmem:[%s12384 + $0x158] sm:$0xff]
  %v12415 = vld [vmem:[%s12384 + $0x168] sm:$0xff]
  %v12416 = vld [vmem:[%s12384 + $0x170] sm:$0xff]
  %v12417 = vld [vmem:[%s12384 + $0x1b0] sm:$0xff]
  %v12418 = vld [vmem:[%s12384 + $0x1b8] sm:$0xff]
  %v12419 = vld [vmem:[%s12384 + $0x1c8] sm:$0xff]
  %v12420 = vld [vmem:[%s12384 + $0x1d0] sm:$0xff]
  %v12421 = vld [vmem:[%s12384 + $0x1e0] sm:$0xff]
  %v12422 = vld [vmem:[%s12384 + $0x1e8] sm:$0xff]
  %v12423 = vld [vmem:[%s12384 + $0x1f8] sm:$0xff]
  %v12424 = vld [vmem:[%s12384 + $0x200] sm:$0xff]
  %v12425 = vld [vmem:[%s12384 + $0x210] sm:$0xff]
  %v12426 = vld [vmem:[%s12384 + $0x218] sm:$0xff]
  %v12427 = vld [vmem:[%s12384 + $0x228] sm:$0xff]
  %v12428 = vld [vmem:[%s12384 + $0x230] sm:$0xff]
  %v12429 = vld [vmem:[%s12384 + $0x240] sm:$0xff]
  %v12430 = vld [vmem:[%s12384 + $0x248] sm:$0xff]
  %v12431 = vld [vmem:[%s12384 + $0x258] sm:$0xff]
  %v12432 = vld [vmem:[%s12384 + $0x260] sm:$0xff]
  %v12433 = vld [vmem:[%s12384 + $0x270] sm:$0xff]
  %v12434 = vld [vmem:[%s12384 + $0x278] sm:$0xff]
  %v12435 = vld [vmem:[%s12384 + $0x288] sm:$0xff]
  %v12436 = vld [vmem:[%s12384 + $0x290] sm:$0xff]
  %v12437 = vld [vmem:[%s12384 + $0x2a0] sm:$0xff]
  %v12438 = vld [vmem:[%s12384 + $0x2a8] sm:$0xff]
  %v12439 = vld [vmem:[%s12384 + $0x2b8] sm:$0xff]
  %v12440 = vld [vmem:[%s12384 + $0x2c0] sm:$0xff]
  %v12441 = vld [vmem:[%s12384 + $0x2d0] sm:$0xff]
  %v12442 = vld [vmem:[%s12384 + $0x2d8] sm:$0xff]
  %v12443 = vld [vmem:[%s12384 + $0x2e8] sm:$0xff]
  %v12444 = vld [vmem:[%s12384 + $0x2f0] sm:$0xff]
  %v12445 = vld [vmem:[%s12384 + $0x300] sm:$0xff]
  %v12446 = vld [vmem:[%s12384 + $0x308] sm:$0xff]
  %v12447 = vld [vmem:[%s12384 + $0x318] sm:$0xff]
  %v12448 = vld [vmem:[%s12384 + $0x320] sm:$0xff]
  %v12449 = vpack.c.bf16 %v12386, %v12385
  %v12450 = vpack.c.bf16 %v12388, %v12387
  %v12451 = vpack.c.bf16 %v12390, %v12389
  %v12452 = vpack.c.bf16 %v12392, %v12391
  %v12453 = vpack.c.bf16 %v12394, %v12393
  %v12454 = vpack.c.bf16 %v12396, %v12395
  %v12455 = vpack.c.bf16 %v12398, %v12397
  %v12456 = vpack.c.bf16 %v12400, %v12399
  %v12457 = vpack.c.bf16 %v12402, %v12401
  %v12458 = vpack.c.bf16 %v12404, %v12403
  %v12459 = vpack.c.bf16 %v12406, %v12405
  %v12460 = vpack.c.bf16 %v12408, %v12407
  %v12461 = vpack.c.bf16 %v12410, %v12409
  %v12462 = vpack.c.bf16 %v12412, %v12411
  %v12463 = vpack.c.bf16 %v12414, %v12413
  %v12464 = vpack.c.bf16 %v12416, %v12415
  %v12465 = vpack.c.bf16 %v12418, %v12417
  %v12466 = vpack.c.bf16 %v12420, %v12419
  %v12467 = vpack.c.bf16 %v12422, %v12421
  %v12468 = vpack.c.bf16 %v12424, %v12423
  %v12469 = vpack.c.bf16 %v12426, %v12425
  %v12470 = vpack.c.bf16 %v12428, %v12427
  %v12471 = vpack.c.bf16 %v12430, %v12429
  %v12472 = vpack.c.bf16 %v12432, %v12431
  %v12473 = vpack.c.bf16 %v12434, %v12433
  %v12474 = vpack.c.bf16 %v12436, %v12435
  %v12475 = vpack.c.bf16 %v12438, %v12437
  %v12476 = vpack.c.bf16 %v12440, %v12439
  %v12477 = vpack.c.bf16 %v12442, %v12441
  %v12478 = vpack.c.bf16 %v12444, %v12443
  %v12479 = vpack.c.bf16 %v12446, %v12445
  %v12480 = vpack.c.bf16 %v12448, %v12447
  %s12481 = scalar_lea.vmem %s7, 192
  %v12482 = vld [vmem:[%s12481] sm:$0xf]
  %v12483 = vld [vmem:[%s12481 + $0x4] sm:$0xf]
  %v12484 = vld [vmem:[%s12481 + $0x8] sm:$0xf]
  %v12485 = vld [vmem:[%s12481 + $0xc] sm:$0xf]
  %v12486 = vld [vmem:[%s12481 + $0x10] sm:$0xf]
  %v12487 = vld [vmem:[%s12481 + $0x14] sm:$0xf]
  %v12488 = vld [vmem:[%s12481 + $0x18] sm:$0xf]
  %v12489 = vld [vmem:[%s12481 + $0x1c] sm:$0xf]
  %v12498 = vunpack.c.l.b16 %v12482
  %v12499 = vunpack.c.l.b16 %v12483
  %v12500 = vunpack.c.l.b16 %v12484
  %v12501 = vunpack.c.l.b16 %v12485
  %v12502 = vunpack.c.l.b16 %v12486
  %v12503 = vunpack.c.l.b16 %v12487
  %v12504 = vunpack.c.l.b16 %v12488
  %v12505 = vunpack.c.l.b16 %v12489
  %v12506 = vpack.c.b16 %v12499, %v12498
  %v12507 = vpack.c.b16 %v12501, %v12500
  %v12508 = vpack.c.b16 %v12503, %v12502
  %v12509 = vpack.c.b16 %v12505, %v12504
  %v12515 = vsel %vm33, %v12449, 0
  %v12518 = vsel %vm33, %v12450, 0
  %v12521 = vsel %vm33, %v12451, 0
  %v12524 = vsel %vm33, %v12452, 0
  %v12527 = vsel %vm33, %v12453, 0
  %v12530 = vsel %vm33, %v12454, 0
  %v12533 = vsel %vm33, %v12455, 0
  %v12536 = vsel %vm33, %v12456, 0
  %v12539 = vsel %vm33, %v12457, 0
  %v12542 = vsel %vm33, %v12458, 0
  %v12545 = vsel %vm33, %v12459, 0
  %v12548 = vsel %vm33, %v12460, 0
  %v12551 = vsel %vm33, %v12461, 0
  %v12554 = vsel %vm33, %v12462, 0
  %v12557 = vsel %vm33, %v12463, 0
  %v12560 = vsel %vm33, %v12464, 0
  %v12563 = vsel %vm33, %v12465, 0
  %v12566 = vsel %vm33, %v12466, 0
  %v12569 = vsel %vm33, %v12467, 0
  %v12572 = vsel %vm33, %v12468, 0
  %v12575 = vsel %vm33, %v12469, 0
  %v12578 = vsel %vm33, %v12470, 0
  %v12581 = vsel %vm33, %v12471, 0
  %v12584 = vsel %vm33, %v12472, 0
  %v12587 = vsel %vm33, %v12473, 0
  %v12590 = vsel %vm33, %v12474, 0
  %v12593 = vsel %vm33, %v12475, 0
  %v12596 = vsel %vm33, %v12476, 0
  %v12599 = vsel %vm33, %v12477, 0
  %v12602 = vsel %vm33, %v12478, 0
  %v12605 = vsel %vm33, %v12479, 0
  %v12608 = vsel %vm33, %v12480, 0
  %12610 = vmatpush.bf16.msra.mxu0 0
  %12611 = vmatpush.bf16.msra.mxu0 0
  %12612 = vmatpush.bf16.msra.mxu0 0
  %12613 = vmatpush.bf16.msra.mxu0 0
  %12614 = vmatpush.bf16.msra.mxu0 %v12509
  %12615 = vmatpush.bf16.msra.mxu0 %v12508
  %12616 = vmatpush.bf16.msra.mxu0 %v12507
  %12617 = vmatpush.bf16.msra.mxu0 %v12506
  %12618 = vmatmul.bf16.gmra.mxu0 %v12515
  %v12619 = vpop.f32.mrf.mxu0
  %v12620 = vadd.f32 0.0, %v12619
  %v12621 = vpop.f32.mrf.mxu0
  %v12622 = vadd.f32 0.0, %v12621
  %12623 = vmatmul.bf16.gmra.mxu0 %v12518
  %v12624 = vpop.f32.mrf.mxu0
  %v12625 = vadd.f32 0.0, %v12624
  %v12626 = vpop.f32.mrf.mxu0
  %v12627 = vadd.f32 0.0, %v12626
  %12628 = vmatmul.bf16.gmra.mxu0 %v12521
  %v12629 = vpop.f32.mrf.mxu0
  %v12630 = vadd.f32 0.0, %v12629
  %v12631 = vpop.f32.mrf.mxu0
  %v12632 = vadd.f32 0.0, %v12631
  %12633 = vmatmul.bf16.gmra.mxu0 %v12524
  %v12634 = vpop.f32.mrf.mxu0
  %v12635 = vadd.f32 0.0, %v12634
  %v12636 = vpop.f32.mrf.mxu0
  %v12637 = vadd.f32 0.0, %v12636
  %12638 = vmatmul.bf16.gmra.mxu0 %v12527
  %v12639 = vpop.f32.mrf.mxu0
  %v12640 = vadd.f32 0.0, %v12639
  %v12641 = vpop.f32.mrf.mxu0
  %v12642 = vadd.f32 0.0, %v12641
  %12643 = vmatmul.bf16.gmra.mxu0 %v12530
  %v12644 = vpop.f32.mrf.mxu0
  %v12645 = vadd.f32 0.0, %v12644
  %v12646 = vpop.f32.mrf.mxu0
  %v12647 = vadd.f32 0.0, %v12646
  %12648 = vmatmul.bf16.gmra.mxu0 %v12533
  %v12649 = vpop.f32.mrf.mxu0
  %v12650 = vadd.f32 0.0, %v12649
  %v12651 = vpop.f32.mrf.mxu0
  %v12652 = vadd.f32 0.0, %v12651
  %12653 = vmatmul.bf16.gmra.mxu0 %v12536
  %v12654 = vpop.f32.mrf.mxu0
  %v12655 = vadd.f32 0.0, %v12654
  %v12656 = vpop.f32.mrf.mxu0
  %v12657 = vadd.f32 0.0, %v12656
  %12658 = vmatmul.bf16.gmra.mxu0 %v12539
  %v12659 = vpop.f32.mrf.mxu0
  %v12660 = vadd.f32 0.0, %v12659
  %v12661 = vpop.f32.mrf.mxu0
  %v12662 = vadd.f32 0.0, %v12661
  %12663 = vmatmul.bf16.gmra.mxu0 %v12542
  %v12664 = vpop.f32.mrf.mxu0
  %v12665 = vadd.f32 0.0, %v12664
  %v12666 = vpop.f32.mrf.mxu0
  %v12667 = vadd.f32 0.0, %v12666
  %12668 = vmatmul.bf16.gmra.mxu0 %v12545
  %v12669 = vpop.f32.mrf.mxu0
  %v12670 = vadd.f32 0.0, %v12669
  %v12671 = vpop.f32.mrf.mxu0
  %v12672 = vadd.f32 0.0, %v12671
  %12673 = vmatmul.bf16.gmra.mxu0 %v12548
  %v12674 = vpop.f32.mrf.mxu0
  %v12675 = vadd.f32 0.0, %v12674
  %v12676 = vpop.f32.mrf.mxu0
  %v12677 = vadd.f32 0.0, %v12676
  %12678 = vmatmul.bf16.gmra.mxu0 %v12551
  %v12679 = vpop.f32.mrf.mxu0
  %v12680 = vadd.f32 0.0, %v12679
  %v12681 = vpop.f32.mrf.mxu0
  %v12682 = vadd.f32 0.0, %v12681
  %12683 = vmatmul.bf16.gmra.mxu0 %v12554
  %v12684 = vpop.f32.mrf.mxu0
  %v12685 = vadd.f32 0.0, %v12684
  %v12686 = vpop.f32.mrf.mxu0
  %v12687 = vadd.f32 0.0, %v12686
  %12688 = vmatmul.bf16.gmra.mxu0 %v12557
  %v12689 = vpop.f32.mrf.mxu0
  %v12690 = vadd.f32 0.0, %v12689
  %v12691 = vpop.f32.mrf.mxu0
  %v12692 = vadd.f32 0.0, %v12691
  %12693 = vmatmul.bf16.gmra.mxu0 %v12560
  %v12694 = vpop.f32.mrf.mxu0
  %v12695 = vadd.f32 0.0, %v12694
  %v12696 = vpop.f32.mrf.mxu0
  %v12697 = vadd.f32 0.0, %v12696
  %12698 = vmatmul.bf16.gmra.mxu0 %v12563
  %v12699 = vpop.f32.mrf.mxu0
  %v12700 = vadd.f32 0.0, %v12699
  %v12701 = vpop.f32.mrf.mxu0
  %v12702 = vadd.f32 0.0, %v12701
  %12703 = vmatmul.bf16.gmra.mxu0 %v12566
  %v12704 = vpop.f32.mrf.mxu0
  %v12705 = vadd.f32 0.0, %v12704
  %v12706 = vpop.f32.mrf.mxu0
  %v12707 = vadd.f32 0.0, %v12706
  %12708 = vmatmul.bf16.gmra.mxu0 %v12569
  %v12709 = vpop.f32.mrf.mxu0
  %v12710 = vadd.f32 0.0, %v12709
  %v12711 = vpop.f32.mrf.mxu0
  %v12712 = vadd.f32 0.0, %v12711
  %12713 = vmatmul.bf16.gmra.mxu0 %v12572
  %v12714 = vpop.f32.mrf.mxu0
  %v12715 = vadd.f32 0.0, %v12714
  %v12716 = vpop.f32.mrf.mxu0
  %v12717 = vadd.f32 0.0, %v12716
  %12718 = vmatmul.bf16.gmra.mxu0 %v12575
  %v12719 = vpop.f32.mrf.mxu0
  %v12720 = vadd.f32 0.0, %v12719
  %v12721 = vpop.f32.mrf.mxu0
  %v12722 = vadd.f32 0.0, %v12721
  %12723 = vmatmul.bf16.gmra.mxu0 %v12578
  %v12724 = vpop.f32.mrf.mxu0
  %v12725 = vadd.f32 0.0, %v12724
  %v12726 = vpop.f32.mrf.mxu0
  %v12727 = vadd.f32 0.0, %v12726
  %12728 = vmatmul.bf16.gmra.mxu0 %v12581
  %v12729 = vpop.f32.mrf.mxu0
  %v12730 = vadd.f32 0.0, %v12729
  %v12731 = vpop.f32.mrf.mxu0
  %v12732 = vadd.f32 0.0, %v12731
  %12733 = vmatmul.bf16.gmra.mxu0 %v12584
  %v12734 = vpop.f32.mrf.mxu0
  %v12735 = vadd.f32 0.0, %v12734
  %v12736 = vpop.f32.mrf.mxu0
  %v12737 = vadd.f32 0.0, %v12736
  %12738 = vmatmul.bf16.gmra.mxu0 %v12587
  %v12739 = vpop.f32.mrf.mxu0
  %v12740 = vadd.f32 0.0, %v12739
  %v12741 = vpop.f32.mrf.mxu0
  %v12742 = vadd.f32 0.0, %v12741
  %12743 = vmatmul.bf16.gmra.mxu0 %v12590
  %v12744 = vpop.f32.mrf.mxu0
  %v12745 = vadd.f32 0.0, %v12744
  %v12746 = vpop.f32.mrf.mxu0
  %v12747 = vadd.f32 0.0, %v12746
  %12748 = vmatmul.bf16.gmra.mxu0 %v12593
  %v12749 = vpop.f32.mrf.mxu0
  %v12750 = vadd.f32 0.0, %v12749
  %v12751 = vpop.f32.mrf.mxu0
  %v12752 = vadd.f32 0.0, %v12751
  %12753 = vmatmul.bf16.gmra.mxu0 %v12596
  %v12754 = vpop.f32.mrf.mxu0
  %v12755 = vadd.f32 0.0, %v12754
  %v12756 = vpop.f32.mrf.mxu0
  %v12757 = vadd.f32 0.0, %v12756
  %12758 = vmatmul.bf16.gmra.mxu0 %v12599
  %v12759 = vpop.f32.mrf.mxu0
  %v12760 = vadd.f32 0.0, %v12759
  %v12761 = vpop.f32.mrf.mxu0
  %v12762 = vadd.f32 0.0, %v12761
  %12763 = vmatmul.bf16.gmra.mxu0 %v12602
  %v12764 = vpop.f32.mrf.mxu0
  %v12765 = vadd.f32 0.0, %v12764
  %v12766 = vpop.f32.mrf.mxu0
  %v12767 = vadd.f32 0.0, %v12766
  %12768 = vmatmul.bf16.gmra.mxu0 %v12605
  %v12769 = vpop.f32.mrf.mxu0
  %v12770 = vadd.f32 0.0, %v12769
  %v12771 = vpop.f32.mrf.mxu0
  %v12772 = vadd.f32 0.0, %v12771
  %12773 = vmatmul.bf16.gmra.mxu0 %v12608
  %v12774 = vpop.f32.mrf.mxu0
  %v12775 = vadd.f32 0.0, %v12774
  %v12776 = vpop.f32.mrf.mxu0
  %v12777 = vadd.f32 0.0, %v12776
  %12778 = vdwg.mxu0
  %v12779 = vadd.f32 %v12320, %v12620
  %v12780 = vadd.f32 %v12321, %v12622
  %v12781 = vadd.f32 %v12322, %v12625
  %v12782 = vadd.f32 %v12323, %v12627
  %v12783 = vadd.f32 %v12324, %v12630
  %v12784 = vadd.f32 %v12325, %v12632
  %v12785 = vadd.f32 %v12326, %v12635
  %v12786 = vadd.f32 %v12327, %v12637
  %v12787 = vadd.f32 %v12328, %v12640
  %v12788 = vadd.f32 %v12329, %v12642
  %v12789 = vadd.f32 %v12330, %v12645
  %v12790 = vadd.f32 %v12331, %v12647
  %v12791 = vadd.f32 %v12332, %v12650
  %v12792 = vadd.f32 %v12333, %v12652
  %v12793 = vadd.f32 %v12334, %v12655
  %v12794 = vadd.f32 %v12335, %v12657
  %v12795 = vadd.f32 %v12336, %v12660
  %v12796 = vadd.f32 %v12337, %v12662
  %v12797 = vadd.f32 %v12338, %v12665
  %v12798 = vadd.f32 %v12339, %v12667
  %v12799 = vadd.f32 %v12340, %v12670
  %v12800 = vadd.f32 %v12341, %v12672
  %v12801 = vadd.f32 %v12342, %v12675
  %v12802 = vadd.f32 %v12343, %v12677
  %v12803 = vadd.f32 %v12344, %v12680
  %v12804 = vadd.f32 %v12345, %v12682
  %v12805 = vadd.f32 %v12346, %v12685
  %v12806 = vadd.f32 %v12347, %v12687
  %v12807 = vadd.f32 %v12348, %v12690
  %v12808 = vadd.f32 %v12349, %v12692
  %v12809 = vadd.f32 %v12350, %v12695
  %v12810 = vadd.f32 %v12351, %v12697
  %v12811 = vadd.f32 %v12352, %v12700
  %v12812 = vadd.f32 %v12353, %v12702
  %v12813 = vadd.f32 %v12354, %v12705
  %v12814 = vadd.f32 %v12355, %v12707
  %v12815 = vadd.f32 %v12356, %v12710
  %v12816 = vadd.f32 %v12357, %v12712
  %v12817 = vadd.f32 %v12358, %v12715
  %v12818 = vadd.f32 %v12359, %v12717
  %v12819 = vadd.f32 %v12360, %v12720
  %v12820 = vadd.f32 %v12361, %v12722
  %v12821 = vadd.f32 %v12362, %v12725
  %v12822 = vadd.f32 %v12363, %v12727
  %v12823 = vadd.f32 %v12364, %v12730
  %v12824 = vadd.f32 %v12365, %v12732
  %v12825 = vadd.f32 %v12366, %v12735
  %v12826 = vadd.f32 %v12367, %v12737
  %v12827 = vadd.f32 %v12368, %v12740
  %v12828 = vadd.f32 %v12369, %v12742
  %v12829 = vadd.f32 %v12370, %v12745
  %v12830 = vadd.f32 %v12371, %v12747
  %v12831 = vadd.f32 %v12372, %v12750
  %v12832 = vadd.f32 %v12373, %v12752
  %v12833 = vadd.f32 %v12374, %v12755
  %v12834 = vadd.f32 %v12375, %v12757
  %v12835 = vadd.f32 %v12376, %v12760
  %v12836 = vadd.f32 %v12377, %v12762
  %v12837 = vadd.f32 %v12378, %v12765
  %v12838 = vadd.f32 %v12379, %v12767
  %v12839 = vadd.f32 %v12380, %v12770
  %v12840 = vadd.f32 %v12381, %v12772
  %v12841 = vadd.f32 %v12382, %v12775
  %v12842 = vadd.f32 %v12383, %v12777
  %v12843 = vld [vmem:[%s12384 + $0x1] sm:$0xff]
  %v12844 = vld [vmem:[%s12384 + $0x9] sm:$0xff]
  %v12845 = vld [vmem:[%s12384 + $0x19] sm:$0xff]
  %v12846 = vld [vmem:[%s12384 + $0x21] sm:$0xff]
  %v12847 = vld [vmem:[%s12384 + $0x31] sm:$0xff]
  %v12848 = vld [vmem:[%s12384 + $0x39] sm:$0xff]
  %v12849 = vld [vmem:[%s12384 + $0x49] sm:$0xff]
  %v12850 = vld [vmem:[%s12384 + $0x51] sm:$0xff]
  %v12851 = vld [vmem:[%s12384 + $0x61] sm:$0xff]
  %v12852 = vld [vmem:[%s12384 + $0x69] sm:$0xff]
  %v12853 = vld [vmem:[%s12384 + $0x79] sm:$0xff]
  %v12854 = vld [vmem:[%s12384 + $0x81] sm:$0xff]
  %v12855 = vld [vmem:[%s12384 + $0x91] sm:$0xff]
  %v12856 = vld [vmem:[%s12384 + $0x99] sm:$0xff]
  %v12857 = vld [vmem:[%s12384 + $0xa9] sm:$0xff]
  %v12858 = vld [vmem:[%s12384 + $0xb1] sm:$0xff]
  %v12859 = vld [vmem:[%s12384 + $0xc1] sm:$0xff]
  %v12860 = vld [vmem:[%s12384 + $0xc9] sm:$0xff]
  %v12861 = vld [vmem:[%s12384 + $0xd9] sm:$0xff]
  %v12862 = vld [vmem:[%s12384 + $0xe1] sm:$0xff]
  %v12863 = vld [vmem:[%s12384 + $0xf1] sm:$0xff]
  %v12864 = vld [vmem:[%s12384 + $0xf9] sm:$0xff]
  %v12865 = vld [vmem:[%s12384 + $0x109] sm:$0xff]
  %v12866 = vld [vmem:[%s12384 + $0x111] sm:$0xff]
  %v12867 = vld [vmem:[%s12384 + $0x121] sm:$0xff]
  %v12868 = vld [vmem:[%s12384 + $0x129] sm:$0xff]
  %v12869 = vld [vmem:[%s12384 + $0x139] sm:$0xff]
  %v12870 = vld [vmem:[%s12384 + $0x141] sm:$0xff]
  %v12871 = vld [vmem:[%s12384 + $0x151] sm:$0xff]
  %v12872 = vld [vmem:[%s12384 + $0x159] sm:$0xff]
  %v12873 = vld [vmem:[%s12384 + $0x169] sm:$0xff]
  %v12874 = vld [vmem:[%s12384 + $0x171] sm:$0xff]
  %v12875 = vld [vmem:[%s12384 + $0x1b1] sm:$0xff]
  %v12876 = vld [vmem:[%s12384 + $0x1b9] sm:$0xff]
  %v12877 = vld [vmem:[%s12384 + $0x1c9] sm:$0xff]
  %v12878 = vld [vmem:[%s12384 + $0x1d1] sm:$0xff]
  %v12879 = vld [vmem:[%s12384 + $0x1e1] sm:$0xff]
  %v12880 = vld [vmem:[%s12384 + $0x1e9] sm:$0xff]
  %v12881 = vld [vmem:[%s12384 + $0x1f9] sm:$0xff]
  %v12882 = vld [vmem:[%s12384 + $0x201] sm:$0xff]
  %v12883 = vld [vmem:[%s12384 + $0x211] sm:$0xff]
  %v12884 = vld [vmem:[%s12384 + $0x219] sm:$0xff]
  %v12885 = vld [vmem:[%s12384 + $0x229] sm:$0xff]
  %v12886 = vld [vmem:[%s12384 + $0x231] sm:$0xff]
  %v12887 = vld [vmem:[%s12384 + $0x241] sm:$0xff]
  %v12888 = vld [vmem:[%s12384 + $0x249] sm:$0xff]
  %v12889 = vld [vmem:[%s12384 + $0x259] sm:$0xff]
  %v12890 = vld [vmem:[%s12384 + $0x261] sm:$0xff]
  %v12891 = vld [vmem:[%s12384 + $0x271] sm:$0xff]
  %v12892 = vld [vmem:[%s12384 + $0x279] sm:$0xff]
  %v12893 = vld [vmem:[%s12384 + $0x289] sm:$0xff]
  %v12894 = vld [vmem:[%s12384 + $0x291] sm:$0xff]
  %v12895 = vld [vmem:[%s12384 + $0x2a1] sm:$0xff]
  %v12896 = vld [vmem:[%s12384 + $0x2a9] sm:$0xff]
  %v12897 = vld [vmem:[%s12384 + $0x2b9] sm:$0xff]
  %v12898 = vld [vmem:[%s12384 + $0x2c1] sm:$0xff]
  %v12899 = vld [vmem:[%s12384 + $0x2d1] sm:$0xff]
  %v12900 = vld [vmem:[%s12384 + $0x2d9] sm:$0xff]
  %v12901 = vld [vmem:[%s12384 + $0x2e9] sm:$0xff]
  %v12902 = vld [vmem:[%s12384 + $0x2f1] sm:$0xff]
  %v12903 = vld [vmem:[%s12384 + $0x301] sm:$0xff]
  %v12904 = vld [vmem:[%s12384 + $0x309] sm:$0xff]
  %v12905 = vld [vmem:[%s12384 + $0x319] sm:$0xff]
  %v12906 = vld [vmem:[%s12384 + $0x321] sm:$0xff]
  %v12907 = vpack.c.bf16 %v12844, %v12843
  %v12908 = vpack.c.bf16 %v12846, %v12845
  %v12909 = vpack.c.bf16 %v12848, %v12847
  %v12910 = vpack.c.bf16 %v12850, %v12849
  %v12911 = vpack.c.bf16 %v12852, %v12851
  %v12912 = vpack.c.bf16 %v12854, %v12853
  %v12913 = vpack.c.bf16 %v12856, %v12855
  %v12914 = vpack.c.bf16 %v12858, %v12857
  %v12915 = vpack.c.bf16 %v12860, %v12859
  %v12916 = vpack.c.bf16 %v12862, %v12861
  %v12917 = vpack.c.bf16 %v12864, %v12863
  %v12918 = vpack.c.bf16 %v12866, %v12865
  %v12919 = vpack.c.bf16 %v12868, %v12867
  %v12920 = vpack.c.bf16 %v12870, %v12869
  %v12921 = vpack.c.bf16 %v12872, %v12871
  %v12922 = vpack.c.bf16 %v12874, %v12873
  %v12923 = vpack.c.bf16 %v12876, %v12875
  %v12924 = vpack.c.bf16 %v12878, %v12877
  %v12925 = vpack.c.bf16 %v12880, %v12879
  %v12926 = vpack.c.bf16 %v12882, %v12881
  %v12927 = vpack.c.bf16 %v12884, %v12883
  %v12928 = vpack.c.bf16 %v12886, %v12885
  %v12929 = vpack.c.bf16 %v12888, %v12887
  %v12930 = vpack.c.bf16 %v12890, %v12889
  %v12931 = vpack.c.bf16 %v12892, %v12891
  %v12932 = vpack.c.bf16 %v12894, %v12893
  %v12933 = vpack.c.bf16 %v12896, %v12895
  %v12934 = vpack.c.bf16 %v12898, %v12897
  %v12935 = vpack.c.bf16 %v12900, %v12899
  %v12936 = vpack.c.bf16 %v12902, %v12901
  %v12937 = vpack.c.bf16 %v12904, %v12903
  %v12938 = vpack.c.bf16 %v12906, %v12905
  %s12939 = scalar_lea.vmem %s7, 224
  %v12940 = vld [vmem:[%s12939] sm:$0xf]
  %v12941 = vld [vmem:[%s12939 + $0x4] sm:$0xf]
  %v12942 = vld [vmem:[%s12939 + $0x8] sm:$0xf]
  %v12943 = vld [vmem:[%s12939 + $0xc] sm:$0xf]
  %v12944 = vld [vmem:[%s12939 + $0x10] sm:$0xf]
  %v12945 = vld [vmem:[%s12939 + $0x14] sm:$0xf]
  %v12946 = vld [vmem:[%s12939 + $0x18] sm:$0xf]
  %v12947 = vld [vmem:[%s12939 + $0x1c] sm:$0xf]
  %v12956 = vunpack.c.l.b16 %v12940
  %v12957 = vunpack.c.l.b16 %v12941
  %v12958 = vunpack.c.l.b16 %v12942
  %v12959 = vunpack.c.l.b16 %v12943
  %v12960 = vunpack.c.l.b16 %v12944
  %v12961 = vunpack.c.l.b16 %v12945
  %v12962 = vunpack.c.l.b16 %v12946
  %v12963 = vunpack.c.l.b16 %v12947
  %v12964 = vpack.c.b16 %v12957, %v12956
  %v12965 = vpack.c.b16 %v12959, %v12958
  %v12966 = vpack.c.b16 %v12961, %v12960
  %v12967 = vpack.c.b16 %v12963, %v12962
  %v12973 = vsel %vm33, %v12907, 0
  %v12976 = vsel %vm33, %v12908, 0
  %v12979 = vsel %vm33, %v12909, 0
  %v12982 = vsel %vm33, %v12910, 0
  %v12985 = vsel %vm33, %v12911, 0
  %v12988 = vsel %vm33, %v12912, 0
  %v12991 = vsel %vm33, %v12913, 0
  %v12994 = vsel %vm33, %v12914, 0
  %v12997 = vsel %vm33, %v12915, 0
  %v13000 = vsel %vm33, %v12916, 0
  %v13003 = vsel %vm33, %v12917, 0
  %v13006 = vsel %vm33, %v12918, 0
  %v13009 = vsel %vm33, %v12919, 0
  %v13012 = vsel %vm33, %v12920, 0
  %v13015 = vsel %vm33, %v12921, 0
  %v13018 = vsel %vm33, %v12922, 0
  %v13021 = vsel %vm33, %v12923, 0
  %v13024 = vsel %vm33, %v12924, 0
  %v13027 = vsel %vm33, %v12925, 0
  %v13030 = vsel %vm33, %v12926, 0
  %v13033 = vsel %vm33, %v12927, 0
  %v13036 = vsel %vm33, %v12928, 0
  %v13039 = vsel %vm33, %v12929, 0
  %v13042 = vsel %vm33, %v12930, 0
  %v13045 = vsel %vm33, %v12931, 0
  %v13048 = vsel %vm33, %v12932, 0
  %v13051 = vsel %vm33, %v12933, 0
  %v13054 = vsel %vm33, %v12934, 0
  %v13057 = vsel %vm33, %v12935, 0
  %v13060 = vsel %vm33, %v12936, 0
  %v13063 = vsel %vm33, %v12937, 0
  %v13066 = vsel %vm33, %v12938, 0
  %13068 = vmatpush.bf16.msra.mxu0 0
  %13069 = vmatpush.bf16.msra.mxu0 0
  %13070 = vmatpush.bf16.msra.mxu0 0
  %13071 = vmatpush.bf16.msra.mxu0 0
  %13072 = vmatpush.bf16.msra.mxu0 %v12967
  %13073 = vmatpush.bf16.msra.mxu0 %v12966
  %13074 = vmatpush.bf16.msra.mxu0 %v12965
  %13075 = vmatpush.bf16.msra.mxu0 %v12964
  %13076 = vmatmul.bf16.gmra.mxu0 %v12973
  %v13077 = vpop.f32.mrf.mxu0
  %v13078 = vadd.f32 0.0, %v13077
  %v13079 = vpop.f32.mrf.mxu0
  %v13080 = vadd.f32 0.0, %v13079
  %13081 = vmatmul.bf16.gmra.mxu0 %v12976
  %v13082 = vpop.f32.mrf.mxu0
  %v13083 = vadd.f32 0.0, %v13082
  %v13084 = vpop.f32.mrf.mxu0
  %v13085 = vadd.f32 0.0, %v13084
  %13086 = vmatmul.bf16.gmra.mxu0 %v12979
  %v13087 = vpop.f32.mrf.mxu0
  %v13088 = vadd.f32 0.0, %v13087
  %v13089 = vpop.f32.mrf.mxu0
  %v13090 = vadd.f32 0.0, %v13089
  %13091 = vmatmul.bf16.gmra.mxu0 %v12982
  %v13092 = vpop.f32.mrf.mxu0
  %v13093 = vadd.f32 0.0, %v13092
  %v13094 = vpop.f32.mrf.mxu0
  %v13095 = vadd.f32 0.0, %v13094
  %13096 = vmatmul.bf16.gmra.mxu0 %v12985
  %v13097 = vpop.f32.mrf.mxu0
  %v13098 = vadd.f32 0.0, %v13097
  %v13099 = vpop.f32.mrf.mxu0
  %v13100 = vadd.f32 0.0, %v13099
  %13101 = vmatmul.bf16.gmra.mxu0 %v12988
  %v13102 = vpop.f32.mrf.mxu0
  %v13103 = vadd.f32 0.0, %v13102
  %v13104 = vpop.f32.mrf.mxu0
  %v13105 = vadd.f32 0.0, %v13104
  %13106 = vmatmul.bf16.gmra.mxu0 %v12991
  %v13107 = vpop.f32.mrf.mxu0
  %v13108 = vadd.f32 0.0, %v13107
  %v13109 = vpop.f32.mrf.mxu0
  %v13110 = vadd.f32 0.0, %v13109
  %13111 = vmatmul.bf16.gmra.mxu0 %v12994
  %v13112 = vpop.f32.mrf.mxu0
  %v13113 = vadd.f32 0.0, %v13112
  %v13114 = vpop.f32.mrf.mxu0
  %v13115 = vadd.f32 0.0, %v13114
  %13116 = vmatmul.bf16.gmra.mxu0 %v12997
  %v13117 = vpop.f32.mrf.mxu0
  %v13118 = vadd.f32 0.0, %v13117
  %v13119 = vpop.f32.mrf.mxu0
  %v13120 = vadd.f32 0.0, %v13119
  %13121 = vmatmul.bf16.gmra.mxu0 %v13000
  %v13122 = vpop.f32.mrf.mxu0
  %v13123 = vadd.f32 0.0, %v13122
  %v13124 = vpop.f32.mrf.mxu0
  %v13125 = vadd.f32 0.0, %v13124
  %13126 = vmatmul.bf16.gmra.mxu0 %v13003
  %v13127 = vpop.f32.mrf.mxu0
  %v13128 = vadd.f32 0.0, %v13127
  %v13129 = vpop.f32.mrf.mxu0
  %v13130 = vadd.f32 0.0, %v13129
  %13131 = vmatmul.bf16.gmra.mxu0 %v13006
  %v13132 = vpop.f32.mrf.mxu0
  %v13133 = vadd.f32 0.0, %v13132
  %v13134 = vpop.f32.mrf.mxu0
  %v13135 = vadd.f32 0.0, %v13134
  %13136 = vmatmul.bf16.gmra.mxu0 %v13009
  %v13137 = vpop.f32.mrf.mxu0
  %v13138 = vadd.f32 0.0, %v13137
  %v13139 = vpop.f32.mrf.mxu0
  %v13140 = vadd.f32 0.0, %v13139
  %13141 = vmatmul.bf16.gmra.mxu0 %v13012
  %v13142 = vpop.f32.mrf.mxu0
  %v13143 = vadd.f32 0.0, %v13142
  %v13144 = vpop.f32.mrf.mxu0
  %v13145 = vadd.f32 0.0, %v13144
  %13146 = vmatmul.bf16.gmra.mxu0 %v13015
  %v13147 = vpop.f32.mrf.mxu0
  %v13148 = vadd.f32 0.0, %v13147
  %v13149 = vpop.f32.mrf.mxu0
  %v13150 = vadd.f32 0.0, %v13149
  %13151 = vmatmul.bf16.gmra.mxu0 %v13018
  %v13152 = vpop.f32.mrf.mxu0
  %v13153 = vadd.f32 0.0, %v13152
  %v13154 = vpop.f32.mrf.mxu0
  %v13155 = vadd.f32 0.0, %v13154
  %13156 = vmatmul.bf16.gmra.mxu0 %v13021
  %v13157 = vpop.f32.mrf.mxu0
  %v13158 = vadd.f32 0.0, %v13157
  %v13159 = vpop.f32.mrf.mxu0
  %v13160 = vadd.f32 0.0, %v13159
  %13161 = vmatmul.bf16.gmra.mxu0 %v13024
  %v13162 = vpop.f32.mrf.mxu0
  %v13163 = vadd.f32 0.0, %v13162
  %v13164 = vpop.f32.mrf.mxu0
  %v13165 = vadd.f32 0.0, %v13164
  %13166 = vmatmul.bf16.gmra.mxu0 %v13027
  %v13167 = vpop.f32.mrf.mxu0
  %v13168 = vadd.f32 0.0, %v13167
  %v13169 = vpop.f32.mrf.mxu0
  %v13170 = vadd.f32 0.0, %v13169
  %13171 = vmatmul.bf16.gmra.mxu0 %v13030
  %v13172 = vpop.f32.mrf.mxu0
  %v13173 = vadd.f32 0.0, %v13172
  %v13174 = vpop.f32.mrf.mxu0
  %v13175 = vadd.f32 0.0, %v13174
  %13176 = vmatmul.bf16.gmra.mxu0 %v13033
  %v13177 = vpop.f32.mrf.mxu0
  %v13178 = vadd.f32 0.0, %v13177
  %v13179 = vpop.f32.mrf.mxu0
  %v13180 = vadd.f32 0.0, %v13179
  %13181 = vmatmul.bf16.gmra.mxu0 %v13036
  %v13182 = vpop.f32.mrf.mxu0
  %v13183 = vadd.f32 0.0, %v13182
  %v13184 = vpop.f32.mrf.mxu0
  %v13185 = vadd.f32 0.0, %v13184
  %13186 = vmatmul.bf16.gmra.mxu0 %v13039
  %v13187 = vpop.f32.mrf.mxu0
  %v13188 = vadd.f32 0.0, %v13187
  %v13189 = vpop.f32.mrf.mxu0
  %v13190 = vadd.f32 0.0, %v13189
  %13191 = vmatmul.bf16.gmra.mxu0 %v13042
  %v13192 = vpop.f32.mrf.mxu0
  %v13193 = vadd.f32 0.0, %v13192
  %v13194 = vpop.f32.mrf.mxu0
  %v13195 = vadd.f32 0.0, %v13194
  %13196 = vmatmul.bf16.gmra.mxu0 %v13045
  %v13197 = vpop.f32.mrf.mxu0
  %v13198 = vadd.f32 0.0, %v13197
  %v13199 = vpop.f32.mrf.mxu0
  %v13200 = vadd.f32 0.0, %v13199
  %13201 = vmatmul.bf16.gmra.mxu0 %v13048
  %v13202 = vpop.f32.mrf.mxu0
  %v13203 = vadd.f32 0.0, %v13202
  %v13204 = vpop.f32.mrf.mxu0
  %v13205 = vadd.f32 0.0, %v13204
  %13206 = vmatmul.bf16.gmra.mxu0 %v13051
  %v13207 = vpop.f32.mrf.mxu0
  %v13208 = vadd.f32 0.0, %v13207
  %v13209 = vpop.f32.mrf.mxu0
  %v13210 = vadd.f32 0.0, %v13209
  %13211 = vmatmul.bf16.gmra.mxu0 %v13054
  %v13212 = vpop.f32.mrf.mxu0
  %v13213 = vadd.f32 0.0, %v13212
  %v13214 = vpop.f32.mrf.mxu0
  %v13215 = vadd.f32 0.0, %v13214
  %13216 = vmatmul.bf16.gmra.mxu0 %v13057
  %v13217 = vpop.f32.mrf.mxu0
  %v13218 = vadd.f32 0.0, %v13217
  %v13219 = vpop.f32.mrf.mxu0
  %v13220 = vadd.f32 0.0, %v13219
  %13221 = vmatmul.bf16.gmra.mxu0 %v13060
  %v13222 = vpop.f32.mrf.mxu0
  %v13223 = vadd.f32 0.0, %v13222
  %v13224 = vpop.f32.mrf.mxu0
  %v13225 = vadd.f32 0.0, %v13224
  %13226 = vmatmul.bf16.gmra.mxu0 %v13063
  %v13227 = vpop.f32.mrf.mxu0
  %v13228 = vadd.f32 0.0, %v13227
  %v13229 = vpop.f32.mrf.mxu0
  %v13230 = vadd.f32 0.0, %v13229
  %13231 = vmatmul.bf16.gmra.mxu0 %v13066
  %v13232 = vpop.f32.mrf.mxu0
  %v13233 = vadd.f32 0.0, %v13232
  %v13234 = vpop.f32.mrf.mxu0
  %v13235 = vadd.f32 0.0, %v13234
  %13236 = vdwg.mxu0
  %v13237 = vadd.f32 %v12779, %v13078
  %v13238 = vadd.f32 %v12780, %v13080
  %v13239 = vadd.f32 %v12781, %v13083
  %v13240 = vadd.f32 %v12782, %v13085
  %v13241 = vadd.f32 %v12783, %v13088
  %v13242 = vadd.f32 %v12784, %v13090
  %v13243 = vadd.f32 %v12785, %v13093
  %v13244 = vadd.f32 %v12786, %v13095
  %v13245 = vadd.f32 %v12787, %v13098
  %v13246 = vadd.f32 %v12788, %v13100
  %v13247 = vadd.f32 %v12789, %v13103
  %v13248 = vadd.f32 %v12790, %v13105
  %v13249 = vadd.f32 %v12791, %v13108
  %v13250 = vadd.f32 %v12792, %v13110
  %v13251 = vadd.f32 %v12793, %v13113
  %v13252 = vadd.f32 %v12794, %v13115
  %v13253 = vadd.f32 %v12795, %v13118
  %v13254 = vadd.f32 %v12796, %v13120
  %v13255 = vadd.f32 %v12797, %v13123
  %v13256 = vadd.f32 %v12798, %v13125
  %v13257 = vadd.f32 %v12799, %v13128
  %v13258 = vadd.f32 %v12800, %v13130
  %v13259 = vadd.f32 %v12801, %v13133
  %v13260 = vadd.f32 %v12802, %v13135
  %v13261 = vadd.f32 %v12803, %v13138
  %v13262 = vadd.f32 %v12804, %v13140
  %v13263 = vadd.f32 %v12805, %v13143
  %v13264 = vadd.f32 %v12806, %v13145
  %v13265 = vadd.f32 %v12807, %v13148
  %v13266 = vadd.f32 %v12808, %v13150
  %v13267 = vadd.f32 %v12809, %v13153
  %v13268 = vadd.f32 %v12810, %v13155
  %v13269 = vadd.f32 %v12811, %v13158
  %v13270 = vadd.f32 %v12812, %v13160
  %v13271 = vadd.f32 %v12813, %v13163
  %v13272 = vadd.f32 %v12814, %v13165
  %v13273 = vadd.f32 %v12815, %v13168
  %v13274 = vadd.f32 %v12816, %v13170
  %v13275 = vadd.f32 %v12817, %v13173
  %v13276 = vadd.f32 %v12818, %v13175
  %v13277 = vadd.f32 %v12819, %v13178
  %v13278 = vadd.f32 %v12820, %v13180
  %v13279 = vadd.f32 %v12821, %v13183
  %v13280 = vadd.f32 %v12822, %v13185
  %v13281 = vadd.f32 %v12823, %v13188
  %v13282 = vadd.f32 %v12824, %v13190
  %v13283 = vadd.f32 %v12825, %v13193
  %v13284 = vadd.f32 %v12826, %v13195
  %v13285 = vadd.f32 %v12827, %v13198
  %v13286 = vadd.f32 %v12828, %v13200
  %v13287 = vadd.f32 %v12829, %v13203
  %v13288 = vadd.f32 %v12830, %v13205
  %v13289 = vadd.f32 %v12831, %v13208
  %v13290 = vadd.f32 %v12832, %v13210
  %v13291 = vadd.f32 %v12833, %v13213
  %v13292 = vadd.f32 %v12834, %v13215
  %v13293 = vadd.f32 %v12835, %v13218
  %v13294 = vadd.f32 %v12836, %v13220
  %v13295 = vadd.f32 %v12837, %v13223
  %v13296 = vadd.f32 %v12838, %v13225
  %v13297 = vadd.f32 %v12839, %v13228
  %v13298 = vadd.f32 %v12840, %v13230
  %v13299 = vadd.f32 %v12841, %v13233
  %v13300 = vadd.f32 %v12842, %v13235
  %v13301 = vld [vmem:[%s12384 + $0x2] sm:$0xff]
  %v13302 = vld [vmem:[%s12384 + $0xa] sm:$0xff]
  %v13303 = vld [vmem:[%s12384 + $0x1a] sm:$0xff]
  %v13304 = vld [vmem:[%s12384 + $0x22] sm:$0xff]
  %v13305 = vld [vmem:[%s12384 + $0x32] sm:$0xff]
  %v13306 = vld [vmem:[%s12384 + $0x3a] sm:$0xff]
  %v13307 = vld [vmem:[%s12384 + $0x4a] sm:$0xff]
  %v13308 = vld [vmem:[%s12384 + $0x52] sm:$0xff]
  %v13309 = vld [vmem:[%s12384 + $0x62] sm:$0xff]
  %v13310 = vld [vmem:[%s12384 + $0x6a] sm:$0xff]
  %v13311 = vld [vmem:[%s12384 + $0x7a] sm:$0xff]
  %v13312 = vld [vmem:[%s12384 + $0x82] sm:$0xff]
  %v13313 = vld [vmem:[%s12384 + $0x92] sm:$0xff]
  %v13314 = vld [vmem:[%s12384 + $0x9a] sm:$0xff]
  %v13315 = vld [vmem:[%s12384 + $0xaa] sm:$0xff]
  %v13316 = vld [vmem:[%s12384 + $0xb2] sm:$0xff]
  %v13317 = vld [vmem:[%s12384 + $0xc2] sm:$0xff]
  %v13318 = vld [vmem:[%s12384 + $0xca] sm:$0xff]
  %v13319 = vld [vmem:[%s12384 + $0xda] sm:$0xff]
  %v13320 = vld [vmem:[%s12384 + $0xe2] sm:$0xff]
  %v13321 = vld [vmem:[%s12384 + $0xf2] sm:$0xff]
  %v13322 = vld [vmem:[%s12384 + $0xfa] sm:$0xff]
  %v13323 = vld [vmem:[%s12384 + $0x10a] sm:$0xff]
  %v13324 = vld [vmem:[%s12384 + $0x112] sm:$0xff]
  %v13325 = vld [vmem:[%s12384 + $0x122] sm:$0xff]
  %v13326 = vld [vmem:[%s12384 + $0x12a] sm:$0xff]
  %v13327 = vld [vmem:[%s12384 + $0x13a] sm:$0xff]
  %v13328 = vld [vmem:[%s12384 + $0x142] sm:$0xff]
  %v13329 = vld [vmem:[%s12384 + $0x152] sm:$0xff]
  %v13330 = vld [vmem:[%s12384 + $0x15a] sm:$0xff]
  %v13331 = vld [vmem:[%s12384 + $0x16a] sm:$0xff]
  %v13332 = vld [vmem:[%s12384 + $0x172] sm:$0xff]
  %v13333 = vld [vmem:[%s12384 + $0x1b2] sm:$0xff]
  %v13334 = vld [vmem:[%s12384 + $0x1ba] sm:$0xff]
  %v13335 = vld [vmem:[%s12384 + $0x1ca] sm:$0xff]
  %v13336 = vld [vmem:[%s12384 + $0x1d2] sm:$0xff]
  %v13337 = vld [vmem:[%s12384 + $0x1e2] sm:$0xff]
  %v13338 = vld [vmem:[%s12384 + $0x1ea] sm:$0xff]
  %v13339 = vld [vmem:[%s12384 + $0x1fa] sm:$0xff]
  %v13340 = vld [vmem:[%s12384 + $0x202] sm:$0xff]
  %v13341 = vld [vmem:[%s12384 + $0x212] sm:$0xff]
  %v13342 = vld [vmem:[%s12384 + $0x21a] sm:$0xff]
  %v13343 = vld [vmem:[%s12384 + $0x22a] sm:$0xff]
  %v13344 = vld [vmem:[%s12384 + $0x232] sm:$0xff]
  %v13345 = vld [vmem:[%s12384 + $0x242] sm:$0xff]
  %v13346 = vld [vmem:[%s12384 + $0x24a] sm:$0xff]
  %v13347 = vld [vmem:[%s12384 + $0x25a] sm:$0xff]
  %v13348 = vld [vmem:[%s12384 + $0x262] sm:$0xff]
  %v13349 = vld [vmem:[%s12384 + $0x272] sm:$0xff]
  %v13350 = vld [vmem:[%s12384 + $0x27a] sm:$0xff]
  %v13351 = vld [vmem:[%s12384 + $0x28a] sm:$0xff]
  %v13352 = vld [vmem:[%s12384 + $0x292] sm:$0xff]
  %v13353 = vld [vmem:[%s12384 + $0x2a2] sm:$0xff]
  %v13354 = vld [vmem:[%s12384 + $0x2aa] sm:$0xff]
  %v13355 = vld [vmem:[%s12384 + $0x2ba] sm:$0xff]
  %v13356 = vld [vmem:[%s12384 + $0x2c2] sm:$0xff]
  %v13357 = vld [vmem:[%s12384 + $0x2d2] sm:$0xff]
  %v13358 = vld [vmem:[%s12384 + $0x2da] sm:$0xff]
  %v13359 = vld [vmem:[%s12384 + $0x2ea] sm:$0xff]
  %v13360 = vld [vmem:[%s12384 + $0x2f2] sm:$0xff]
  %v13361 = vld [vmem:[%s12384 + $0x302] sm:$0xff]
  %v13362 = vld [vmem:[%s12384 + $0x30a] sm:$0xff]
  %v13363 = vld [vmem:[%s12384 + $0x31a] sm:$0xff]
  %v13364 = vld [vmem:[%s12384 + $0x322] sm:$0xff]
  %v13365 = vpack.c.bf16 %v13302, %v13301
  %v13366 = vpack.c.bf16 %v13304, %v13303
  %v13367 = vpack.c.bf16 %v13306, %v13305
  %v13368 = vpack.c.bf16 %v13308, %v13307
  %v13369 = vpack.c.bf16 %v13310, %v13309
  %v13370 = vpack.c.bf16 %v13312, %v13311
  %v13371 = vpack.c.bf16 %v13314, %v13313
  %v13372 = vpack.c.bf16 %v13316, %v13315
  %v13373 = vpack.c.bf16 %v13318, %v13317
  %v13374 = vpack.c.bf16 %v13320, %v13319
  %v13375 = vpack.c.bf16 %v13322, %v13321
  %v13376 = vpack.c.bf16 %v13324, %v13323
  %v13377 = vpack.c.bf16 %v13326, %v13325
  %v13378 = vpack.c.bf16 %v13328, %v13327
  %v13379 = vpack.c.bf16 %v13330, %v13329
  %v13380 = vpack.c.bf16 %v13332, %v13331
  %v13381 = vpack.c.bf16 %v13334, %v13333
  %v13382 = vpack.c.bf16 %v13336, %v13335
  %v13383 = vpack.c.bf16 %v13338, %v13337
  %v13384 = vpack.c.bf16 %v13340, %v13339
  %v13385 = vpack.c.bf16 %v13342, %v13341
  %v13386 = vpack.c.bf16 %v13344, %v13343
  %v13387 = vpack.c.bf16 %v13346, %v13345
  %v13388 = vpack.c.bf16 %v13348, %v13347
  %v13389 = vpack.c.bf16 %v13350, %v13349
  %v13390 = vpack.c.bf16 %v13352, %v13351
  %v13391 = vpack.c.bf16 %v13354, %v13353
  %v13392 = vpack.c.bf16 %v13356, %v13355
  %v13393 = vpack.c.bf16 %v13358, %v13357
  %v13394 = vpack.c.bf16 %v13360, %v13359
  %v13395 = vpack.c.bf16 %v13362, %v13361
  %v13396 = vpack.c.bf16 %v13364, %v13363
  %s13397 = scalar_lea.vmem %s7, 256
  %v13398 = vld [vmem:[%s13397] sm:$0xf]
  %v13399 = vld [vmem:[%s13397 + $0x4] sm:$0xf]
  %v13400 = vld [vmem:[%s13397 + $0x8] sm:$0xf]
  %v13401 = vld [vmem:[%s13397 + $0xc] sm:$0xf]
  %v13402 = vld [vmem:[%s13397 + $0x10] sm:$0xf]
  %v13403 = vld [vmem:[%s13397 + $0x14] sm:$0xf]
  %v13404 = vld [vmem:[%s13397 + $0x18] sm:$0xf]
  %v13405 = vld [vmem:[%s13397 + $0x1c] sm:$0xf]
  %v13414 = vunpack.c.l.b16 %v13398
  %v13415 = vunpack.c.l.b16 %v13399
  %v13416 = vunpack.c.l.b16 %v13400
  %v13417 = vunpack.c.l.b16 %v13401
  %v13418 = vunpack.c.l.b16 %v13402
  %v13419 = vunpack.c.l.b16 %v13403
  %v13420 = vunpack.c.l.b16 %v13404
  %v13421 = vunpack.c.l.b16 %v13405
  %v13422 = vpack.c.b16 %v13415, %v13414
  %v13423 = vpack.c.b16 %v13417, %v13416
  %v13424 = vpack.c.b16 %v13419, %v13418
  %v13425 = vpack.c.b16 %v13421, %v13420
  %v13431 = vsel %vm33, %v13365, 0
  %v13434 = vsel %vm33, %v13366, 0
  %v13437 = vsel %vm33, %v13367, 0
  %v13440 = vsel %vm33, %v13368, 0
  %v13443 = vsel %vm33, %v13369, 0
  %v13446 = vsel %vm33, %v13370, 0
  %v13449 = vsel %vm33, %v13371, 0
  %v13452 = vsel %vm33, %v13372, 0
  %v13455 = vsel %vm33, %v13373, 0
  %v13458 = vsel %vm33, %v13374, 0
  %v13461 = vsel %vm33, %v13375, 0
  %v13464 = vsel %vm33, %v13376, 0
  %v13467 = vsel %vm33, %v13377, 0
  %v13470 = vsel %vm33, %v13378, 0
  %v13473 = vsel %vm33, %v13379, 0
  %v13476 = vsel %vm33, %v13380, 0
  %v13479 = vsel %vm33, %v13381, 0
  %v13482 = vsel %vm33, %v13382, 0
  %v13485 = vsel %vm33, %v13383, 0
  %v13488 = vsel %vm33, %v13384, 0
  %v13491 = vsel %vm33, %v13385, 0
  %v13494 = vsel %vm33, %v13386, 0
  %v13497 = vsel %vm33, %v13387, 0
  %v13500 = vsel %vm33, %v13388, 0
  %v13503 = vsel %vm33, %v13389, 0
  %v13506 = vsel %vm33, %v13390, 0
  %v13509 = vsel %vm33, %v13391, 0
  %v13512 = vsel %vm33, %v13392, 0
  %v13515 = vsel %vm33, %v13393, 0
  %v13518 = vsel %vm33, %v13394, 0
  %v13521 = vsel %vm33, %v13395, 0
  %v13524 = vsel %vm33, %v13396, 0
  %13526 = vmatpush.bf16.msra.mxu0 0
  %13527 = vmatpush.bf16.msra.mxu0 0
  %13528 = vmatpush.bf16.msra.mxu0 0
  %13529 = vmatpush.bf16.msra.mxu0 0
  %13530 = vmatpush.bf16.msra.mxu0 %v13425
  %13531 = vmatpush.bf16.msra.mxu0 %v13424
  %13532 = vmatpush.bf16.msra.mxu0 %v13423
  %13533 = vmatpush.bf16.msra.mxu0 %v13422
  %13534 = vmatmul.bf16.gmra.mxu0 %v13431
  %v13535 = vpop.f32.mrf.mxu0
  %v13536 = vadd.f32 0.0, %v13535
  %v13537 = vpop.f32.mrf.mxu0
  %v13538 = vadd.f32 0.0, %v13537
  %13539 = vmatmul.bf16.gmra.mxu0 %v13434
  %v13540 = vpop.f32.mrf.mxu0
  %v13541 = vadd.f32 0.0, %v13540
  %v13542 = vpop.f32.mrf.mxu0
  %v13543 = vadd.f32 0.0, %v13542
  %13544 = vmatmul.bf16.gmra.mxu0 %v13437
  %v13545 = vpop.f32.mrf.mxu0
  %v13546 = vadd.f32 0.0, %v13545
  %v13547 = vpop.f32.mrf.mxu0
  %v13548 = vadd.f32 0.0, %v13547
  %13549 = vmatmul.bf16.gmra.mxu0 %v13440
  %v13550 = vpop.f32.mrf.mxu0
  %v13551 = vadd.f32 0.0, %v13550
  %v13552 = vpop.f32.mrf.mxu0
  %v13553 = vadd.f32 0.0, %v13552
  %13554 = vmatmul.bf16.gmra.mxu0 %v13443
  %v13555 = vpop.f32.mrf.mxu0
  %v13556 = vadd.f32 0.0, %v13555
  %v13557 = vpop.f32.mrf.mxu0
  %v13558 = vadd.f32 0.0, %v13557
  %13559 = vmatmul.bf16.gmra.mxu0 %v13446
  %v13560 = vpop.f32.mrf.mxu0
  %v13561 = vadd.f32 0.0, %v13560
  %v13562 = vpop.f32.mrf.mxu0
  %v13563 = vadd.f32 0.0, %v13562
  %13564 = vmatmul.bf16.gmra.mxu0 %v13449
  %v13565 = vpop.f32.mrf.mxu0
  %v13566 = vadd.f32 0.0, %v13565
  %v13567 = vpop.f32.mrf.mxu0
  %v13568 = vadd.f32 0.0, %v13567
  %13569 = vmatmul.bf16.gmra.mxu0 %v13452
  %v13570 = vpop.f32.mrf.mxu0
  %v13571 = vadd.f32 0.0, %v13570
  %v13572 = vpop.f32.mrf.mxu0
  %v13573 = vadd.f32 0.0, %v13572
  %13574 = vmatmul.bf16.gmra.mxu0 %v13455
  %v13575 = vpop.f32.mrf.mxu0
  %v13576 = vadd.f32 0.0, %v13575
  %v13577 = vpop.f32.mrf.mxu0
  %v13578 = vadd.f32 0.0, %v13577
  %13579 = vmatmul.bf16.gmra.mxu0 %v13458
  %v13580 = vpop.f32.mrf.mxu0
  %v13581 = vadd.f32 0.0, %v13580
  %v13582 = vpop.f32.mrf.mxu0
  %v13583 = vadd.f32 0.0, %v13582
  %13584 = vmatmul.bf16.gmra.mxu0 %v13461
  %v13585 = vpop.f32.mrf.mxu0
  %v13586 = vadd.f32 0.0, %v13585
  %v13587 = vpop.f32.mrf.mxu0
  %v13588 = vadd.f32 0.0, %v13587
  %13589 = vmatmul.bf16.gmra.mxu0 %v13464
  %v13590 = vpop.f32.mrf.mxu0
  %v13591 = vadd.f32 0.0, %v13590
  %v13592 = vpop.f32.mrf.mxu0
  %v13593 = vadd.f32 0.0, %v13592
  %13594 = vmatmul.bf16.gmra.mxu0 %v13467
  %v13595 = vpop.f32.mrf.mxu0
  %v13596 = vadd.f32 0.0, %v13595
  %v13597 = vpop.f32.mrf.mxu0
  %v13598 = vadd.f32 0.0, %v13597
  %13599 = vmatmul.bf16.gmra.mxu0 %v13470
  %v13600 = vpop.f32.mrf.mxu0
  %v13601 = vadd.f32 0.0, %v13600
  %v13602 = vpop.f32.mrf.mxu0
  %v13603 = vadd.f32 0.0, %v13602
  %13604 = vmatmul.bf16.gmra.mxu0 %v13473
  %v13605 = vpop.f32.mrf.mxu0
  %v13606 = vadd.f32 0.0, %v13605
  %v13607 = vpop.f32.mrf.mxu0
  %v13608 = vadd.f32 0.0, %v13607
  %13609 = vmatmul.bf16.gmra.mxu0 %v13476
  %v13610 = vpop.f32.mrf.mxu0
  %v13611 = vadd.f32 0.0, %v13610
  %v13612 = vpop.f32.mrf.mxu0
  %v13613 = vadd.f32 0.0, %v13612
  %13614 = vmatmul.bf16.gmra.mxu0 %v13479
  %v13615 = vpop.f32.mrf.mxu0
  %v13616 = vadd.f32 0.0, %v13615
  %v13617 = vpop.f32.mrf.mxu0
  %v13618 = vadd.f32 0.0, %v13617
  %13619 = vmatmul.bf16.gmra.mxu0 %v13482
  %v13620 = vpop.f32.mrf.mxu0
  %v13621 = vadd.f32 0.0, %v13620
  %v13622 = vpop.f32.mrf.mxu0
  %v13623 = vadd.f32 0.0, %v13622
  %13624 = vmatmul.bf16.gmra.mxu0 %v13485
  %v13625 = vpop.f32.mrf.mxu0
  %v13626 = vadd.f32 0.0, %v13625
  %v13627 = vpop.f32.mrf.mxu0
  %v13628 = vadd.f32 0.0, %v13627
  %13629 = vmatmul.bf16.gmra.mxu0 %v13488
  %v13630 = vpop.f32.mrf.mxu0
  %v13631 = vadd.f32 0.0, %v13630
  %v13632 = vpop.f32.mrf.mxu0
  %v13633 = vadd.f32 0.0, %v13632
  %13634 = vmatmul.bf16.gmra.mxu0 %v13491
  %v13635 = vpop.f32.mrf.mxu0
  %v13636 = vadd.f32 0.0, %v13635
  %v13637 = vpop.f32.mrf.mxu0
  %v13638 = vadd.f32 0.0, %v13637
  %13639 = vmatmul.bf16.gmra.mxu0 %v13494
  %v13640 = vpop.f32.mrf.mxu0
  %v13641 = vadd.f32 0.0, %v13640
  %v13642 = vpop.f32.mrf.mxu0
  %v13643 = vadd.f32 0.0, %v13642
  %13644 = vmatmul.bf16.gmra.mxu0 %v13497
  %v13645 = vpop.f32.mrf.mxu0
  %v13646 = vadd.f32 0.0, %v13645
  %v13647 = vpop.f32.mrf.mxu0
  %v13648 = vadd.f32 0.0, %v13647
  %13649 = vmatmul.bf16.gmra.mxu0 %v13500
  %v13650 = vpop.f32.mrf.mxu0
  %v13651 = vadd.f32 0.0, %v13650
  %v13652 = vpop.f32.mrf.mxu0
  %v13653 = vadd.f32 0.0, %v13652
  %13654 = vmatmul.bf16.gmra.mxu0 %v13503
  %v13655 = vpop.f32.mrf.mxu0
  %v13656 = vadd.f32 0.0, %v13655
  %v13657 = vpop.f32.mrf.mxu0
  %v13658 = vadd.f32 0.0, %v13657
  %13659 = vmatmul.bf16.gmra.mxu0 %v13506
  %v13660 = vpop.f32.mrf.mxu0
  %v13661 = vadd.f32 0.0, %v13660
  %v13662 = vpop.f32.mrf.mxu0
  %v13663 = vadd.f32 0.0, %v13662
  %13664 = vmatmul.bf16.gmra.mxu0 %v13509
  %v13665 = vpop.f32.mrf.mxu0
  %v13666 = vadd.f32 0.0, %v13665
  %v13667 = vpop.f32.mrf.mxu0
  %v13668 = vadd.f32 0.0, %v13667
  %13669 = vmatmul.bf16.gmra.mxu0 %v13512
  %v13670 = vpop.f32.mrf.mxu0
  %v13671 = vadd.f32 0.0, %v13670
  %v13672 = vpop.f32.mrf.mxu0
  %v13673 = vadd.f32 0.0, %v13672
  %13674 = vmatmul.bf16.gmra.mxu0 %v13515
  %v13675 = vpop.f32.mrf.mxu0
  %v13676 = vadd.f32 0.0, %v13675
  %v13677 = vpop.f32.mrf.mxu0
  %v13678 = vadd.f32 0.0, %v13677
  %13679 = vmatmul.bf16.gmra.mxu0 %v13518
  %v13680 = vpop.f32.mrf.mxu0
  %v13681 = vadd.f32 0.0, %v13680
  %v13682 = vpop.f32.mrf.mxu0
  %v13683 = vadd.f32 0.0, %v13682
  %13684 = vmatmul.bf16.gmra.mxu0 %v13521
  %v13685 = vpop.f32.mrf.mxu0
  %v13686 = vadd.f32 0.0, %v13685
  %v13687 = vpop.f32.mrf.mxu0
  %v13688 = vadd.f32 0.0, %v13687
  %13689 = vmatmul.bf16.gmra.mxu0 %v13524
  %v13690 = vpop.f32.mrf.mxu0
  %v13691 = vadd.f32 0.0, %v13690
  %v13692 = vpop.f32.mrf.mxu0
  %v13693 = vadd.f32 0.0, %v13692
  %13694 = vdwg.mxu0
  %v13695 = vadd.f32 %v13237, %v13536
  %v13696 = vadd.f32 %v13238, %v13538
  %v13697 = vadd.f32 %v13239, %v13541
  %v13698 = vadd.f32 %v13240, %v13543
  %v13699 = vadd.f32 %v13241, %v13546
  %v13700 = vadd.f32 %v13242, %v13548
  %v13701 = vadd.f32 %v13243, %v13551
  %v13702 = vadd.f32 %v13244, %v13553
  %v13703 = vadd.f32 %v13245, %v13556
  %v13704 = vadd.f32 %v13246, %v13558
  %v13705 = vadd.f32 %v13247, %v13561
  %v13706 = vadd.f32 %v13248, %v13563
  %v13707 = vadd.f32 %v13249, %v13566
  %v13708 = vadd.f32 %v13250, %v13568
  %v13709 = vadd.f32 %v13251, %v13571
  %v13710 = vadd.f32 %v13252, %v13573
  %v13711 = vadd.f32 %v13253, %v13576
  %v13712 = vadd.f32 %v13254, %v13578
  %v13713 = vadd.f32 %v13255, %v13581
  %v13714 = vadd.f32 %v13256, %v13583
  %v13715 = vadd.f32 %v13257, %v13586
  %v13716 = vadd.f32 %v13258, %v13588
  %v13717 = vadd.f32 %v13259, %v13591
  %v13718 = vadd.f32 %v13260, %v13593
  %v13719 = vadd.f32 %v13261, %v13596
  %v13720 = vadd.f32 %v13262, %v13598
  %v13721 = vadd.f32 %v13263, %v13601
  %v13722 = vadd.f32 %v13264, %v13603
  %v13723 = vadd.f32 %v13265, %v13606
  %v13724 = vadd.f32 %v13266, %v13608
  %v13725 = vadd.f32 %v13267, %v13611
  %v13726 = vadd.f32 %v13268, %v13613
  %v13727 = vadd.f32 %v13269, %v13616
  %v13728 = vadd.f32 %v13270, %v13618
  %v13729 = vadd.f32 %v13271, %v13621
  %v13730 = vadd.f32 %v13272, %v13623
  %v13731 = vadd.f32 %v13273, %v13626
  %v13732 = vadd.f32 %v13274, %v13628
  %v13733 = vadd.f32 %v13275, %v13631
  %v13734 = vadd.f32 %v13276, %v13633
  %v13735 = vadd.f32 %v13277, %v13636
  %v13736 = vadd.f32 %v13278, %v13638
  %v13737 = vadd.f32 %v13279, %v13641
  %v13738 = vadd.f32 %v13280, %v13643
  %v13739 = vadd.f32 %v13281, %v13646
  %v13740 = vadd.f32 %v13282, %v13648
  %v13741 = vadd.f32 %v13283, %v13651
  %v13742 = vadd.f32 %v13284, %v13653
  %v13743 = vadd.f32 %v13285, %v13656
  %v13744 = vadd.f32 %v13286, %v13658
  %v13745 = vadd.f32 %v13287, %v13661
  %v13746 = vadd.f32 %v13288, %v13663
  %v13747 = vadd.f32 %v13289, %v13666
  %v13748 = vadd.f32 %v13290, %v13668
  %v13749 = vadd.f32 %v13291, %v13671
  %v13750 = vadd.f32 %v13292, %v13673
  %v13751 = vadd.f32 %v13293, %v13676
  %v13752 = vadd.f32 %v13294, %v13678
  %v13753 = vadd.f32 %v13295, %v13681
  %v13754 = vadd.f32 %v13296, %v13683
  %v13755 = vadd.f32 %v13297, %v13686
  %v13756 = vadd.f32 %v13298, %v13688
  %v13757 = vadd.f32 %v13299, %v13691
  %v13758 = vadd.f32 %v13300, %v13693
  %v13759 = vld [vmem:[%s8] sm:$0x1]
  %v13761 = vperm.slane %v13759, 0
  %v13763 = vadd.f32 %v13695, %v13761
  %v13764 = vadd.f32 %v13696, %v13761
  %v13765 = vadd.f32 %v13697, %v13761
  %v13766 = vadd.f32 %v13698, %v13761
  %v13767 = vadd.f32 %v13699, %v13761
  %v13768 = vadd.f32 %v13700, %v13761
  %v13769 = vadd.f32 %v13701, %v13761
  %v13770 = vadd.f32 %v13702, %v13761
  %v13771 = vadd.f32 %v13703, %v13761
  %v13772 = vadd.f32 %v13704, %v13761
  %v13773 = vadd.f32 %v13705, %v13761
  %v13774 = vadd.f32 %v13706, %v13761
  %v13775 = vadd.f32 %v13707, %v13761
  %v13776 = vadd.f32 %v13708, %v13761
  %v13777 = vadd.f32 %v13709, %v13761
  %v13778 = vadd.f32 %v13710, %v13761
  %v13779 = vadd.f32 %v13711, %v13761
  %v13780 = vadd.f32 %v13712, %v13761
  %v13781 = vadd.f32 %v13713, %v13761
  %v13782 = vadd.f32 %v13714, %v13761
  %v13783 = vadd.f32 %v13715, %v13761
  %v13784 = vadd.f32 %v13716, %v13761
  %v13785 = vadd.f32 %v13717, %v13761
  %v13786 = vadd.f32 %v13718, %v13761
  %v13787 = vadd.f32 %v13719, %v13761
  %v13788 = vadd.f32 %v13720, %v13761
  %v13789 = vadd.f32 %v13721, %v13761
  %v13790 = vadd.f32 %v13722, %v13761
  %v13791 = vadd.f32 %v13723, %v13761
  %v13792 = vadd.f32 %v13724, %v13761
  %v13793 = vadd.f32 %v13725, %v13761
  %v13794 = vadd.f32 %v13726, %v13761
  %v13795 = vadd.f32 %v13727, %v13761
  %v13796 = vadd.f32 %v13728, %v13761
  %v13797 = vadd.f32 %v13729, %v13761
  %v13798 = vadd.f32 %v13730, %v13761
  %v13799 = vadd.f32 %v13731, %v13761
  %v13800 = vadd.f32 %v13732, %v13761
  %v13801 = vadd.f32 %v13733, %v13761
  %v13802 = vadd.f32 %v13734, %v13761
  %v13803 = vadd.f32 %v13735, %v13761
  %v13804 = vadd.f32 %v13736, %v13761
  %v13805 = vadd.f32 %v13737, %v13761
  %v13806 = vadd.f32 %v13738, %v13761
  %v13807 = vadd.f32 %v13739, %v13761
  %v13808 = vadd.f32 %v13740, %v13761
  %v13809 = vadd.f32 %v13741, %v13761
  %v13810 = vadd.f32 %v13742, %v13761
  %v13811 = vadd.f32 %v13743, %v13761
  %v13812 = vadd.f32 %v13744, %v13761
  %v13813 = vadd.f32 %v13745, %v13761
  %v13814 = vadd.f32 %v13746, %v13761
  %v13815 = vadd.f32 %v13747, %v13761
  %v13816 = vadd.f32 %v13748, %v13761
  %v13817 = vadd.f32 %v13749, %v13761
  %v13818 = vadd.f32 %v13750, %v13761
  %v13819 = vadd.f32 %v13751, %v13761
  %v13820 = vadd.f32 %v13752, %v13761
  %v13821 = vadd.f32 %v13753, %v13761
  %v13822 = vadd.f32 %v13754, %v13761
  %v13823 = vadd.f32 %v13755, %v13761
  %v13824 = vadd.f32 %v13756, %v13761
  %v13825 = vadd.f32 %v13757, %v13761
  %v13826 = vadd.f32 %v13758, %v13761
  %vm13827 = vcmask 64512
  %13828 = vst.msk [vmem:[%s9] sm:$0xff] %vm13827, %v13763
  %13829 = vst.msk [vmem:[%s9 + $0x8] sm:$0xff] %vm13827, %v13764
  %13830 = vst.msk [vmem:[%s9 + $0x10] sm:$0xff] %vm13827, %v13765
  %13831 = vst.msk [vmem:[%s9 + $0x18] sm:$0xff] %vm13827, %v13766
  %13832 = vst.msk [vmem:[%s9 + $0x20] sm:$0xff] %vm13827, %v13767
  %13833 = vst.msk [vmem:[%s9 + $0x28] sm:$0xff] %vm13827, %v13768
  %13834 = vst.msk [vmem:[%s9 + $0x30] sm:$0xff] %vm13827, %v13769
  %13835 = vst.msk [vmem:[%s9 + $0x38] sm:$0xff] %vm13827, %v13770
  %13836 = vst.msk [vmem:[%s9 + $0x40] sm:$0xff] %vm13827, %v13771
  %13837 = vst.msk [vmem:[%s9 + $0x48] sm:$0xff] %vm13827, %v13772
  %13838 = vst.msk [vmem:[%s9 + $0x50] sm:$0xff] %vm13827, %v13773
  %13839 = vst.msk [vmem:[%s9 + $0x58] sm:$0xff] %vm13827, %v13774
  %13840 = vst.msk [vmem:[%s9 + $0x60] sm:$0xff] %vm13827, %v13775
  %13841 = vst.msk [vmem:[%s9 + $0x68] sm:$0xff] %vm13827, %v13776
  %13842 = vst.msk [vmem:[%s9 + $0x70] sm:$0xff] %vm13827, %v13777
  %13843 = vst.msk [vmem:[%s9 + $0x78] sm:$0xff] %vm13827, %v13778
  %13844 = vst.msk [vmem:[%s9 + $0x80] sm:$0xff] %vm13827, %v13779
  %13845 = vst.msk [vmem:[%s9 + $0x88] sm:$0xff] %vm13827, %v13780
  %13846 = vst.msk [vmem:[%s9 + $0x90] sm:$0xff] %vm13827, %v13781
  %13847 = vst.msk [vmem:[%s9 + $0x98] sm:$0xff] %vm13827, %v13782
  %13848 = vst.msk [vmem:[%s9 + $0xa0] sm:$0xff] %vm13827, %v13783
  %13849 = vst.msk [vmem:[%s9 + $0xa8] sm:$0xff] %vm13827, %v13784
  %13850 = vst.msk [vmem:[%s9 + $0xb0] sm:$0xff] %vm13827, %v13785
  %13851 = vst.msk [vmem:[%s9 + $0xb8] sm:$0xff] %vm13827, %v13786
  %13852 = vst.msk [vmem:[%s9 + $0xc0] sm:$0xff] %vm13827, %v13787
  %13853 = vst.msk [vmem:[%s9 + $0xc8] sm:$0xff] %vm13827, %v13788
  %13854 = vst.msk [vmem:[%s9 + $0xd0] sm:$0xff] %vm13827, %v13789
  %13855 = vst.msk [vmem:[%s9 + $0xd8] sm:$0xff] %vm13827, %v13790
  %13856 = vst.msk [vmem:[%s9 + $0xe0] sm:$0xff] %vm13827, %v13791
  %13857 = vst.msk [vmem:[%s9 + $0xe8] sm:$0xff] %vm13827, %v13792
  %13858 = vst.msk [vmem:[%s9 + $0xf0] sm:$0xff] %vm13827, %v13793
  %13859 = vst.msk [vmem:[%s9 + $0xf8] sm:$0xff] %vm13827, %v13794
  %13860 = vst.msk [vmem:[%s9 + $0x100] sm:$0xff] %vm13827, %v13795
  %13861 = vst.msk [vmem:[%s9 + $0x108] sm:$0xff] %vm13827, %v13796
  %13862 = vst.msk [vmem:[%s9 + $0x110] sm:$0xff] %vm13827, %v13797
  %13863 = vst.msk [vmem:[%s9 + $0x118] sm:$0xff] %vm13827, %v13798
  %13864 = vst.msk [vmem:[%s9 + $0x120] sm:$0xff] %vm13827, %v13799
  %13865 = vst.msk [vmem:[%s9 + $0x128] sm:$0xff] %vm13827, %v13800
  %13866 = vst.msk [vmem:[%s9 + $0x130] sm:$0xff] %vm13827, %v13801
  %13867 = vst.msk [vmem:[%s9 + $0x138] sm:$0xff] %vm13827, %v13802
  %13868 = vst.msk [vmem:[%s9 + $0x140] sm:$0xff] %vm13827, %v13803
  %13869 = vst.msk [vmem:[%s9 + $0x148] sm:$0xff] %vm13827, %v13804
  %13870 = vst.msk [vmem:[%s9 + $0x150] sm:$0xff] %vm13827, %v13805
  %13871 = vst.msk [vmem:[%s9 + $0x158] sm:$0xff] %vm13827, %v13806
  %13872 = vst.msk [vmem:[%s9 + $0x160] sm:$0xff] %vm13827, %v13807
  %13873 = vst.msk [vmem:[%s9 + $0x168] sm:$0xff] %vm13827, %v13808
  %13874 = vst.msk [vmem:[%s9 + $0x170] sm:$0xff] %vm13827, %v13809
  %13875 = vst.msk [vmem:[%s9 + $0x178] sm:$0xff] %vm13827, %v13810
  %13876 = vst.msk [vmem:[%s9 + $0x180] sm:$0xff] %vm13827, %v13811
  %13877 = vst.msk [vmem:[%s9 + $0x188] sm:$0xff] %vm13827, %v13812
  %13878 = vst.msk [vmem:[%s9 + $0x190] sm:$0xff] %vm13827, %v13813
  %13879 = vst.msk [vmem:[%s9 + $0x198] sm:$0xff] %vm13827, %v13814
  %13880 = vst.msk [vmem:[%s9 + $0x1a0] sm:$0xff] %vm13827, %v13815
  %13881 = vst.msk [vmem:[%s9 + $0x1a8] sm:$0xff] %vm13827, %v13816
  %13882 = vst.msk [vmem:[%s9 + $0x1b0] sm:$0xff] %vm13827, %v13817
  %13883 = vst.msk [vmem:[%s9 + $0x1b8] sm:$0xff] %vm13827, %v13818
  %13884 = vst.msk [vmem:[%s9 + $0x1c0] sm:$0xff] %vm13827, %v13819
  %13885 = vst.msk [vmem:[%s9 + $0x1c8] sm:$0xff] %vm13827, %v13820
  %13886 = vst.msk [vmem:[%s9 + $0x1d0] sm:$0xff] %vm13827, %v13821
  %13887 = vst.msk [vmem:[%s9 + $0x1d8] sm:$0xff] %vm13827, %v13822
  %13888 = vst.msk [vmem:[%s9 + $0x1e0] sm:$0xff] %vm13827, %v13823
  %13889 = vst.msk [vmem:[%s9 + $0x1e8] sm:$0xff] %vm13827, %v13824
  %13890 = vst.msk [vmem:[%s9 + $0x1f0] sm:$0xff] %vm13827, %v13825
  %13891 = vst.msk [vmem:[%s9 + $0x1f8] sm:$0xff] %vm13827, %v13826
  // Predicated region
  $region45: #{tpu_custom_call.1} parent=0 // pred_check
    _
  $region46: #{tpu_custom_call.1} parent=0 // pred_check_branch
    %13893 = sbr.rel (0) target = $region48
  $region47: #{tpu_custom_call.1} parent=0 // pred_region
    _
  $region48: #{tpu_custom_call.1} parent=0 // pred_fallthru
    _
  // Predicated region
  $region49: #{tpu_custom_call.1} parent=0 // pred_check
    _
  $region50: #{tpu_custom_call.1} parent=0 // pred_check_branch
    %13895 = sbr.rel (0) target = $region52
  $region51: #{tpu_custom_call.1} parent=0 // pred_region
    _
  $region52: #{tpu_custom_call.1} parent=0 // pred_fallthru
    _

</llo_original>
